<compile_context>
chip_gen: v7x
topology: tpu7x:2x2x1
jax: 0.10.0
libtpu: 0.0.40
codegen_flags: <defaults>
</compile_context>

<pallas_src>
import math
import functools

import jax
import jax.numpy as jnp
from jax.experimental import pallas as pl
from jax.experimental.pallas import tpu as pltpu


def _decoder_layer_kernel(
    # activations / masks
    xq_ref, xkv_ref, enc_ref, tmask_ref, smask_ref,
    # self-attention weights ([in, out], full width)
    swq_ref, sbq_ref, swk_ref, sbk_ref, swv_ref, sbv_ref, swo_ref, sbo_ref,
    # cross-attention weights
    cwq_ref, cbq_ref, cwk_ref, cbk_ref, cwv_ref, cbv_ref, cwo_ref, cbo_ref,
    # feed-forward weights
    w1_ref, b1_ref, w2_ref, b2_ref,
    # layer norms
    g1_ref, be1_ref, g2_ref, be2_ref, g3_ref, be3_ref,
    # output
    out_ref,
    # scratch: per-batch K/V caches (persist across the query tiles of one batch elem)
    sk_ref, sv_ref, ck_ref, cv_ref,
    *, num_heads, d_k, compute_dtype,
):
    f32 = jnp.float32
    cdt = compute_dtype
    H = num_heads
    scale = 1.0 / math.sqrt(d_k)

    # ---- K/V projections: computed once per batch element (query-tile 0 only) -------
    @pl.when(pl.program_id(1) == 0)
    def _():
        xkv = xkv_ref[0]          # (Lt, D) already in compute dtype
        enc = enc_ref[0]          # (Ls, D) already in compute dtype

        def proj(a, w_ref, b_ref):
            # Full-width (L, D) @ (D, D) matmul, f32 accumulation, stored in cdt.
            return (jnp.dot(a, w_ref[...], preferred_element_type=f32)
                    + b_ref[...]).astype(cdt)

        sk_ref[...] = proj(xkv, swk_ref, sbk_ref)
        sv_ref[...] = proj(xkv, swv_ref, sbv_ref)
        ck_ref[...] = proj(enc, cwk_ref, cbk_ref)
        cv_ref[...] = proj(enc, cwv_ref, cbv_ref)

    xq = xq_ref[0].astype(f32)                    # (blk_q, D)  query tile (residual path)
    # Hoist the mask compare out of the per-head loop (one compare per tile).
    tkeep = tmask_ref[0] != 0                     # (blk_q, Lt) bool, 0 = masked
    skeep = smask_ref[0] != 0                     # (blk_q, Ls) bool

    def attention(q_in, wq_ref, bq_ref, k_cache_ref, v_cache_ref, wo_ref, bo_ref, keep):
        # Full-width, lane-dense Q projection on the MXU: (Lq, D) @ (D, D).
        Q = jnp.dot(q_in.astype(cdt), wq_ref[...], preferred_element_type=f32) + bq_ref[...]
        Q = (Q * scale).astype(cdt)               # pre-scale Q once, not the (Lq, Lk) scores
        K = k_cache_ref[...]                      # (Lk, D) compute dtype (cached per batch)
        V = v_cache_ref[...]

        # Per-head scores / softmax / P@V.  These contractions are inherently
        # d_k-narrow per head; the static unrolled loop over H is the same MXU work
        # as a leading-batch dot_general without any head-replicated intermediates.
        heads = []
        for h in range(H):
            lo, hi = h * d_k, (h + 1) * d_k
            q_h, k_h, v_h = Q[:, lo:hi], K[:, lo:hi], V[:, lo:hi]
            # scores = q_h @ k_h^T without materializing a transpose.
            s = jax.lax.dot_general(q_h, k_h, (((1,), (1,)), ((), ())),
                                    preferred_element_type=f32)        # (Lq, Lk)
            # Exact masked_fill(mask == 0, -1e9) semantics (also for fully-masked rows).
            s = jnp.where(keep, s, -1000000000.0)
            m = jnp.max(s, axis=-1, keepdims=True)
            e = jnp.exp(s - m)
            p = e * pl.reciprocal(jnp.sum(e, axis=-1, keepdims=True), approx=True)
            heads.append(jnp.dot(p.astype(cdt), v_h,
                                 preferred_element_type=f32).astype(cdt))   # (Lq, d_k)

        o = jnp.concatenate(heads, axis=-1)       # combine_heads -> (Lq, D)
        # Single full-width output projection (reduction depth = D) replaces the old
        # per-head partial products + VALU head-sum.
        return jnp.dot(o, wo_ref[...], preferred_element_type=f32) + bo_ref[...]

    def layer_norm(v, g_ref, b_ref):
        mean = jnp.mean(v, axis=-1, keepdims=True)
        var = jnp.mean((v - mean) ** 2, axis=-1, keepdims=True)
        return (v - mean) * jax.lax.rsqrt(var + 1e-5) * g_ref[...] + b_ref[...]

    # --- self attention + residual + norm1 ---
    sa = attention(xq, swq_ref, sbq_ref, sk_ref, sv_ref, swo_ref, sbo_ref, tkeep)
    x1 = layer_norm(xq + sa, g1_ref, be1_ref)

    # --- cross attention + residual + norm2 ---
    ca = attention(x1, cwq_ref, cbq_ref, ck_ref, cv_ref, cwo_ref, cbo_ref, skeep)
    x2 = layer_norm(x1 + ca, g2_ref, be2_ref)

    # --- position-wise feed-forward + residual + norm3 ---
    h = jnp.maximum(
        jnp.dot(x2.astype(cdt), w1_ref[...], preferred_element_type=f32) + b1_ref[...], 0.0)
    ff = jnp.dot(h.astype(cdt), w2_ref[...], preferred_element_type=f32) + b2_ref[...]
    x3 = layer_norm(x2 + ff, g3_ref, be3_ref)

    out_ref[0] = x3.astype(out_ref.dtype)


def _vmem_capacity_bytes():
    """Physical per-core VMEM (generation-aware); falls back to 128 MiB."""
    try:
        info = pltpu.get_tpu_info()
        cap = getattr(info, "vmem_capacity_bytes", None)
        if cap:
            return int(cap)
    except Exception:
        pass
    return 128 * 1024 * 1024


def _pick_blk_q(Lt, cap):
    """Largest divisor of Lt (preferring multiples of 8) not exceeding `cap`."""
    if Lt <= cap:
        return Lt
    best = 0
    for cand in range(cap, 7, -1):
        if Lt % cand == 0:
            if cand % 8 == 0:
                return cand
            if best == 0:
                best = cand
    # TODO(synk): for awkward (e.g. prime) Lt use a cdiv grid with a masked tail tile
    # instead of collapsing to a single block.
    return best if best else Lt


def decoder_layer(x, enc_output, src_mask, tgt_mask, params, *, num_heads,
                  compute_dtype=jnp.bfloat16, blk_q=None):
    B, Lt, D = x.shape
    _, Ls, _ = enc_output.shape
    d_ff = params["w1"].shape[1]
    assert D % num_heads == 0, "d_model must be divisible by num_heads"
    d_k = D // num_heads
    f32 = jnp.float32
    cdt = compute_dtype

    # ---- generation-aware budgeting -------------------------------------------------
    vmem_cap = _vmem_capacity_bytes()
    vmem_limit = int(max(32 * 1024 * 1024, min(vmem_cap * 3 // 4, 112 * 1024 * 1024)))
    q_cap = 256 if vmem_cap >= 96 * 1024 * 1024 else 128     # smaller tiles on 64 MiB v7x

    if blk_q is None or blk_q <= 0 or blk_q > Lt or Lt % blk_q != 0:
        blk_q = _pick_blk_q(Lt, q_cap)
    nq = Lt // blk_q

    # Masks as int32 (0 = masked).  int8 would cut traffic further but needs
    # 32-row-aligned query tiles for the packed sublane tiling.
    tgt_m = (tgt_mask != 0).astype(jnp.int32)
    src_m = (src_mask != 0).astype(jnp.int32)

    def wcast(name):
        return params[name].astype(cdt)

    def fcast(name):
        return params[name].astype(f32)

    args = [
        x,                          # query tiles (kept in x.dtype for the residual path)
        x.astype(cdt),              # self-attn K/V source, pre-cast (halved HBM traffic)
        enc_output.astype(cdt),     # cross-attn K/V source, pre-cast
        tgt_m, src_m,
        wcast("swq"), fcast("sbq"), wcast("swk"), fcast("sbk"),
        wcast("swv"), fcast("sbv"), wcast("swo"), fcast("sbo"),
        wcast("cwq"), fcast("cbq"), wcast("cwk"), fcast("cbk"),
        wcast("cwv"), fcast("cbv"), wcast("cwo"), fcast("cbo"),
        wcast("w1"), fcast("b1"), wcast("w2"), fcast("b2"),
        fcast("g1"), fcast("be1"), fcast("g2"), fcast("be2"), fcast("g3"), fcast("be3"),
    ]

    attn_shapes = [(D, D), (1, D)] * 4                         # wq,bq,wk,bk,wv,bv,wo,bo
    const_shapes = (attn_shapes + attn_shapes
                    + [(D, d_ff), (1, d_ff), (d_ff, D), (1, D)]
                    + [(1, D)] * 6)

    def build_in_specs(single_buffer_consts):
        specs = [
            pl.BlockSpec((1, blk_q, D), lambda b, q: (b, q, 0)),    # x (query tile)
            pl.BlockSpec((1, Lt, D), lambda b, q: (b, 0, 0)),       # x (self-attn K/V src)
            pl.BlockSpec((1, Ls, D), lambda b, q: (b, 0, 0)),       # enc_output
            pl.BlockSpec((1, blk_q, Lt), lambda b, q: (b, q, 0)),   # tgt mask rows
            pl.BlockSpec((1, blk_q, Ls), lambda b, q: (b, q, 0)),   # src mask rows
        ]
        for shp in const_shapes:
            if single_buffer_consts:
                # Whole array resident once in VMEM (no per-step double-buffered copy).
                specs.append(pl.BlockSpec(memory_space=pltpu.MemorySpace.VMEM))
            else:
                nd = len(shp)
                specs.append(pl.BlockSpec(shp, lambda b, q, _nd=nd: (0,) * _nd))
        return specs

    out_spec = pl.BlockSpec((1, blk_q, D), lambda b, q: (b, q, 0))

    scratch = [
        pltpu.VMEM((Lt, D), cdt), pltpu.VMEM((Lt, D), cdt),   # self-attn K, V caches
        pltpu.VMEM((Ls, D), cdt), pltpu.VMEM((Ls, D), cdt),   # cross-attn K, V caches
    ]

    kernel = functools.partial(_decoder_layer_kernel, num_heads=num_heads, d_k=d_k,
                               compute_dtype=cdt)

    def run(single_buffer_consts):
        return pl.pallas_call(
            kernel,
            out_shape=jax.ShapeDtypeStruct((B, Lt, D), x.dtype),
            grid=(B, nq),
            in_specs=build_in_specs(single_buffer_consts),
            out_specs=out_spec,
            scratch_shapes=scratch,
            compiler_params=pltpu.CompilerParams(
                # Batch axis may be split across TensorCores; the query-tile axis must
                # stay sequential because the K/V caches are built at q == 0.
                # TODO(synk): for B == 1 on v7x, add another parallel split (heads/d_ff)
                # so both TensorCores stay busy.
                dimension_semantics=("parallel", "arbitrary"),
                vmem_limit_bytes=vmem_limit,
            ),
        )(*args)

    try:
        return run(True)    # single-buffered, whole-array VMEM weights
    except Exception:
        # Portability fallback: constant-index blocked weight specs (double-buffered).
        return run(False)


def _reference_decoder_layer(x, enc, src_mask, tgt_mask, p, num_heads):
    """Pure-JAX f32 reference mirroring the PyTorch forward (eval mode)."""
    D = x.shape[-1]
    d_k = D // num_heads

    def mha(q_in, kv_in, wq, bq, wk, bk, wv, bv, wo, bo, mask):
        B, Lq, _ = q_in.shape
        Lk = kv_in.shape[1]
        Q = (q_in @ wq + bq).reshape(B, Lq, num_heads, d_k).transpose(0, 2, 1, 3)
        K = (kv_in @ wk + bk).reshape(B, Lk, num_heads, d_k).transpose(0, 2, 1, 3)
        V = (kv_in @ wv + bv).reshape(B, Lk, num_heads, d_k).transpose(0, 2, 1, 3)
        sc = jnp.einsum("bhqd,bhkd->bhqk", Q, K) / math.sqrt(d_k)
        sc = jnp.where(mask[:, None] == 0, -1000000000.0, sc)
        pr = jax.nn.softmax(sc, axis=-1)
        o = jnp.einsum("bhqk,bhkd->bhqd", pr, V).transpose(0, 2, 1, 3).reshape(B, Lq, D)
        return o @ wo + bo

    def ln(v, g, b):
        m = jnp.mean(v, -1, keepdims=True)
        var = jnp.mean((v - m) ** 2, -1, keepdims=True)
        return (v - m) / jnp.sqrt(var + 1e-5) * g + b

    sa = mha(x, x, p["swq"], p["sbq"], p["swk"], p["sbk"], p["swv"], p["sbv"],
             p["swo"], p["sbo"], tgt_mask)
    x1 = ln(x + sa, p["g1"], p["be1"])
    ca = mha(x1, enc, p["cwq"], p["cbq"], p["cwk"], p["cbk"], p["cwv"], p["cbv"],
             p["cwo"], p["cbo"], src_mask)
    x2 = ln(x1 + ca, p["g2"], p["be2"])
    ff = jnp.maximum(x2 @ p["w1"] + p["b1"], 0.0) @ p["w2"] + p["b2"]
    return ln(x2 + ff, p["g3"], p["be3"])


if __name__ == "__main__":
    # Small shapes consistent with the module.
    B, Lt, Ls = 2, 16, 16
    D, NUM_HEADS, D_FF = 32, 4, 64

    key = jax.random.PRNGKey(0)
    keys = iter(jax.random.split(key, 64))

    def w(shape, scale=0.05):
        return (scale * jax.random.normal(next(keys), shape)).astype(jnp.float32)

    params = {}
    # attention linear layers (weights stored [in, out] = W^T of torch Linear)
    for pre in ("s", "c"):
        for nm in ("q", "k", "v", "o"):
            params[f"{pre}w{nm}"] = w((D, D))
            params[f"{pre}b{nm}"] = w((1, D))
    # feed-forward
    params["w1"], params["b1"] = w((D, D_FF)), w((1, D_FF))
    params["w2"], params["b2"] = w((D_FF, D)), w((1, D))
    # layer norms (gamma=1, beta=0 like torch defaults)
    for i in (1, 2, 3):
        params[f"g{i}"] = jnp.ones((1, D), jnp.float32)
        params[f"be{i}"] = jnp.zeros((1, D), jnp.float32)

    x = jax.random.normal(next(keys), (B, Lt, D), dtype=jnp.float32)
    enc_output = jax.random.normal(next(keys), (B, Ls, D), dtype=jnp.float32)
    # tgt_mask: causal (B, Lt, Lt); src_mask: all-visible (B, Lt, Ls); 0 = masked.
    tgt_mask = jnp.broadcast_to(jnp.tril(jnp.ones((Lt, Lt), jnp.float32)), (B, Lt, Lt))
    src_mask = jnp.ones((B, Lt, Ls), jnp.float32)

    ref = _reference_decoder_layer(x, enc_output, src_mask, tgt_mask, params, NUM_HEADS)

    # f32 compute path with explicit query tiling (blk_q=8 -> 2 tiles): exercises the
    # per-batch K/V caching + pl.when path.  Tight tolerance (only the approx
    # reciprocal differs from the reference).
    out_f32 = decoder_layer(x, enc_output, src_mask, tgt_mask, params,
                            num_heads=NUM_HEADS, compute_dtype=jnp.float32, blk_q=8)
    out_f32 = jax.block_until_ready(out_f32)
    assert out_f32.shape == (B, Lt, D)
    assert jnp.allclose(out_f32, ref, atol=5e-3, rtol=5e-3), "f32 kernel mismatch vs reference"

    # Default bf16 MXU path (f32 accumulation): looser tolerance.
    out_bf16 = decoder_layer(x, enc_output, src_mask, tgt_mask, params, num_heads=NUM_HEADS)
    out_bf16 = jax.block_until_ready(out_bf16)
    assert out_bf16.shape == (B, Lt, D)
    assert jnp.allclose(out_bf16, ref, atol=5e-2, rtol=5e-2), "bf16 kernel mismatch vs reference"

    print("KERNEL_OK")
</pallas_src>

<mosaic_0001>
module attributes {stable_mosaic.version = 11 : i64} {
  func.func @_decoder_layer_kernel(%arg0: i32, %arg1: i32, %arg2: memref<1x8x32xf32, #tpu.memory_space<vmem>>, %arg3: memref<1x16x32xf32, #tpu.memory_space<vmem>>, %arg4: memref<1x16x32xf32, #tpu.memory_space<vmem>>, %arg5: memref<1x8x16xi32, #tpu.memory_space<vmem>>, %arg6: memref<1x8x16xi32, #tpu.memory_space<vmem>>, %arg7: memref<32x32xf32, #tpu.memory_space<vmem>>, %arg8: memref<1x32xf32, #tpu.memory_space<vmem>>, %arg9: memref<32x32xf32, #tpu.memory_space<vmem>>, %arg10: memref<1x32xf32, #tpu.memory_space<vmem>>, %arg11: memref<32x32xf32, #tpu.memory_space<vmem>>, %arg12: memref<1x32xf32, #tpu.memory_space<vmem>>, %arg13: memref<32x32xf32, #tpu.memory_space<vmem>>, %arg14: memref<1x32xf32, #tpu.memory_space<vmem>>, %arg15: memref<32x32xf32, #tpu.memory_space<vmem>>, %arg16: memref<1x32xf32, #tpu.memory_space<vmem>>, %arg17: memref<32x32xf32, #tpu.memory_space<vmem>>, %arg18: memref<1x32xf32, #tpu.memory_space<vmem>>, %arg19: memref<32x32xf32, #tpu.memory_space<vmem>>, %arg20: memref<1x32xf32, #tpu.memory_space<vmem>>, %arg21: memref<32x32xf32, #tpu.memory_space<vmem>>, %arg22: memref<1x32xf32, #tpu.memory_space<vmem>>, %arg23: memref<32x64xf32, #tpu.memory_space<vmem>>, %arg24: memref<1x64xf32, #tpu.memory_space<vmem>>, %arg25: memref<64x32xf32, #tpu.memory_space<vmem>>, %arg26: memref<1x32xf32, #tpu.memory_space<vmem>>, %arg27: memref<1x32xf32, #tpu.memory_space<vmem>>, %arg28: memref<1x32xf32, #tpu.memory_space<vmem>>, %arg29: memref<1x32xf32, #tpu.memory_space<vmem>>, %arg30: memref<1x32xf32, #tpu.memory_space<vmem>>, %arg31: memref<1x32xf32, #tpu.memory_space<vmem>>, %arg32: memref<1x32xf32, #tpu.memory_space<vmem>>, %arg33: memref<1x8x32xf32, #tpu.memory_space<vmem>>, %arg34: memref<16x32xf32, #tpu.memory_space<vmem>>, %arg35: memref<16x32xf32, #tpu.memory_space<vmem>>, %arg36: memref<16x32xf32, #tpu.memory_space<vmem>>, %arg37: memref<16x32xf32, #tpu.memory_space<vmem>>) attributes {dimension_semantics = [#tpu.dimension_semantics<parallel>, #tpu.dimension_semantics<arbitrary>], iteration_bounds = array<i64: 2, 2>, scalar_prefetch = 0 : i64, scratch_operands = 4 : i64, tpu.core_type = #tpu.core_type<tc>, window_params = [{transform_indices = @transform_0, window_bounds = array<i64: 1, 8, 32>}, {transform_indices = @transform_1, window_bounds = array<i64: 1, 16, 32>}, {transform_indices = @transform_2, window_bounds = array<i64: 1, 16, 32>}, {transform_indices = @transform_3, window_bounds = array<i64: 1, 8, 16>}, {transform_indices = @transform_4, window_bounds = array<i64: 1, 8, 16>}, {pipeline_mode = #tpu.pipeline_mode<synchronous>, transform_indices = @transform_5, window_bounds = array<i64: 32, 32>}, {pipeline_mode = #tpu.pipeline_mode<synchronous>, transform_indices = @transform_6, window_bounds = array<i64: 1, 32>}, {pipeline_mode = #tpu.pipeline_mode<synchronous>, transform_indices = @transform_7, window_bounds = array<i64: 32, 32>}, {pipeline_mode = #tpu.pipeline_mode<synchronous>, transform_indices = @transform_8, window_bounds = array<i64: 1, 32>}, {pipeline_mode = #tpu.pipeline_mode<synchronous>, transform_indices = @transform_9, window_bounds = array<i64: 32, 32>}, {pipeline_mode = #tpu.pipeline_mode<synchronous>, transform_indices = @transform_10, window_bounds = array<i64: 1, 32>}, {pipeline_mode = #tpu.pipeline_mode<synchronous>, transform_indices = @transform_11, window_bounds = array<i64: 32, 32>}, {pipeline_mode = #tpu.pipeline_mode<synchronous>, transform_indices = @transform_12, window_bounds = array<i64: 1, 32>}, {pipeline_mode = #tpu.pipeline_mode<synchronous>, transform_indices = @transform_13, window_bounds = array<i64: 32, 32>}, {pipeline_mode = #tpu.pipeline_mode<synchronous>, transform_indices = @transform_14, window_bounds = array<i64: 1, 32>}, {pipeline_mode = #tpu.pipeline_mode<synchronous>, transform_indices = @transform_15, window_bounds = array<i64: 32, 32>}, {pipeline_mode = #tpu.pipeline_mode<synchronous>, transform_indices = @transform_16, window_bounds = array<i64: 1, 32>}, {pipeline_mode = #tpu.pipeline_mode<synchronous>, transform_indices = @transform_17, window_bounds = array<i64: 32, 32>}, {pipeline_mode = #tpu.pipeline_mode<synchronous>, transform_indices = @transform_18, window_bounds = array<i64: 1, 32>}, {pipeline_mode = #tpu.pipeline_mode<synchronous>, transform_indices = @transform_19, window_bounds = array<i64: 32, 32>}, {pipeline_mode = #tpu.pipeline_mode<synchronous>, transform_indices = @transform_20, window_bounds = array<i64: 1, 32>}, {pipeline_mode = #tpu.pipeline_mode<synchronous>, transform_indices = @transform_21, window_bounds = array<i64: 32, 64>}, {pipeline_mode = #tpu.pipeline_mode<synchronous>, transform_indices = @transform_22, window_bounds = array<i64: 1, 64>}, {pipeline_mode = #tpu.pipeline_mode<synchronous>, transform_indices = @transform_23, window_bounds = array<i64: 64, 32>}, {pipeline_mode = #tpu.pipeline_mode<synchronous>, transform_indices = @transform_24, window_bounds = array<i64: 1, 32>}, {pipeline_mode = #tpu.pipeline_mode<synchronous>, transform_indices = @transform_25, window_bounds = array<i64: 1, 32>}, {pipeline_mode = #tpu.pipeline_mode<synchronous>, transform_indices = @transform_26, window_bounds = array<i64: 1, 32>}, {pipeline_mode = #tpu.pipeline_mode<synchronous>, transform_indices = @transform_27, window_bounds = array<i64: 1, 32>}, {pipeline_mode = #tpu.pipeline_mode<synchronous>, transform_indices = @transform_28, window_bounds = array<i64: 1, 32>}, {pipeline_mode = #tpu.pipeline_mode<synchronous>, transform_indices = @transform_29, window_bounds = array<i64: 1, 32>}, {pipeline_mode = #tpu.pipeline_mode<synchronous>, transform_indices = @transform_30, window_bounds = array<i64: 1, 32>}, {transform_indices = @transform_31, window_bounds = array<i64: 1, 8, 32>}]} {
    %c0_i32 = arith.constant 0 : i32
    %0 = arith.cmpi eq, %arg1, %c0_i32 : i32
    %1 = arith.extui %0 : i1 to i32
    %c0_i32_0 = arith.constant 0 : i32
    %2 = arith.cmpi ne, %1, %c0_i32_0 : i32
    scf.if %2 {
      %c0_121 = arith.constant 0 : index
      %c0_122 = arith.constant 0 : index
      %c0_123 = arith.constant 0 : index
      %269 = vector.load %arg3[%c0_121, %c0_122, %c0_123] : memref<1x16x32xf32, #tpu.memory_space<vmem>>, vector<1x16x32xf32>
      %270 = vector.shape_cast %269 : vector<1x16x32xf32> to vector<16x32xf32>
      %c0_124 = arith.constant 0 : index
      %c0_125 = arith.constant 0 : index
      %c0_126 = arith.constant 0 : index
      %271 = vector.load %arg4[%c0_124, %c0_125, %c0_126] : memref<1x16x32xf32, #tpu.memory_space<vmem>>, vector<1x16x32xf32>
      %272 = vector.shape_cast %271 : vector<1x16x32xf32> to vector<16x32xf32>
      %c0_127 = arith.constant 0 : index
      %c0_128 = arith.constant 0 : index
      %273 = vector.load %arg9[%c0_127, %c0_128] : memref<32x32xf32, #tpu.memory_space<vmem>>, vector<32x32xf32>
      %cst_129 = arith.constant dense<0.000000e+00> : vector<16x32xf32>
      %274 = tpu.matmul %270, %273, %cst_129 {dimension_numbers = #tpu.dot_dimension_numbers<[1], [0], [0], [1], [0, 0, 1, 1], [], []>} : vector<16x32xf32>, vector<32x32xf32>, vector<16x32xf32> -> vector<16x32xf32>
      %c0_130 = arith.constant 0 : index
      %c0_131 = arith.constant 0 : index
      %275 = vector.load %arg10[%c0_130, %c0_131] : memref<1x32xf32, #tpu.memory_space<vmem>>, vector<1x32xf32>
      %276 = vector.broadcast %275 : vector<1x32xf32> to vector<16x32xf32>
      %277 = arith.addf %274, %276 : vector<16x32xf32>
      %c0_132 = arith.constant 0 : index
      %c0_133 = arith.constant 0 : index
      %278 = vector.load %arg34[%c0_132, %c0_133] : memref<16x32xf32, #tpu.memory_space<vmem>>, vector<16x32xf32>
      tpu.vector_store %arg34[%c0_132, %c0_133], %277 {strides = array<i32>} : memref<16x32xf32, #tpu.memory_space<vmem>>, vector<16x32xf32>,
      %c0_134 = arith.constant 0 : index
      %c0_135 = arith.constant 0 : index
      %279 = vector.load %arg11[%c0_134, %c0_135] : memref<32x32xf32, #tpu.memory_space<vmem>>, vector<32x32xf32>
      %cst_136 = arith.constant dense<0.000000e+00> : vector<16x32xf32>
      %280 = tpu.matmul %270, %279, %cst_136 {dimension_numbers = #tpu.dot_dimension_numbers<[1], [0], [0], [1], [0, 0, 1, 1], [], []>} : vector<16x32xf32>, vector<32x32xf32>, vector<16x32xf32> -> vector<16x32xf32>
      %c0_137 = arith.constant 0 : index
      %c0_138 = arith.constant 0 : index
      %281 = vector.load %arg12[%c0_137, %c0_138] : memref<1x32xf32, #tpu.memory_space<vmem>>, vector<1x32xf32>
      %282 = vector.broadcast %281 : vector<1x32xf32> to vector<16x32xf32>
      %283 = arith.addf %280, %282 : vector<16x32xf32>
      %c0_139 = arith.constant 0 : index
      %c0_140 = arith.constant 0 : index
      %284 = vector.load %arg35[%c0_139, %c0_140] : memref<16x32xf32, #tpu.memory_space<vmem>>, vector<16x32xf32>
      tpu.vector_store %arg35[%c0_139, %c0_140], %283 {strides = array<i32>} : memref<16x32xf32, #tpu.memory_space<vmem>>, vector<16x32xf32>,
      %c0_141 = arith.constant 0 : index
      %c0_142 = arith.constant 0 : index
      %285 = vector.load %arg17[%c0_141, %c0_142] : memref<32x32xf32, #tpu.memory_space<vmem>>, vector<32x32xf32>
      %cst_143 = arith.constant dense<0.000000e+00> : vector<16x32xf32>
      %286 = tpu.matmul %272, %285, %cst_143 {dimension_numbers = #tpu.dot_dimension_numbers<[1], [0], [0], [1], [0, 0, 1, 1], [], []>} : vector<16x32xf32>, vector<32x32xf32>, vector<16x32xf32> -> vector<16x32xf32>
      %c0_144 = arith.constant 0 : index
      %c0_145 = arith.constant 0 : index
      %287 = vector.load %arg18[%c0_144, %c0_145] : memref<1x32xf32, #tpu.memory_space<vmem>>, vector<1x32xf32>
      %288 = vector.broadcast %287 : vector<1x32xf32> to vector<16x32xf32>
      %289 = arith.addf %286, %288 : vector<16x32xf32>
      %c0_146 = arith.constant 0 : index
      %c0_147 = arith.constant 0 : index
      %290 = vector.load %arg36[%c0_146, %c0_147] : memref<16x32xf32, #tpu.memory_space<vmem>>, vector<16x32xf32>
      tpu.vector_store %arg36[%c0_146, %c0_147], %289 {strides = array<i32>} : memref<16x32xf32, #tpu.memory_space<vmem>>, vector<16x32xf32>,
      %c0_148 = arith.constant 0 : index
      %c0_149 = arith.constant 0 : index
      %291 = vector.load %arg19[%c0_148, %c0_149] : memref<32x32xf32, #tpu.memory_space<vmem>>, vector<32x32xf32>
      %cst_150 = arith.constant dense<0.000000e+00> : vector<16x32xf32>
      %292 = tpu.matmul %272, %291, %cst_150 {dimension_numbers = #tpu.dot_dimension_numbers<[1], [0], [0], [1], [0, 0, 1, 1], [], []>} : vector<16x32xf32>, vector<32x32xf32>, vector<16x32xf32> -> vector<16x32xf32>
      %c0_151 = arith.constant 0 : index
      %c0_152 = arith.constant 0 : index
      %293 = vector.load %arg20[%c0_151, %c0_152] : memref<1x32xf32, #tpu.memory_space<vmem>>, vector<1x32xf32>
      %294 = vector.broadcast %293 : vector<1x32xf32> to vector<16x32xf32>
      %295 = arith.addf %292, %294 : vector<16x32xf32>
      %c0_153 = arith.constant 0 : index
      %c0_154 = arith.constant 0 : index
      %296 = vector.load %arg37[%c0_153, %c0_154] : memref<16x32xf32, #tpu.memory_space<vmem>>, vector<16x32xf32>
      tpu.vector_store %arg37[%c0_153, %c0_154], %295 {strides = array<i32>} : memref<16x32xf32, #tpu.memory_space<vmem>>, vector<16x32xf32>,
    } else {
    }
    %c0 = arith.constant 0 : index
    %c0_1 = arith.constant 0 : index
    %c0_2 = arith.constant 0 : index
    %3 = vector.load %arg2[%c0, %c0_1, %c0_2] : memref<1x8x32xf32, #tpu.memory_space<vmem>>, vector<1x8x32xf32>
    %4 = vector.shape_cast %3 : vector<1x8x32xf32> to vector<8x32xf32>
    %c0_3 = arith.constant 0 : index
    %c0_4 = arith.constant 0 : index
    %c0_5 = arith.constant 0 : index
    %5 = vector.load %arg5[%c0_3, %c0_4, %c0_5] : memref<1x8x16xi32, #tpu.memory_space<vmem>>, vector<1x8x16xi32>
    %6 = vector.shape_cast %5 : vector<1x8x16xi32> to vector<8x16xi32>
    %c0_i32_6 = arith.constant 0 : i32
    %7 = vector.broadcast %c0_i32_6 : i32 to vector<8x16xi32>
    %8 = arith.cmpi ne, %6, %7 : vector<8x16xi32>
    %c0_7 = arith.constant 0 : index
    %c0_8 = arith.constant 0 : index
    %c0_9 = arith.constant 0 : index
    %9 = vector.load %arg6[%c0_7, %c0_8, %c0_9] : memref<1x8x16xi32, #tpu.memory_space<vmem>>, vector<1x8x16xi32>
    %10 = vector.shape_cast %9 : vector<1x8x16xi32> to vector<8x16xi32>
    %c0_i32_10 = arith.constant 0 : i32
    %11 = vector.broadcast %c0_i32_10 : i32 to vector<8x16xi32>
    %12 = arith.cmpi ne, %10, %11 : vector<8x16xi32>
    %c0_11 = arith.constant 0 : index
    %c0_12 = arith.constant 0 : index
    %13 = vector.load %arg7[%c0_11, %c0_12] : memref<32x32xf32, #tpu.memory_space<vmem>>, vector<32x32xf32>
    %cst = arith.constant dense<0.000000e+00> : vector<8x32xf32>
    %14 = tpu.matmul %4, %13, %cst {dimension_numbers = #tpu.dot_dimension_numbers<[1], [0], [0], [1], [0, 0, 1, 1], [], []>} : vector<8x32xf32>, vector<32x32xf32>, vector<8x32xf32> -> vector<8x32xf32>
    %c0_13 = arith.constant 0 : index
    %c0_14 = arith.constant 0 : index
    %15 = vector.load %arg8[%c0_13, %c0_14] : memref<1x32xf32, #tpu.memory_space<vmem>>, vector<1x32xf32>
    %16 = vector.broadcast %15 : vector<1x32xf32> to vector<8x32xf32>
    %17 = arith.addf %14, %16 : vector<8x32xf32>
    %cst_15 = arith.constant 0.353553385 : f32
    %18 = vector.broadcast %cst_15 : f32 to vector<8x32xf32>
    %19 = arith.mulf %17, %18 : vector<8x32xf32>
    %c0_16 = arith.constant 0 : index
    %c0_17 = arith.constant 0 : index
    %20 = vector.load %arg34[%c0_16, %c0_17] : memref<16x32xf32, #tpu.memory_space<vmem>>, vector<16x32xf32>
    %c0_18 = arith.constant 0 : index
    %c0_19 = arith.constant 0 : index
    %21 = vector.load %arg35[%c0_18, %c0_19] : memref<16x32xf32, #tpu.memory_space<vmem>>, vector<16x32xf32>
    %22 = vector.extract_strided_slice %19 {offsets = [0, 0], sizes = [8, 8], strides = [1, 1]} : vector<8x32xf32> to vector<8x8xf32>
    %23 = vector.extract_strided_slice %20 {offsets = [0, 0], sizes = [16, 8], strides = [1, 1]} : vector<16x32xf32> to vector<16x8xf32>
    %24 = vector.extract_strided_slice %21 {offsets = [0, 0], sizes = [16, 8], strides = [1, 1]} : vector<16x32xf32> to vector<16x8xf32>
    %cst_20 = arith.constant dense<0.000000e+00> : vector<8x16xf32>
    %25 = tpu.matmul %22, %23, %cst_20 {dimension_numbers = #tpu.dot_dimension_numbers<[1], [1], [0], [0], [0, 0, 1, 0], [], []>} : vector<8x8xf32>, vector<16x8xf32>, vector<8x16xf32> -> vector<8x16xf32>
    %cst_21 = arith.constant -1.000000e+09 : f32
    %26 = vector.broadcast %cst_21 : f32 to vector<8x16xf32>
    %27 = arith.select %8, %25, %26 : vector<8x16xi1>, vector<8x16xf32>
    %cst_22 = arith.constant dense<0xFF800000> : vector<8xf32>
    %28 = vector.multi_reduction <maximumf>, %27, %cst_22 [1] : vector<8x16xf32> to vector<8xf32>
    %29 = vector.shape_cast %28 : vector<8xf32> to vector<8x1xf32>
    %30 = vector.broadcast %29 : vector<8x1xf32> to vector<8x16xf32>
    %31 = arith.subf %27, %30 : vector<8x16xf32>
    %32 = math.exp %31 : vector<8x16xf32>
    %cst_23 = arith.constant dense<0.000000e+00> : vector<8xf32>
    %33 = vector.multi_reduction <add>, %32, %cst_23 [1] : vector<8x16xf32> to vector<8xf32>
    %34 = vector.shape_cast %33 : vector<8xf32> to vector<8x1xf32>
    %35 = tpu.reciprocal %34 {approx = true} : vector<8x1xf32> -> vector<8x1xf32>
    %36 = vector.broadcast %35 : vector<8x1xf32> to vector<8x16xf32>
    %37 = arith.mulf %32, %36 : vector<8x16xf32>
    %cst_24 = arith.constant dense<0.000000e+00> : vector<8x8xf32>
    %38 = tpu.matmul %37, %24, %cst_24 {dimension_numbers = #tpu.dot_dimension_numbers<[1], [0], [0], [1], [0, 0, 1, 1], [], []>} : vector<8x16xf32>, vector<16x8xf32>, vector<8x8xf32> -> vector<8x8xf32>
    %39 = vector.extract_strided_slice %19 {offsets = [0, 8], sizes = [8, 8], strides = [1, 1]} : vector<8x32xf32> to vector<8x8xf32>
    %40 = vector.extract_strided_slice %20 {offsets = [0, 8], sizes = [16, 8], strides = [1, 1]} : vector<16x32xf32> to vector<16x8xf32>
    %41 = vector.extract_strided_slice %21 {offsets = [0, 8], sizes = [16, 8], strides = [1, 1]} : vector<16x32xf32> to vector<16x8xf32>
    %cst_25 = arith.constant dense<0.000000e+00> : vector<8x16xf32>
    %42 = tpu.matmul %39, %40, %cst_25 {dimension_numbers = #tpu.dot_dimension_numbers<[1], [1], [0], [0], [0, 0, 1, 0], [], []>} : vector<8x8xf32>, vector<16x8xf32>, vector<8x16xf32> -> vector<8x16xf32>
    %cst_26 = arith.constant -1.000000e+09 : f32
    %43 = vector.broadcast %cst_26 : f32 to vector<8x16xf32>
    %44 = arith.select %8, %42, %43 : vector<8x16xi1>, vector<8x16xf32>
    %cst_27 = arith.constant dense<0xFF800000> : vector<8xf32>
    %45 = vector.multi_reduction <maximumf>, %44, %cst_27 [1] : vector<8x16xf32> to vector<8xf32>
    %46 = vector.shape_cast %45 : vector<8xf32> to vector<8x1xf32>
    %47 = vector.broadcast %46 : vector<8x1xf32> to vector<8x16xf32>
    %48 = arith.subf %44, %47 : vector<8x16xf32>
    %49 = math.exp %48 : vector<8x16xf32>
    %cst_28 = arith.constant dense<0.000000e+00> : vector<8xf32>
    %50 = vector.multi_reduction <add>, %49, %cst_28 [1] : vector<8x16xf32> to vector<8xf32>
    %51 = vector.shape_cast %50 : vector<8xf32> to vector<8x1xf32>
    %52 = tpu.reciprocal %51 {approx = true} : vector<8x1xf32> -> vector<8x1xf32>
    %53 = vector.broadcast %52 : vector<8x1xf32> to vector<8x16xf32>
    %54 = arith.mulf %49, %53 : vector<8x16xf32>
    %cst_29 = arith.constant dense<0.000000e+00> : vector<8x8xf32>
    %55 = tpu.matmul %54, %41, %cst_29 {dimension_numbers = #tpu.dot_dimension_numbers<[1], [0], [0], [1], [0, 0, 1, 1], [], []>} : vector<8x16xf32>, vector<16x8xf32>, vector<8x8xf32> -> vector<8x8xf32>
    %56 = vector.extract_strided_slice %19 {offsets = [0, 16], sizes = [8, 8], strides = [1, 1]} : vector<8x32xf32> to vector<8x8xf32>
    %57 = vector.extract_strided_slice %20 {offsets = [0, 16], sizes = [16, 8], strides = [1, 1]} : vector<16x32xf32> to vector<16x8xf32>
    %58 = vector.extract_strided_slice %21 {offsets = [0, 16], sizes = [16, 8], strides = [1, 1]} : vector<16x32xf32> to vector<16x8xf32>
    %cst_30 = arith.constant dense<0.000000e+00> : vector<8x16xf32>
    %59 = tpu.matmul %56, %57, %cst_30 {dimension_numbers = #tpu.dot_dimension_numbers<[1], [1], [0], [0], [0, 0, 1, 0], [], []>} : vector<8x8xf32>, vector<16x8xf32>, vector<8x16xf32> -> vector<8x16xf32>
    %cst_31 = arith.constant -1.000000e+09 : f32
    %60 = vector.broadcast %cst_31 : f32 to vector<8x16xf32>
    %61 = arith.select %8, %59, %60 : vector<8x16xi1>, vector<8x16xf32>
    %cst_32 = arith.constant dense<0xFF800000> : vector<8xf32>
    %62 = vector.multi_reduction <maximumf>, %61, %cst_32 [1] : vector<8x16xf32> to vector<8xf32>
    %63 = vector.shape_cast %62 : vector<8xf32> to vector<8x1xf32>
    %64 = vector.broadcast %63 : vector<8x1xf32> to vector<8x16xf32>
    %65 = arith.subf %61, %64 : vector<8x16xf32>
    %66 = math.exp %65 : vector<8x16xf32>
    %cst_33 = arith.constant dense<0.000000e+00> : vector<8xf32>
    %67 = vector.multi_reduction <add>, %66, %cst_33 [1] : vector<8x16xf32> to vector<8xf32>
    %68 = vector.shape_cast %67 : vector<8xf32> to vector<8x1xf32>
    %69 = tpu.reciprocal %68 {approx = true} : vector<8x1xf32> -> vector<8x1xf32>
    %70 = vector.broadcast %69 : vector<8x1xf32> to vector<8x16xf32>
    %71 = arith.mulf %66, %70 : vector<8x16xf32>
    %cst_34 = arith.constant dense<0.000000e+00> : vector<8x8xf32>
    %72 = tpu.matmul %71, %58, %cst_34 {dimension_numbers = #tpu.dot_dimension_numbers<[1], [0], [0], [1], [0, 0, 1, 1], [], []>} : vector<8x16xf32>, vector<16x8xf32>, vector<8x8xf32> -> vector<8x8xf32>
    %73 = vector.extract_strided_slice %19 {offsets = [0, 24], sizes = [8, 8], strides = [1, 1]} : vector<8x32xf32> to vector<8x8xf32>
    %74 = vector.extract_strided_slice %20 {offsets = [0, 24], sizes = [16, 8], strides = [1, 1]} : vector<16x32xf32> to vector<16x8xf32>
    %75 = vector.extract_strided_slice %21 {offsets = [0, 24], sizes = [16, 8], strides = [1, 1]} : vector<16x32xf32> to vector<16x8xf32>
    %cst_35 = arith.constant dense<0.000000e+00> : vector<8x16xf32>
    %76 = tpu.matmul %73, %74, %cst_35 {dimension_numbers = #tpu.dot_dimension_numbers<[1], [1], [0], [0], [0, 0, 1, 0], [], []>} : vector<8x8xf32>, vector<16x8xf32>, vector<8x16xf32> -> vector<8x16xf32>
    %cst_36 = arith.constant -1.000000e+09 : f32
    %77 = vector.broadcast %cst_36 : f32 to vector<8x16xf32>
    %78 = arith.select %8, %76, %77 : vector<8x16xi1>, vector<8x16xf32>
    %cst_37 = arith.constant dense<0xFF800000> : vector<8xf32>
    %79 = vector.multi_reduction <maximumf>, %78, %cst_37 [1] : vector<8x16xf32> to vector<8xf32>
    %80 = vector.shape_cast %79 : vector<8xf32> to vector<8x1xf32>
    %81 = vector.broadcast %80 : vector<8x1xf32> to vector<8x16xf32>
    %82 = arith.subf %78, %81 : vector<8x16xf32>
    %83 = math.exp %82 : vector<8x16xf32>
    %cst_38 = arith.constant dense<0.000000e+00> : vector<8xf32>
    %84 = vector.multi_reduction <add>, %83, %cst_38 [1] : vector<8x16xf32> to vector<8xf32>
    %85 = vector.shape_cast %84 : vector<8xf32> to vector<8x1xf32>
    %86 = tpu.reciprocal %85 {approx = true} : vector<8x1xf32> -> vector<8x1xf32>
    %87 = vector.broadcast %86 : vector<8x1xf32> to vector<8x16xf32>
    %88 = arith.mulf %83, %87 : vector<8x16xf32>
    %cst_39 = arith.constant dense<0.000000e+00> : vector<8x8xf32>
    %89 = tpu.matmul %88, %75, %cst_39 {dimension_numbers = #tpu.dot_dimension_numbers<[1], [0], [0], [1], [0, 0, 1, 1], [], []>} : vector<8x16xf32>, vector<16x8xf32>, vector<8x8xf32> -> vector<8x8xf32>
    %90 = tpu.concatenate %38, %55, %72, %89 in 1 : vector<8x8xf32>, vector<8x8xf32>, vector<8x8xf32>, vector<8x8xf32> -> vector<8x32xf32>
    %c0_40 = arith.constant 0 : index
    %c0_41 = arith.constant 0 : index
    %91 = vector.load %arg13[%c0_40, %c0_41] : memref<32x32xf32, #tpu.memory_space<vmem>>, vector<32x32xf32>
    %cst_42 = arith.constant dense<0.000000e+00> : vector<8x32xf32>
    %92 = tpu.matmul %90, %91, %cst_42 {dimension_numbers = #tpu.dot_dimension_numbers<[1], [0], [0], [1], [0, 0, 1, 1], [], []>} : vector<8x32xf32>, vector<32x32xf32>, vector<8x32xf32> -> vector<8x32xf32>
    %c0_43 = arith.constant 0 : index
    %c0_44 = arith.constant 0 : index
    %93 = vector.load %arg14[%c0_43, %c0_44] : memref<1x32xf32, #tpu.memory_space<vmem>>, vector<1x32xf32>
    %94 = vector.broadcast %93 : vector<1x32xf32> to vector<8x32xf32>
    %95 = arith.addf %92, %94 : vector<8x32xf32>
    %96 = arith.addf %4, %95 : vector<8x32xf32>
    %cst_45 = arith.constant dense<0.000000e+00> : vector<8xf32>
    %97 = vector.multi_reduction <add>, %96, %cst_45 [1] : vector<8x32xf32> to vector<8xf32>
    %98 = vector.shape_cast %97 : vector<8xf32> to vector<8x1xf32>
    %cst_46 = arith.constant 3.200000e+01 : f32
    %99 = vector.broadcast %cst_46 : f32 to vector<8x1xf32>
    %100 = arith.divf %98, %99 : vector<8x1xf32>
    %101 = vector.broadcast %100 : vector<8x1xf32> to vector<8x32xf32>
    %102 = arith.subf %96, %101 : vector<8x32xf32>
    %103 = arith.mulf %102, %102 : vector<8x32xf32>
    %cst_47 = arith.constant dense<0.000000e+00> : vector<8xf32>
    %104 = vector.multi_reduction <add>, %103, %cst_47 [1] : vector<8x32xf32> to vector<8xf32>
    %105 = vector.shape_cast %104 : vector<8xf32> to vector<8x1xf32>
    %cst_48 = arith.constant 3.200000e+01 : f32
    %106 = vector.broadcast %cst_48 : f32 to vector<8x1xf32>
    %107 = arith.divf %105, %106 : vector<8x1xf32>
    %108 = vector.broadcast %100 : vector<8x1xf32> to vector<8x32xf32>
    %109 = arith.subf %96, %108 : vector<8x32xf32>
    %cst_49 = arith.constant 9.99999974E-6 : f32
    %110 = vector.broadcast %cst_49 : f32 to vector<8x1xf32>
    %111 = arith.addf %107, %110 : vector<8x1xf32>
    %112 = math.rsqrt %111 : vector<8x1xf32>
    %113 = vector.broadcast %112 : vector<8x1xf32> to vector<8x32xf32>
    %114 = arith.mulf %109, %113 : vector<8x32xf32>
    %c0_50 = arith.constant 0 : index
    %c0_51 = arith.constant 0 : index
    %115 = vector.load %arg27[%c0_50, %c0_51] : memref<1x32xf32, #tpu.memory_space<vmem>>, vector<1x32xf32>
    %116 = vector.broadcast %115 : vector<1x32xf32> to vector<8x32xf32>
    %117 = arith.mulf %114, %116 : vector<8x32xf32>
    %c0_52 = arith.constant 0 : index
    %c0_53 = arith.constant 0 : index
    %118 = vector.load %arg28[%c0_52, %c0_53] : memref<1x32xf32, #tpu.memory_space<vmem>>, vector<1x32xf32>
    %119 = vector.broadcast %118 : vector<1x32xf32> to vector<8x32xf32>
    %120 = arith.addf %117, %119 : vector<8x32xf32>
    %c0_54 = arith.constant 0 : index
    %c0_55 = arith.constant 0 : index
    %121 = vector.load %arg15[%c0_54, %c0_55] : memref<32x32xf32, #tpu.memory_space<vmem>>, vector<32x32xf32>
    %cst_56 = arith.constant dense<0.000000e+00> : vector<8x32xf32>
    %122 = tpu.matmul %120, %121, %cst_56 {dimension_numbers = #tpu.dot_dimension_numbers<[1], [0], [0], [1], [0, 0, 1, 1], [], []>} : vector<8x32xf32>, vector<32x32xf32>, vector<8x32xf32> -> vector<8x32xf32>
    %c0_57 = arith.constant 0 : index
    %c0_58 = arith.constant 0 : index
    %123 = vector.load %arg16[%c0_57, %c0_58] : memref<1x32xf32, #tpu.memory_space<vmem>>, vector<1x32xf32>
    %124 = vector.broadcast %123 : vector<1x32xf32> to vector<8x32xf32>
    %125 = arith.addf %122, %124 : vector<8x32xf32>
    %cst_59 = arith.constant 0.353553385 : f32
    %126 = vector.broadcast %cst_59 : f32 to vector<8x32xf32>
    %127 = arith.mulf %125, %126 : vector<8x32xf32>
    %c0_60 = arith.constant 0 : index
    %c0_61 = arith.constant 0 : index
    %128 = vector.load %arg36[%c0_60, %c0_61] : memref<16x32xf32, #tpu.memory_space<vmem>>, vector<16x32xf32>
    %c0_62 = arith.constant 0 : index
    %c0_63 = arith.constant 0 : index
    %129 = vector.load %arg37[%c0_62, %c0_63] : memref<16x32xf32, #tpu.memory_space<vmem>>, vector<16x32xf32>
    %130 = vector.extract_strided_slice %127 {offsets = [0, 0], sizes = [8, 8], strides = [1, 1]} : vector<8x32xf32> to vector<8x8xf32>
    %131 = vector.extract_strided_slice %128 {offsets = [0, 0], sizes = [16, 8], strides = [1, 1]} : vector<16x32xf32> to vector<16x8xf32>
    %132 = vector.extract_strided_slice %129 {offsets = [0, 0], sizes = [16, 8], strides = [1, 1]} : vector<16x32xf32> to vector<16x8xf32>
    %cst_64 = arith.constant dense<0.000000e+00> : vector<8x16xf32>
    %133 = tpu.matmul %130, %131, %cst_64 {dimension_numbers = #tpu.dot_dimension_numbers<[1], [1], [0], [0], [0, 0, 1, 0], [], []>} : vector<8x8xf32>, vector<16x8xf32>, vector<8x16xf32> -> vector<8x16xf32>
    %cst_65 = arith.constant -1.000000e+09 : f32
    %134 = vector.broadcast %cst_65 : f32 to vector<8x16xf32>
    %135 = arith.select %12, %133, %134 : vector<8x16xi1>, vector<8x16xf32>
    %cst_66 = arith.constant dense<0xFF800000> : vector<8xf32>
    %136 = vector.multi_reduction <maximumf>, %135, %cst_66 [1] : vector<8x16xf32> to vector<8xf32>
    %137 = vector.shape_cast %136 : vector<8xf32> to vector<8x1xf32>
    %138 = vector.broadcast %137 : vector<8x1xf32> to vector<8x16xf32>
    %139 = arith.subf %135, %138 : vector<8x16xf32>
    %140 = math.exp %139 : vector<8x16xf32>
    %cst_67 = arith.constant dense<0.000000e+00> : vector<8xf32>
    %141 = vector.multi_reduction <add>, %140, %cst_67 [1] : vector<8x16xf32> to vector<8xf32>
    %142 = vector.shape_cast %141 : vector<8xf32> to vector<8x1xf32>
    %143 = tpu.reciprocal %142 {approx = true} : vector<8x1xf32> -> vector<8x1xf32>
    %144 = vector.broadcast %143 : vector<8x1xf32> to vector<8x16xf32>
    %145 = arith.mulf %140, %144 : vector<8x16xf32>
    %cst_68 = arith.constant dense<0.000000e+00> : vector<8x8xf32>
    %146 = tpu.matmul %145, %132, %cst_68 {dimension_numbers = #tpu.dot_dimension_numbers<[1], [0], [0], [1], [0, 0, 1, 1], [], []>} : vector<8x16xf32>, vector<16x8xf32>, vector<8x8xf32> -> vector<8x8xf32>
    %147 = vector.extract_strided_slice %127 {offsets = [0, 8], sizes = [8, 8], strides = [1, 1]} : vector<8x32xf32> to vector<8x8xf32>
    %148 = vector.extract_strided_slice %128 {offsets = [0, 8], sizes = [16, 8], strides = [1, 1]} : vector<16x32xf32> to vector<16x8xf32>
    %149 = vector.extract_strided_slice %129 {offsets = [0, 8], sizes = [16, 8], strides = [1, 1]} : vector<16x32xf32> to vector<16x8xf32>
    %cst_69 = arith.constant dense<0.000000e+00> : vector<8x16xf32>
    %150 = tpu.matmul %147, %148, %cst_69 {dimension_numbers = #tpu.dot_dimension_numbers<[1], [1], [0], [0], [0, 0, 1, 0], [], []>} : vector<8x8xf32>, vector<16x8xf32>, vector<8x16xf32> -> vector<8x16xf32>
    %cst_70 = arith.constant -1.000000e+09 : f32
    %151 = vector.broadcast %cst_70 : f32 to vector<8x16xf32>
    %152 = arith.select %12, %150, %151 : vector<8x16xi1>, vector<8x16xf32>
    %cst_71 = arith.constant dense<0xFF800000> : vector<8xf32>
    %153 = vector.multi_reduction <maximumf>, %152, %cst_71 [1] : vector<8x16xf32> to vector<8xf32>
    %154 = vector.shape_cast %153 : vector<8xf32> to vector<8x1xf32>
    %155 = vector.broadcast %154 : vector<8x1xf32> to vector<8x16xf32>
    %156 = arith.subf %152, %155 : vector<8x16xf32>
    %157 = math.exp %156 : vector<8x16xf32>
    %cst_72 = arith.constant dense<0.000000e+00> : vector<8xf32>
    %158 = vector.multi_reduction <add>, %157, %cst_72 [1] : vector<8x16xf32> to vector<8xf32>
    %159 = vector.shape_cast %158 : vector<8xf32> to vector<8x1xf32>
    %160 = tpu.reciprocal %159 {approx = true} : vector<8x1xf32> -> vector<8x1xf32>
    %161 = vector.broadcast %160 : vector<8x1xf32> to vector<8x16xf32>
    %162 = arith.mulf %157, %161 : vector<8x16xf32>
    %cst_73 = arith.constant dense<0.000000e+00> : vector<8x8xf32>
    %163 = tpu.matmul %162, %149, %cst_73 {dimension_numbers = #tpu.dot_dimension_numbers<[1], [0], [0], [1], [0, 0, 1, 1], [], []>} : vector<8x16xf32>, vector<16x8xf32>, vector<8x8xf32> -> vector<8x8xf32>
    %164 = vector.extract_strided_slice %127 {offsets = [0, 16], sizes = [8, 8], strides = [1, 1]} : vector<8x32xf32> to vector<8x8xf32>
    %165 = vector.extract_strided_slice %128 {offsets = [0, 16], sizes = [16, 8], strides = [1, 1]} : vector<16x32xf32> to vector<16x8xf32>
    %166 = vector.extract_strided_slice %129 {offsets = [0, 16], sizes = [16, 8], strides = [1, 1]} : vector<16x32xf32> to vector<16x8xf32>
    %cst_74 = arith.constant dense<0.000000e+00> : vector<8x16xf32>
    %167 = tpu.matmul %164, %165, %cst_74 {dimension_numbers = #tpu.dot_dimension_numbers<[1], [1], [0], [0], [0, 0, 1, 0], [], []>} : vector<8x8xf32>, vector<16x8xf32>, vector<8x16xf32> -> vector<8x16xf32>
    %cst_75 = arith.constant -1.000000e+09 : f32
    %168 = vector.broadcast %cst_75 : f32 to vector<8x16xf32>
    %169 = arith.select %12, %167, %168 : vector<8x16xi1>, vector<8x16xf32>
    %cst_76 = arith.constant dense<0xFF800000> : vector<8xf32>
    %170 = vector.multi_reduction <maximumf>, %169, %cst_76 [1] : vector<8x16xf32> to vector<8xf32>
    %171 = vector.shape_cast %170 : vector<8xf32> to vector<8x1xf32>
    %172 = vector.broadcast %171 : vector<8x1xf32> to vector<8x16xf32>
    %173 = arith.subf %169, %172 : vector<8x16xf32>
    %174 = math.exp %173 : vector<8x16xf32>
    %cst_77 = arith.constant dense<0.000000e+00> : vector<8xf32>
    %175 = vector.multi_reduction <add>, %174, %cst_77 [1] : vector<8x16xf32> to vector<8xf32>
    %176 = vector.shape_cast %175 : vector<8xf32> to vector<8x1xf32>
    %177 = tpu.reciprocal %176 {approx = true} : vector<8x1xf32> -> vector<8x1xf32>
    %178 = vector.broadcast %177 : vector<8x1xf32> to vector<8x16xf32>
    %179 = arith.mulf %174, %178 : vector<8x16xf32>
    %cst_78 = arith.constant dense<0.000000e+00> : vector<8x8xf32>
    %180 = tpu.matmul %179, %166, %cst_78 {dimension_numbers = #tpu.dot_dimension_numbers<[1], [0], [0], [1], [0, 0, 1, 1], [], []>} : vector<8x16xf32>, vector<16x8xf32>, vector<8x8xf32> -> vector<8x8xf32>
    %181 = vector.extract_strided_slice %127 {offsets = [0, 24], sizes = [8, 8], strides = [1, 1]} : vector<8x32xf32> to vector<8x8xf32>
    %182 = vector.extract_strided_slice %128 {offsets = [0, 24], sizes = [16, 8], strides = [1, 1]} : vector<16x32xf32> to vector<16x8xf32>
    %183 = vector.extract_strided_slice %129 {offsets = [0, 24], sizes = [16, 8], strides = [1, 1]} : vector<16x32xf32> to vector<16x8xf32>
    %cst_79 = arith.constant dense<0.000000e+00> : vector<8x16xf32>
    %184 = tpu.matmul %181, %182, %cst_79 {dimension_numbers = #tpu.dot_dimension_numbers<[1], [1], [0], [0], [0, 0, 1, 0], [], []>} : vector<8x8xf32>, vector<16x8xf32>, vector<8x16xf32> -> vector<8x16xf32>
    %cst_80 = arith.constant -1.000000e+09 : f32
    %185 = vector.broadcast %cst_80 : f32 to vector<8x16xf32>
    %186 = arith.select %12, %184, %185 : vector<8x16xi1>, vector<8x16xf32>
    %cst_81 = arith.constant dense<0xFF800000> : vector<8xf32>
    %187 = vector.multi_reduction <maximumf>, %186, %cst_81 [1] : vector<8x16xf32> to vector<8xf32>
    %188 = vector.shape_cast %187 : vector<8xf32> to vector<8x1xf32>
    %189 = vector.broadcast %188 : vector<8x1xf32> to vector<8x16xf32>
    %190 = arith.subf %186, %189 : vector<8x16xf32>
    %191 = math.exp %190 : vector<8x16xf32>
    %cst_82 = arith.constant dense<0.000000e+00> : vector<8xf32>
    %192 = vector.multi_reduction <add>, %191, %cst_82 [1] : vector<8x16xf32> to vector<8xf32>
    %193 = vector.shape_cast %192 : vector<8xf32> to vector<8x1xf32>
    %194 = tpu.reciprocal %193 {approx = true} : vector<8x1xf32> -> vector<8x1xf32>
    %195 = vector.broadcast %194 : vector<8x1xf32> to vector<8x16xf32>
    %196 = arith.mulf %191, %195 : vector<8x16xf32>
    %cst_83 = arith.constant dense<0.000000e+00> : vector<8x8xf32>
    %197 = tpu.matmul %196, %183, %cst_83 {dimension_numbers = #tpu.dot_dimension_numbers<[1], [0], [0], [1], [0, 0, 1, 1], [], []>} : vector<8x16xf32>, vector<16x8xf32>, vector<8x8xf32> -> vector<8x8xf32>
    %198 = tpu.concatenate %146, %163, %180, %197 in 1 : vector<8x8xf32>, vector<8x8xf32>, vector<8x8xf32>, vector<8x8xf32> -> vector<8x32xf32>
    %c0_84 = arith.constant 0 : index
    %c0_85 = arith.constant 0 : index
    %199 = vector.load %arg21[%c0_84, %c0_85] : memref<32x32xf32, #tpu.memory_space<vmem>>, vector<32x32xf32>
    %cst_86 = arith.constant dense<0.000000e+00> : vector<8x32xf32>
    %200 = tpu.matmul %198, %199, %cst_86 {dimension_numbers = #tpu.dot_dimension_numbers<[1], [0], [0], [1], [0, 0, 1, 1], [], []>} : vector<8x32xf32>, vector<32x32xf32>, vector<8x32xf32> -> vector<8x32xf32>
    %c0_87 = arith.constant 0 : index
    %c0_88 = arith.constant 0 : index
    %201 = vector.load %arg22[%c0_87, %c0_88] : memref<1x32xf32, #tpu.memory_space<vmem>>, vector<1x32xf32>
    %202 = vector.broadcast %201 : vector<1x32xf32> to vector<8x32xf32>
    %203 = arith.addf %200, %202 : vector<8x32xf32>
    %204 = arith.addf %120, %203 : vector<8x32xf32>
    %cst_89 = arith.constant dense<0.000000e+00> : vector<8xf32>
    %205 = vector.multi_reduction <add>, %204, %cst_89 [1] : vector<8x32xf32> to vector<8xf32>
    %206 = vector.shape_cast %205 : vector<8xf32> to vector<8x1xf32>
    %cst_90 = arith.constant 3.200000e+01 : f32
    %207 = vector.broadcast %cst_90 : f32 to vector<8x1xf32>
    %208 = arith.divf %206, %207 : vector<8x1xf32>
    %209 = vector.broadcast %208 : vector<8x1xf32> to vector<8x32xf32>
    %210 = arith.subf %204, %209 : vector<8x32xf32>
    %211 = arith.mulf %210, %210 : vector<8x32xf32>
    %cst_91 = arith.constant dense<0.000000e+00> : vector<8xf32>
    %212 = vector.multi_reduction <add>, %211, %cst_91 [1] : vector<8x32xf32> to vector<8xf32>
    %213 = vector.shape_cast %212 : vector<8xf32> to vector<8x1xf32>
    %cst_92 = arith.constant 3.200000e+01 : f32
    %214 = vector.broadcast %cst_92 : f32 to vector<8x1xf32>
    %215 = arith.divf %213, %214 : vector<8x1xf32>
    %216 = vector.broadcast %208 : vector<8x1xf32> to vector<8x32xf32>
    %217 = arith.subf %204, %216 : vector<8x32xf32>
    %cst_93 = arith.constant 9.99999974E-6 : f32
    %218 = vector.broadcast %cst_93 : f32 to vector<8x1xf32>
    %219 = arith.addf %215, %218 : vector<8x1xf32>
    %220 = math.rsqrt %219 : vector<8x1xf32>
    %221 = vector.broadcast %220 : vector<8x1xf32> to vector<8x32xf32>
    %222 = arith.mulf %217, %221 : vector<8x32xf32>
    %c0_94 = arith.constant 0 : index
    %c0_95 = arith.constant 0 : index
    %223 = vector.load %arg29[%c0_94, %c0_95] : memref<1x32xf32, #tpu.memory_space<vmem>>, vector<1x32xf32>
    %224 = vector.broadcast %223 : vector<1x32xf32> to vector<8x32xf32>
    %225 = arith.mulf %222, %224 : vector<8x32xf32>
    %c0_96 = arith.constant 0 : index
    %c0_97 = arith.constant 0 : index
    %226 = vector.load %arg30[%c0_96, %c0_97] : memref<1x32xf32, #tpu.memory_space<vmem>>, vector<1x32xf32>
    %227 = vector.broadcast %226 : vector<1x32xf32> to vector<8x32xf32>
    %228 = arith.addf %225, %227 : vector<8x32xf32>
    %c0_98 = arith.constant 0 : index
    %c0_99 = arith.constant 0 : index
    %229 = vector.load %arg23[%c0_98, %c0_99] : memref<32x64xf32, #tpu.memory_space<vmem>>, vector<32x64xf32>
    %cst_100 = arith.constant dense<0.000000e+00> : vector<8x64xf32>
    %230 = tpu.matmul %228, %229, %cst_100 {dimension_numbers = #tpu.dot_dimension_numbers<[1], [0], [0], [1], [0, 0, 1, 1], [], []>} : vector<8x32xf32>, vector<32x64xf32>, vector<8x64xf32> -> vector<8x64xf32>
    %c0_101 = arith.constant 0 : index
    %c0_102 = arith.constant 0 : index
    %231 = vector.load %arg24[%c0_101, %c0_102] : memref<1x64xf32, #tpu.memory_space<vmem>>, vector<1x64xf32>
    %232 = vector.broadcast %231 : vector<1x64xf32> to vector<8x64xf32>
    %233 = arith.addf %230, %232 : vector<8x64xf32>
    %cst_103 = arith.constant 0.000000e+00 : f32
    %234 = vector.broadcast %cst_103 : f32 to vector<8x64xf32>
    %235 = arith.maximumf %233, %234 : vector<8x64xf32>
    %c0_104 = arith.constant 0 : index
    %c0_105 = arith.constant 0 : index
    %236 = vector.load %arg25[%c0_104, %c0_105] : memref<64x32xf32, #tpu.memory_space<vmem>>, vector<64x32xf32>
    %cst_106 = arith.constant dense<0.000000e+00> : vector<8x32xf32>
    %237 = tpu.matmul %235, %236, %cst_106 {dimension_numbers = #tpu.dot_dimension_numbers<[1], [0], [0], [1], [0, 0, 1, 1], [], []>} : vector<8x64xf32>, vector<64x32xf32>, vector<8x32xf32> -> vector<8x32xf32>
    %c0_107 = arith.constant 0 : index
    %c0_108 = arith.constant 0 : index
    %238 = vector.load %arg26[%c0_107, %c0_108] : memref<1x32xf32, #tpu.memory_space<vmem>>, vector<1x32xf32>
    %239 = vector.broadcast %238 : vector<1x32xf32> to vector<8x32xf32>
    %240 = arith.addf %237, %239 : vector<8x32xf32>
    %241 = arith.addf %228, %240 : vector<8x32xf32>
    %cst_109 = arith.constant dense<0.000000e+00> : vector<8xf32>
    %242 = vector.multi_reduction <add>, %241, %cst_109 [1] : vector<8x32xf32> to vector<8xf32>
    %243 = vector.shape_cast %242 : vector<8xf32> to vector<8x1xf32>
    %cst_110 = arith.constant 3.200000e+01 : f32
    %244 = vector.broadcast %cst_110 : f32 to vector<8x1xf32>
    %245 = arith.divf %243, %244 : vector<8x1xf32>
    %246 = vector.broadcast %245 : vector<8x1xf32> to vector<8x32xf32>
    %247 = arith.subf %241, %246 : vector<8x32xf32>
    %248 = arith.mulf %247, %247 : vector<8x32xf32>
    %cst_111 = arith.constant dense<0.000000e+00> : vector<8xf32>
    %249 = vector.multi_reduction <add>, %248, %cst_111 [1] : vector<8x32xf32> to vector<8xf32>
    %250 = vector.shape_cast %249 : vector<8xf32> to vector<8x1xf32>
    %cst_112 = arith.constant 3.200000e+01 : f32
    %251 = vector.broadcast %cst_112 : f32 to vector<8x1xf32>
    %252 = arith.divf %250, %251 : vector<8x1xf32>
    %253 = vector.broadcast %245 : vector<8x1xf32> to vector<8x32xf32>
    %254 = arith.subf %241, %253 : vector<8x32xf32>
    %cst_113 = arith.constant 9.99999974E-6 : f32
    %255 = vector.broadcast %cst_113 : f32 to vector<8x1xf32>
    %256 = arith.addf %252, %255 : vector<8x1xf32>
    %257 = math.rsqrt %256 : vector<8x1xf32>
    %258 = vector.broadcast %257 : vector<8x1xf32> to vector<8x32xf32>
    %259 = arith.mulf %254, %258 : vector<8x32xf32>
    %c0_114 = arith.constant 0 : index
    %c0_115 = arith.constant 0 : index
    %260 = vector.load %arg31[%c0_114, %c0_115] : memref<1x32xf32, #tpu.memory_space<vmem>>, vector<1x32xf32>
    %261 = vector.broadcast %260 : vector<1x32xf32> to vector<8x32xf32>
    %262 = arith.mulf %259, %261 : vector<8x32xf32>
    %c0_116 = arith.constant 0 : index
    %c0_117 = arith.constant 0 : index
    %263 = vector.load %arg32[%c0_116, %c0_117] : memref<1x32xf32, #tpu.memory_space<vmem>>, vector<1x32xf32>
    %264 = vector.broadcast %263 : vector<1x32xf32> to vector<8x32xf32>
    %265 = arith.addf %262, %264 : vector<8x32xf32>
    %c0_118 = arith.constant 0 : index
    %c0_119 = arith.constant 0 : index
    %c0_120 = arith.constant 0 : index
    %266 = vector.load %arg33[%c0_118, %c0_119, %c0_120] : memref<1x8x32xf32, #tpu.memory_space<vmem>>, vector<1x8x32xf32>
    %267 = vector.shape_cast %266 : vector<1x8x32xf32> to vector<8x32xf32>
    %268 = vector.shape_cast %265 : vector<8x32xf32> to vector<1x8x32xf32>
    tpu.vector_store %arg33[%c0_118, %c0_119, %c0_120], %268 {strides = array<i32>} : memref<1x8x32xf32, #tpu.memory_space<vmem>>, vector<1x8x32xf32>,
    return
  }
  func.func @transform_0(%arg0: i32, %arg1: i32) -> (i32, i32, i32) {
    %c0_i32 = arith.constant 0 : i32
    %c0_i32_0 = arith.constant 0 : i32
    return %arg0, %arg1, %c0_i32 : i32, i32, i32
  }
  func.func @transform_1(%arg0: i32, %arg1: i32) -> (i32, i32, i32) {
    %c0_i32 = arith.constant 0 : i32
    %c0_i32_0 = arith.constant 0 : i32
    %c0_i32_1 = arith.constant 0 : i32
    return %arg0, %c0_i32, %c0_i32_0 : i32, i32, i32
  }
  func.func @transform_2(%arg0: i32, %arg1: i32) -> (i32, i32, i32) {
    %c0_i32 = arith.constant 0 : i32
    %c0_i32_0 = arith.constant 0 : i32
    %c0_i32_1 = arith.constant 0 : i32
    return %arg0, %c0_i32, %c0_i32_0 : i32, i32, i32
  }
  func.func @transform_3(%arg0: i32, %arg1: i32) -> (i32, i32, i32) {
    %c0_i32 = arith.constant 0 : i32
    %c0_i32_0 = arith.constant 0 : i32
    return %arg0, %arg1, %c0_i32 : i32, i32, i32
  }
  func.func @transform_4(%arg0: i32, %arg1: i32) -> (i32, i32, i32) {
    %c0_i32 = arith.constant 0 : i32
    %c0_i32_0 = arith.constant 0 : i32
    return %arg0, %arg1, %c0_i32 : i32, i32, i32
  }
  func.func @transform_5(%arg0: i32, %arg1: i32) -> (i32, i32) {
    %c0_i32 = arith.constant 0 : i32
    %c0_i32_0 = arith.constant 0 : i32
    %c0_i32_1 = arith.constant 0 : i32
    return %c0_i32, %c0_i32_0 : i32, i32
  }
  func.func @transform_6(%arg0: i32, %arg1: i32) -> (i32, i32) {
    %c0_i32 = arith.constant 0 : i32
    %c0_i32_0 = arith.constant 0 : i32
    %c0_i32_1 = arith.constant 0 : i32
    return %c0_i32, %c0_i32_0 : i32, i32
  }
  func.func @transform_7(%arg0: i32, %arg1: i32) -> (i32, i32) {
    %c0_i32 = arith.constant 0 : i32
    %c0_i32_0 = arith.constant 0 : i32
    %c0_i32_1 = arith.constant 0 : i32
    return %c0_i32, %c0_i32_0 : i32, i32
  }
  func.func @transform_8(%arg0: i32, %arg1: i32) -> (i32, i32) {
    %c0_i32 = arith.constant 0 : i32
    %c0_i32_0 = arith.constant 0 : i32
    %c0_i32_1 = arith.constant 0 : i32
    return %c0_i32, %c0_i32_0 : i32, i32
  }
  func.func @transform_9(%arg0: i32, %arg1: i32) -> (i32, i32) {
    %c0_i32 = arith.constant 0 : i32
    %c0_i32_0 = arith.constant 0 : i32
    %c0_i32_1 = arith.constant 0 : i32
    return %c0_i32, %c0_i32_0 : i32, i32
  }
  func.func @transform_10(%arg0: i32, %arg1: i32) -> (i32, i32) {
    %c0_i32 = arith.constant 0 : i32
    %c0_i32_0 = arith.constant 0 : i32
    %c0_i32_1 = arith.constant 0 : i32
    return %c0_i32, %c0_i32_0 : i32, i32
  }
  func.func @transform_11(%arg0: i32, %arg1: i32) -> (i32, i32) {
    %c0_i32 = arith.constant 0 : i32
    %c0_i32_0 = arith.constant 0 : i32
    %c0_i32_1 = arith.constant 0 : i32
    return %c0_i32, %c0_i32_0 : i32, i32
  }
  func.func @transform_12(%arg0: i32, %arg1: i32) -> (i32, i32) {
    %c0_i32 = arith.constant 0 : i32
    %c0_i32_0 = arith.constant 0 : i32
    %c0_i32_1 = arith.constant 0 : i32
    return %c0_i32, %c0_i32_0 : i32, i32
  }
  func.func @transform_13(%arg0: i32, %arg1: i32) -> (i32, i32) {
    %c0_i32 = arith.constant 0 : i32
    %c0_i32_0 = arith.constant 0 : i32
    %c0_i32_1 = arith.constant 0 : i32
    return %c0_i32, %c0_i32_0 : i32, i32
  }
  func.func @transform_14(%arg0: i32, %arg1: i32) -> (i32, i32) {
    %c0_i32 = arith.constant 0 : i32
    %c0_i32_0 = arith.constant 0 : i32
    %c0_i32_1 = arith.constant 0 : i32
    return %c0_i32, %c0_i32_0 : i32, i32
  }
  func.func @transform_15(%arg0: i32, %arg1: i32) -> (i32, i32) {
    %c0_i32 = arith.constant 0 : i32
    %c0_i32_0 = arith.constant 0 : i32
    %c0_i32_1 = arith.constant 0 : i32
    return %c0_i32, %c0_i32_0 : i32, i32
  }
  func.func @transform_16(%arg0: i32, %arg1: i32) -> (i32, i32) {
    %c0_i32 = arith.constant 0 : i32
    %c0_i32_0 = arith.constant 0 : i32
    %c0_i32_1 = arith.constant 0 : i32
    return %c0_i32, %c0_i32_0 : i32, i32
  }
  func.func @transform_17(%arg0: i32, %arg1: i32) -> (i32, i32) {
    %c0_i32 = arith.constant 0 : i32
    %c0_i32_0 = arith.constant 0 : i32
    %c0_i32_1 = arith.constant 0 : i32
    return %c0_i32, %c0_i32_0 : i32, i32
  }
  func.func @transform_18(%arg0: i32, %arg1: i32) -> (i32, i32) {
    %c0_i32 = arith.constant 0 : i32
    %c0_i32_0 = arith.constant 0 : i32
    %c0_i32_1 = arith.constant 0 : i32
    return %c0_i32, %c0_i32_0 : i32, i32
  }
  func.func @transform_19(%arg0: i32, %arg1: i32) -> (i32, i32) {
    %c0_i32 = arith.constant 0 : i32
    %c0_i32_0 = arith.constant 0 : i32
    %c0_i32_1 = arith.constant 0 : i32
    return %c0_i32, %c0_i32_0 : i32, i32
  }
  func.func @transform_20(%arg0: i32, %arg1: i32) -> (i32, i32) {
    %c0_i32 = arith.constant 0 : i32
    %c0_i32_0 = arith.constant 0 : i32
    %c0_i32_1 = arith.constant 0 : i32
    return %c0_i32, %c0_i32_0 : i32, i32
  }
  func.func @transform_21(%arg0: i32, %arg1: i32) -> (i32, i32) {
    %c0_i32 = arith.constant 0 : i32
    %c0_i32_0 = arith.constant 0 : i32
    %c0_i32_1 = arith.constant 0 : i32
    return %c0_i32, %c0_i32_0 : i32, i32
  }
  func.func @transform_22(%arg0: i32, %arg1: i32) -> (i32, i32) {
    %c0_i32 = arith.constant 0 : i32
    %c0_i32_0 = arith.constant 0 : i32
    %c0_i32_1 = arith.constant 0 : i32
    return %c0_i32, %c0_i32_0 : i32, i32
  }
  func.func @transform_23(%arg0: i32, %arg1: i32) -> (i32, i32) {
    %c0_i32 = arith.constant 0 : i32
    %c0_i32_0 = arith.constant 0 : i32
    %c0_i32_1 = arith.constant 0 : i32
    return %c0_i32, %c0_i32_0 : i32, i32
  }
  func.func @transform_24(%arg0: i32, %arg1: i32) -> (i32, i32) {
    %c0_i32 = arith.constant 0 : i32
    %c0_i32_0 = arith.constant 0 : i32
    %c0_i32_1 = arith.constant 0 : i32
    return %c0_i32, %c0_i32_0 : i32, i32
  }
  func.func @transform_25(%arg0: i32, %arg1: i32) -> (i32, i32) {
    %c0_i32 = arith.constant 0 : i32
    %c0_i32_0 = arith.constant 0 : i32
    %c0_i32_1 = arith.constant 0 : i32
    return %c0_i32, %c0_i32_0 : i32, i32
  }
  func.func @transform_26(%arg0: i32, %arg1: i32) -> (i32, i32) {
    %c0_i32 = arith.constant 0 : i32
    %c0_i32_0 = arith.constant 0 : i32
    %c0_i32_1 = arith.constant 0 : i32
    return %c0_i32, %c0_i32_0 : i32, i32
  }
  func.func @transform_27(%arg0: i32, %arg1: i32) -> (i32, i32) {
    %c0_i32 = arith.constant 0 : i32
    %c0_i32_0 = arith.constant 0 : i32
    %c0_i32_1 = arith.constant 0 : i32
    return %c0_i32, %c0_i32_0 : i32, i32
  }
  func.func @transform_28(%arg0: i32, %arg1: i32) -> (i32, i32) {
    %c0_i32 = arith.constant 0 : i32
    %c0_i32_0 = arith.constant 0 : i32
    %c0_i32_1 = arith.constant 0 : i32
    return %c0_i32, %c0_i32_0 : i32, i32
  }
  func.func @transform_29(%arg0: i32, %arg1: i32) -> (i32, i32) {
    %c0_i32 = arith.constant 0 : i32
    %c0_i32_0 = arith.constant 0 : i32
    %c0_i32_1 = arith.constant 0 : i32
    return %c0_i32, %c0_i32_0 : i32, i32
  }
  func.func @transform_30(%arg0: i32, %arg1: i32) -> (i32, i32) {
    %c0_i32 = arith.constant 0 : i32
    %c0_i32_0 = arith.constant 0 : i32
    %c0_i32_1 = arith.constant 0 : i32
    return %c0_i32, %c0_i32_0 : i32, i32
  }
  func.func @transform_31(%arg0: i32, %arg1: i32) -> (i32, i32, i32) {
    %c0_i32 = arith.constant 0 : i32
    %c0_i32_0 = arith.constant 0 : i32
    return %arg0, %arg1, %c0_i32 : i32, i32, i32
  }
}

module attributes {stable_mosaic.version = 11 : i64} {
  func.func @_decoder_layer_kernel(%arg0: i32, %arg1: i32, %arg2: memref<1x8x32xf32, #tpu.memory_space<vmem>>, %arg3: memref<1x16x32xf32, #tpu.memory_space<vmem>>, %arg4: memref<1x16x32xf32, #tpu.memory_space<vmem>>, %arg5: memref<1x8x16xi32, #tpu.memory_space<vmem>>, %arg6: memref<1x8x16xi32, #tpu.memory_space<vmem>>, %arg7: memref<32x32xf32, #tpu.memory_space<vmem>>, %arg8: memref<1x32xf32, #tpu.memory_space<vmem>>, %arg9: memref<32x32xf32, #tpu.memory_space<vmem>>, %arg10: memref<1x32xf32, #tpu.memory_space<vmem>>, %arg11: memref<32x32xf32, #tpu.memory_space<vmem>>, %arg12: memref<1x32xf32, #tpu.memory_space<vmem>>, %arg13: memref<32x32xf32, #tpu.memory_space<vmem>>, %arg14: memref<1x32xf32, #tpu.memory_space<vmem>>, %arg15: memref<32x32xf32, #tpu.memory_space<vmem>>, %arg16: memref<1x32xf32, #tpu.memory_space<vmem>>, %arg17: memref<32x32xf32, #tpu.memory_space<vmem>>, %arg18: memref<1x32xf32, #tpu.memory_space<vmem>>, %arg19: memref<32x32xf32, #tpu.memory_space<vmem>>, %arg20: memref<1x32xf32, #tpu.memory_space<vmem>>, %arg21: memref<32x32xf32, #tpu.memory_space<vmem>>, %arg22: memref<1x32xf32, #tpu.memory_space<vmem>>, %arg23: memref<32x64xf32, #tpu.memory_space<vmem>>, %arg24: memref<1x64xf32, #tpu.memory_space<vmem>>, %arg25: memref<64x32xf32, #tpu.memory_space<vmem>>, %arg26: memref<1x32xf32, #tpu.memory_space<vmem>>, %arg27: memref<1x32xf32, #tpu.memory_space<vmem>>, %arg28: memref<1x32xf32, #tpu.memory_space<vmem>>, %arg29: memref<1x32xf32, #tpu.memory_space<vmem>>, %arg30: memref<1x32xf32, #tpu.memory_space<vmem>>, %arg31: memref<1x32xf32, #tpu.memory_space<vmem>>, %arg32: memref<1x32xf32, #tpu.memory_space<vmem>>, %arg33: memref<1x8x32xf32, #tpu.memory_space<vmem>>, %arg34: memref<16x32xf32, #tpu.memory_space<vmem>>, %arg35: memref<16x32xf32, #tpu.memory_space<vmem>>, %arg36: memref<16x32xf32, #tpu.memory_space<vmem>>, %arg37: memref<16x32xf32, #tpu.memory_space<vmem>>) attributes {dimension_semantics = [#tpu.dimension_semantics<parallel>, #tpu.dimension_semantics<arbitrary>], iteration_bounds = array<i64: 2, 2>, scalar_prefetch = 0 : i64, scratch_operands = 4 : i64, tpu.core_type = #tpu.core_type<tc>, window_params = [{transform_indices = @transform_0, window_bounds = array<i64: 1, 8, 32>}, {transform_indices = @transform_1, window_bounds = array<i64: 1, 16, 32>}, {transform_indices = @transform_2, window_bounds = array<i64: 1, 16, 32>}, {transform_indices = @transform_3, window_bounds = array<i64: 1, 8, 16>}, {transform_indices = @transform_4, window_bounds = array<i64: 1, 8, 16>}, {pipeline_mode = #tpu.pipeline_mode<synchronous>, transform_indices = @transform_5, window_bounds = array<i64: 32, 32>}, {pipeline_mode = #tpu.pipeline_mode<synchronous>, transform_indices = @transform_6, window_bounds = array<i64: 1, 32>}, {pipeline_mode = #tpu.pipeline_mode<synchronous>, transform_indices = @transform_7, window_bounds = array<i64: 32, 32>}, {pipeline_mode = #tpu.pipeline_mode<synchronous>, transform_indices = @transform_8, window_bounds = array<i64: 1, 32>}, {pipeline_mode = #tpu.pipeline_mode<synchronous>, transform_indices = @transform_9, window_bounds = array<i64: 32, 32>}, {pipeline_mode = #tpu.pipeline_mode<synchronous>, transform_indices = @transform_10, window_bounds = array<i64: 1, 32>}, {pipeline_mode = #tpu.pipeline_mode<synchronous>, transform_indices = @transform_11, window_bounds = array<i64: 32, 32>}, {pipeline_mode = #tpu.pipeline_mode<synchronous>, transform_indices = @transform_12, window_bounds = array<i64: 1, 32>}, {pipeline_mode = #tpu.pipeline_mode<synchronous>, transform_indices = @transform_13, window_bounds = array<i64: 32, 32>}, {pipeline_mode = #tpu.pipeline_mode<synchronous>, transform_indices = @transform_14, window_bounds = array<i64: 1, 32>}, {pipeline_mode = #tpu.pipeline_mode<synchronous>, transform_indices = @transform_15, window_bounds = array<i64: 32, 32>}, {pipeline_mode = #tpu.pipeline_mode<synchronous>, transform_indices = @transform_16, window_bounds = array<i64: 1, 32>}, {pipeline_mode = #tpu.pipeline_mode<synchronous>, transform_indices = @transform_17, window_bounds = array<i64: 32, 32>}, {pipeline_mode = #tpu.pipeline_mode<synchronous>, transform_indices = @transform_18, window_bounds = array<i64: 1, 32>}, {pipeline_mode = #tpu.pipeline_mode<synchronous>, transform_indices = @transform_19, window_bounds = array<i64: 32, 32>}, {pipeline_mode = #tpu.pipeline_mode<synchronous>, transform_indices = @transform_20, window_bounds = array<i64: 1, 32>}, {pipeline_mode = #tpu.pipeline_mode<synchronous>, transform_indices = @transform_21, window_bounds = array<i64: 32, 64>}, {pipeline_mode = #tpu.pipeline_mode<synchronous>, transform_indices = @transform_22, window_bounds = array<i64: 1, 64>}, {pipeline_mode = #tpu.pipeline_mode<synchronous>, transform_indices = @transform_23, window_bounds = array<i64: 64, 32>}, {pipeline_mode = #tpu.pipeline_mode<synchronous>, transform_indices = @transform_24, window_bounds = array<i64: 1, 32>}, {pipeline_mode = #tpu.pipeline_mode<synchronous>, transform_indices = @transform_25, window_bounds = array<i64: 1, 32>}, {pipeline_mode = #tpu.pipeline_mode<synchronous>, transform_indices = @transform_26, window_bounds = array<i64: 1, 32>}, {pipeline_mode = #tpu.pipeline_mode<synchronous>, transform_indices = @transform_27, window_bounds = array<i64: 1, 32>}, {pipeline_mode = #tpu.pipeline_mode<synchronous>, transform_indices = @transform_28, window_bounds = array<i64: 1, 32>}, {pipeline_mode = #tpu.pipeline_mode<synchronous>, transform_indices = @transform_29, window_bounds = array<i64: 1, 32>}, {pipeline_mode = #tpu.pipeline_mode<synchronous>, transform_indices = @transform_30, window_bounds = array<i64: 1, 32>}, {transform_indices = @transform_31, window_bounds = array<i64: 1, 8, 32>}]} {
    %c0_i32 = arith.constant 0 : i32
    %0 = arith.cmpi eq, %arg1, %c0_i32 : i32
    %1 = arith.extui %0 : i1 to i32
    %c0_i32_0 = arith.constant 0 : i32
    %2 = arith.cmpi ne, %1, %c0_i32_0 : i32
    scf.if %2 {
      %c0_121 = arith.constant 0 : index
      %c0_122 = arith.constant 0 : index
      %c0_123 = arith.constant 0 : index
      %269 = vector.load %arg3[%c0_121, %c0_122, %c0_123] : memref<1x16x32xf32, #tpu.memory_space<vmem>>, vector<1x16x32xf32>
      %270 = vector.shape_cast %269 : vector<1x16x32xf32> to vector<16x32xf32>
      %c0_124 = arith.constant 0 : index
      %c0_125 = arith.constant 0 : index
      %c0_126 = arith.constant 0 : index
      %271 = vector.load %arg4[%c0_124, %c0_125, %c0_126] : memref<1x16x32xf32, #tpu.memory_space<vmem>>, vector<1x16x32xf32>
      %272 = vector.shape_cast %271 : vector<1x16x32xf32> to vector<16x32xf32>
      %c0_127 = arith.constant 0 : index
      %c0_128 = arith.constant 0 : index
      %273 = vector.load %arg9[%c0_127, %c0_128] : memref<32x32xf32, #tpu.memory_space<vmem>>, vector<32x32xf32>
      %cst_129 = arith.constant dense<0.000000e+00> : vector<16x32xf32>
      %274 = tpu.matmul %270, %273, %cst_129 {dimension_numbers = #tpu.dot_dimension_numbers<[1], [0], [0], [1], [0, 0, 1, 1], [], []>} : vector<16x32xf32>, vector<32x32xf32>, vector<16x32xf32> -> vector<16x32xf32>
      %c0_130 = arith.constant 0 : index
      %c0_131 = arith.constant 0 : index
      %275 = vector.load %arg10[%c0_130, %c0_131] : memref<1x32xf32, #tpu.memory_space<vmem>>, vector<1x32xf32>
      %276 = vector.broadcast %275 : vector<1x32xf32> to vector<16x32xf32>
      %277 = arith.addf %274, %276 : vector<16x32xf32>
      %c0_132 = arith.constant 0 : index
      %c0_133 = arith.constant 0 : index
      %278 = vector.load %arg34[%c0_132, %c0_133] : memref<16x32xf32, #tpu.memory_space<vmem>>, vector<16x32xf32>
      tpu.vector_store %arg34[%c0_132, %c0_133], %277 {strides = array<i32>} : memref<16x32xf32, #tpu.memory_space<vmem>>, vector<16x32xf32>,
      %c0_134 = arith.constant 0 : index
      %c0_135 = arith.constant 0 : index
      %279 = vector.load %arg11[%c0_134, %c0_135] : memref<32x32xf32, #tpu.memory_space<vmem>>, vector<32x32xf32>
      %cst_136 = arith.constant dense<0.000000e+00> : vector<16x32xf32>
      %280 = tpu.matmul %270, %279, %cst_136 {dimension_numbers = #tpu.dot_dimension_numbers<[1], [0], [0], [1], [0, 0, 1, 1], [], []>} : vector<16x32xf32>, vector<32x32xf32>, vector<16x32xf32> -> vector<16x32xf32>
      %c0_137 = arith.constant 0 : index
      %c0_138 = arith.constant 0 : index
      %281 = vector.load %arg12[%c0_137, %c0_138] : memref<1x32xf32, #tpu.memory_space<vmem>>, vector<1x32xf32>
      %282 = vector.broadcast %281 : vector<1x32xf32> to vector<16x32xf32>
      %283 = arith.addf %280, %282 : vector<16x32xf32>
      %c0_139 = arith.constant 0 : index
      %c0_140 = arith.constant 0 : index
      %284 = vector.load %arg35[%c0_139, %c0_140] : memref<16x32xf32, #tpu.memory_space<vmem>>, vector<16x32xf32>
      tpu.vector_store %arg35[%c0_139, %c0_140], %283 {strides = array<i32>} : memref<16x32xf32, #tpu.memory_space<vmem>>, vector<16x32xf32>,
      %c0_141 = arith.constant 0 : index
      %c0_142 = arith.constant 0 : index
      %285 = vector.load %arg17[%c0_141, %c0_142] : memref<32x32xf32, #tpu.memory_space<vmem>>, vector<32x32xf32>
      %cst_143 = arith.constant dense<0.000000e+00> : vector<16x32xf32>
      %286 = tpu.matmul %272, %285, %cst_143 {dimension_numbers = #tpu.dot_dimension_numbers<[1], [0], [0], [1], [0, 0, 1, 1], [], []>} : vector<16x32xf32>, vector<32x32xf32>, vector<16x32xf32> -> vector<16x32xf32>
      %c0_144 = arith.constant 0 : index
      %c0_145 = arith.constant 0 : index
      %287 = vector.load %arg18[%c0_144, %c0_145] : memref<1x32xf32, #tpu.memory_space<vmem>>, vector<1x32xf32>
      %288 = vector.broadcast %287 : vector<1x32xf32> to vector<16x32xf32>
      %289 = arith.addf %286, %288 : vector<16x32xf32>
      %c0_146 = arith.constant 0 : index
      %c0_147 = arith.constant 0 : index
      %290 = vector.load %arg36[%c0_146, %c0_147] : memref<16x32xf32, #tpu.memory_space<vmem>>, vector<16x32xf32>
      tpu.vector_store %arg36[%c0_146, %c0_147], %289 {strides = array<i32>} : memref<16x32xf32, #tpu.memory_space<vmem>>, vector<16x32xf32>,
      %c0_148 = arith.constant 0 : index
      %c0_149 = arith.constant 0 : index
      %291 = vector.load %arg19[%c0_148, %c0_149] : memref<32x32xf32, #tpu.memory_space<vmem>>, vector<32x32xf32>
      %cst_150 = arith.constant dense<0.000000e+00> : vector<16x32xf32>
      %292 = tpu.matmul %272, %291, %cst_150 {dimension_numbers = #tpu.dot_dimension_numbers<[1], [0], [0], [1], [0, 0, 1, 1], [], []>} : vector<16x32xf32>, vector<32x32xf32>, vector<16x32xf32> -> vector<16x32xf32>
      %c0_151 = arith.constant 0 : index
      %c0_152 = arith.constant 0 : index
      %293 = vector.load %arg20[%c0_151, %c0_152] : memref<1x32xf32, #tpu.memory_space<vmem>>, vector<1x32xf32>
      %294 = vector.broadcast %293 : vector<1x32xf32> to vector<16x32xf32>
      %295 = arith.addf %292, %294 : vector<16x32xf32>
      %c0_153 = arith.constant 0 : index
      %c0_154 = arith.constant 0 : index
      %296 = vector.load %arg37[%c0_153, %c0_154] : memref<16x32xf32, #tpu.memory_space<vmem>>, vector<16x32xf32>
      tpu.vector_store %arg37[%c0_153, %c0_154], %295 {strides = array<i32>} : memref<16x32xf32, #tpu.memory_space<vmem>>, vector<16x32xf32>,
    } else {
    }
    %c0 = arith.constant 0 : index
    %c0_1 = arith.constant 0 : index
    %c0_2 = arith.constant 0 : index
    %3 = vector.load %arg2[%c0, %c0_1, %c0_2] : memref<1x8x32xf32, #tpu.memory_space<vmem>>, vector<1x8x32xf32>
    %4 = vector.shape_cast %3 : vector<1x8x32xf32> to vector<8x32xf32>
    %c0_3 = arith.constant 0 : index
    %c0_4 = arith.constant 0 : index
    %c0_5 = arith.constant 0 : index
    %5 = vector.load %arg5[%c0_3, %c0_4, %c0_5] : memref<1x8x16xi32, #tpu.memory_space<vmem>>, vector<1x8x16xi32>
    %6 = vector.shape_cast %5 : vector<1x8x16xi32> to vector<8x16xi32>
    %c0_i32_6 = arith.constant 0 : i32
    %7 = vector.broadcast %c0_i32_6 : i32 to vector<8x16xi32>
    %8 = arith.cmpi ne, %6, %7 : vector<8x16xi32>
    %c0_7 = arith.constant 0 : index
    %c0_8 = arith.constant 0 : index
    %c0_9 = arith.constant 0 : index
    %9 = vector.load %arg6[%c0_7, %c0_8, %c0_9] : memref<1x8x16xi32, #tpu.memory_space<vmem>>, vector<1x8x16xi32>
    %10 = vector.shape_cast %9 : vector<1x8x16xi32> to vector<8x16xi32>
    %c0_i32_10 = arith.constant 0 : i32
    %11 = vector.broadcast %c0_i32_10 : i32 to vector<8x16xi32>
    %12 = arith.cmpi ne, %10, %11 : vector<8x16xi32>
    %c0_11 = arith.constant 0 : index
    %c0_12 = arith.constant 0 : index
    %13 = vector.load %arg7[%c0_11, %c0_12] : memref<32x32xf32, #tpu.memory_space<vmem>>, vector<32x32xf32>
    %cst = arith.constant dense<0.000000e+00> : vector<8x32xf32>
    %14 = tpu.matmul %4, %13, %cst {dimension_numbers = #tpu.dot_dimension_numbers<[1], [0], [0], [1], [0, 0, 1, 1], [], []>} : vector<8x32xf32>, vector<32x32xf32>, vector<8x32xf32> -> vector<8x32xf32>
    %c0_13 = arith.constant 0 : index
    %c0_14 = arith.constant 0 : index
    %15 = vector.load %arg8[%c0_13, %c0_14] : memref<1x32xf32, #tpu.memory_space<vmem>>, vector<1x32xf32>
    %16 = vector.broadcast %15 : vector<1x32xf32> to vector<8x32xf32>
    %17 = arith.addf %14, %16 : vector<8x32xf32>
    %cst_15 = arith.constant 0.353553385 : f32
    %18 = vector.broadcast %cst_15 : f32 to vector<8x32xf32>
    %19 = arith.mulf %17, %18 : vector<8x32xf32>
    %c0_16 = arith.constant 0 : index
    %c0_17 = arith.constant 0 : index
    %20 = vector.load %arg34[%c0_16, %c0_17] : memref<16x32xf32, #tpu.memory_space<vmem>>, vector<16x32xf32>
    %c0_18 = arith.constant 0 : index
    %c0_19 = arith.constant 0 : index
    %21 = vector.load %arg35[%c0_18, %c0_19] : memref<16x32xf32, #tpu.memory_space<vmem>>, vector<16x32xf32>
    %22 = vector.extract_strided_slice %19 {offsets = [0, 0], sizes = [8, 8], strides = [1, 1]} : vector<8x32xf32> to vector<8x8xf32>
    %23 = vector.extract_strided_slice %20 {offsets = [0, 0], sizes = [16, 8], strides = [1, 1]} : vector<16x32xf32> to vector<16x8xf32>
    %24 = vector.extract_strided_slice %21 {offsets = [0, 0], sizes = [16, 8], strides = [1, 1]} : vector<16x32xf32> to vector<16x8xf32>
    %cst_20 = arith.constant dense<0.000000e+00> : vector<8x16xf32>
    %25 = tpu.matmul %22, %23, %cst_20 {dimension_numbers = #tpu.dot_dimension_numbers<[1], [1], [0], [0], [0, 0, 1, 0], [], []>} : vector<8x8xf32>, vector<16x8xf32>, vector<8x16xf32> -> vector<8x16xf32>
    %cst_21 = arith.constant -1.000000e+09 : f32
    %26 = vector.broadcast %cst_21 : f32 to vector<8x16xf32>
    %27 = arith.select %8, %25, %26 : vector<8x16xi1>, vector<8x16xf32>
    %cst_22 = arith.constant dense<0xFF800000> : vector<8xf32>
    %28 = vector.multi_reduction <maximumf>, %27, %cst_22 [1] : vector<8x16xf32> to vector<8xf32>
    %29 = vector.shape_cast %28 : vector<8xf32> to vector<8x1xf32>
    %30 = vector.broadcast %29 : vector<8x1xf32> to vector<8x16xf32>
    %31 = arith.subf %27, %30 : vector<8x16xf32>
    %32 = math.exp %31 : vector<8x16xf32>
    %cst_23 = arith.constant dense<0.000000e+00> : vector<8xf32>
    %33 = vector.multi_reduction <add>, %32, %cst_23 [1] : vector<8x16xf32> to vector<8xf32>
    %34 = vector.shape_cast %33 : vector<8xf32> to vector<8x1xf32>
    %35 = tpu.reciprocal %34 {approx = true} : vector<8x1xf32> -> vector<8x1xf32>
    %36 = vector.broadcast %35 : vector<8x1xf32> to vector<8x16xf32>
    %37 = arith.mulf %32, %36 : vector<8x16xf32>
    %cst_24 = arith.constant dense<0.000000e+00> : vector<8x8xf32>
    %38 = tpu.matmul %37, %24, %cst_24 {dimension_numbers = #tpu.dot_dimension_numbers<[1], [0], [0], [1], [0, 0, 1, 1], [], []>} : vector<8x16xf32>, vector<16x8xf32>, vector<8x8xf32> -> vector<8x8xf32>
    %39 = vector.extract_strided_slice %19 {offsets = [0, 8], sizes = [8, 8], strides = [1, 1]} : vector<8x32xf32> to vector<8x8xf32>
    %40 = vector.extract_strided_slice %20 {offsets = [0, 8], sizes = [16, 8], strides = [1, 1]} : vector<16x32xf32> to vector<16x8xf32>
    %41 = vector.extract_strided_slice %21 {offsets = [0, 8], sizes = [16, 8], strides = [1, 1]} : vector<16x32xf32> to vector<16x8xf32>
    %cst_25 = arith.constant dense<0.000000e+00> : vector<8x16xf32>
    %42 = tpu.matmul %39, %40, %cst_25 {dimension_numbers = #tpu.dot_dimension_numbers<[1], [1], [0], [0], [0, 0, 1, 0], [], []>} : vector<8x8xf32>, vector<16x8xf32>, vector<8x16xf32> -> vector<8x16xf32>
    %cst_26 = arith.constant -1.000000e+09 : f32
    %43 = vector.broadcast %cst_26 : f32 to vector<8x16xf32>
    %44 = arith.select %8, %42, %43 : vector<8x16xi1>, vector<8x16xf32>
    %cst_27 = arith.constant dense<0xFF800000> : vector<8xf32>
    %45 = vector.multi_reduction <maximumf>, %44, %cst_27 [1] : vector<8x16xf32> to vector<8xf32>
    %46 = vector.shape_cast %45 : vector<8xf32> to vector<8x1xf32>
    %47 = vector.broadcast %46 : vector<8x1xf32> to vector<8x16xf32>
    %48 = arith.subf %44, %47 : vector<8x16xf32>
    %49 = math.exp %48 : vector<8x16xf32>
    %cst_28 = arith.constant dense<0.000000e+00> : vector<8xf32>
    %50 = vector.multi_reduction <add>, %49, %cst_28 [1] : vector<8x16xf32> to vector<8xf32>
    %51 = vector.shape_cast %50 : vector<8xf32> to vector<8x1xf32>
    %52 = tpu.reciprocal %51 {approx = true} : vector<8x1xf32> -> vector<8x1xf32>
    %53 = vector.broadcast %52 : vector<8x1xf32> to vector<8x16xf32>
    %54 = arith.mulf %49, %53 : vector<8x16xf32>
    %cst_29 = arith.constant dense<0.000000e+00> : vector<8x8xf32>
    %55 = tpu.matmul %54, %41, %cst_29 {dimension_numbers = #tpu.dot_dimension_numbers<[1], [0], [0], [1], [0, 0, 1, 1], [], []>} : vector<8x16xf32>, vector<16x8xf32>, vector<8x8xf32> -> vector<8x8xf32>
    %56 = vector.extract_strided_slice %19 {offsets = [0, 16], sizes = [8, 8], strides = [1, 1]} : vector<8x32xf32> to vector<8x8xf32>
    %57 = vector.extract_strided_slice %20 {offsets = [0, 16], sizes = [16, 8], strides = [1, 1]} : vector<16x32xf32> to vector<16x8xf32>
    %58 = vector.extract_strided_slice %21 {offsets = [0, 16], sizes = [16, 8], strides = [1, 1]} : vector<16x32xf32> to vector<16x8xf32>
    %cst_30 = arith.constant dense<0.000000e+00> : vector<8x16xf32>
    %59 = tpu.matmul %56, %57, %cst_30 {dimension_numbers = #tpu.dot_dimension_numbers<[1], [1], [0], [0], [0, 0, 1, 0], [], []>} : vector<8x8xf32>, vector<16x8xf32>, vector<8x16xf32> -> vector<8x16xf32>
    %cst_31 = arith.constant -1.000000e+09 : f32
    %60 = vector.broadcast %cst_31 : f32 to vector<8x16xf32>
    %61 = arith.select %8, %59, %60 : vector<8x16xi1>, vector<8x16xf32>
    %cst_32 = arith.constant dense<0xFF800000> : vector<8xf32>
    %62 = vector.multi_reduction <maximumf>, %61, %cst_32 [1] : vector<8x16xf32> to vector<8xf32>
    %63 = vector.shape_cast %62 : vector<8xf32> to vector<8x1xf32>
    %64 = vector.broadcast %63 : vector<8x1xf32> to vector<8x16xf32>
    %65 = arith.subf %61, %64 : vector<8x16xf32>
    %66 = math.exp %65 : vector<8x16xf32>
    %cst_33 = arith.constant dense<0.000000e+00> : vector<8xf32>
    %67 = vector.multi_reduction <add>, %66, %cst_33 [1] : vector<8x16xf32> to vector<8xf32>
    %68 = vector.shape_cast %67 : vector<8xf32> to vector<8x1xf32>
    %69 = tpu.reciprocal %68 {approx = true} : vector<8x1xf32> -> vector<8x1xf32>
    %70 = vector.broadcast %69 : vector<8x1xf32> to vector<8x16xf32>
    %71 = arith.mulf %66, %70 : vector<8x16xf32>
    %cst_34 = arith.constant dense<0.000000e+00> : vector<8x8xf32>
    %72 = tpu.matmul %71, %58, %cst_34 {dimension_numbers = #tpu.dot_dimension_numbers<[1], [0], [0], [1], [0, 0, 1, 1], [], []>} : vector<8x16xf32>, vector<16x8xf32>, vector<8x8xf32> -> vector<8x8xf32>
    %73 = vector.extract_strided_slice %19 {offsets = [0, 24], sizes = [8, 8], strides = [1, 1]} : vector<8x32xf32> to vector<8x8xf32>
    %74 = vector.extract_strided_slice %20 {offsets = [0, 24], sizes = [16, 8], strides = [1, 1]} : vector<16x32xf32> to vector<16x8xf32>
    %75 = vector.extract_strided_slice %21 {offsets = [0, 24], sizes = [16, 8], strides = [1, 1]} : vector<16x32xf32> to vector<16x8xf32>
    %cst_35 = arith.constant dense<0.000000e+00> : vector<8x16xf32>
    %76 = tpu.matmul %73, %74, %cst_35 {dimension_numbers = #tpu.dot_dimension_numbers<[1], [1], [0], [0], [0, 0, 1, 0], [], []>} : vector<8x8xf32>, vector<16x8xf32>, vector<8x16xf32> -> vector<8x16xf32>
    %cst_36 = arith.constant -1.000000e+09 : f32
    %77 = vector.broadcast %cst_36 : f32 to vector<8x16xf32>
    %78 = arith.select %8, %76, %77 : vector<8x16xi1>, vector<8x16xf32>
    %cst_37 = arith.constant dense<0xFF800000> : vector<8xf32>
    %79 = vector.multi_reduction <maximumf>, %78, %cst_37 [1] : vector<8x16xf32> to vector<8xf32>
    %80 = vector.shape_cast %79 : vector<8xf32> to vector<8x1xf32>
    %81 = vector.broadcast %80 : vector<8x1xf32> to vector<8x16xf32>
    %82 = arith.subf %78, %81 : vector<8x16xf32>
    %83 = math.exp %82 : vector<8x16xf32>
    %cst_38 = arith.constant dense<0.000000e+00> : vector<8xf32>
    %84 = vector.multi_reduction <add>, %83, %cst_38 [1] : vector<8x16xf32> to vector<8xf32>
    %85 = vector.shape_cast %84 : vector<8xf32> to vector<8x1xf32>
    %86 = tpu.reciprocal %85 {approx = true} : vector<8x1xf32> -> vector<8x1xf32>
    %87 = vector.broadcast %86 : vector<8x1xf32> to vector<8x16xf32>
    %88 = arith.mulf %83, %87 : vector<8x16xf32>
    %cst_39 = arith.constant dense<0.000000e+00> : vector<8x8xf32>
    %89 = tpu.matmul %88, %75, %cst_39 {dimension_numbers = #tpu.dot_dimension_numbers<[1], [0], [0], [1], [0, 0, 1, 1], [], []>} : vector<8x16xf32>, vector<16x8xf32>, vector<8x8xf32> -> vector<8x8xf32>
    %90 = tpu.concatenate %38, %55, %72, %89 in 1 : vector<8x8xf32>, vector<8x8xf32>, vector<8x8xf32>, vector<8x8xf32> -> vector<8x32xf32>
    %c0_40 = arith.constant 0 : index
    %c0_41 = arith.constant 0 : index
    %91 = vector.load %arg13[%c0_40, %c0_41] : memref<32x32xf32, #tpu.memory_space<vmem>>, vector<32x32xf32>
    %cst_42 = arith.constant dense<0.000000e+00> : vector<8x32xf32>
    %92 = tpu.matmul %90, %91, %cst_42 {dimension_numbers = #tpu.dot_dimension_numbers<[1], [0], [0], [1], [0, 0, 1, 1], [], []>} : vector<8x32xf32>, vector<32x32xf32>, vector<8x32xf32> -> vector<8x32xf32>
    %c0_43 = arith.constant 0 : index
    %c0_44 = arith.constant 0 : index
    %93 = vector.load %arg14[%c0_43, %c0_44] : memref<1x32xf32, #tpu.memory_space<vmem>>, vector<1x32xf32>
    %94 = vector.broadcast %93 : vector<1x32xf32> to vector<8x32xf32>
    %95 = arith.addf %92, %94 : vector<8x32xf32>
    %96 = arith.addf %4, %95 : vector<8x32xf32>
    %cst_45 = arith.constant dense<0.000000e+00> : vector<8xf32>
    %97 = vector.multi_reduction <add>, %96, %cst_45 [1] : vector<8x32xf32> to vector<8xf32>
    %98 = vector.shape_cast %97 : vector<8xf32> to vector<8x1xf32>
    %cst_46 = arith.constant 3.200000e+01 : f32
    %99 = vector.broadcast %cst_46 : f32 to vector<8x1xf32>
    %100 = arith.divf %98, %99 : vector<8x1xf32>
    %101 = vector.broadcast %100 : vector<8x1xf32> to vector<8x32xf32>
    %102 = arith.subf %96, %101 : vector<8x32xf32>
    %103 = arith.mulf %102, %102 : vector<8x32xf32>
    %cst_47 = arith.constant dense<0.000000e+00> : vector<8xf32>
    %104 = vector.multi_reduction <add>, %103, %cst_47 [1] : vector<8x32xf32> to vector<8xf32>
    %105 = vector.shape_cast %104 : vector<8xf32> to vector<8x1xf32>
    %cst_48 = arith.constant 3.200000e+01 : f32
    %106 = vector.broadcast %cst_48 : f32 to vector<8x1xf32>
    %107 = arith.divf %105, %106 : vector<8x1xf32>
    %108 = vector.broadcast %100 : vector<8x1xf32> to vector<8x32xf32>
    %109 = arith.subf %96, %108 : vector<8x32xf32>
    %cst_49 = arith.constant 9.99999974E-6 : f32
    %110 = vector.broadcast %cst_49 : f32 to vector<8x1xf32>
    %111 = arith.addf %107, %110 : vector<8x1xf32>
    %112 = math.rsqrt %111 : vector<8x1xf32>
    %113 = vector.broadcast %112 : vector<8x1xf32> to vector<8x32xf32>
    %114 = arith.mulf %109, %113 : vector<8x32xf32>
    %c0_50 = arith.constant 0 : index
    %c0_51 = arith.constant 0 : index
    %115 = vector.load %arg27[%c0_50, %c0_51] : memref<1x32xf32, #tpu.memory_space<vmem>>, vector<1x32xf32>
    %116 = vector.broadcast %115 : vector<1x32xf32> to vector<8x32xf32>
    %117 = arith.mulf %114, %116 : vector<8x32xf32>
    %c0_52 = arith.constant 0 : index
    %c0_53 = arith.constant 0 : index
    %118 = vector.load %arg28[%c0_52, %c0_53] : memref<1x32xf32, #tpu.memory_space<vmem>>, vector<1x32xf32>
    %119 = vector.broadcast %118 : vector<1x32xf32> to vector<8x32xf32>
    %120 = arith.addf %117, %119 : vector<8x32xf32>
    %c0_54 = arith.constant 0 : index
    %c0_55 = arith.constant 0 : index
    %121 = vector.load %arg15[%c0_54, %c0_55] : memref<32x32xf32, #tpu.memory_space<vmem>>, vector<32x32xf32>
    %cst_56 = arith.constant dense<0.000000e+00> : vector<8x32xf32>
    %122 = tpu.matmul %120, %121, %cst_56 {dimension_numbers = #tpu.dot_dimension_numbers<[1], [0], [0], [1], [0, 0, 1, 1], [], []>} : vector<8x32xf32>, vector<32x32xf32>, vector<8x32xf32> -> vector<8x32xf32>
    %c0_57 = arith.constant 0 : index
    %c0_58 = arith.constant 0 : index
    %123 = vector.load %arg16[%c0_57, %c0_58] : memref<1x32xf32, #tpu.memory_space<vmem>>, vector<1x32xf32>
    %124 = vector.broadcast %123 : vector<1x32xf32> to vector<8x32xf32>
    %125 = arith.addf %122, %124 : vector<8x32xf32>
    %cst_59 = arith.constant 0.353553385 : f32
    %126 = vector.broadcast %cst_59 : f32 to vector<8x32xf32>
    %127 = arith.mulf %125, %126 : vector<8x32xf32>
    %c0_60 = arith.constant 0 : index
    %c0_61 = arith.constant 0 : index
    %128 = vector.load %arg36[%c0_60, %c0_61] : memref<16x32xf32, #tpu.memory_space<vmem>>, vector<16x32xf32>
    %c0_62 = arith.constant 0 : index
    %c0_63 = arith.constant 0 : index
    %129 = vector.load %arg37[%c0_62, %c0_63] : memref<16x32xf32, #tpu.memory_space<vmem>>, vector<16x32xf32>
    %130 = vector.extract_strided_slice %127 {offsets = [0, 0], sizes = [8, 8], strides = [1, 1]} : vector<8x32xf32> to vector<8x8xf32>
    %131 = vector.extract_strided_slice %128 {offsets = [0, 0], sizes = [16, 8], strides = [1, 1]} : vector<16x32xf32> to vector<16x8xf32>
    %132 = vector.extract_strided_slice %129 {offsets = [0, 0], sizes = [16, 8], strides = [1, 1]} : vector<16x32xf32> to vector<16x8xf32>
    %cst_64 = arith.constant dense<0.000000e+00> : vector<8x16xf32>
    %133 = tpu.matmul %130, %131, %cst_64 {dimension_numbers = #tpu.dot_dimension_numbers<[1], [1], [0], [0], [0, 0, 1, 0], [], []>} : vector<8x8xf32>, vector<16x8xf32>, vector<8x16xf32> -> vector<8x16xf32>
    %cst_65 = arith.constant -1.000000e+09 : f32
    %134 = vector.broadcast %cst_65 : f32 to vector<8x16xf32>
    %135 = arith.select %12, %133, %134 : vector<8x16xi1>, vector<8x16xf32>
    %cst_66 = arith.constant dense<0xFF800000> : vector<8xf32>
    %136 = vector.multi_reduction <maximumf>, %135, %cst_66 [1] : vector<8x16xf32> to vector<8xf32>
    %137 = vector.shape_cast %136 : vector<8xf32> to vector<8x1xf32>
    %138 = vector.broadcast %137 : vector<8x1xf32> to vector<8x16xf32>
    %139 = arith.subf %135, %138 : vector<8x16xf32>
    %140 = math.exp %139 : vector<8x16xf32>
    %cst_67 = arith.constant dense<0.000000e+00> : vector<8xf32>
    %141 = vector.multi_reduction <add>, %140, %cst_67 [1] : vector<8x16xf32> to vector<8xf32>
    %142 = vector.shape_cast %141 : vector<8xf32> to vector<8x1xf32>
    %143 = tpu.reciprocal %142 {approx = true} : vector<8x1xf32> -> vector<8x1xf32>
    %144 = vector.broadcast %143 : vector<8x1xf32> to vector<8x16xf32>
    %145 = arith.mulf %140, %144 : vector<8x16xf32>
    %cst_68 = arith.constant dense<0.000000e+00> : vector<8x8xf32>
    %146 = tpu.matmul %145, %132, %cst_68 {dimension_numbers = #tpu.dot_dimension_numbers<[1], [0], [0], [1], [0, 0, 1, 1], [], []>} : vector<8x16xf32>, vector<16x8xf32>, vector<8x8xf32> -> vector<8x8xf32>
    %147 = vector.extract_strided_slice %127 {offsets = [0, 8], sizes = [8, 8], strides = [1, 1]} : vector<8x32xf32> to vector<8x8xf32>
    %148 = vector.extract_strided_slice %128 {offsets = [0, 8], sizes = [16, 8], strides = [1, 1]} : vector<16x32xf32> to vector<16x8xf32>
    %149 = vector.extract_strided_slice %129 {offsets = [0, 8], sizes = [16, 8], strides = [1, 1]} : vector<16x32xf32> to vector<16x8xf32>
    %cst_69 = arith.constant dense<0.000000e+00> : vector<8x16xf32>
    %150 = tpu.matmul %147, %148, %cst_69 {dimension_numbers = #tpu.dot_dimension_numbers<[1], [1], [0], [0], [0, 0, 1, 0], [], []>} : vector<8x8xf32>, vector<16x8xf32>, vector<8x16xf32> -> vector<8x16xf32>
    %cst_70 = arith.constant -1.000000e+09 : f32
    %151 = vector.broadcast %cst_70 : f32 to vector<8x16xf32>
    %152 = arith.select %12, %150, %151 : vector<8x16xi1>, vector<8x16xf32>
    %cst_71 = arith.constant dense<0xFF800000> : vector<8xf32>
    %153 = vector.multi_reduction <maximumf>, %152, %cst_71 [1] : vector<8x16xf32> to vector<8xf32>
    %154 = vector.shape_cast %153 : vector<8xf32> to vector<8x1xf32>
    %155 = vector.broadcast %154 : vector<8x1xf32> to vector<8x16xf32>
    %156 = arith.subf %152, %155 : vector<8x16xf32>
    %157 = math.exp %156 : vector<8x16xf32>
    %cst_72 = arith.constant dense<0.000000e+00> : vector<8xf32>
    %158 = vector.multi_reduction <add>, %157, %cst_72 [1] : vector<8x16xf32> to vector<8xf32>
    %159 = vector.shape_cast %158 : vector<8xf32> to vector<8x1xf32>
    %160 = tpu.reciprocal %159 {approx = true} : vector<8x1xf32> -> vector<8x1xf32>
    %161 = vector.broadcast %160 : vector<8x1xf32> to vector<8x16xf32>
    %162 = arith.mulf %157, %161 : vector<8x16xf32>
    %cst_73 = arith.constant dense<0.000000e+00> : vector<8x8xf32>
    %163 = tpu.matmul %162, %149, %cst_73 {dimension_numbers = #tpu.dot_dimension_numbers<[1], [0], [0], [1], [0, 0, 1, 1], [], []>} : vector<8x16xf32>, vector<16x8xf32>, vector<8x8xf32> -> vector<8x8xf32>
    %164 = vector.extract_strided_slice %127 {offsets = [0, 16], sizes = [8, 8], strides = [1, 1]} : vector<8x32xf32> to vector<8x8xf32>
    %165 = vector.extract_strided_slice %128 {offsets = [0, 16], sizes = [16, 8], strides = [1, 1]} : vector<16x32xf32> to vector<16x8xf32>
    %166 = vector.extract_strided_slice %129 {offsets = [0, 16], sizes = [16, 8], strides = [1, 1]} : vector<16x32xf32> to vector<16x8xf32>
    %cst_74 = arith.constant dense<0.000000e+00> : vector<8x16xf32>
    %167 = tpu.matmul %164, %165, %cst_74 {dimension_numbers = #tpu.dot_dimension_numbers<[1], [1], [0], [0], [0, 0, 1, 0], [], []>} : vector<8x8xf32>, vector<16x8xf32>, vector<8x16xf32> -> vector<8x16xf32>
    %cst_75 = arith.constant -1.000000e+09 : f32
    %168 = vector.broadcast %cst_75 : f32 to vector<8x16xf32>
    %169 = arith.select %12, %167, %168 : vector<8x16xi1>, vector<8x16xf32>
    %cst_76 = arith.constant dense<0xFF800000> : vector<8xf32>
    %170 = vector.multi_reduction <maximumf>, %169, %cst_76 [1] : vector<8x16xf32> to vector<8xf32>
    %171 = vector.shape_cast %170 : vector<8xf32> to vector<8x1xf32>
    %172 = vector.broadcast %171 : vector<8x1xf32> to vector<8x16xf32>
    %173 = arith.subf %169, %172 : vector<8x16xf32>
    %174 = math.exp %173 : vector<8x16xf32>
    %cst_77 = arith.constant dense<0.000000e+00> : vector<8xf32>
    %175 = vector.multi_reduction <add>, %174, %cst_77 [1] : vector<8x16xf32> to vector<8xf32>
    %176 = vector.shape_cast %175 : vector<8xf32> to vector<8x1xf32>
    %177 = tpu.reciprocal %176 {approx = true} : vector<8x1xf32> -> vector<8x1xf32>
    %178 = vector.broadcast %177 : vector<8x1xf32> to vector<8x16xf32>
    %179 = arith.mulf %174, %178 : vector<8x16xf32>
    %cst_78 = arith.constant dense<0.000000e+00> : vector<8x8xf32>
    %180 = tpu.matmul %179, %166, %cst_78 {dimension_numbers = #tpu.dot_dimension_numbers<[1], [0], [0], [1], [0, 0, 1, 1], [], []>} : vector<8x16xf32>, vector<16x8xf32>, vector<8x8xf32> -> vector<8x8xf32>
    %181 = vector.extract_strided_slice %127 {offsets = [0, 24], sizes = [8, 8], strides = [1, 1]} : vector<8x32xf32> to vector<8x8xf32>
    %182 = vector.extract_strided_slice %128 {offsets = [0, 24], sizes = [16, 8], strides = [1, 1]} : vector<16x32xf32> to vector<16x8xf32>
    %183 = vector.extract_strided_slice %129 {offsets = [0, 24], sizes = [16, 8], strides = [1, 1]} : vector<16x32xf32> to vector<16x8xf32>
    %cst_79 = arith.constant dense<0.000000e+00> : vector<8x16xf32>
    %184 = tpu.matmul %181, %182, %cst_79 {dimension_numbers = #tpu.dot_dimension_numbers<[1], [1], [0], [0], [0, 0, 1, 0], [], []>} : vector<8x8xf32>, vector<16x8xf32>, vector<8x16xf32> -> vector<8x16xf32>
    %cst_80 = arith.constant -1.000000e+09 : f32
    %185 = vector.broadcast %cst_80 : f32 to vector<8x16xf32>
    %186 = arith.select %12, %184, %185 : vector<8x16xi1>, vector<8x16xf32>
    %cst_81 = arith.constant dense<0xFF800000> : vector<8xf32>
    %187 = vector.multi_reduction <maximumf>, %186, %cst_81 [1] : vector<8x16xf32> to vector<8xf32>
    %188 = vector.shape_cast %187 : vector<8xf32> to vector<8x1xf32>
    %189 = vector.broadcast %188 : vector<8x1xf32> to vector<8x16xf32>
    %190 = arith.subf %186, %189 : vector<8x16xf32>
    %191 = math.exp %190 : vector<8x16xf32>
    %cst_82 = arith.constant dense<0.000000e+00> : vector<8xf32>
    %192 = vector.multi_reduction <add>, %191, %cst_82 [1] : vector<8x16xf32> to vector<8xf32>
    %193 = vector.shape_cast %192 : vector<8xf32> to vector<8x1xf32>
    %194 = tpu.reciprocal %193 {approx = true} : vector<8x1xf32> -> vector<8x1xf32>
    %195 = vector.broadcast %194 : vector<8x1xf32> to vector<8x16xf32>
    %196 = arith.mulf %191, %195 : vector<8x16xf32>
    %cst_83 = arith.constant dense<0.000000e+00> : vector<8x8xf32>
    %197 = tpu.matmul %196, %183, %cst_83 {dimension_numbers = #tpu.dot_dimension_numbers<[1], [0], [0], [1], [0, 0, 1, 1], [], []>} : vector<8x16xf32>, vector<16x8xf32>, vector<8x8xf32> -> vector<8x8xf32>
    %198 = tpu.concatenate %146, %163, %180, %197 in 1 : vector<8x8xf32>, vector<8x8xf32>, vector<8x8xf32>, vector<8x8xf32> -> vector<8x32xf32>
    %c0_84 = arith.constant 0 : index
    %c0_85 = arith.constant 0 : index
    %199 = vector.load %arg21[%c0_84, %c0_85] : memref<32x32xf32, #tpu.memory_space<vmem>>, vector<32x32xf32>
    %cst_86 = arith.constant dense<0.000000e+00> : vector<8x32xf32>
    %200 = tpu.matmul %198, %199, %cst_86 {dimension_numbers = #tpu.dot_dimension_numbers<[1], [0], [0], [1], [0, 0, 1, 1], [], []>} : vector<8x32xf32>, vector<32x32xf32>, vector<8x32xf32> -> vector<8x32xf32>
    %c0_87 = arith.constant 0 : index
    %c0_88 = arith.constant 0 : index
    %201 = vector.load %arg22[%c0_87, %c0_88] : memref<1x32xf32, #tpu.memory_space<vmem>>, vector<1x32xf32>
    %202 = vector.broadcast %201 : vector<1x32xf32> to vector<8x32xf32>
    %203 = arith.addf %200, %202 : vector<8x32xf32>
    %204 = arith.addf %120, %203 : vector<8x32xf32>
    %cst_89 = arith.constant dense<0.000000e+00> : vector<8xf32>
    %205 = vector.multi_reduction <add>, %204, %cst_89 [1] : vector<8x32xf32> to vector<8xf32>
    %206 = vector.shape_cast %205 : vector<8xf32> to vector<8x1xf32>
    %cst_90 = arith.constant 3.200000e+01 : f32
    %207 = vector.broadcast %cst_90 : f32 to vector<8x1xf32>
    %208 = arith.divf %206, %207 : vector<8x1xf32>
    %209 = vector.broadcast %208 : vector<8x1xf32> to vector<8x32xf32>
    %210 = arith.subf %204, %209 : vector<8x32xf32>
    %211 = arith.mulf %210, %210 : vector<8x32xf32>
    %cst_91 = arith.constant dense<0.000000e+00> : vector<8xf32>
    %212 = vector.multi_reduction <add>, %211, %cst_91 [1] : vector<8x32xf32> to vector<8xf32>
    %213 = vector.shape_cast %212 : vector<8xf32> to vector<8x1xf32>
    %cst_92 = arith.constant 3.200000e+01 : f32
    %214 = vector.broadcast %cst_92 : f32 to vector<8x1xf32>
    %215 = arith.divf %213, %214 : vector<8x1xf32>
    %216 = vector.broadcast %208 : vector<8x1xf32> to vector<8x32xf32>
    %217 = arith.subf %204, %216 : vector<8x32xf32>
    %cst_93 = arith.constant 9.99999974E-6 : f32
    %218 = vector.broadcast %cst_93 : f32 to vector<8x1xf32>
    %219 = arith.addf %215, %218 : vector<8x1xf32>
    %220 = math.rsqrt %219 : vector<8x1xf32>
    %221 = vector.broadcast %220 : vector<8x1xf32> to vector<8x32xf32>
    %222 = arith.mulf %217, %221 : vector<8x32xf32>
    %c0_94 = arith.constant 0 : index
    %c0_95 = arith.constant 0 : index
    %223 = vector.load %arg29[%c0_94, %c0_95] : memref<1x32xf32, #tpu.memory_space<vmem>>, vector<1x32xf32>
    %224 = vector.broadcast %223 : vector<1x32xf32> to vector<8x32xf32>
    %225 = arith.mulf %222, %224 : vector<8x32xf32>
    %c0_96 = arith.constant 0 : index
    %c0_97 = arith.constant 0 : index
    %226 = vector.load %arg30[%c0_96, %c0_97] : memref<1x32xf32, #tpu.memory_space<vmem>>, vector<1x32xf32>
    %227 = vector.broadcast %226 : vector<1x32xf32> to vector<8x32xf32>
    %228 = arith.addf %225, %227 : vector<8x32xf32>
    %c0_98 = arith.constant 0 : index
    %c0_99 = arith.constant 0 : index
    %229 = vector.load %arg23[%c0_98, %c0_99] : memref<32x64xf32, #tpu.memory_space<vmem>>, vector<32x64xf32>
    %cst_100 = arith.constant dense<0.000000e+00> : vector<8x64xf32>
    %230 = tpu.matmul %228, %229, %cst_100 {dimension_numbers = #tpu.dot_dimension_numbers<[1], [0], [0], [1], [0, 0, 1, 1], [], []>} : vector<8x32xf32>, vector<32x64xf32>, vector<8x64xf32> -> vector<8x64xf32>
    %c0_101 = arith.constant 0 : index
    %c0_102 = arith.constant 0 : index
    %231 = vector.load %arg24[%c0_101, %c0_102] : memref<1x64xf32, #tpu.memory_space<vmem>>, vector<1x64xf32>
    %232 = vector.broadcast %231 : vector<1x64xf32> to vector<8x64xf32>
    %233 = arith.addf %230, %232 : vector<8x64xf32>
    %cst_103 = arith.constant 0.000000e+00 : f32
    %234 = vector.broadcast %cst_103 : f32 to vector<8x64xf32>
    %235 = arith.maximumf %233, %234 : vector<8x64xf32>
    %c0_104 = arith.constant 0 : index
    %c0_105 = arith.constant 0 : index
    %236 = vector.load %arg25[%c0_104, %c0_105] : memref<64x32xf32, #tpu.memory_space<vmem>>, vector<64x32xf32>
    %cst_106 = arith.constant dense<0.000000e+00> : vector<8x32xf32>
    %237 = tpu.matmul %235, %236, %cst_106 {dimension_numbers = #tpu.dot_dimension_numbers<[1], [0], [0], [1], [0, 0, 1, 1], [], []>} : vector<8x64xf32>, vector<64x32xf32>, vector<8x32xf32> -> vector<8x32xf32>
    %c0_107 = arith.constant 0 : index
    %c0_108 = arith.constant 0 : index
    %238 = vector.load %arg26[%c0_107, %c0_108] : memref<1x32xf32, #tpu.memory_space<vmem>>, vector<1x32xf32>
    %239 = vector.broadcast %238 : vector<1x32xf32> to vector<8x32xf32>
    %240 = arith.addf %237, %239 : vector<8x32xf32>
    %241 = arith.addf %228, %240 : vector<8x32xf32>
    %cst_109 = arith.constant dense<0.000000e+00> : vector<8xf32>
    %242 = vector.multi_reduction <add>, %241, %cst_109 [1] : vector<8x32xf32> to vector<8xf32>
    %243 = vector.shape_cast %242 : vector<8xf32> to vector<8x1xf32>
    %cst_110 = arith.constant 3.200000e+01 : f32
    %244 = vector.broadcast %cst_110 : f32 to vector<8x1xf32>
    %245 = arith.divf %243, %244 : vector<8x1xf32>
    %246 = vector.broadcast %245 : vector<8x1xf32> to vector<8x32xf32>
    %247 = arith.subf %241, %246 : vector<8x32xf32>
    %248 = arith.mulf %247, %247 : vector<8x32xf32>
    %cst_111 = arith.constant dense<0.000000e+00> : vector<8xf32>
    %249 = vector.multi_reduction <add>, %248, %cst_111 [1] : vector<8x32xf32> to vector<8xf32>
    %250 = vector.shape_cast %249 : vector<8xf32> to vector<8x1xf32>
    %cst_112 = arith.constant 3.200000e+01 : f32
    %251 = vector.broadcast %cst_112 : f32 to vector<8x1xf32>
    %252 = arith.divf %250, %251 : vector<8x1xf32>
    %253 = vector.broadcast %245 : vector<8x1xf32> to vector<8x32xf32>
    %254 = arith.subf %241, %253 : vector<8x32xf32>
    %cst_113 = arith.constant 9.99999974E-6 : f32
    %255 = vector.broadcast %cst_113 : f32 to vector<8x1xf32>
    %256 = arith.addf %252, %255 : vector<8x1xf32>
    %257 = math.rsqrt %256 : vector<8x1xf32>
    %258 = vector.broadcast %257 : vector<8x1xf32> to vector<8x32xf32>
    %259 = arith.mulf %254, %258 : vector<8x32xf32>
    %c0_114 = arith.constant 0 : index
    %c0_115 = arith.constant 0 : index
    %260 = vector.load %arg31[%c0_114, %c0_115] : memref<1x32xf32, #tpu.memory_space<vmem>>, vector<1x32xf32>
    %261 = vector.broadcast %260 : vector<1x32xf32> to vector<8x32xf32>
    %262 = arith.mulf %259, %261 : vector<8x32xf32>
    %c0_116 = arith.constant 0 : index
    %c0_117 = arith.constant 0 : index
    %263 = vector.load %arg32[%c0_116, %c0_117] : memref<1x32xf32, #tpu.memory_space<vmem>>, vector<1x32xf32>
    %264 = vector.broadcast %263 : vector<1x32xf32> to vector<8x32xf32>
    %265 = arith.addf %262, %264 : vector<8x32xf32>
    %c0_118 = arith.constant 0 : index
    %c0_119 = arith.constant 0 : index
    %c0_120 = arith.constant 0 : index
    %266 = vector.load %arg33[%c0_118, %c0_119, %c0_120] : memref<1x8x32xf32, #tpu.memory_space<vmem>>, vector<1x8x32xf32>
    %267 = vector.shape_cast %266 : vector<1x8x32xf32> to vector<8x32xf32>
    %268 = vector.shape_cast %265 : vector<8x32xf32> to vector<1x8x32xf32>
    tpu.vector_store %arg33[%c0_118, %c0_119, %c0_120], %268 {strides = array<i32>} : memref<1x8x32xf32, #tpu.memory_space<vmem>>, vector<1x8x32xf32>,
    return
  }
  func.func @transform_0(%arg0: i32, %arg1: i32) -> (i32, i32, i32) {
    %c0_i32 = arith.constant 0 : i32
    %c0_i32_0 = arith.constant 0 : i32
    return %arg0, %arg1, %c0_i32 : i32, i32, i32
  }
  func.func @transform_1(%arg0: i32, %arg1: i32) -> (i32, i32, i32) {
    %c0_i32 = arith.constant 0 : i32
    %c0_i32_0 = arith.constant 0 : i32
    %c0_i32_1 = arith.constant 0 : i32
    return %arg0, %c0_i32, %c0_i32_0 : i32, i32, i32
  }
  func.func @transform_2(%arg0: i32, %arg1: i32) -> (i32, i32, i32) {
    %c0_i32 = arith.constant 0 : i32
    %c0_i32_0 = arith.constant 0 : i32
    %c0_i32_1 = arith.constant 0 : i32
    return %arg0, %c0_i32, %c0_i32_0 : i32, i32, i32
  }
  func.func @transform_3(%arg0: i32, %arg1: i32) -> (i32, i32, i32) {
    %c0_i32 = arith.constant 0 : i32
    %c0_i32_0 = arith.constant 0 : i32
    return %arg0, %arg1, %c0_i32 : i32, i32, i32
  }
  func.func @transform_4(%arg0: i32, %arg1: i32) -> (i32, i32, i32) {
    %c0_i32 = arith.constant 0 : i32
    %c0_i32_0 = arith.constant 0 : i32
    return %arg0, %arg1, %c0_i32 : i32, i32, i32
  }
  func.func @transform_5(%arg0: i32, %arg1: i32) -> (i32, i32) {
    %c0_i32 = arith.constant 0 : i32
    %c0_i32_0 = arith.constant 0 : i32
    %c0_i32_1 = arith.constant 0 : i32
    return %c0_i32, %c0_i32_0 : i32, i32
  }
  func.func @transform_6(%arg0: i32, %arg1: i32) -> (i32, i32) {
    %c0_i32 = arith.constant 0 : i32
    %c0_i32_0 = arith.constant 0 : i32
    %c0_i32_1 = arith.constant 0 : i32
    return %c0_i32, %c0_i32_0 : i32, i32
  }
  func.func @transform_7(%arg0: i32, %arg1: i32) -> (i32, i32) {
    %c0_i32 = arith.constant 0 : i32
    %c0_i32_0 = arith.constant 0 : i32
    %c0_i32_1 = arith.constant 0 : i32
    return %c0_i32, %c0_i32_0 : i32, i32
  }
  func.func @transform_8(%arg0: i32, %arg1: i32) -> (i32, i32) {
    %c0_i32 = arith.constant 0 : i32
    %c0_i32_0 = arith.constant 0 : i32
    %c0_i32_1 = arith.constant 0 : i32
    return %c0_i32, %c0_i32_0 : i32, i32
  }
  func.func @transform_9(%arg0: i32, %arg1: i32) -> (i32, i32) {
    %c0_i32 = arith.constant 0 : i32
    %c0_i32_0 = arith.constant 0 : i32
    %c0_i32_1 = arith.constant 0 : i32
    return %c0_i32, %c0_i32_0 : i32, i32
  }
  func.func @transform_10(%arg0: i32, %arg1: i32) -> (i32, i32) {
    %c0_i32 = arith.constant 0 : i32
    %c0_i32_0 = arith.constant 0 : i32
    %c0_i32_1 = arith.constant 0 : i32
    return %c0_i32, %c0_i32_0 : i32, i32
  }
  func.func @transform_11(%arg0: i32, %arg1: i32) -> (i32, i32) {
    %c0_i32 = arith.constant 0 : i32
    %c0_i32_0 = arith.constant 0 : i32
    %c0_i32_1 = arith.constant 0 : i32
    return %c0_i32, %c0_i32_0 : i32, i32
  }
  func.func @transform_12(%arg0: i32, %arg1: i32) -> (i32, i32) {
    %c0_i32 = arith.constant 0 : i32
    %c0_i32_0 = arith.constant 0 : i32
    %c0_i32_1 = arith.constant 0 : i32
    return %c0_i32, %c0_i32_0 : i32, i32
  }
  func.func @transform_13(%arg0: i32, %arg1: i32) -> (i32, i32) {
    %c0_i32 = arith.constant 0 : i32
    %c0_i32_0 = arith.constant 0 : i32
    %c0_i32_1 = arith.constant 0 : i32
    return %c0_i32, %c0_i32_0 : i32, i32
  }
  func.func @transform_14(%arg0: i32, %arg1: i32) -> (i32, i32) {
    %c0_i32 = arith.constant 0 : i32
    %c0_i32_0 = arith.constant 0 : i32
    %c0_i32_1 = arith.constant 0 : i32
    return %c0_i32, %c0_i32_0 : i32, i32
  }
  func.func @transform_15(%arg0: i32, %arg1: i32) -> (i32, i32) {
    %c0_i32 = arith.constant 0 : i32
    %c0_i32_0 = arith.constant 0 : i32
    %c0_i32_1 = arith.constant 0 : i32
    return %c0_i32, %c0_i32_0 : i32, i32
  }
  func.func @transform_16(%arg0: i32, %arg1: i32) -> (i32, i32) {
    %c0_i32 = arith.constant 0 : i32
    %c0_i32_0 = arith.constant 0 : i32
    %c0_i32_1 = arith.constant 0 : i32
    return %c0_i32, %c0_i32_0 : i32, i32
  }
  func.func @transform_17(%arg0: i32, %arg1: i32) -> (i32, i32) {
    %c0_i32 = arith.constant 0 : i32
    %c0_i32_0 = arith.constant 0 : i32
    %c0_i32_1 = arith.constant 0 : i32
    return %c0_i32, %c0_i32_0 : i32, i32
  }
  func.func @transform_18(%arg0: i32, %arg1: i32) -> (i32, i32) {
    %c0_i32 = arith.constant 0 : i32
    %c0_i32_0 = arith.constant 0 : i32
    %c0_i32_1 = arith.constant 0 : i32
    return %c0_i32, %c0_i32_0 : i32, i32
  }
  func.func @transform_19(%arg0: i32, %arg1: i32) -> (i32, i32) {
    %c0_i32 = arith.constant 0 : i32
    %c0_i32_0 = arith.constant 0 : i32
    %c0_i32_1 = arith.constant 0 : i32
    return %c0_i32, %c0_i32_0 : i32, i32
  }
  func.func @transform_20(%arg0: i32, %arg1: i32) -> (i32, i32) {
    %c0_i32 = arith.constant 0 : i32
    %c0_i32_0 = arith.constant 0 : i32
    %c0_i32_1 = arith.constant 0 : i32
    return %c0_i32, %c0_i32_0 : i32, i32
  }
  func.func @transform_21(%arg0: i32, %arg1: i32) -> (i32, i32) {
    %c0_i32 = arith.constant 0 : i32
    %c0_i32_0 = arith.constant 0 : i32
    %c0_i32_1 = arith.constant 0 : i32
    return %c0_i32, %c0_i32_0 : i32, i32
  }
  func.func @transform_22(%arg0: i32, %arg1: i32) -> (i32, i32) {
    %c0_i32 = arith.constant 0 : i32
    %c0_i32_0 = arith.constant 0 : i32
    %c0_i32_1 = arith.constant 0 : i32
    return %c0_i32, %c0_i32_0 : i32, i32
  }
  func.func @transform_23(%arg0: i32, %arg1: i32) -> (i32, i32) {
    %c0_i32 = arith.constant 0 : i32
    %c0_i32_0 = arith.constant 0 : i32
    %c0_i32_1 = arith.constant 0 : i32
    return %c0_i32, %c0_i32_0 : i32, i32
  }
  func.func @transform_24(%arg0: i32, %arg1: i32) -> (i32, i32) {
    %c0_i32 = arith.constant 0 : i32
    %c0_i32_0 = arith.constant 0 : i32
    %c0_i32_1 = arith.constant 0 : i32
    return %c0_i32, %c0_i32_0 : i32, i32
  }
  func.func @transform_25(%arg0: i32, %arg1: i32) -> (i32, i32) {
    %c0_i32 = arith.constant 0 : i32
    %c0_i32_0 = arith.constant 0 : i32
    %c0_i32_1 = arith.constant 0 : i32
    return %c0_i32, %c0_i32_0 : i32, i32
  }
  func.func @transform_26(%arg0: i32, %arg1: i32) -> (i32, i32) {
    %c0_i32 = arith.constant 0 : i32
    %c0_i32_0 = arith.constant 0 : i32
    %c0_i32_1 = arith.constant 0 : i32
    return %c0_i32, %c0_i32_0 : i32, i32
  }
  func.func @transform_27(%arg0: i32, %arg1: i32) -> (i32, i32) {
    %c0_i32 = arith.constant 0 : i32
    %c0_i32_0 = arith.constant 0 : i32
    %c0_i32_1 = arith.constant 0 : i32
    return %c0_i32, %c0_i32_0 : i32, i32
  }
  func.func @transform_28(%arg0: i32, %arg1: i32) -> (i32, i32) {
    %c0_i32 = arith.constant 0 : i32
    %c0_i32_0 = arith.constant 0 : i32
    %c0_i32_1 = arith.constant 0 : i32
    return %c0_i32, %c0_i32_0 : i32, i32
  }
  func.func @transform_29(%arg0: i32, %arg1: i32) -> (i32, i32) {
    %c0_i32 = arith.constant 0 : i32
    %c0_i32_0 = arith.constant 0 : i32
    %c0_i32_1 = arith.constant 0 : i32
    return %c0_i32, %c0_i32_0 : i32, i32
  }
  func.func @transform_30(%arg0: i32, %arg1: i32) -> (i32, i32) {
    %c0_i32 = arith.constant 0 : i32
    %c0_i32_0 = arith.constant 0 : i32
    %c0_i32_1 = arith.constant 0 : i32
    return %c0_i32, %c0_i32_0 : i32, i32
  }
  func.func @transform_31(%arg0: i32, %arg1: i32) -> (i32, i32, i32) {
    %c0_i32 = arith.constant 0 : i32
    %c0_i32_0 = arith.constant 0 : i32
    return %arg0, %arg1, %c0_i32 : i32, i32, i32
  }
}

</mosaic_0001>

<llo_original>
// kernel: tpu_custom_call.1
$region0: #{tpu_custom_call.1}
  #allocation0 [shape = 'u32[]', space=smem, size = 0x4, offset = 0x4, fixed_abs, tag = 'smem constant byte address 0x4 - core index']
  #allocation1 [shape = 'u32[144,128]{1,0:T(1,128)}', space=vmem, size = 0x12000, scoped, tag = 'internal scratch']
  #allocation2 [shape = 'f32[16,32]{1,0:T(8,128)}', space=vmem, size = 0x2000, scoped, tag = 'scratch operand']
  #allocation3 [shape = 'f32[16,32]{1,0:T(8,128)}', space=vmem, size = 0x2000, scoped, tag = 'scratch operand']
  #allocation4 [shape = 'f32[16,32]{1,0:T(8,128)}', space=vmem, size = 0x2000, scoped, tag = 'scratch operand']
  #allocation5 [shape = 'f32[16,32]{1,0:T(8,128)}', space=vmem, size = 0x2000, scoped, tag = 'scratch operand']
  %s0 = inlined_call_operand.smem [shape: u32[32], index: -1, kind: input, shape index: {}]
  %s1 = sld [smem:[%s0]]
  %s2 = scalar_lea.smem %s0, 1
  %s3 = sld [smem:[%s2]]
  %s4 = scalar_lea.smem %s0, 2
  %s5 = sld [smem:[%s4]]
  %s6 = scalar_lea.smem %s0, 3
  %s7 = sld [smem:[%s6]]
  %s8 = scalar_lea.smem %s0, 4
  %s9 = sld [smem:[%s8]]
  %s10 = scalar_lea.smem %s0, 5
  %s11 = sld [smem:[%s10]]
  %s12 = scalar_lea.smem %s0, 6
  %s13 = sld [smem:[%s12]]
  %s14 = scalar_lea.smem %s0, 7
  %s15 = sld [smem:[%s14]]
  %s16 = scalar_lea.smem %s0, 8
  %s17 = sld [smem:[%s16]]
  %s18 = scalar_lea.smem %s0, 9
  %s19 = sld [smem:[%s18]]
  %s20 = scalar_lea.smem %s0, 10
  %s21 = sld [smem:[%s20]]
  %s22 = scalar_lea.smem %s0, 11
  %s23 = sld [smem:[%s22]]
  %s24 = scalar_lea.smem %s0, 12
  %s25 = sld [smem:[%s24]]
  %s26 = scalar_lea.smem %s0, 13
  %s27 = sld [smem:[%s26]]
  %s28 = scalar_lea.smem %s0, 14
  %s29 = sld [smem:[%s28]]
  %s30 = scalar_lea.smem %s0, 15
  %s31 = sld [smem:[%s30]]
  %s32 = scalar_lea.smem %s0, 16
  %s33 = sld [smem:[%s32]]
  %s34 = scalar_lea.smem %s0, 17
  %s35 = sld [smem:[%s34]]
  %s36 = scalar_lea.smem %s0, 18
  %s37 = sld [smem:[%s36]]
  %s38 = scalar_lea.smem %s0, 19
  %s39 = sld [smem:[%s38]]
  %s40 = scalar_lea.smem %s0, 20
  %s41 = sld [smem:[%s40]]
  %s42 = scalar_lea.smem %s0, 21
  %s43 = sld [smem:[%s42]]
  %s44 = scalar_lea.smem %s0, 22
  %s45 = sld [smem:[%s44]]
  %s46 = scalar_lea.smem %s0, 23
  %s47 = sld [smem:[%s46]]
  %s48 = scalar_lea.smem %s0, 24
  %s49 = sld [smem:[%s48]]
  %s50 = scalar_lea.smem %s0, 25
  %s51 = sld [smem:[%s50]]
  %s52 = scalar_lea.smem %s0, 26
  %s53 = sld [smem:[%s52]]
  %s54 = scalar_lea.smem %s0, 27
  %s55 = sld [smem:[%s54]]
  %s56 = scalar_lea.smem %s0, 28
  %s57 = sld [smem:[%s56]]
  %s58 = scalar_lea.smem %s0, 29
  %s59 = sld [smem:[%s58]]
  %s60 = scalar_lea.smem %s0, 30
  %s61 = sld [smem:[%s60]]
  %s62 = scalar_lea.smem %s0, 31
  %s63 = sld [smem:[%s62]]
  %s64 = sld [smem:[#allocation0]]
  $region285: #{tpu_custom_call.1} parent=0
    _
  %s66 = ssub.s32 1, %s64
  %s67 = scalar_select 0, %s66, %s64
  $region1: #{tpu_custom_call.1} parent=0
    #allocation6 [shape = 'u8[8192]{0}', space=vmem, size = 0x2000, scoped, tag = 'input window, operand 0']
    #allocation7 [shape = 's32[2]{0}', space=sflag, size = 0x8, scoped, tag = 'scoped memory for tpu_custom_call.1']
    #allocation8 [shape = 's32[2]{0}', space=sflag, size = 0x8, scoped, tag = 'scoped memory for tpu_custom_call.1']
    #allocation9 [shape = 'u8[16384]{0}', space=vmem, size = 0x4000, scoped, tag = 'input window, operand 1']
    #allocation10 [shape = 's32[2]{0}', space=sflag, size = 0x8, scoped, tag = 'scoped memory for tpu_custom_call.1']
    #allocation11 [shape = 'u8[16384]{0}', space=vmem, size = 0x4000, scoped, tag = 'input window, operand 2']
    #allocation12 [shape = 'u8[8192]{0}', space=vmem, size = 0x2000, scoped, tag = 'input window, operand 3']
    #allocation13 [shape = 's32[2]{0}', space=sflag, size = 0x8, scoped, tag = 'scoped memory for tpu_custom_call.1']
    #allocation14 [shape = 'u8[8192]{0}', space=vmem, size = 0x2000, scoped, tag = 'input window, operand 4']
    #allocation15 [shape = 'u8[16384]{0}', space=vmem, size = 0x4000, scoped, tag = 'input window, operand 5, single buffered']
    #allocation16 [shape = 's32[1]{0}', space=sflag, size = 0x4, scoped, tag = 'scoped memory for tpu_custom_call.1']
    #allocation17 [shape = 'u8[512]{0}', space=vmem, size = 0x400, scoped, tag = 'input window, operand 6, single buffered']
    #allocation18 [shape = 'u8[16384]{0}', space=vmem, size = 0x4000, scoped, tag = 'input window, operand 7, single buffered']
    #allocation19 [shape = 's32[1]{0}', space=sflag, size = 0x4, scoped, tag = 'scoped memory for tpu_custom_call.1']
    #allocation20 [shape = 'u8[512]{0}', space=vmem, size = 0x400, scoped, tag = 'input window, operand 8, single buffered']
    #allocation21 [shape = 'u8[16384]{0}', space=vmem, size = 0x4000, scoped, tag = 'input window, operand 9, single buffered']
    #allocation22 [shape = 's32[1]{0}', space=sflag, size = 0x4, scoped, tag = 'scoped memory for tpu_custom_call.1']
    #allocation23 [shape = 'u8[512]{0}', space=vmem, size = 0x400, scoped, tag = 'input window, operand 10, single buffered']
    #allocation24 [shape = 'u8[16384]{0}', space=vmem, size = 0x4000, scoped, tag = 'input window, operand 11, single buffered']
    #allocation25 [shape = 's32[1]{0}', space=sflag, size = 0x4, scoped, tag = 'scoped memory for tpu_custom_call.1']
    #allocation26 [shape = 'u8[512]{0}', space=vmem, size = 0x400, scoped, tag = 'input window, operand 12, single buffered']
    #allocation27 [shape = 'u8[16384]{0}', space=vmem, size = 0x4000, scoped, tag = 'input window, operand 13, single buffered']
    #allocation28 [shape = 's32[1]{0}', space=sflag, size = 0x4, scoped, tag = 'scoped memory for tpu_custom_call.1']
    #allocation29 [shape = 'u8[512]{0}', space=vmem, size = 0x400, scoped, tag = 'input window, operand 14, single buffered']
    #allocation30 [shape = 'u8[16384]{0}', space=vmem, size = 0x4000, scoped, tag = 'input window, operand 15, single buffered']
    #allocation31 [shape = 's32[1]{0}', space=sflag, size = 0x4, scoped, tag = 'scoped memory for tpu_custom_call.1']
    #allocation32 [shape = 'u8[512]{0}', space=vmem, size = 0x400, scoped, tag = 'input window, operand 16, single buffered']
    #allocation33 [shape = 'u8[16384]{0}', space=vmem, size = 0x4000, scoped, tag = 'input window, operand 17, single buffered']
    #allocation34 [shape = 's32[1]{0}', space=sflag, size = 0x4, scoped, tag = 'scoped memory for tpu_custom_call.1']
    #allocation35 [shape = 'u8[512]{0}', space=vmem, size = 0x400, scoped, tag = 'input window, operand 18, single buffered']
    #allocation36 [shape = 'u8[16384]{0}', space=vmem, size = 0x4000, scoped, tag = 'input window, operand 19, single buffered']
    #allocation37 [shape = 's32[1]{0}', space=sflag, size = 0x4, scoped, tag = 'scoped memory for tpu_custom_call.1']
    #allocation38 [shape = 'u8[512]{0}', space=vmem, size = 0x400, scoped, tag = 'input window, operand 20, single buffered']
    #allocation39 [shape = 'u8[16384]{0}', space=vmem, size = 0x4000, scoped, tag = 'input window, operand 21, single buffered']
    #allocation40 [shape = 's32[1]{0}', space=sflag, size = 0x4, scoped, tag = 'scoped memory for tpu_custom_call.1']
    #allocation41 [shape = 'u8[512]{0}', space=vmem, size = 0x400, scoped, tag = 'input window, operand 22, single buffered']
    #allocation42 [shape = 'u8[32768]{0}', space=vmem, size = 0x8000, scoped, tag = 'input window, operand 23, single buffered']
    #allocation43 [shape = 's32[1]{0}', space=sflag, size = 0x4, scoped, tag = 'scoped memory for tpu_custom_call.1']
    #allocation44 [shape = 'u8[512]{0}', space=vmem, size = 0x400, scoped, tag = 'input window, operand 24, single buffered']
    #allocation45 [shape = 'u8[512]{0}', space=vmem, size = 0x400, scoped, tag = 'input window, operand 25, single buffered']
    #allocation46 [shape = 's32[1]{0}', space=sflag, size = 0x4, scoped, tag = 'scoped memory for tpu_custom_call.1']
    #allocation47 [shape = 'u8[512]{0}', space=vmem, size = 0x400, scoped, tag = 'input window, operand 26, single buffered']
    #allocation48 [shape = 'u8[512]{0}', space=vmem, size = 0x400, scoped, tag = 'input window, operand 27, single buffered']
    #allocation49 [shape = 's32[1]{0}', space=sflag, size = 0x4, scoped, tag = 'scoped memory for tpu_custom_call.1']
    #allocation50 [shape = 'u8[512]{0}', space=vmem, size = 0x400, scoped, tag = 'input window, operand 28, single buffered']
    #allocation51 [shape = 'u8[512]{0}', space=vmem, size = 0x400, scoped, tag = 'input window, operand 29, single buffered']
    #allocation52 [shape = 's32[1]{0}', space=sflag, size = 0x4, scoped, tag = 'scoped memory for tpu_custom_call.1']
    #allocation53 [shape = 'u8[512]{0}', space=vmem, size = 0x400, scoped, tag = 'input window, operand 30, single buffered']
    #allocation54 [shape = 'u8[8192]{0}', space=vmem, size = 0x2000, scoped, tag = 'output window, operand 0']
    %68 = vsyncpa [#allocation7], 0
    %s69 = scalar_lea.sflag [#allocation7], 1
    %70 = vsyncpa %s69, 0
    %71 = vsyncpa [#allocation10], 0
    %s72 = scalar_lea.sflag [#allocation10], 1
    %73 = vsyncpa %s72, 0
    %74 = vsyncpa [#allocation13], 0
    %s75 = scalar_lea.sflag [#allocation13], 1
    %76 = vsyncpa %s75, 0
    %77 = vsyncpa [#allocation16], 0
    %78 = vsyncpa [#allocation19], 0
    %79 = vsyncpa [#allocation22], 0
    %80 = vsyncpa [#allocation25], 0
    %81 = vsyncpa [#allocation28], 0
    %82 = vsyncpa [#allocation31], 0
    %83 = vsyncpa [#allocation34], 0
    %84 = vsyncpa [#allocation37], 0
    %85 = vsyncpa [#allocation40], 0
    %86 = vsyncpa [#allocation43], 0
    %87 = vsyncpa [#allocation46], 0
    %88 = vsyncpa [#allocation49], 0
    %89 = vsyncpa [#allocation52], 0
    %90 = vsyncpa [#allocation8], 0
    %s91 = scalar_lea.sflag [#allocation8], 1
    %92 = vsyncpa %s91, 0
    loop: start=0, step=1, limit=6
    $region2: #{tpu_custom_call.1} parent=1 // loop_pre_header
      _
    $region3: #{tpu_custom_call.1} parent=1 // loop_header
      %s94 = sphi 0, %s98
      %p95 = scmp.ge.s32.totalorder %s94, 6
      %s101 = sphi 0, %s113
      %s102 = sphi 0, %s109
      %s103 = sphi 0, %s101
      %s104 = sphi 0, %s102
      %s105 = sphi 0, %s103
      %s106 = sphi 0, %s104
      %s118 = sphi 0, %s120
      %s121 = sphi 0, %s118
      %s122 = sphi 0, %s121
      %s138 = sphi 0, %s122
      %s144 = sphi 0, %s146
      %s147 = sphi 0, %s144
      %s148 = sphi 0, %s147
      %s164 = sphi 0, %s148
      %s170 = sphi 0, %s172
      %s173 = sphi 0, %s170
      %s174 = sphi 0, %s173
      %s190 = sphi 0, %s174
      %s198 = sphi 0, %s200
      %s201 = sphi 0, %s198
      %s202 = sphi 0, %s201
      %s218 = sphi 0, %s202
      %s226 = sphi 0, %s228
      %s229 = sphi 0, %s226
      %s230 = sphi 0, %s229
      %s246 = sphi 0, %s230
      %s250 = sphi 0, %s250
      %s252 = sphi 0, %s250
      %s253 = sphi 0, %s252
      %s267 = sphi 0, %s253
      %s271 = sphi 0, %s271
      %s273 = sphi 0, %s271
      %s274 = sphi 0, %s273
      %s288 = sphi 0, %s274
      %s292 = sphi 0, %s292
      %s294 = sphi 0, %s292
      %s295 = sphi 0, %s294
      %s309 = sphi 0, %s295
      %s313 = sphi 0, %s313
      %s315 = sphi 0, %s313
      %s316 = sphi 0, %s315
      %s330 = sphi 0, %s316
      %s334 = sphi 0, %s334
      %s336 = sphi 0, %s334
      %s337 = sphi 0, %s336
      %s351 = sphi 0, %s337
      %s355 = sphi 0, %s355
      %s357 = sphi 0, %s355
      %s358 = sphi 0, %s357
      %s372 = sphi 0, %s358
      %s376 = sphi 0, %s376
      %s378 = sphi 0, %s376
      %s379 = sphi 0, %s378
      %s393 = sphi 0, %s379
      %s397 = sphi 0, %s397
      %s399 = sphi 0, %s397
      %s400 = sphi 0, %s399
      %s414 = sphi 0, %s400
      %s418 = sphi 0, %s418
      %s420 = sphi 0, %s418
      %s421 = sphi 0, %s420
      %s435 = sphi 0, %s421
      %s439 = sphi 0, %s439
      %s441 = sphi 0, %s439
      %s442 = sphi 0, %s441
      %s456 = sphi 0, %s442
      %s460 = sphi 0, %s460
      %s462 = sphi 0, %s460
      %s463 = sphi 0, %s462
      %s477 = sphi 0, %s463
      %s481 = sphi 0, %s481
      %s483 = sphi 0, %s481
      %s484 = sphi 0, %s483
      %s498 = sphi 0, %s484
      %s502 = sphi 0, %s502
      %s504 = sphi 0, %s502
      %s505 = sphi 0, %s504
      %s519 = sphi 0, %s505
      %s523 = sphi 0, %s523
      %s525 = sphi 0, %s523
      %s526 = sphi 0, %s525
      %s540 = sphi 0, %s526
      %s544 = sphi 0, %s544
      %s546 = sphi 0, %s544
      %s547 = sphi 0, %s546
      %s561 = sphi 0, %s547
      %s565 = sphi 0, %s565
      %s567 = sphi 0, %s565
      %s568 = sphi 0, %s567
      %s582 = sphi 0, %s568
      %s586 = sphi 0, %s586
      %s588 = sphi 0, %s586
      %s589 = sphi 0, %s588
      %s603 = sphi 0, %s589
      %s607 = sphi 0, %s607
      %s609 = sphi 0, %s607
      %s610 = sphi 0, %s609
      %s624 = sphi 0, %s610
      %s628 = sphi 0, %s628
      %s630 = sphi 0, %s628
      %s631 = sphi 0, %s630
      %s645 = sphi 0, %s631
      %s649 = sphi 0, %s649
      %s651 = sphi 0, %s649
      %s652 = sphi 0, %s651
      %s666 = sphi 0, %s652
      %s670 = sphi 0, %s670
      %s672 = sphi 0, %s670
      %s673 = sphi 0, %s672
      %s687 = sphi 0, %s673
      %s691 = sphi 0, %s691
      %s693 = sphi 0, %s691
      %s694 = sphi 0, %s693
      %s708 = sphi 0, %s694
      %s712 = sphi 0, %s712
      %s714 = sphi 0, %s712
      %s715 = sphi 0, %s714
      %s729 = sphi 0, %s715
      %s733 = sphi 0, %s733
      %s735 = sphi 0, %s733
      %s736 = sphi 0, %s735
      %s750 = sphi 0, %s736
      %s754 = sphi 0, %s754
      %s756 = sphi 0, %s754
      %s757 = sphi 0, %s756
      %s771 = sphi 0, %s757
      %s775 = sphi 0, %s775
      %s777 = sphi 0, %s775
      %s778 = sphi 0, %s777
      %s792 = sphi 0, %s778
      %s800 = sphi 0, %s802
      %s803 = sphi 0, %s800
      %s804 = sphi 0, %s803
      %s820 = sphi 0, %s804
    $region4: #{tpu_custom_call.1} parent=1 // loop_header_branch
      %97 = sbr.rel (%p95) target = $region8
    $region5: #{tpu_custom_call.1} parent=1 // loop_body
      %s99 = ssub.s32 %s94, 1
      %s100 = ssub.s32 %s94, 2
      %s107 = sadd.s32 1, %s102
      %p108 = scmp.ge.s32.totalorder %s107, 2
      %s109 = scalar_select %p108, 0, %s107
      %s110 = sadd.s32 1, %s101
      %s111 = scalar_select %p108, %s110, %s101
      %p112 = scmp.ge.s32.totalorder %s111, 2
      %s113 = scalar_select %p112, 0, %s111
      %s114 = ssub.s32 %s101, %s113
      %s115 = ssub.s32 %s102, %s109
      %s116 = sor.u32 %s114, %s115
      %p117 = scmp.eq.s32.totalorder %s116, 0
      %s119 = sadd.s32 %s118, 1
      %s120 = scalar_select %p117, %s118, %s119
      %p123 = pneg %p117
      %p124 = scmp.eq.s32.totalorder %s94, 3
      %p125 = por %p123, %p124
      %p126 = scmp.ne.s32.totalorder %s118, %s121
      %p127 = scmp.eq.s32.totalorder %s94, 0
      %p128 = por %p126, %p127
      %p129 = scmp.ne.s32.totalorder %s118, %s121
      %p130 = scmp.eq.s32.totalorder %s99, 3
      %p131 = por %p129, %p130
      %p132 = scmp.ne.s32.totalorder %s121, %s122
      %p133 = scmp.eq.s32.totalorder %s99, 0
      %p134 = por %p132, %p133
      %p135 = scmp.ne.s32.totalorder %s121, %s122
      %p136 = scmp.eq.s32.totalorder %s100, 3
      %p137 = por %p135, %p136
      %p139 = scmp.ne.s32.totalorder %s122, %s138
      %p140 = scmp.eq.s32.totalorder %s100, 0
      %p141 = por %p139, %p140
      %s142 = ssub.s32 %s101, %s113
      %p143 = scmp.eq.s32.totalorder %s142, 0
      %s145 = sadd.s32 %s144, 1
      %s146 = scalar_select %p143, %s144, %s145
      %p149 = pneg %p143
      %p150 = scmp.eq.s32.totalorder %s94, 3
      %p151 = por %p149, %p150
      %p152 = scmp.ne.s32.totalorder %s144, %s147
      %p153 = scmp.eq.s32.totalorder %s94, 0
      %p154 = por %p152, %p153
      %p155 = scmp.ne.s32.totalorder %s144, %s147
      %p156 = scmp.eq.s32.totalorder %s99, 3
      %p157 = por %p155, %p156
      %p158 = scmp.ne.s32.totalorder %s147, %s148
      %p159 = scmp.eq.s32.totalorder %s99, 0
      %p160 = por %p158, %p159
      %p161 = scmp.ne.s32.totalorder %s147, %s148
      %p162 = scmp.eq.s32.totalorder %s100, 3
      %p163 = por %p161, %p162
      %p165 = scmp.ne.s32.totalorder %s148, %s164
      %p166 = scmp.eq.s32.totalorder %s100, 0
      %p167 = por %p165, %p166
      %s168 = ssub.s32 %s101, %s113
      %p169 = scmp.eq.s32.totalorder %s168, 0
      %s171 = sadd.s32 %s170, 1
      %s172 = scalar_select %p169, %s170, %s171
      %p175 = pneg %p169
      %p176 = scmp.eq.s32.totalorder %s94, 3
      %p177 = por %p175, %p176
      %p178 = scmp.ne.s32.totalorder %s170, %s173
      %p179 = scmp.eq.s32.totalorder %s94, 0
      %p180 = por %p178, %p179
      %p181 = scmp.ne.s32.totalorder %s170, %s173
      %p182 = scmp.eq.s32.totalorder %s99, 3
      %p183 = por %p181, %p182
      %p184 = scmp.ne.s32.totalorder %s173, %s174
      %p185 = scmp.eq.s32.totalorder %s99, 0
      %p186 = por %p184, %p185
      %p187 = scmp.ne.s32.totalorder %s173, %s174
      %p188 = scmp.eq.s32.totalorder %s100, 3
      %p189 = por %p187, %p188
      %p191 = scmp.ne.s32.totalorder %s174, %s190
      %p192 = scmp.eq.s32.totalorder %s100, 0
      %p193 = por %p191, %p192
      %s194 = ssub.s32 %s101, %s113
      %s195 = ssub.s32 %s102, %s109
      %s196 = sor.u32 %s194, %s195
      %p197 = scmp.eq.s32.totalorder %s196, 0
      %s199 = sadd.s32 %s198, 1
      %s200 = scalar_select %p197, %s198, %s199
      %p203 = pneg %p197
      %p204 = scmp.eq.s32.totalorder %s94, 3
      %p205 = por %p203, %p204
      %p206 = scmp.ne.s32.totalorder %s198, %s201
      %p207 = scmp.eq.s32.totalorder %s94, 0
      %p208 = por %p206, %p207
      %p209 = scmp.ne.s32.totalorder %s198, %s201
      %p210 = scmp.eq.s32.totalorder %s99, 3
      %p211 = por %p209, %p210
      %p212 = scmp.ne.s32.totalorder %s201, %s202
      %p213 = scmp.eq.s32.totalorder %s99, 0
      %p214 = por %p212, %p213
      %p215 = scmp.ne.s32.totalorder %s201, %s202
      %p216 = scmp.eq.s32.totalorder %s100, 3
      %p217 = por %p215, %p216
      %p219 = scmp.ne.s32.totalorder %s202, %s218
      %p220 = scmp.eq.s32.totalorder %s100, 0
      %p221 = por %p219, %p220
      %s222 = ssub.s32 %s101, %s113
      %s223 = ssub.s32 %s102, %s109
      %s224 = sor.u32 %s222, %s223
      %p225 = scmp.eq.s32.totalorder %s224, 0
      %s227 = sadd.s32 %s226, 1
      %s228 = scalar_select %p225, %s226, %s227
      %p231 = pneg %p225
      %p232 = scmp.eq.s32.totalorder %s94, 3
      %p233 = por %p231, %p232
      %p234 = scmp.ne.s32.totalorder %s226, %s229
      %p235 = scmp.eq.s32.totalorder %s94, 0
      %p236 = por %p234, %p235
      %p237 = scmp.ne.s32.totalorder %s226, %s229
      %p238 = scmp.eq.s32.totalorder %s99, 3
      %p239 = por %p237, %p238
      %p240 = scmp.ne.s32.totalorder %s229, %s230
      %p241 = scmp.eq.s32.totalorder %s99, 0
      %p242 = por %p240, %p241
      %p243 = scmp.ne.s32.totalorder %s229, %s230
      %p244 = scmp.eq.s32.totalorder %s100, 3
      %p245 = por %p243, %p244
      %p247 = scmp.ne.s32.totalorder %s230, %s246
      %p248 = scmp.eq.s32.totalorder %s100, 0
      %p249 = por %p247, %p248
      %s251 = sadd.s32 %s250, 1
      %p254 = scmp.eq.s32.totalorder %s94, 3
      %p255 = scmp.ne.s32.totalorder %s250, %s252
      %p256 = scmp.eq.s32.totalorder %s94, 0
      %p257 = por %p255, %p256
      %p258 = scmp.ne.s32.totalorder %s250, %s252
      %p259 = scmp.eq.s32.totalorder %s99, 3
      %p260 = por %p258, %p259
      %p261 = scmp.ne.s32.totalorder %s252, %s253
      %p262 = scmp.eq.s32.totalorder %s99, 0
      %p263 = por %p261, %p262
      %p264 = scmp.ne.s32.totalorder %s252, %s253
      %p265 = scmp.eq.s32.totalorder %s100, 3
      %p266 = por %p264, %p265
      %p268 = scmp.ne.s32.totalorder %s253, %s267
      %p269 = scmp.eq.s32.totalorder %s100, 0
      %p270 = por %p268, %p269
      %s272 = sadd.s32 %s271, 1
      %p275 = scmp.eq.s32.totalorder %s94, 3
      %p276 = scmp.ne.s32.totalorder %s271, %s273
      %p277 = scmp.eq.s32.totalorder %s94, 0
      %p278 = por %p276, %p277
      %p279 = scmp.ne.s32.totalorder %s271, %s273
      %p280 = scmp.eq.s32.totalorder %s99, 3
      %p281 = por %p279, %p280
      %p282 = scmp.ne.s32.totalorder %s273, %s274
      %p283 = scmp.eq.s32.totalorder %s99, 0
      %p284 = por %p282, %p283
      %p285 = scmp.ne.s32.totalorder %s273, %s274
      %p286 = scmp.eq.s32.totalorder %s100, 3
      %p287 = por %p285, %p286
      %p289 = scmp.ne.s32.totalorder %s274, %s288
      %p290 = scmp.eq.s32.totalorder %s100, 0
      %p291 = por %p289, %p290
      %s293 = sadd.s32 %s292, 1
      %p296 = scmp.eq.s32.totalorder %s94, 3
      %p297 = scmp.ne.s32.totalorder %s292, %s294
      %p298 = scmp.eq.s32.totalorder %s94, 0
      %p299 = por %p297, %p298
      %p300 = scmp.ne.s32.totalorder %s292, %s294
      %p301 = scmp.eq.s32.totalorder %s99, 3
      %p302 = por %p300, %p301
      %p303 = scmp.ne.s32.totalorder %s294, %s295
      %p304 = scmp.eq.s32.totalorder %s99, 0
      %p305 = por %p303, %p304
      %p306 = scmp.ne.s32.totalorder %s294, %s295
      %p307 = scmp.eq.s32.totalorder %s100, 3
      %p308 = por %p306, %p307
      %p310 = scmp.ne.s32.totalorder %s295, %s309
      %p311 = scmp.eq.s32.totalorder %s100, 0
      %p312 = por %p310, %p311
      %s314 = sadd.s32 %s313, 1
      %p317 = scmp.eq.s32.totalorder %s94, 3
      %p318 = scmp.ne.s32.totalorder %s313, %s315
      %p319 = scmp.eq.s32.totalorder %s94, 0
      %p320 = por %p318, %p319
      %p321 = scmp.ne.s32.totalorder %s313, %s315
      %p322 = scmp.eq.s32.totalorder %s99, 3
      %p323 = por %p321, %p322
      %p324 = scmp.ne.s32.totalorder %s315, %s316
      %p325 = scmp.eq.s32.totalorder %s99, 0
      %p326 = por %p324, %p325
      %p327 = scmp.ne.s32.totalorder %s315, %s316
      %p328 = scmp.eq.s32.totalorder %s100, 3
      %p329 = por %p327, %p328
      %p331 = scmp.ne.s32.totalorder %s316, %s330
      %p332 = scmp.eq.s32.totalorder %s100, 0
      %p333 = por %p331, %p332
      %s335 = sadd.s32 %s334, 1
      %p338 = scmp.eq.s32.totalorder %s94, 3
      %p339 = scmp.ne.s32.totalorder %s334, %s336
      %p340 = scmp.eq.s32.totalorder %s94, 0
      %p341 = por %p339, %p340
      %p342 = scmp.ne.s32.totalorder %s334, %s336
      %p343 = scmp.eq.s32.totalorder %s99, 3
      %p344 = por %p342, %p343
      %p345 = scmp.ne.s32.totalorder %s336, %s337
      %p346 = scmp.eq.s32.totalorder %s99, 0
      %p347 = por %p345, %p346
      %p348 = scmp.ne.s32.totalorder %s336, %s337
      %p349 = scmp.eq.s32.totalorder %s100, 3
      %p350 = por %p348, %p349
      %p352 = scmp.ne.s32.totalorder %s337, %s351
      %p353 = scmp.eq.s32.totalorder %s100, 0
      %p354 = por %p352, %p353
      %s356 = sadd.s32 %s355, 1
      %p359 = scmp.eq.s32.totalorder %s94, 3
      %p360 = scmp.ne.s32.totalorder %s355, %s357
      %p361 = scmp.eq.s32.totalorder %s94, 0
      %p362 = por %p360, %p361
      %p363 = scmp.ne.s32.totalorder %s355, %s357
      %p364 = scmp.eq.s32.totalorder %s99, 3
      %p365 = por %p363, %p364
      %p366 = scmp.ne.s32.totalorder %s357, %s358
      %p367 = scmp.eq.s32.totalorder %s99, 0
      %p368 = por %p366, %p367
      %p369 = scmp.ne.s32.totalorder %s357, %s358
      %p370 = scmp.eq.s32.totalorder %s100, 3
      %p371 = por %p369, %p370
      %p373 = scmp.ne.s32.totalorder %s358, %s372
      %p374 = scmp.eq.s32.totalorder %s100, 0
      %p375 = por %p373, %p374
      %s377 = sadd.s32 %s376, 1
      %p380 = scmp.eq.s32.totalorder %s94, 3
      %p381 = scmp.ne.s32.totalorder %s376, %s378
      %p382 = scmp.eq.s32.totalorder %s94, 0
      %p383 = por %p381, %p382
      %p384 = scmp.ne.s32.totalorder %s376, %s378
      %p385 = scmp.eq.s32.totalorder %s99, 3
      %p386 = por %p384, %p385
      %p387 = scmp.ne.s32.totalorder %s378, %s379
      %p388 = scmp.eq.s32.totalorder %s99, 0
      %p389 = por %p387, %p388
      %p390 = scmp.ne.s32.totalorder %s378, %s379
      %p391 = scmp.eq.s32.totalorder %s100, 3
      %p392 = por %p390, %p391
      %p394 = scmp.ne.s32.totalorder %s379, %s393
      %p395 = scmp.eq.s32.totalorder %s100, 0
      %p396 = por %p394, %p395
      %s398 = sadd.s32 %s397, 1
      %p401 = scmp.eq.s32.totalorder %s94, 3
      %p402 = scmp.ne.s32.totalorder %s397, %s399
      %p403 = scmp.eq.s32.totalorder %s94, 0
      %p404 = por %p402, %p403
      %p405 = scmp.ne.s32.totalorder %s397, %s399
      %p406 = scmp.eq.s32.totalorder %s99, 3
      %p407 = por %p405, %p406
      %p408 = scmp.ne.s32.totalorder %s399, %s400
      %p409 = scmp.eq.s32.totalorder %s99, 0
      %p410 = por %p408, %p409
      %p411 = scmp.ne.s32.totalorder %s399, %s400
      %p412 = scmp.eq.s32.totalorder %s100, 3
      %p413 = por %p411, %p412
      %p415 = scmp.ne.s32.totalorder %s400, %s414
      %p416 = scmp.eq.s32.totalorder %s100, 0
      %p417 = por %p415, %p416
      %s419 = sadd.s32 %s418, 1
      %p422 = scmp.eq.s32.totalorder %s94, 3
      %p423 = scmp.ne.s32.totalorder %s418, %s420
      %p424 = scmp.eq.s32.totalorder %s94, 0
      %p425 = por %p423, %p424
      %p426 = scmp.ne.s32.totalorder %s418, %s420
      %p427 = scmp.eq.s32.totalorder %s99, 3
      %p428 = por %p426, %p427
      %p429 = scmp.ne.s32.totalorder %s420, %s421
      %p430 = scmp.eq.s32.totalorder %s99, 0
      %p431 = por %p429, %p430
      %p432 = scmp.ne.s32.totalorder %s420, %s421
      %p433 = scmp.eq.s32.totalorder %s100, 3
      %p434 = por %p432, %p433
      %p436 = scmp.ne.s32.totalorder %s421, %s435
      %p437 = scmp.eq.s32.totalorder %s100, 0
      %p438 = por %p436, %p437
      %s440 = sadd.s32 %s439, 1
      %p443 = scmp.eq.s32.totalorder %s94, 3
      %p444 = scmp.ne.s32.totalorder %s439, %s441
      %p445 = scmp.eq.s32.totalorder %s94, 0
      %p446 = por %p444, %p445
      %p447 = scmp.ne.s32.totalorder %s439, %s441
      %p448 = scmp.eq.s32.totalorder %s99, 3
      %p449 = por %p447, %p448
      %p450 = scmp.ne.s32.totalorder %s441, %s442
      %p451 = scmp.eq.s32.totalorder %s99, 0
      %p452 = por %p450, %p451
      %p453 = scmp.ne.s32.totalorder %s441, %s442
      %p454 = scmp.eq.s32.totalorder %s100, 3
      %p455 = por %p453, %p454
      %p457 = scmp.ne.s32.totalorder %s442, %s456
      %p458 = scmp.eq.s32.totalorder %s100, 0
      %p459 = por %p457, %p458
      %s461 = sadd.s32 %s460, 1
      %p464 = scmp.eq.s32.totalorder %s94, 3
      %p465 = scmp.ne.s32.totalorder %s460, %s462
      %p466 = scmp.eq.s32.totalorder %s94, 0
      %p467 = por %p465, %p466
      %p468 = scmp.ne.s32.totalorder %s460, %s462
      %p469 = scmp.eq.s32.totalorder %s99, 3
      %p470 = por %p468, %p469
      %p471 = scmp.ne.s32.totalorder %s462, %s463
      %p472 = scmp.eq.s32.totalorder %s99, 0
      %p473 = por %p471, %p472
      %p474 = scmp.ne.s32.totalorder %s462, %s463
      %p475 = scmp.eq.s32.totalorder %s100, 3
      %p476 = por %p474, %p475
      %p478 = scmp.ne.s32.totalorder %s463, %s477
      %p479 = scmp.eq.s32.totalorder %s100, 0
      %p480 = por %p478, %p479
      %s482 = sadd.s32 %s481, 1
      %p485 = scmp.eq.s32.totalorder %s94, 3
      %p486 = scmp.ne.s32.totalorder %s481, %s483
      %p487 = scmp.eq.s32.totalorder %s94, 0
      %p488 = por %p486, %p487
      %p489 = scmp.ne.s32.totalorder %s481, %s483
      %p490 = scmp.eq.s32.totalorder %s99, 3
      %p491 = por %p489, %p490
      %p492 = scmp.ne.s32.totalorder %s483, %s484
      %p493 = scmp.eq.s32.totalorder %s99, 0
      %p494 = por %p492, %p493
      %p495 = scmp.ne.s32.totalorder %s483, %s484
      %p496 = scmp.eq.s32.totalorder %s100, 3
      %p497 = por %p495, %p496
      %p499 = scmp.ne.s32.totalorder %s484, %s498
      %p500 = scmp.eq.s32.totalorder %s100, 0
      %p501 = por %p499, %p500
      %s503 = sadd.s32 %s502, 1
      %p506 = scmp.eq.s32.totalorder %s94, 3
      %p507 = scmp.ne.s32.totalorder %s502, %s504
      %p508 = scmp.eq.s32.totalorder %s94, 0
      %p509 = por %p507, %p508
      %p510 = scmp.ne.s32.totalorder %s502, %s504
      %p511 = scmp.eq.s32.totalorder %s99, 3
      %p512 = por %p510, %p511
      %p513 = scmp.ne.s32.totalorder %s504, %s505
      %p514 = scmp.eq.s32.totalorder %s99, 0
      %p515 = por %p513, %p514
      %p516 = scmp.ne.s32.totalorder %s504, %s505
      %p517 = scmp.eq.s32.totalorder %s100, 3
      %p518 = por %p516, %p517
      %p520 = scmp.ne.s32.totalorder %s505, %s519
      %p521 = scmp.eq.s32.totalorder %s100, 0
      %p522 = por %p520, %p521
      %s524 = sadd.s32 %s523, 1
      %p527 = scmp.eq.s32.totalorder %s94, 3
      %p528 = scmp.ne.s32.totalorder %s523, %s525
      %p529 = scmp.eq.s32.totalorder %s94, 0
      %p530 = por %p528, %p529
      %p531 = scmp.ne.s32.totalorder %s523, %s525
      %p532 = scmp.eq.s32.totalorder %s99, 3
      %p533 = por %p531, %p532
      %p534 = scmp.ne.s32.totalorder %s525, %s526
      %p535 = scmp.eq.s32.totalorder %s99, 0
      %p536 = por %p534, %p535
      %p537 = scmp.ne.s32.totalorder %s525, %s526
      %p538 = scmp.eq.s32.totalorder %s100, 3
      %p539 = por %p537, %p538
      %p541 = scmp.ne.s32.totalorder %s526, %s540
      %p542 = scmp.eq.s32.totalorder %s100, 0
      %p543 = por %p541, %p542
      %s545 = sadd.s32 %s544, 1
      %p548 = scmp.eq.s32.totalorder %s94, 3
      %p549 = scmp.ne.s32.totalorder %s544, %s546
      %p550 = scmp.eq.s32.totalorder %s94, 0
      %p551 = por %p549, %p550
      %p552 = scmp.ne.s32.totalorder %s544, %s546
      %p553 = scmp.eq.s32.totalorder %s99, 3
      %p554 = por %p552, %p553
      %p555 = scmp.ne.s32.totalorder %s546, %s547
      %p556 = scmp.eq.s32.totalorder %s99, 0
      %p557 = por %p555, %p556
      %p558 = scmp.ne.s32.totalorder %s546, %s547
      %p559 = scmp.eq.s32.totalorder %s100, 3
      %p560 = por %p558, %p559
      %p562 = scmp.ne.s32.totalorder %s547, %s561
      %p563 = scmp.eq.s32.totalorder %s100, 0
      %p564 = por %p562, %p563
      %s566 = sadd.s32 %s565, 1
      %p569 = scmp.eq.s32.totalorder %s94, 3
      %p570 = scmp.ne.s32.totalorder %s565, %s567
      %p571 = scmp.eq.s32.totalorder %s94, 0
      %p572 = por %p570, %p571
      %p573 = scmp.ne.s32.totalorder %s565, %s567
      %p574 = scmp.eq.s32.totalorder %s99, 3
      %p575 = por %p573, %p574
      %p576 = scmp.ne.s32.totalorder %s567, %s568
      %p577 = scmp.eq.s32.totalorder %s99, 0
      %p578 = por %p576, %p577
      %p579 = scmp.ne.s32.totalorder %s567, %s568
      %p580 = scmp.eq.s32.totalorder %s100, 3
      %p581 = por %p579, %p580
      %p583 = scmp.ne.s32.totalorder %s568, %s582
      %p584 = scmp.eq.s32.totalorder %s100, 0
      %p585 = por %p583, %p584
      %s587 = sadd.s32 %s586, 1
      %p590 = scmp.eq.s32.totalorder %s94, 3
      %p591 = scmp.ne.s32.totalorder %s586, %s588
      %p592 = scmp.eq.s32.totalorder %s94, 0
      %p593 = por %p591, %p592
      %p594 = scmp.ne.s32.totalorder %s586, %s588
      %p595 = scmp.eq.s32.totalorder %s99, 3
      %p596 = por %p594, %p595
      %p597 = scmp.ne.s32.totalorder %s588, %s589
      %p598 = scmp.eq.s32.totalorder %s99, 0
      %p599 = por %p597, %p598
      %p600 = scmp.ne.s32.totalorder %s588, %s589
      %p601 = scmp.eq.s32.totalorder %s100, 3
      %p602 = por %p600, %p601
      %p604 = scmp.ne.s32.totalorder %s589, %s603
      %p605 = scmp.eq.s32.totalorder %s100, 0
      %p606 = por %p604, %p605
      %s608 = sadd.s32 %s607, 1
      %p611 = scmp.eq.s32.totalorder %s94, 3
      %p612 = scmp.ne.s32.totalorder %s607, %s609
      %p613 = scmp.eq.s32.totalorder %s94, 0
      %p614 = por %p612, %p613
      %p615 = scmp.ne.s32.totalorder %s607, %s609
      %p616 = scmp.eq.s32.totalorder %s99, 3
      %p617 = por %p615, %p616
      %p618 = scmp.ne.s32.totalorder %s609, %s610
      %p619 = scmp.eq.s32.totalorder %s99, 0
      %p620 = por %p618, %p619
      %p621 = scmp.ne.s32.totalorder %s609, %s610
      %p622 = scmp.eq.s32.totalorder %s100, 3
      %p623 = por %p621, %p622
      %p625 = scmp.ne.s32.totalorder %s610, %s624
      %p626 = scmp.eq.s32.totalorder %s100, 0
      %p627 = por %p625, %p626
      %s629 = sadd.s32 %s628, 1
      %p632 = scmp.eq.s32.totalorder %s94, 3
      %p633 = scmp.ne.s32.totalorder %s628, %s630
      %p634 = scmp.eq.s32.totalorder %s94, 0
      %p635 = por %p633, %p634
      %p636 = scmp.ne.s32.totalorder %s628, %s630
      %p637 = scmp.eq.s32.totalorder %s99, 3
      %p638 = por %p636, %p637
      %p639 = scmp.ne.s32.totalorder %s630, %s631
      %p640 = scmp.eq.s32.totalorder %s99, 0
      %p641 = por %p639, %p640
      %p642 = scmp.ne.s32.totalorder %s630, %s631
      %p643 = scmp.eq.s32.totalorder %s100, 3
      %p644 = por %p642, %p643
      %p646 = scmp.ne.s32.totalorder %s631, %s645
      %p647 = scmp.eq.s32.totalorder %s100, 0
      %p648 = por %p646, %p647
      %s650 = sadd.s32 %s649, 1
      %p653 = scmp.eq.s32.totalorder %s94, 3
      %p654 = scmp.ne.s32.totalorder %s649, %s651
      %p655 = scmp.eq.s32.totalorder %s94, 0
      %p656 = por %p654, %p655
      %p657 = scmp.ne.s32.totalorder %s649, %s651
      %p658 = scmp.eq.s32.totalorder %s99, 3
      %p659 = por %p657, %p658
      %p660 = scmp.ne.s32.totalorder %s651, %s652
      %p661 = scmp.eq.s32.totalorder %s99, 0
      %p662 = por %p660, %p661
      %p663 = scmp.ne.s32.totalorder %s651, %s652
      %p664 = scmp.eq.s32.totalorder %s100, 3
      %p665 = por %p663, %p664
      %p667 = scmp.ne.s32.totalorder %s652, %s666
      %p668 = scmp.eq.s32.totalorder %s100, 0
      %p669 = por %p667, %p668
      %s671 = sadd.s32 %s670, 1
      %p674 = scmp.eq.s32.totalorder %s94, 3
      %p675 = scmp.ne.s32.totalorder %s670, %s672
      %p676 = scmp.eq.s32.totalorder %s94, 0
      %p677 = por %p675, %p676
      %p678 = scmp.ne.s32.totalorder %s670, %s672
      %p679 = scmp.eq.s32.totalorder %s99, 3
      %p680 = por %p678, %p679
      %p681 = scmp.ne.s32.totalorder %s672, %s673
      %p682 = scmp.eq.s32.totalorder %s99, 0
      %p683 = por %p681, %p682
      %p684 = scmp.ne.s32.totalorder %s672, %s673
      %p685 = scmp.eq.s32.totalorder %s100, 3
      %p686 = por %p684, %p685
      %p688 = scmp.ne.s32.totalorder %s673, %s687
      %p689 = scmp.eq.s32.totalorder %s100, 0
      %p690 = por %p688, %p689
      %s692 = sadd.s32 %s691, 1
      %p695 = scmp.eq.s32.totalorder %s94, 3
      %p696 = scmp.ne.s32.totalorder %s691, %s693
      %p697 = scmp.eq.s32.totalorder %s94, 0
      %p698 = por %p696, %p697
      %p699 = scmp.ne.s32.totalorder %s691, %s693
      %p700 = scmp.eq.s32.totalorder %s99, 3
      %p701 = por %p699, %p700
      %p702 = scmp.ne.s32.totalorder %s693, %s694
      %p703 = scmp.eq.s32.totalorder %s99, 0
      %p704 = por %p702, %p703
      %p705 = scmp.ne.s32.totalorder %s693, %s694
      %p706 = scmp.eq.s32.totalorder %s100, 3
      %p707 = por %p705, %p706
      %p709 = scmp.ne.s32.totalorder %s694, %s708
      %p710 = scmp.eq.s32.totalorder %s100, 0
      %p711 = por %p709, %p710
      %s713 = sadd.s32 %s712, 1
      %p716 = scmp.eq.s32.totalorder %s94, 3
      %p717 = scmp.ne.s32.totalorder %s712, %s714
      %p718 = scmp.eq.s32.totalorder %s94, 0
      %p719 = por %p717, %p718
      %p720 = scmp.ne.s32.totalorder %s712, %s714
      %p721 = scmp.eq.s32.totalorder %s99, 3
      %p722 = por %p720, %p721
      %p723 = scmp.ne.s32.totalorder %s714, %s715
      %p724 = scmp.eq.s32.totalorder %s99, 0
      %p725 = por %p723, %p724
      %p726 = scmp.ne.s32.totalorder %s714, %s715
      %p727 = scmp.eq.s32.totalorder %s100, 3
      %p728 = por %p726, %p727
      %p730 = scmp.ne.s32.totalorder %s715, %s729
      %p731 = scmp.eq.s32.totalorder %s100, 0
      %p732 = por %p730, %p731
      %s734 = sadd.s32 %s733, 1
      %p737 = scmp.eq.s32.totalorder %s94, 3
      %p738 = scmp.ne.s32.totalorder %s733, %s735
      %p739 = scmp.eq.s32.totalorder %s94, 0
      %p740 = por %p738, %p739
      %p741 = scmp.ne.s32.totalorder %s733, %s735
      %p742 = scmp.eq.s32.totalorder %s99, 3
      %p743 = por %p741, %p742
      %p744 = scmp.ne.s32.totalorder %s735, %s736
      %p745 = scmp.eq.s32.totalorder %s99, 0
      %p746 = por %p744, %p745
      %p747 = scmp.ne.s32.totalorder %s735, %s736
      %p748 = scmp.eq.s32.totalorder %s100, 3
      %p749 = por %p747, %p748
      %p751 = scmp.ne.s32.totalorder %s736, %s750
      %p752 = scmp.eq.s32.totalorder %s100, 0
      %p753 = por %p751, %p752
      %s755 = sadd.s32 %s754, 1
      %p758 = scmp.eq.s32.totalorder %s94, 3
      %p759 = scmp.ne.s32.totalorder %s754, %s756
      %p760 = scmp.eq.s32.totalorder %s94, 0
      %p761 = por %p759, %p760
      %p762 = scmp.ne.s32.totalorder %s754, %s756
      %p763 = scmp.eq.s32.totalorder %s99, 3
      %p764 = por %p762, %p763
      %p765 = scmp.ne.s32.totalorder %s756, %s757
      %p766 = scmp.eq.s32.totalorder %s99, 0
      %p767 = por %p765, %p766
      %p768 = scmp.ne.s32.totalorder %s756, %s757
      %p769 = scmp.eq.s32.totalorder %s100, 3
      %p770 = por %p768, %p769
      %p772 = scmp.ne.s32.totalorder %s757, %s771
      %p773 = scmp.eq.s32.totalorder %s100, 0
      %p774 = por %p772, %p773
      %s776 = sadd.s32 %s775, 1
      %p779 = scmp.eq.s32.totalorder %s94, 3
      %p780 = scmp.ne.s32.totalorder %s775, %s777
      %p781 = scmp.eq.s32.totalorder %s94, 0
      %p782 = por %p780, %p781
      %p783 = scmp.ne.s32.totalorder %s775, %s777
      %p784 = scmp.eq.s32.totalorder %s99, 3
      %p785 = por %p783, %p784
      %p786 = scmp.ne.s32.totalorder %s777, %s778
      %p787 = scmp.eq.s32.totalorder %s99, 0
      %p788 = por %p786, %p787
      %p789 = scmp.ne.s32.totalorder %s777, %s778
      %p790 = scmp.eq.s32.totalorder %s100, 3
      %p791 = por %p789, %p790
      %p793 = scmp.ne.s32.totalorder %s778, %s792
      %p794 = scmp.eq.s32.totalorder %s100, 0
      %p795 = por %p793, %p794
      %s796 = ssub.s32 %s101, %s113
      %s797 = ssub.s32 %s102, %s109
      %s798 = sor.u32 %s796, %s797
      %p799 = scmp.eq.s32.totalorder %s798, 0
      %s801 = sadd.s32 %s800, 1
      %s802 = scalar_select %p799, %s800, %s801
      %p805 = pneg %p799
      %p806 = scmp.eq.s32.totalorder %s94, 3
      %p807 = por %p805, %p806
      %p808 = scmp.ne.s32.totalorder %s800, %s803
      %p809 = scmp.eq.s32.totalorder %s94, 0
      %p810 = por %p808, %p809
      %p811 = scmp.ne.s32.totalorder %s800, %s803
      %p812 = scmp.eq.s32.totalorder %s99, 3
      %p813 = por %p811, %p812
      %p814 = scmp.ne.s32.totalorder %s803, %s804
      %p815 = scmp.eq.s32.totalorder %s99, 0
      %p816 = por %p814, %p815
      %p817 = scmp.ne.s32.totalorder %s803, %s804
      %p818 = scmp.eq.s32.totalorder %s100, 3
      %p819 = por %p817, %p818
      %p821 = scmp.ne.s32.totalorder %s804, %s820
      %p822 = scmp.eq.s32.totalorder %s100, 0
      %p823 = por %p821, %p822
      %p824 = scmp.le.s32.totalorder 1, %s94
      %p825 = scmp.lt.s32.totalorder %s94, 5
      %p826 = pnand %p824, %p825
      %p827 = pneg %p826
      // Predicated region
      $region9: #{tpu_custom_call.1} parent=5 // pred_check
        _
      $region10: #{tpu_custom_call.1} parent=5 // pred_check_branch
        %829 = sbr.rel (%p826) target = $region12
      $region11: #{tpu_custom_call.1} parent=5 // pred_region
        %s830 = ssub.s32 %s94, 1
        // Predicated region
        $region13: #{tpu_custom_call.1} parent=11 // pred_check
          %p831 = pneg %p263
        $region14: #{tpu_custom_call.1} parent=11 // pred_check_branch
          %833 = sbr.rel (%p831) target = $region16
        $region15: #{tpu_custom_call.1} parent=11 // pred_region
          %s835 = ssub.s32 512, 512
          %836 = vsyncadd [#allocation16], %s835
          %s837 = sshll.u32 [#allocation15], 4
          %s838 = int_to_ptr.vmem [resolvable:$true] %s837
          %843 = dma.hbm_to_vmem [thread:$0]  %s11, 512, %s838, [#allocation16], 128, 128, 8
        $region16: #{tpu_custom_call.1} parent=11 // pred_fallthru
          _
        // Predicated region
        $region17: #{tpu_custom_call.1} parent=11 // pred_check
          %p844 = pneg %p284
        $region18: #{tpu_custom_call.1} parent=11 // pred_check_branch
          %846 = sbr.rel (%p844) target = $region20
        $region19: #{tpu_custom_call.1} parent=11 // pred_region
          %s848 = ssub.s32 16, 16
          %849 = vsyncadd [#allocation16], %s848
          %s851 = sshll.u32 [#allocation17], 4
          %s852 = int_to_ptr.vmem [resolvable:$true] %s851
          %854 = dma.hbm_to_vmem [thread:$0]  %s13, 16, %s852, [#allocation16]
        $region20: #{tpu_custom_call.1} parent=11 // pred_fallthru
          _
        // Predicated region
        $region21: #{tpu_custom_call.1} parent=11 // pred_check
          %p855 = pneg %p305
        $region22: #{tpu_custom_call.1} parent=11 // pred_check_branch
          %857 = sbr.rel (%p855) target = $region24
        $region23: #{tpu_custom_call.1} parent=11 // pred_region
          %s859 = ssub.s32 512, 512
          %860 = vsyncadd [#allocation19], %s859
          %s861 = sshll.u32 [#allocation18], 4
          %s862 = int_to_ptr.vmem [resolvable:$true] %s861
          %867 = dma.hbm_to_vmem [thread:$0]  %s15, 512, %s862, [#allocation19], 128, 128, 8
        $region24: #{tpu_custom_call.1} parent=11 // pred_fallthru
          _
        // Predicated region
        $region25: #{tpu_custom_call.1} parent=11 // pred_check
          %p868 = pneg %p326
        $region26: #{tpu_custom_call.1} parent=11 // pred_check_branch
          %870 = sbr.rel (%p868) target = $region28
        $region27: #{tpu_custom_call.1} parent=11 // pred_region
          %s872 = ssub.s32 16, 16
          %873 = vsyncadd [#allocation19], %s872
          %s875 = sshll.u32 [#allocation20], 4
          %s876 = int_to_ptr.vmem [resolvable:$true] %s875
          %878 = dma.hbm_to_vmem [thread:$0]  %s17, 16, %s876, [#allocation19]
        $region28: #{tpu_custom_call.1} parent=11 // pred_fallthru
          _
        // Predicated region
        $region29: #{tpu_custom_call.1} parent=11 // pred_check
          %p879 = pneg %p347
        $region30: #{tpu_custom_call.1} parent=11 // pred_check_branch
          %881 = sbr.rel (%p879) target = $region32
        $region31: #{tpu_custom_call.1} parent=11 // pred_region
          %s883 = ssub.s32 512, 512
          %884 = vsyncadd [#allocation22], %s883
          %s885 = sshll.u32 [#allocation21], 4
          %s886 = int_to_ptr.vmem [resolvable:$true] %s885
          %891 = dma.hbm_to_vmem [thread:$0]  %s19, 512, %s886, [#allocation22], 128, 128, 8
        $region32: #{tpu_custom_call.1} parent=11 // pred_fallthru
          _
        // Predicated region
        $region33: #{tpu_custom_call.1} parent=11 // pred_check
          %p892 = pneg %p368
        $region34: #{tpu_custom_call.1} parent=11 // pred_check_branch
          %894 = sbr.rel (%p892) target = $region36
        $region35: #{tpu_custom_call.1} parent=11 // pred_region
          %s896 = ssub.s32 16, 16
          %897 = vsyncadd [#allocation22], %s896
          %s899 = sshll.u32 [#allocation23], 4
          %s900 = int_to_ptr.vmem [resolvable:$true] %s899
          %902 = dma.hbm_to_vmem [thread:$0]  %s21, 16, %s900, [#allocation22]
        $region36: #{tpu_custom_call.1} parent=11 // pred_fallthru
          _
        // Predicated region
        $region37: #{tpu_custom_call.1} parent=11 // pred_check
          %p903 = pneg %p389
        $region38: #{tpu_custom_call.1} parent=11 // pred_check_branch
          %905 = sbr.rel (%p903) target = $region40
        $region39: #{tpu_custom_call.1} parent=11 // pred_region
          %s907 = ssub.s32 512, 512
          %908 = vsyncadd [#allocation25], %s907
          %s909 = sshll.u32 [#allocation24], 4
          %s910 = int_to_ptr.vmem [resolvable:$true] %s909
          %915 = dma.hbm_to_vmem [thread:$0]  %s23, 512, %s910, [#allocation25], 128, 128, 8
        $region40: #{tpu_custom_call.1} parent=11 // pred_fallthru
          _
        // Predicated region
        $region41: #{tpu_custom_call.1} parent=11 // pred_check
          %p916 = pneg %p410
        $region42: #{tpu_custom_call.1} parent=11 // pred_check_branch
          %918 = sbr.rel (%p916) target = $region44
        $region43: #{tpu_custom_call.1} parent=11 // pred_region
          %s920 = ssub.s32 16, 16
          %921 = vsyncadd [#allocation25], %s920
          %s923 = sshll.u32 [#allocation26], 4
          %s924 = int_to_ptr.vmem [resolvable:$true] %s923
          %926 = dma.hbm_to_vmem [thread:$0]  %s25, 16, %s924, [#allocation25]
        $region44: #{tpu_custom_call.1} parent=11 // pred_fallthru
          _
        // Predicated region
        $region45: #{tpu_custom_call.1} parent=11 // pred_check
          %p927 = pneg %p431
        $region46: #{tpu_custom_call.1} parent=11 // pred_check_branch
          %929 = sbr.rel (%p927) target = $region48
        $region47: #{tpu_custom_call.1} parent=11 // pred_region
          %s931 = ssub.s32 512, 512
          %932 = vsyncadd [#allocation28], %s931
          %s933 = sshll.u32 [#allocation27], 4
          %s934 = int_to_ptr.vmem [resolvable:$true] %s933
          %939 = dma.hbm_to_vmem [thread:$0]  %s27, 512, %s934, [#allocation28], 128, 128, 8
        $region48: #{tpu_custom_call.1} parent=11 // pred_fallthru
          _
        // Predicated region
        $region49: #{tpu_custom_call.1} parent=11 // pred_check
          %p940 = pneg %p452
        $region50: #{tpu_custom_call.1} parent=11 // pred_check_branch
          %942 = sbr.rel (%p940) target = $region52
        $region51: #{tpu_custom_call.1} parent=11 // pred_region
          %s944 = ssub.s32 16, 16
          %945 = vsyncadd [#allocation28], %s944
          %s947 = sshll.u32 [#allocation29], 4
          %s948 = int_to_ptr.vmem [resolvable:$true] %s947
          %950 = dma.hbm_to_vmem [thread:$0]  %s29, 16, %s948, [#allocation28]
        $region52: #{tpu_custom_call.1} parent=11 // pred_fallthru
          _
        // Predicated region
        $region53: #{tpu_custom_call.1} parent=11 // pred_check
          %p951 = pneg %p473
        $region54: #{tpu_custom_call.1} parent=11 // pred_check_branch
          %953 = sbr.rel (%p951) target = $region56
        $region55: #{tpu_custom_call.1} parent=11 // pred_region
          %s955 = ssub.s32 512, 512
          %956 = vsyncadd [#allocation31], %s955
          %s957 = sshll.u32 [#allocation30], 4
          %s958 = int_to_ptr.vmem [resolvable:$true] %s957
          %963 = dma.hbm_to_vmem [thread:$0]  %s31, 512, %s958, [#allocation31], 128, 128, 8
        $region56: #{tpu_custom_call.1} parent=11 // pred_fallthru
          _
        // Predicated region
        $region57: #{tpu_custom_call.1} parent=11 // pred_check
          %p964 = pneg %p494
        $region58: #{tpu_custom_call.1} parent=11 // pred_check_branch
          %966 = sbr.rel (%p964) target = $region60
        $region59: #{tpu_custom_call.1} parent=11 // pred_region
          %s968 = ssub.s32 16, 16
          %969 = vsyncadd [#allocation31], %s968
          %s971 = sshll.u32 [#allocation32], 4
          %s972 = int_to_ptr.vmem [resolvable:$true] %s971
          %974 = dma.hbm_to_vmem [thread:$0]  %s33, 16, %s972, [#allocation31]
        $region60: #{tpu_custom_call.1} parent=11 // pred_fallthru
          _
        // Predicated region
        $region61: #{tpu_custom_call.1} parent=11 // pred_check
          %p975 = pneg %p515
        $region62: #{tpu_custom_call.1} parent=11 // pred_check_branch
          %977 = sbr.rel (%p975) target = $region64
        $region63: #{tpu_custom_call.1} parent=11 // pred_region
          %s979 = ssub.s32 512, 512
          %980 = vsyncadd [#allocation34], %s979
          %s981 = sshll.u32 [#allocation33], 4
          %s982 = int_to_ptr.vmem [resolvable:$true] %s981
          %987 = dma.hbm_to_vmem [thread:$0]  %s35, 512, %s982, [#allocation34], 128, 128, 8
        $region64: #{tpu_custom_call.1} parent=11 // pred_fallthru
          _
        // Predicated region
        $region65: #{tpu_custom_call.1} parent=11 // pred_check
          %p988 = pneg %p536
        $region66: #{tpu_custom_call.1} parent=11 // pred_check_branch
          %990 = sbr.rel (%p988) target = $region68
        $region67: #{tpu_custom_call.1} parent=11 // pred_region
          %s992 = ssub.s32 16, 16
          %993 = vsyncadd [#allocation34], %s992
          %s995 = sshll.u32 [#allocation35], 4
          %s996 = int_to_ptr.vmem [resolvable:$true] %s995
          %998 = dma.hbm_to_vmem [thread:$0]  %s37, 16, %s996, [#allocation34]
        $region68: #{tpu_custom_call.1} parent=11 // pred_fallthru
          _
        // Predicated region
        $region69: #{tpu_custom_call.1} parent=11 // pred_check
          %p999 = pneg %p557
        $region70: #{tpu_custom_call.1} parent=11 // pred_check_branch
          %1001 = sbr.rel (%p999) target = $region72
        $region71: #{tpu_custom_call.1} parent=11 // pred_region
          %s1003 = ssub.s32 512, 512
          %1004 = vsyncadd [#allocation37], %s1003
          %s1005 = sshll.u32 [#allocation36], 4
          %s1006 = int_to_ptr.vmem [resolvable:$true] %s1005
          %1011 = dma.hbm_to_vmem [thread:$0]  %s39, 512, %s1006, [#allocation37], 128, 128, 8
        $region72: #{tpu_custom_call.1} parent=11 // pred_fallthru
          _
        // Predicated region
        $region73: #{tpu_custom_call.1} parent=11 // pred_check
          %p1012 = pneg %p578
        $region74: #{tpu_custom_call.1} parent=11 // pred_check_branch
          %1014 = sbr.rel (%p1012) target = $region76
        $region75: #{tpu_custom_call.1} parent=11 // pred_region
          %s1016 = ssub.s32 16, 16
          %1017 = vsyncadd [#allocation37], %s1016
          %s1019 = sshll.u32 [#allocation38], 4
          %s1020 = int_to_ptr.vmem [resolvable:$true] %s1019
          %1022 = dma.hbm_to_vmem [thread:$0]  %s41, 16, %s1020, [#allocation37]
        $region76: #{tpu_custom_call.1} parent=11 // pred_fallthru
          _
        // Predicated region
        $region77: #{tpu_custom_call.1} parent=11 // pred_check
          %p1023 = pneg %p599
        $region78: #{tpu_custom_call.1} parent=11 // pred_check_branch
          %1025 = sbr.rel (%p1023) target = $region80
        $region79: #{tpu_custom_call.1} parent=11 // pred_region
          %s1027 = ssub.s32 512, 512
          %1028 = vsyncadd [#allocation40], %s1027
          %s1029 = sshll.u32 [#allocation39], 4
          %s1030 = int_to_ptr.vmem [resolvable:$true] %s1029
          %1035 = dma.hbm_to_vmem [thread:$0]  %s43, 512, %s1030, [#allocation40], 128, 128, 8
        $region80: #{tpu_custom_call.1} parent=11 // pred_fallthru
          _
        // Predicated region
        $region81: #{tpu_custom_call.1} parent=11 // pred_check
          %p1036 = pneg %p620
        $region82: #{tpu_custom_call.1} parent=11 // pred_check_branch
          %1038 = sbr.rel (%p1036) target = $region84
        $region83: #{tpu_custom_call.1} parent=11 // pred_region
          %s1040 = ssub.s32 16, 16
          %1041 = vsyncadd [#allocation40], %s1040
          %s1043 = sshll.u32 [#allocation41], 4
          %s1044 = int_to_ptr.vmem [resolvable:$true] %s1043
          %1046 = dma.hbm_to_vmem [thread:$0]  %s45, 16, %s1044, [#allocation40]
        $region84: #{tpu_custom_call.1} parent=11 // pred_fallthru
          _
        // Predicated region
        $region85: #{tpu_custom_call.1} parent=11 // pred_check
          %p1047 = pneg %p641
        $region86: #{tpu_custom_call.1} parent=11 // pred_check_branch
          %1049 = sbr.rel (%p1047) target = $region88
        $region87: #{tpu_custom_call.1} parent=11 // pred_region
          %s1051 = ssub.s32 1024, 1024
          %1052 = vsyncadd [#allocation43], %s1051
          %s1053 = sshll.u32 [#allocation42], 4
          %s1054 = int_to_ptr.vmem [resolvable:$true] %s1053
          %1059 = dma.hbm_to_vmem [thread:$0]  %s47, 1024, %s1054, [#allocation43], 128, 128, 8
        $region88: #{tpu_custom_call.1} parent=11 // pred_fallthru
          _
        // Predicated region
        $region89: #{tpu_custom_call.1} parent=11 // pred_check
          %p1060 = pneg %p662
        $region90: #{tpu_custom_call.1} parent=11 // pred_check_branch
          %1062 = sbr.rel (%p1060) target = $region92
        $region91: #{tpu_custom_call.1} parent=11 // pred_region
          %s1064 = ssub.s32 16, 16
          %1065 = vsyncadd [#allocation43], %s1064
          %s1067 = sshll.u32 [#allocation44], 4
          %s1068 = int_to_ptr.vmem [resolvable:$true] %s1067
          %1070 = dma.hbm_to_vmem [thread:$0]  %s49, 16, %s1068, [#allocation43]
        $region92: #{tpu_custom_call.1} parent=11 // pred_fallthru
          _
        // Predicated region
        $region93: #{tpu_custom_call.1} parent=11 // pred_check
          %p1071 = pneg %p683
        $region94: #{tpu_custom_call.1} parent=11 // pred_check_branch
          %1073 = sbr.rel (%p1071) target = $region96
        $region95: #{tpu_custom_call.1} parent=11 // pred_region
          %s1075 = ssub.s32 16, 16
          %1076 = vsyncadd [#allocation46], %s1075
          %s1078 = sshll.u32 [#allocation45], 4
          %s1079 = int_to_ptr.vmem [resolvable:$true] %s1078
          %1081 = dma.hbm_to_vmem [thread:$0]  %s51, 16, %s1079, [#allocation46]
        $region96: #{tpu_custom_call.1} parent=11 // pred_fallthru
          _
        // Predicated region
        $region97: #{tpu_custom_call.1} parent=11 // pred_check
          %p1082 = pneg %p704
        $region98: #{tpu_custom_call.1} parent=11 // pred_check_branch
          %1084 = sbr.rel (%p1082) target = $region100
        $region99: #{tpu_custom_call.1} parent=11 // pred_region
          %s1086 = ssub.s32 16, 16
          %1087 = vsyncadd [#allocation46], %s1086
          %s1089 = sshll.u32 [#allocation47], 4
          %s1090 = int_to_ptr.vmem [resolvable:$true] %s1089
          %1092 = dma.hbm_to_vmem [thread:$0]  %s53, 16, %s1090, [#allocation46]
        $region100: #{tpu_custom_call.1} parent=11 // pred_fallthru
          _
        // Predicated region
        $region101: #{tpu_custom_call.1} parent=11 // pred_check
          %p1093 = pneg %p725
        $region102: #{tpu_custom_call.1} parent=11 // pred_check_branch
          %1095 = sbr.rel (%p1093) target = $region104
        $region103: #{tpu_custom_call.1} parent=11 // pred_region
          %s1097 = ssub.s32 16, 16
          %1098 = vsyncadd [#allocation49], %s1097
          %s1100 = sshll.u32 [#allocation48], 4
          %s1101 = int_to_ptr.vmem [resolvable:$true] %s1100
          %1103 = dma.hbm_to_vmem [thread:$0]  %s55, 16, %s1101, [#allocation49]
        $region104: #{tpu_custom_call.1} parent=11 // pred_fallthru
          _
        // Predicated region
        $region105: #{tpu_custom_call.1} parent=11 // pred_check
          %p1104 = pneg %p746
        $region106: #{tpu_custom_call.1} parent=11 // pred_check_branch
          %1106 = sbr.rel (%p1104) target = $region108
        $region107: #{tpu_custom_call.1} parent=11 // pred_region
          %s1108 = ssub.s32 16, 16
          %1109 = vsyncadd [#allocation49], %s1108
          %s1111 = sshll.u32 [#allocation50], 4
          %s1112 = int_to_ptr.vmem [resolvable:$true] %s1111
          %1114 = dma.hbm_to_vmem [thread:$0]  %s57, 16, %s1112, [#allocation49]
        $region108: #{tpu_custom_call.1} parent=11 // pred_fallthru
          _
        // Predicated region
        $region109: #{tpu_custom_call.1} parent=11 // pred_check
          %p1115 = pneg %p767
        $region110: #{tpu_custom_call.1} parent=11 // pred_check_branch
          %1117 = sbr.rel (%p1115) target = $region112
        $region111: #{tpu_custom_call.1} parent=11 // pred_region
          %s1119 = ssub.s32 16, 16
          %1120 = vsyncadd [#allocation52], %s1119
          %s1122 = sshll.u32 [#allocation51], 4
          %s1123 = int_to_ptr.vmem [resolvable:$true] %s1122
          %1125 = dma.hbm_to_vmem [thread:$0]  %s59, 16, %s1123, [#allocation52]
        $region112: #{tpu_custom_call.1} parent=11 // pred_fallthru
          _
        // Predicated region
        $region113: #{tpu_custom_call.1} parent=11 // pred_check
          %p1126 = pneg %p788
        $region114: #{tpu_custom_call.1} parent=11 // pred_check_branch
          %1128 = sbr.rel (%p1126) target = $region116
        $region115: #{tpu_custom_call.1} parent=11 // pred_region
          %s1130 = ssub.s32 16, 16
          %1131 = vsyncadd [#allocation52], %s1130
          %s1133 = sshll.u32 [#allocation53], 4
          %s1134 = int_to_ptr.vmem [resolvable:$true] %s1133
          %1136 = dma.hbm_to_vmem [thread:$0]  %s61, 16, %s1134, [#allocation52]
        $region116: #{tpu_custom_call.1} parent=11 // pred_fallthru
          _
      $region12: #{tpu_custom_call.1} parent=5 // pred_fallthru
        _
      %p1137 = scmp.lt.s32.totalorder %s94, 4
      // Predicated region
      $region117: #{tpu_custom_call.1} parent=5 // pred_check
        %p1138 = pneg %p1137
      $region118: #{tpu_custom_call.1} parent=5 // pred_check_branch
        %1140 = sbr.rel (%p1138) target = $region120
      $region119: #{tpu_custom_call.1} parent=5 // pred_region
        // Predicated region
        $region121: #{tpu_custom_call.1} parent=119 // pred_check
          %p1141 = pneg %p128
        $region122: #{tpu_custom_call.1} parent=119 // pred_check_branch
          %1143 = sbr.rel (%p1141) target = $region124
        $region123: #{tpu_custom_call.1} parent=119 // pred_region
          %s1144 = sand.u32 %s118, 1
          %s1145 = scalar_lea.sflag [#allocation7], %s1144
          %s1146 = sand.u32 %s118, 1
          %s1147 = smul.addr %s1146, 8
          %s1148 = scalar_lea.vmem [#allocation6], %s1147
          %s1150 = ssub.s32 128, 128
          %1151 = vsyncadd %s1145, %s1150
          %s1152 = smul.addr %s101, 2
          %s1153 = sadd.s32 %s102, %s1152
          %s1154 = smul.addr %s1153, 128
          %s1155 = scalar_lea.hbm %s1, %s1154
          %s1157 = sshll.u32 %s1148, 4
          %s1158 = int_to_ptr.vmem [resolvable:$true] %s1157
          %1160 = dma.hbm_to_vmem [thread:$0]  %s1155, 128, %s1158, %s1145
        $region124: #{tpu_custom_call.1} parent=119 // pred_fallthru
          _
        // Predicated region
        $region125: #{tpu_custom_call.1} parent=119 // pred_check
          %p1161 = pneg %p154
        $region126: #{tpu_custom_call.1} parent=119 // pred_check_branch
          %1163 = sbr.rel (%p1161) target = $region128
        $region127: #{tpu_custom_call.1} parent=119 // pred_region
          %s1164 = sand.u32 %s94, 1
          %s1165 = scalar_lea.sflag [#allocation10], %s1164
          %s1166 = sand.u32 %s144, 1
          %s1167 = smul.addr %s1166, 16
          %s1168 = scalar_lea.vmem [#allocation9], %s1167
          %s1170 = ssub.s32 256, 256
          %1171 = vsyncadd %s1165, %s1170
          %s1172 = smul.addr %s101, 2
          %s1173 = smul.addr %s1172, 128
          %s1174 = scalar_lea.hbm %s3, %s1173
          %s1175 = sshll.u32 %s1168, 4
          %s1176 = int_to_ptr.vmem [resolvable:$true] %s1175
          %1181 = dma.hbm_to_vmem [thread:$0]  %s1174, 256, %s1176, %s1165, 128, 128, 8
        $region128: #{tpu_custom_call.1} parent=119 // pred_fallthru
          _
        // Predicated region
        $region129: #{tpu_custom_call.1} parent=119 // pred_check
          %p1182 = pneg %p180
        $region130: #{tpu_custom_call.1} parent=119 // pred_check_branch
          %1184 = sbr.rel (%p1182) target = $region132
        $region131: #{tpu_custom_call.1} parent=119 // pred_region
          %s1185 = sand.u32 %s94, 1
          %s1186 = scalar_lea.sflag [#allocation10], %s1185
          %s1187 = sand.u32 %s170, 1
          %s1188 = smul.addr %s1187, 16
          %s1189 = scalar_lea.vmem [#allocation11], %s1188
          %s1191 = ssub.s32 256, 256
          %1192 = vsyncadd %s1186, %s1191
          %s1193 = smul.addr %s101, 2
          %s1194 = smul.addr %s1193, 128
          %s1195 = scalar_lea.hbm %s5, %s1194
          %s1196 = sshll.u32 %s1189, 4
          %s1197 = int_to_ptr.vmem [resolvable:$true] %s1196
          %1202 = dma.hbm_to_vmem [thread:$0]  %s1195, 256, %s1197, %s1186, 128, 128, 8
        $region132: #{tpu_custom_call.1} parent=119 // pred_fallthru
          _
        // Predicated region
        $region133: #{tpu_custom_call.1} parent=119 // pred_check
          %p1203 = pneg %p208
        $region134: #{tpu_custom_call.1} parent=119 // pred_check_branch
          %1205 = sbr.rel (%p1203) target = $region136
        $region135: #{tpu_custom_call.1} parent=119 // pred_region
          %s1206 = sand.u32 %s94, 1
          %s1207 = scalar_lea.sflag [#allocation13], %s1206
          %s1208 = sand.u32 %s198, 1
          %s1209 = smul.addr %s1208, 8
          %s1210 = scalar_lea.vmem [#allocation12], %s1209
          %s1212 = ssub.s32 128, 128
          %1213 = vsyncadd %s1207, %s1212
          %s1214 = smul.addr %s101, 2
          %s1215 = sadd.s32 %s102, %s1214
          %s1216 = smul.addr %s1215, 128
          %s1217 = scalar_lea.hbm %s7, %s1216
          %s1219 = sshll.u32 %s1210, 4
          %s1220 = int_to_ptr.vmem [resolvable:$true] %s1219
          %1222 = dma.hbm_to_vmem [thread:$0]  %s1217, 128, %s1220, %s1207
        $region136: #{tpu_custom_call.1} parent=119 // pred_fallthru
          _
        // Predicated region
        $region137: #{tpu_custom_call.1} parent=119 // pred_check
          %p1223 = pneg %p236
        $region138: #{tpu_custom_call.1} parent=119 // pred_check_branch
          %1225 = sbr.rel (%p1223) target = $region140
        $region139: #{tpu_custom_call.1} parent=119 // pred_region
          %s1226 = sand.u32 %s94, 1
          %s1227 = scalar_lea.sflag [#allocation13], %s1226
          %s1228 = sand.u32 %s226, 1
          %s1229 = smul.addr %s1228, 8
          %s1230 = scalar_lea.vmem [#allocation14], %s1229
          %s1232 = ssub.s32 128, 128
          %1233 = vsyncadd %s1227, %s1232
          %s1234 = smul.addr %s101, 2
          %s1235 = sadd.s32 %s102, %s1234
          %s1236 = smul.addr %s1235, 128
          %s1237 = scalar_lea.hbm %s9, %s1236
          %s1239 = sshll.u32 %s1230, 4
          %s1240 = int_to_ptr.vmem [resolvable:$true] %s1239
          %1242 = dma.hbm_to_vmem [thread:$0]  %s1237, 128, %s1240, %s1227
        $region140: #{tpu_custom_call.1} parent=119 // pred_fallthru
          _
      $region120: #{tpu_custom_call.1} parent=5 // pred_fallthru
        _
      %p1243 = scmp.le.s32.totalorder 1, %s94
      %p1244 = scmp.lt.s32.totalorder %s94, 5
      %p1245 = pnand %p1243, %p1244
      %p1246 = pneg %p1245
      // Predicated region
      $region141: #{tpu_custom_call.1} parent=5 // pred_check
        _
      $region142: #{tpu_custom_call.1} parent=5 // pred_check_branch
        %1248 = sbr.rel (%p1245) target = $region144
      $region143: #{tpu_custom_call.1} parent=5 // pred_region
        %s1249 = ssub.s32 %s94, 1
        %s1250 = sand.u32 %s121, 1
        %s1251 = scalar_lea.sflag [#allocation7], %s1250
        %s1252 = sand.u32 %s121, 1
        %s1253 = smul.addr %s1252, 8
        %s1254 = scalar_lea.vmem [#allocation6], %s1253
        // Predicated region
        $region145: #{tpu_custom_call.1} parent=143 // pred_check
          %p1255 = pneg %p134
        $region146: #{tpu_custom_call.1} parent=143 // pred_check_branch
          %1257 = sbr.rel (%p1255) target = $region148
        $region147: #{tpu_custom_call.1} parent=143 // pred_region
          %1258 = dma.done %s1251, 128
        $region148: #{tpu_custom_call.1} parent=143 // pred_fallthru
          _
        %s1259 = sand.u32 %s99, 1
        %s1260 = scalar_lea.sflag [#allocation10], %s1259
        %s1261 = sand.u32 %s147, 1
        %s1262 = smul.addr %s1261, 16
        %s1263 = scalar_lea.vmem [#allocation9], %s1262
        // Predicated region
        $region149: #{tpu_custom_call.1} parent=143 // pred_check
          %p1264 = pneg %p160
        $region150: #{tpu_custom_call.1} parent=143 // pred_check_branch
          %1266 = sbr.rel (%p1264) target = $region152
        $region151: #{tpu_custom_call.1} parent=143 // pred_region
          %1267 = dma.done %s1260, 256
        $region152: #{tpu_custom_call.1} parent=143 // pred_fallthru
          _
        %s1268 = sand.u32 %s99, 1
        %s1269 = scalar_lea.sflag [#allocation10], %s1268
        %s1270 = sand.u32 %s173, 1
        %s1271 = smul.addr %s1270, 16
        %s1272 = scalar_lea.vmem [#allocation11], %s1271
        // Predicated region
        $region153: #{tpu_custom_call.1} parent=143 // pred_check
          %p1273 = pneg %p186
        $region154: #{tpu_custom_call.1} parent=143 // pred_check_branch
          %1275 = sbr.rel (%p1273) target = $region156
        $region155: #{tpu_custom_call.1} parent=143 // pred_region
          %1276 = dma.done %s1269, 256
        $region156: #{tpu_custom_call.1} parent=143 // pred_fallthru
          _
        %s1277 = sand.u32 %s99, 1
        %s1278 = scalar_lea.sflag [#allocation13], %s1277
        %s1279 = sand.u32 %s201, 1
        %s1280 = smul.addr %s1279, 8
        %s1281 = scalar_lea.vmem [#allocation12], %s1280
        // Predicated region
        $region157: #{tpu_custom_call.1} parent=143 // pred_check
          %p1282 = pneg %p214
        $region158: #{tpu_custom_call.1} parent=143 // pred_check_branch
          %1284 = sbr.rel (%p1282) target = $region160
        $region159: #{tpu_custom_call.1} parent=143 // pred_region
          %1285 = dma.done %s1278, 128
        $region160: #{tpu_custom_call.1} parent=143 // pred_fallthru
          _
        %s1286 = sand.u32 %s99, 1
        %s1287 = scalar_lea.sflag [#allocation13], %s1286
        %s1288 = sand.u32 %s229, 1
        %s1289 = smul.addr %s1288, 8
        %s1290 = scalar_lea.vmem [#allocation14], %s1289
        // Predicated region
        $region161: #{tpu_custom_call.1} parent=143 // pred_check
          %p1291 = pneg %p242
        $region162: #{tpu_custom_call.1} parent=143 // pred_check_branch
          %1293 = sbr.rel (%p1291) target = $region164
        $region163: #{tpu_custom_call.1} parent=143 // pred_region
          %1294 = dma.done %s1287, 128
        $region164: #{tpu_custom_call.1} parent=143 // pred_fallthru
          _
        // Predicated region
        $region165: #{tpu_custom_call.1} parent=143 // pred_check
          %p1295 = pneg %p263
        $region166: #{tpu_custom_call.1} parent=143 // pred_check_branch
          %1297 = sbr.rel (%p1295) target = $region168
        $region167: #{tpu_custom_call.1} parent=143 // pred_region
          %1298 = dma.done [#allocation16], 512
        $region168: #{tpu_custom_call.1} parent=143 // pred_fallthru
          _
        // Predicated region
        $region169: #{tpu_custom_call.1} parent=143 // pred_check
          %p1299 = pneg %p284
        $region170: #{tpu_custom_call.1} parent=143 // pred_check_branch
          %1301 = sbr.rel (%p1299) target = $region172
        $region171: #{tpu_custom_call.1} parent=143 // pred_region
          %1302 = dma.done [#allocation16], 16
        $region172: #{tpu_custom_call.1} parent=143 // pred_fallthru
          _
        // Predicated region
        $region173: #{tpu_custom_call.1} parent=143 // pred_check
          %p1303 = pneg %p305
        $region174: #{tpu_custom_call.1} parent=143 // pred_check_branch
          %1305 = sbr.rel (%p1303) target = $region176
        $region175: #{tpu_custom_call.1} parent=143 // pred_region
          %1306 = dma.done [#allocation19], 512
        $region176: #{tpu_custom_call.1} parent=143 // pred_fallthru
          _
        // Predicated region
        $region177: #{tpu_custom_call.1} parent=143 // pred_check
          %p1307 = pneg %p326
        $region178: #{tpu_custom_call.1} parent=143 // pred_check_branch
          %1309 = sbr.rel (%p1307) target = $region180
        $region179: #{tpu_custom_call.1} parent=143 // pred_region
          %1310 = dma.done [#allocation19], 16
        $region180: #{tpu_custom_call.1} parent=143 // pred_fallthru
          _
        // Predicated region
        $region181: #{tpu_custom_call.1} parent=143 // pred_check
          %p1311 = pneg %p347
        $region182: #{tpu_custom_call.1} parent=143 // pred_check_branch
          %1313 = sbr.rel (%p1311) target = $region184
        $region183: #{tpu_custom_call.1} parent=143 // pred_region
          %1314 = dma.done [#allocation22], 512
        $region184: #{tpu_custom_call.1} parent=143 // pred_fallthru
          _
        // Predicated region
        $region185: #{tpu_custom_call.1} parent=143 // pred_check
          %p1315 = pneg %p368
        $region186: #{tpu_custom_call.1} parent=143 // pred_check_branch
          %1317 = sbr.rel (%p1315) target = $region188
        $region187: #{tpu_custom_call.1} parent=143 // pred_region
          %1318 = dma.done [#allocation22], 16
        $region188: #{tpu_custom_call.1} parent=143 // pred_fallthru
          _
        // Predicated region
        $region189: #{tpu_custom_call.1} parent=143 // pred_check
          %p1319 = pneg %p389
        $region190: #{tpu_custom_call.1} parent=143 // pred_check_branch
          %1321 = sbr.rel (%p1319) target = $region192
        $region191: #{tpu_custom_call.1} parent=143 // pred_region
          %1322 = dma.done [#allocation25], 512
        $region192: #{tpu_custom_call.1} parent=143 // pred_fallthru
          _
        // Predicated region
        $region193: #{tpu_custom_call.1} parent=143 // pred_check
          %p1323 = pneg %p410
        $region194: #{tpu_custom_call.1} parent=143 // pred_check_branch
          %1325 = sbr.rel (%p1323) target = $region196
        $region195: #{tpu_custom_call.1} parent=143 // pred_region
          %1326 = dma.done [#allocation25], 16
        $region196: #{tpu_custom_call.1} parent=143 // pred_fallthru
          _
        // Predicated region
        $region197: #{tpu_custom_call.1} parent=143 // pred_check
          %p1327 = pneg %p431
        $region198: #{tpu_custom_call.1} parent=143 // pred_check_branch
          %1329 = sbr.rel (%p1327) target = $region200
        $region199: #{tpu_custom_call.1} parent=143 // pred_region
          %1330 = dma.done [#allocation28], 512
        $region200: #{tpu_custom_call.1} parent=143 // pred_fallthru
          _
        // Predicated region
        $region201: #{tpu_custom_call.1} parent=143 // pred_check
          %p1331 = pneg %p452
        $region202: #{tpu_custom_call.1} parent=143 // pred_check_branch
          %1333 = sbr.rel (%p1331) target = $region204
        $region203: #{tpu_custom_call.1} parent=143 // pred_region
          %1334 = dma.done [#allocation28], 16
        $region204: #{tpu_custom_call.1} parent=143 // pred_fallthru
          _
        // Predicated region
        $region205: #{tpu_custom_call.1} parent=143 // pred_check
          %p1335 = pneg %p473
        $region206: #{tpu_custom_call.1} parent=143 // pred_check_branch
          %1337 = sbr.rel (%p1335) target = $region208
        $region207: #{tpu_custom_call.1} parent=143 // pred_region
          %1338 = dma.done [#allocation31], 512
        $region208: #{tpu_custom_call.1} parent=143 // pred_fallthru
          _
        // Predicated region
        $region209: #{tpu_custom_call.1} parent=143 // pred_check
          %p1339 = pneg %p494
        $region210: #{tpu_custom_call.1} parent=143 // pred_check_branch
          %1341 = sbr.rel (%p1339) target = $region212
        $region211: #{tpu_custom_call.1} parent=143 // pred_region
          %1342 = dma.done [#allocation31], 16
        $region212: #{tpu_custom_call.1} parent=143 // pred_fallthru
          _
        // Predicated region
        $region213: #{tpu_custom_call.1} parent=143 // pred_check
          %p1343 = pneg %p515
        $region214: #{tpu_custom_call.1} parent=143 // pred_check_branch
          %1345 = sbr.rel (%p1343) target = $region216
        $region215: #{tpu_custom_call.1} parent=143 // pred_region
          %1346 = dma.done [#allocation34], 512
        $region216: #{tpu_custom_call.1} parent=143 // pred_fallthru
          _
        // Predicated region
        $region217: #{tpu_custom_call.1} parent=143 // pred_check
          %p1347 = pneg %p536
        $region218: #{tpu_custom_call.1} parent=143 // pred_check_branch
          %1349 = sbr.rel (%p1347) target = $region220
        $region219: #{tpu_custom_call.1} parent=143 // pred_region
          %1350 = dma.done [#allocation34], 16
        $region220: #{tpu_custom_call.1} parent=143 // pred_fallthru
          _
        // Predicated region
        $region221: #{tpu_custom_call.1} parent=143 // pred_check
          %p1351 = pneg %p557
        $region222: #{tpu_custom_call.1} parent=143 // pred_check_branch
          %1353 = sbr.rel (%p1351) target = $region224
        $region223: #{tpu_custom_call.1} parent=143 // pred_region
          %1354 = dma.done [#allocation37], 512
        $region224: #{tpu_custom_call.1} parent=143 // pred_fallthru
          _
        // Predicated region
        $region225: #{tpu_custom_call.1} parent=143 // pred_check
          %p1355 = pneg %p578
        $region226: #{tpu_custom_call.1} parent=143 // pred_check_branch
          %1357 = sbr.rel (%p1355) target = $region228
        $region227: #{tpu_custom_call.1} parent=143 // pred_region
          %1358 = dma.done [#allocation37], 16
        $region228: #{tpu_custom_call.1} parent=143 // pred_fallthru
          _
        // Predicated region
        $region229: #{tpu_custom_call.1} parent=143 // pred_check
          %p1359 = pneg %p599
        $region230: #{tpu_custom_call.1} parent=143 // pred_check_branch
          %1361 = sbr.rel (%p1359) target = $region232
        $region231: #{tpu_custom_call.1} parent=143 // pred_region
          %1362 = dma.done [#allocation40], 512
        $region232: #{tpu_custom_call.1} parent=143 // pred_fallthru
          _
        // Predicated region
        $region233: #{tpu_custom_call.1} parent=143 // pred_check
          %p1363 = pneg %p620
        $region234: #{tpu_custom_call.1} parent=143 // pred_check_branch
          %1365 = sbr.rel (%p1363) target = $region236
        $region235: #{tpu_custom_call.1} parent=143 // pred_region
          %1366 = dma.done [#allocation40], 16
        $region236: #{tpu_custom_call.1} parent=143 // pred_fallthru
          _
        // Predicated region
        $region237: #{tpu_custom_call.1} parent=143 // pred_check
          %p1367 = pneg %p641
        $region238: #{tpu_custom_call.1} parent=143 // pred_check_branch
          %1369 = sbr.rel (%p1367) target = $region240
        $region239: #{tpu_custom_call.1} parent=143 // pred_region
          %1370 = dma.done [#allocation43], 1024
        $region240: #{tpu_custom_call.1} parent=143 // pred_fallthru
          _
        // Predicated region
        $region241: #{tpu_custom_call.1} parent=143 // pred_check
          %p1371 = pneg %p662
        $region242: #{tpu_custom_call.1} parent=143 // pred_check_branch
          %1373 = sbr.rel (%p1371) target = $region244
        $region243: #{tpu_custom_call.1} parent=143 // pred_region
          %1374 = dma.done [#allocation43], 16
        $region244: #{tpu_custom_call.1} parent=143 // pred_fallthru
          _
        // Predicated region
        $region245: #{tpu_custom_call.1} parent=143 // pred_check
          %p1375 = pneg %p683
        $region246: #{tpu_custom_call.1} parent=143 // pred_check_branch
          %1377 = sbr.rel (%p1375) target = $region248
        $region247: #{tpu_custom_call.1} parent=143 // pred_region
          %1378 = dma.done [#allocation46], 16
        $region248: #{tpu_custom_call.1} parent=143 // pred_fallthru
          _
        // Predicated region
        $region249: #{tpu_custom_call.1} parent=143 // pred_check
          %p1379 = pneg %p704
        $region250: #{tpu_custom_call.1} parent=143 // pred_check_branch
          %1381 = sbr.rel (%p1379) target = $region252
        $region251: #{tpu_custom_call.1} parent=143 // pred_region
          %1382 = dma.done [#allocation46], 16
        $region252: #{tpu_custom_call.1} parent=143 // pred_fallthru
          _
        // Predicated region
        $region253: #{tpu_custom_call.1} parent=143 // pred_check
          %p1383 = pneg %p725
        $region254: #{tpu_custom_call.1} parent=143 // pred_check_branch
          %1385 = sbr.rel (%p1383) target = $region256
        $region255: #{tpu_custom_call.1} parent=143 // pred_region
          %1386 = dma.done [#allocation49], 16
        $region256: #{tpu_custom_call.1} parent=143 // pred_fallthru
          _
        // Predicated region
        $region257: #{tpu_custom_call.1} parent=143 // pred_check
          %p1387 = pneg %p746
        $region258: #{tpu_custom_call.1} parent=143 // pred_check_branch
          %1389 = sbr.rel (%p1387) target = $region260
        $region259: #{tpu_custom_call.1} parent=143 // pred_region
          %1390 = dma.done [#allocation49], 16
        $region260: #{tpu_custom_call.1} parent=143 // pred_fallthru
          _
        // Predicated region
        $region261: #{tpu_custom_call.1} parent=143 // pred_check
          %p1391 = pneg %p767
        $region262: #{tpu_custom_call.1} parent=143 // pred_check_branch
          %1393 = sbr.rel (%p1391) target = $region264
        $region263: #{tpu_custom_call.1} parent=143 // pred_region
          %1394 = dma.done [#allocation52], 16
        $region264: #{tpu_custom_call.1} parent=143 // pred_fallthru
          _
        // Predicated region
        $region265: #{tpu_custom_call.1} parent=143 // pred_check
          %p1395 = pneg %p788
        $region266: #{tpu_custom_call.1} parent=143 // pred_check_branch
          %1397 = sbr.rel (%p1395) target = $region268
        $region267: #{tpu_custom_call.1} parent=143 // pred_region
          %1398 = dma.done [#allocation52], 16
        $region268: #{tpu_custom_call.1} parent=143 // pred_fallthru
          _
        %s1399 = sand.u32 %s121, 1
        %s1400 = scalar_lea.sflag [#allocation7], %s1399
        %s1401 = sand.u32 %s121, 1
        %s1402 = smul.addr %s1401, 8
        %s1403 = scalar_lea.vmem [#allocation6], %s1402
        %p1404 = pneg %p134
        %p1405 = pneg %p131
        %s1406 = sand.u32 %s99, 1
        %s1407 = scalar_lea.sflag [#allocation10], %s1406
        %s1408 = sand.u32 %s147, 1
        %s1409 = smul.addr %s1408, 16
        %s1410 = scalar_lea.vmem [#allocation9], %s1409
        %p1411 = pneg %p160
        %p1412 = pneg %p157
        %s1413 = sand.u32 %s99, 1
        %s1414 = scalar_lea.sflag [#allocation10], %s1413
        %s1415 = sand.u32 %s173, 1
        %s1416 = smul.addr %s1415, 16
        %s1417 = scalar_lea.vmem [#allocation11], %s1416
        %p1418 = pneg %p186
        %p1419 = pneg %p183
        %s1420 = sand.u32 %s99, 1
        %s1421 = scalar_lea.sflag [#allocation13], %s1420
        %s1422 = sand.u32 %s201, 1
        %s1423 = smul.addr %s1422, 8
        %s1424 = scalar_lea.vmem [#allocation12], %s1423
        %p1425 = pneg %p214
        %p1426 = pneg %p211
        %s1427 = sand.u32 %s99, 1
        %s1428 = scalar_lea.sflag [#allocation13], %s1427
        %s1429 = sand.u32 %s229, 1
        %s1430 = smul.addr %s1429, 8
        %s1431 = scalar_lea.vmem [#allocation14], %s1430
        %p1432 = pneg %p242
        %p1433 = pneg %p239
        %p1434 = pneg %p263
        %p1435 = pneg %p260
        %p1436 = pneg %p284
        %p1437 = pneg %p281
        %p1438 = pneg %p305
        %p1439 = pneg %p302
        %p1440 = pneg %p326
        %p1441 = pneg %p323
        %p1442 = pneg %p347
        %p1443 = pneg %p344
        %p1444 = pneg %p368
        %p1445 = pneg %p365
        %p1446 = pneg %p389
        %p1447 = pneg %p386
        %p1448 = pneg %p410
        %p1449 = pneg %p407
        %p1450 = pneg %p431
        %p1451 = pneg %p428
        %p1452 = pneg %p452
        %p1453 = pneg %p449
        %p1454 = pneg %p473
        %p1455 = pneg %p470
        %p1456 = pneg %p494
        %p1457 = pneg %p491
        %p1458 = pneg %p515
        %p1459 = pneg %p512
        %p1460 = pneg %p536
        %p1461 = pneg %p533
        %p1462 = pneg %p557
        %p1463 = pneg %p554
        %p1464 = pneg %p578
        %p1465 = pneg %p575
        %p1466 = pneg %p599
        %p1467 = pneg %p596
        %p1468 = pneg %p620
        %p1469 = pneg %p617
        %p1470 = pneg %p641
        %p1471 = pneg %p638
        %p1472 = pneg %p662
        %p1473 = pneg %p659
        %p1474 = pneg %p683
        %p1475 = pneg %p680
        %p1476 = pneg %p704
        %p1477 = pneg %p701
        %p1478 = pneg %p725
        %p1479 = pneg %p722
        %p1480 = pneg %p746
        %p1481 = pneg %p743
        %p1482 = pneg %p767
        %p1483 = pneg %p764
        %p1484 = pneg %p788
        %p1485 = pneg %p785
        %p1486 = pneg %p816
        %p1487 = pneg %p813
        %s1488 = sand.u32 %s803, 1
        %s1489 = scalar_lea.sflag [#allocation8], %s1488
        %s1490 = sand.u32 %s803, 1
        %s1491 = smul.addr %s1490, 8
        %s1492 = scalar_lea.vmem [#allocation54], %s1491
        %p1493 = scmp.eq.s32.totalorder %s104, 0
        // Predicated region
        $region269: #{tpu_custom_call.1} parent=143 // pred_check
          %p1494 = pneg %p1493
        $region270: #{tpu_custom_call.1} parent=143 // pred_check_branch
          %1496 = sbr.rel (%p1494) target = $region272
        $region271: #{tpu_custom_call.1} parent=143 // pred_region
          %v1497 = vld [vmem:[%s1263] sm:$0xff]
          %v1498 = vld [vmem:[%s1263 + $0x8] sm:$0xff]
          %v1499 = vld [vmem:[%s1272] sm:$0xff]
          %v1500 = vld [vmem:[%s1272 + $0x8] sm:$0xff]
          %v1501 = vld [vmem:[#allocation18] sm:$0xff]
          %v1502 = vld [vmem:[#allocation18 + $0x8] sm:$0xff]
          %v1503 = vld [vmem:[#allocation18 + $0x10] sm:$0xff]
          %v1504 = vld [vmem:[#allocation18 + $0x18] sm:$0xff]
          %v1505 = vld [vmem:[#allocation20] sm:$0x1]
          %v1507 = vlaneseq
          %v1508 = vshrl.u32 %v1507, 7
          %v1509 = vsub.s32 0, %v1508
          %v1510 = vrot.slane %v1505, %v1509
          %vm1512 = vcmask 261120
          %v1514 = vsel %vm1512, %v1497, 0
          %v1517 = vsel %vm1512, %v1498, 0
          %1519 = vmatprep.subr.mxu0 0.0
          %1520 = vmatpush1.msra.mxu0 %v1501
          %1521 = vmatprep.subr.mxu0 0.0
          %1522 = vmatpush1.msra.mxu0 %v1502
          %1523 = vmatprep.subr.mxu0 0.0
          %1524 = vmatpush1.msra.mxu0 %v1503
          %1525 = vmatprep.subr.mxu0 0.0
          %1526 = vmatpush1.msra.mxu0 %v1504
          %1527 = vmatprep.subr.mxu0 0.0
          %1528 = vmatpush1.msra.mxu0 0.0
          %1529 = vmatprep.subr.mxu0 0.0
          %1530 = vmatpush1.msra.mxu0 0.0
          %1531 = vmatprep.subr.mxu0 0.0
          %1532 = vmatpush1.msra.mxu0 0.0
          %1533 = vmatprep.subr.mxu0 0.0
          %1534 = vmatpush1.msra.mxu0 0.0
          %1535 = vmatprep.subr.mxu0 0.0
          %1536 = vmatpush1.msra.mxu0 0.0
          %1537 = vmatprep.subr.mxu0 0.0
          %1538 = vmatpush1.msra.mxu0 0.0
          %1539 = vmatprep.subr.mxu0 0.0
          %1540 = vmatpush1.msra.mxu0 0.0
          %1541 = vmatprep.subr.mxu0 0.0
          %1542 = vmatpush1.msra.mxu0 0.0
          %1543 = vmatprep.subr.mxu0 0.0
          %1544 = vmatpush1.msra.mxu0 0.0
          %1545 = vmatprep.subr.mxu0 0.0
          %1546 = vmatpush1.msra.mxu0 0.0
          %1547 = vmatprep.subr.mxu0 0.0
          %1548 = vmatpush1.msra.mxu0 0.0
          %1549 = vmatprep.subr.mxu0 0.0
          %1550 = vmatpush1.msra.mxu0 0.0
          %1551 = vmatprep.subr.mxu0 0.0
          %1552 = vmatpush1.msra.mxu0 0.0
          %1553 = vmatprep.subr.mxu0 0.0
          %1554 = vmatpush1.msra.mxu0 0.0
          %1555 = vmatprep.subr.mxu0 0.0
          %1556 = vmatpush1.msra.mxu0 0.0
          %1557 = vmatprep.subr.mxu0 0.0
          %1558 = vmatpush1.msra.mxu0 0.0
          %1559 = vmatprep.subr.mxu0 0.0
          %1560 = vmatpush1.msra.mxu0 0.0
          %1561 = vmatprep.subr.mxu0 0.0
          %1562 = vmatpush1.msra.mxu0 0.0
          %1563 = vmatprep.subr.mxu0 0.0
          %1564 = vmatpush1.msra.mxu0 0.0
          %1565 = vmatprep.subr.mxu0 0.0
          %1566 = vmatpush1.msra.mxu0 0.0
          %1567 = vmatprep.subr.mxu0 0.0
          %1568 = vmatpush1.msra.mxu0 0.0
          %1569 = vmatprep.subr.mxu0 0.0
          %1570 = vmatpush1.msra.mxu0 0.0
          %1571 = vmatprep.subr.mxu0 0.0
          %1572 = vmatpush1.msra.mxu0 0.0
          %1573 = vmatprep.subr.mxu0 0.0
          %1574 = vmatpush1.msra.mxu0 0.0
          %1575 = vmatprep.subr.mxu0 0.0
          %1576 = vmatpush1.msra.mxu0 0.0
          %1577 = vmatprep.subr.mxu0 0.0
          %1578 = vmatpush1.msra.mxu0 0.0
          %1579 = vmatprep.subr.mxu0 0.0
          %1580 = vmatpush1.msra.mxu0 0.0
          %1581 = vmatprep.subr.mxu0 0.0
          %1582 = vmatpush1.msra.mxu0 0.0
          %1583 = vmatprep.mubr.f32.mxu0 0.0
          %1584 = vmatmul.mubr.f32.gmra.mrb[0].mxu0 %v1514
          %v1585 = vpop.f32.mrb[0].mxu0
          %v1586 = vadd.f32 %v1510, %v1585
          %v1587 = vpop.f32.mrb[0].mxu0
          %1588 = vmatprep.mubr.f32.mxu0 0.0
          %1589 = vmatmul.mubr.f32.gmra.mrb[0].mxu0 %v1517
          %v1590 = vpop.f32.mrb[0].mxu0
          %v1591 = vadd.f32 %v1510, %v1590
          %v1592 = vpop.f32.mrb[0].mxu0
          %1593 = vdwg.mxu0
          %1594 = vst.msk [vmem:[#allocation2] sm:$0xff] %vm1512, %v1586
          %1595 = vst.msk [vmem:[#allocation2 + $0x8] sm:$0xff] %vm1512, %v1591
          %v1596 = vld [vmem:[#allocation21] sm:$0xff]
          %v1597 = vld [vmem:[#allocation21 + $0x8] sm:$0xff]
          %v1598 = vld [vmem:[#allocation21 + $0x10] sm:$0xff]
          %v1599 = vld [vmem:[#allocation21 + $0x18] sm:$0xff]
          %v1600 = vld [vmem:[#allocation23] sm:$0x1]
          %v1602 = vlaneseq
          %v1603 = vshrl.u32 %v1602, 7
          %v1604 = vsub.s32 0, %v1603
          %v1605 = vrot.slane %v1600, %v1604
          %1607 = vmatprep.subr.mxu0 0.0
          %1608 = vmatpush1.msra.mxu0 %v1596
          %1609 = vmatprep.subr.mxu0 0.0
          %1610 = vmatpush1.msra.mxu0 %v1597
          %1611 = vmatprep.subr.mxu0 0.0
          %1612 = vmatpush1.msra.mxu0 %v1598
          %1613 = vmatprep.subr.mxu0 0.0
          %1614 = vmatpush1.msra.mxu0 %v1599
          %1615 = vmatprep.subr.mxu0 0.0
          %1616 = vmatpush1.msra.mxu0 0.0
          %1617 = vmatprep.subr.mxu0 0.0
          %1618 = vmatpush1.msra.mxu0 0.0
          %1619 = vmatprep.subr.mxu0 0.0
          %1620 = vmatpush1.msra.mxu0 0.0
          %1621 = vmatprep.subr.mxu0 0.0
          %1622 = vmatpush1.msra.mxu0 0.0
          %1623 = vmatprep.subr.mxu0 0.0
          %1624 = vmatpush1.msra.mxu0 0.0
          %1625 = vmatprep.subr.mxu0 0.0
          %1626 = vmatpush1.msra.mxu0 0.0
          %1627 = vmatprep.subr.mxu0 0.0
          %1628 = vmatpush1.msra.mxu0 0.0
          %1629 = vmatprep.subr.mxu0 0.0
          %1630 = vmatpush1.msra.mxu0 0.0
          %1631 = vmatprep.subr.mxu0 0.0
          %1632 = vmatpush1.msra.mxu0 0.0
          %1633 = vmatprep.subr.mxu0 0.0
          %1634 = vmatpush1.msra.mxu0 0.0
          %1635 = vmatprep.subr.mxu0 0.0
          %1636 = vmatpush1.msra.mxu0 0.0
          %1637 = vmatprep.subr.mxu0 0.0
          %1638 = vmatpush1.msra.mxu0 0.0
          %1639 = vmatprep.subr.mxu0 0.0
          %1640 = vmatpush1.msra.mxu0 0.0
          %1641 = vmatprep.subr.mxu0 0.0
          %1642 = vmatpush1.msra.mxu0 0.0
          %1643 = vmatprep.subr.mxu0 0.0
          %1644 = vmatpush1.msra.mxu0 0.0
          %1645 = vmatprep.subr.mxu0 0.0
          %1646 = vmatpush1.msra.mxu0 0.0
          %1647 = vmatprep.subr.mxu0 0.0
          %1648 = vmatpush1.msra.mxu0 0.0
          %1649 = vmatprep.subr.mxu0 0.0
          %1650 = vmatpush1.msra.mxu0 0.0
          %1651 = vmatprep.subr.mxu0 0.0
          %1652 = vmatpush1.msra.mxu0 0.0
          %1653 = vmatprep.subr.mxu0 0.0
          %1654 = vmatpush1.msra.mxu0 0.0
          %1655 = vmatprep.subr.mxu0 0.0
          %1656 = vmatpush1.msra.mxu0 0.0
          %1657 = vmatprep.subr.mxu0 0.0
          %1658 = vmatpush1.msra.mxu0 0.0
          %1659 = vmatprep.subr.mxu0 0.0
          %1660 = vmatpush1.msra.mxu0 0.0
          %1661 = vmatprep.subr.mxu0 0.0
          %1662 = vmatpush1.msra.mxu0 0.0
          %1663 = vmatprep.subr.mxu0 0.0
          %1664 = vmatpush1.msra.mxu0 0.0
          %1665 = vmatprep.subr.mxu0 0.0
          %1666 = vmatpush1.msra.mxu0 0.0
          %1667 = vmatprep.subr.mxu0 0.0
          %1668 = vmatpush1.msra.mxu0 0.0
          %1669 = vmatprep.subr.mxu0 0.0
          %1670 = vmatpush1.msra.mxu0 0.0
          %1671 = vmatprep.mubr.f32.mxu0 0.0
          %1672 = vmatmul.mubr.f32.gmra.mrb[0].mxu0 %v1514
          %v1673 = vpop.f32.mrb[0].mxu0
          %v1674 = vadd.f32 %v1605, %v1673
          %v1675 = vpop.f32.mrb[0].mxu0
          %1676 = vmatprep.mubr.f32.mxu0 0.0
          %1677 = vmatmul.mubr.f32.gmra.mrb[0].mxu0 %v1517
          %v1678 = vpop.f32.mrb[0].mxu0
          %v1679 = vadd.f32 %v1605, %v1678
          %v1680 = vpop.f32.mrb[0].mxu0
          %1681 = vdwg.mxu0
          %1682 = vst.msk [vmem:[#allocation3] sm:$0xff] %vm1512, %v1674
          %1683 = vst.msk [vmem:[#allocation3 + $0x8] sm:$0xff] %vm1512, %v1679
          %v1684 = vld [vmem:[#allocation30] sm:$0xff]
          %v1685 = vld [vmem:[#allocation30 + $0x8] sm:$0xff]
          %v1686 = vld [vmem:[#allocation30 + $0x10] sm:$0xff]
          %v1687 = vld [vmem:[#allocation30 + $0x18] sm:$0xff]
          %v1688 = vld [vmem:[#allocation32] sm:$0x1]
          %v1690 = vlaneseq
          %v1691 = vshrl.u32 %v1690, 7
          %v1692 = vsub.s32 0, %v1691
          %v1693 = vrot.slane %v1688, %v1692
          %v1696 = vsel %vm1512, %v1499, 0
          %v1699 = vsel %vm1512, %v1500, 0
          %1701 = vmatprep.subr.mxu0 0.0
          %1702 = vmatpush1.msra.mxu0 %v1684
          %1703 = vmatprep.subr.mxu0 0.0
          %1704 = vmatpush1.msra.mxu0 %v1685
          %1705 = vmatprep.subr.mxu0 0.0
          %1706 = vmatpush1.msra.mxu0 %v1686
          %1707 = vmatprep.subr.mxu0 0.0
          %1708 = vmatpush1.msra.mxu0 %v1687
          %1709 = vmatprep.subr.mxu0 0.0
          %1710 = vmatpush1.msra.mxu0 0.0
          %1711 = vmatprep.subr.mxu0 0.0
          %1712 = vmatpush1.msra.mxu0 0.0
          %1713 = vmatprep.subr.mxu0 0.0
          %1714 = vmatpush1.msra.mxu0 0.0
          %1715 = vmatprep.subr.mxu0 0.0
          %1716 = vmatpush1.msra.mxu0 0.0
          %1717 = vmatprep.subr.mxu0 0.0
          %1718 = vmatpush1.msra.mxu0 0.0
          %1719 = vmatprep.subr.mxu0 0.0
          %1720 = vmatpush1.msra.mxu0 0.0
          %1721 = vmatprep.subr.mxu0 0.0
          %1722 = vmatpush1.msra.mxu0 0.0
          %1723 = vmatprep.subr.mxu0 0.0
          %1724 = vmatpush1.msra.mxu0 0.0
          %1725 = vmatprep.subr.mxu0 0.0
          %1726 = vmatpush1.msra.mxu0 0.0
          %1727 = vmatprep.subr.mxu0 0.0
          %1728 = vmatpush1.msra.mxu0 0.0
          %1729 = vmatprep.subr.mxu0 0.0
          %1730 = vmatpush1.msra.mxu0 0.0
          %1731 = vmatprep.subr.mxu0 0.0
          %1732 = vmatpush1.msra.mxu0 0.0
          %1733 = vmatprep.subr.mxu0 0.0
          %1734 = vmatpush1.msra.mxu0 0.0
          %1735 = vmatprep.subr.mxu0 0.0
          %1736 = vmatpush1.msra.mxu0 0.0
          %1737 = vmatprep.subr.mxu0 0.0
          %1738 = vmatpush1.msra.mxu0 0.0
          %1739 = vmatprep.subr.mxu0 0.0
          %1740 = vmatpush1.msra.mxu0 0.0
          %1741 = vmatprep.subr.mxu0 0.0
          %1742 = vmatpush1.msra.mxu0 0.0
          %1743 = vmatprep.subr.mxu0 0.0
          %1744 = vmatpush1.msra.mxu0 0.0
          %1745 = vmatprep.subr.mxu0 0.0
          %1746 = vmatpush1.msra.mxu0 0.0
          %1747 = vmatprep.subr.mxu0 0.0
          %1748 = vmatpush1.msra.mxu0 0.0
          %1749 = vmatprep.subr.mxu0 0.0
          %1750 = vmatpush1.msra.mxu0 0.0
          %1751 = vmatprep.subr.mxu0 0.0
          %1752 = vmatpush1.msra.mxu0 0.0
          %1753 = vmatprep.subr.mxu0 0.0
          %1754 = vmatpush1.msra.mxu0 0.0
          %1755 = vmatprep.subr.mxu0 0.0
          %1756 = vmatpush1.msra.mxu0 0.0
          %1757 = vmatprep.subr.mxu0 0.0
          %1758 = vmatpush1.msra.mxu0 0.0
          %1759 = vmatprep.subr.mxu0 0.0
          %1760 = vmatpush1.msra.mxu0 0.0
          %1761 = vmatprep.subr.mxu0 0.0
          %1762 = vmatpush1.msra.mxu0 0.0
          %1763 = vmatprep.subr.mxu0 0.0
          %1764 = vmatpush1.msra.mxu0 0.0
          %1765 = vmatprep.mubr.f32.mxu0 0.0
          %1766 = vmatmul.mubr.f32.gmra.mrb[0].mxu0 %v1696
          %v1767 = vpop.f32.mrb[0].mxu0
          %v1768 = vadd.f32 %v1693, %v1767
          %v1769 = vpop.f32.mrb[0].mxu0
          %1770 = vmatprep.mubr.f32.mxu0 0.0
          %1771 = vmatmul.mubr.f32.gmra.mrb[0].mxu0 %v1699
          %v1772 = vpop.f32.mrb[0].mxu0
          %v1773 = vadd.f32 %v1693, %v1772
          %v1774 = vpop.f32.mrb[0].mxu0
          %1775 = vdwg.mxu0
          %1776 = vst.msk [vmem:[#allocation4] sm:$0xff] %vm1512, %v1768
          %1777 = vst.msk [vmem:[#allocation4 + $0x8] sm:$0xff] %vm1512, %v1773
          %v1778 = vld [vmem:[#allocation33] sm:$0xff]
          %v1779 = vld [vmem:[#allocation33 + $0x8] sm:$0xff]
          %v1780 = vld [vmem:[#allocation33 + $0x10] sm:$0xff]
          %v1781 = vld [vmem:[#allocation33 + $0x18] sm:$0xff]
          %v1782 = vld [vmem:[#allocation35] sm:$0x1]
          %v1784 = vlaneseq
          %v1785 = vshrl.u32 %v1784, 7
          %v1786 = vsub.s32 0, %v1785
          %v1787 = vrot.slane %v1782, %v1786
          %1789 = vmatprep.subr.mxu0 0.0
          %1790 = vmatpush1.msra.mxu0 %v1778
          %1791 = vmatprep.subr.mxu0 0.0
          %1792 = vmatpush1.msra.mxu0 %v1779
          %1793 = vmatprep.subr.mxu0 0.0
          %1794 = vmatpush1.msra.mxu0 %v1780
          %1795 = vmatprep.subr.mxu0 0.0
          %1796 = vmatpush1.msra.mxu0 %v1781
          %1797 = vmatprep.subr.mxu0 0.0
          %1798 = vmatpush1.msra.mxu0 0.0
          %1799 = vmatprep.subr.mxu0 0.0
          %1800 = vmatpush1.msra.mxu0 0.0
          %1801 = vmatprep.subr.mxu0 0.0
          %1802 = vmatpush1.msra.mxu0 0.0
          %1803 = vmatprep.subr.mxu0 0.0
          %1804 = vmatpush1.msra.mxu0 0.0
          %1805 = vmatprep.subr.mxu0 0.0
          %1806 = vmatpush1.msra.mxu0 0.0
          %1807 = vmatprep.subr.mxu0 0.0
          %1808 = vmatpush1.msra.mxu0 0.0
          %1809 = vmatprep.subr.mxu0 0.0
          %1810 = vmatpush1.msra.mxu0 0.0
          %1811 = vmatprep.subr.mxu0 0.0
          %1812 = vmatpush1.msra.mxu0 0.0
          %1813 = vmatprep.subr.mxu0 0.0
          %1814 = vmatpush1.msra.mxu0 0.0
          %1815 = vmatprep.subr.mxu0 0.0
          %1816 = vmatpush1.msra.mxu0 0.0
          %1817 = vmatprep.subr.mxu0 0.0
          %1818 = vmatpush1.msra.mxu0 0.0
          %1819 = vmatprep.subr.mxu0 0.0
          %1820 = vmatpush1.msra.mxu0 0.0
          %1821 = vmatprep.subr.mxu0 0.0
          %1822 = vmatpush1.msra.mxu0 0.0
          %1823 = vmatprep.subr.mxu0 0.0
          %1824 = vmatpush1.msra.mxu0 0.0
          %1825 = vmatprep.subr.mxu0 0.0
          %1826 = vmatpush1.msra.mxu0 0.0
          %1827 = vmatprep.subr.mxu0 0.0
          %1828 = vmatpush1.msra.mxu0 0.0
          %1829 = vmatprep.subr.mxu0 0.0
          %1830 = vmatpush1.msra.mxu0 0.0
          %1831 = vmatprep.subr.mxu0 0.0
          %1832 = vmatpush1.msra.mxu0 0.0
          %1833 = vmatprep.subr.mxu0 0.0
          %1834 = vmatpush1.msra.mxu0 0.0
          %1835 = vmatprep.subr.mxu0 0.0
          %1836 = vmatpush1.msra.mxu0 0.0
          %1837 = vmatprep.subr.mxu0 0.0
          %1838 = vmatpush1.msra.mxu0 0.0
          %1839 = vmatprep.subr.mxu0 0.0
          %1840 = vmatpush1.msra.mxu0 0.0
          %1841 = vmatprep.subr.mxu0 0.0
          %1842 = vmatpush1.msra.mxu0 0.0
          %1843 = vmatprep.subr.mxu0 0.0
          %1844 = vmatpush1.msra.mxu0 0.0
          %1845 = vmatprep.subr.mxu0 0.0
          %1846 = vmatpush1.msra.mxu0 0.0
          %1847 = vmatprep.subr.mxu0 0.0
          %1848 = vmatpush1.msra.mxu0 0.0
          %1849 = vmatprep.subr.mxu0 0.0
          %1850 = vmatpush1.msra.mxu0 0.0
          %1851 = vmatprep.subr.mxu0 0.0
          %1852 = vmatpush1.msra.mxu0 0.0
          %1853 = vmatprep.mubr.f32.mxu0 0.0
          %1854 = vmatmul.mubr.f32.gmra.mrb[0].mxu0 %v1696
          %v1855 = vpop.f32.mrb[0].mxu0
          %v1856 = vadd.f32 %v1787, %v1855
          %v1857 = vpop.f32.mrb[0].mxu0
          %1858 = vmatprep.mubr.f32.mxu0 0.0
          %1859 = vmatmul.mubr.f32.gmra.mrb[0].mxu0 %v1699
          %v1860 = vpop.f32.mrb[0].mxu0
          %v1861 = vadd.f32 %v1787, %v1860
          %v1862 = vpop.f32.mrb[0].mxu0
          %1863 = vdwg.mxu0
          %1864 = vst.msk [vmem:[#allocation5] sm:$0xff] %vm1512, %v1856
          %1865 = vst.msk [vmem:[#allocation5 + $0x8] sm:$0xff] %vm1512, %v1861
        $region272: #{tpu_custom_call.1} parent=143 // pred_fallthru
          _
        %v1866 = vld [vmem:[%s1254] sm:$0xff]
        %v1867 = vld [vmem:[%s1281] sm:$0xff]
        %vm1868 = vcmp.ne.s32.totalorder %v1867, 0
        %v1869 = vld [vmem:[%s1290] sm:$0xff]
        %vm1870 = vcmp.ne.s32.totalorder %v1869, 0
        %v1871 = vld [vmem:[#allocation15] sm:$0xff]
        %v1872 = vld [vmem:[#allocation15 + $0x8] sm:$0xff]
        %v1873 = vld [vmem:[#allocation15 + $0x10] sm:$0xff]
        %v1874 = vld [vmem:[#allocation15 + $0x18] sm:$0xff]
        %v1875 = vld [vmem:[#allocation17] sm:$0x1]
        %v1877 = vlaneseq
        %v1878 = vshrl.u32 %v1877, 7
        %v1879 = vsub.s32 0, %v1878
        %v1880 = vrot.slane %v1875, %v1879
        %vm1882 = vcmask 261120
        %v1884 = vsel %vm1882, %v1866, 0
        %1886 = vmatprep.subr.mxu0 0.0
        %1887 = vmatpush1.msra.mxu0 %v1871
        %1888 = vmatprep.subr.mxu0 0.0
        %1889 = vmatpush1.msra.mxu0 %v1872
        %1890 = vmatprep.subr.mxu0 0.0
        %1891 = vmatpush1.msra.mxu0 %v1873
        %1892 = vmatprep.subr.mxu0 0.0
        %1893 = vmatpush1.msra.mxu0 %v1874
        %1894 = vmatprep.subr.mxu0 0.0
        %1895 = vmatpush1.msra.mxu0 0.0
        %1896 = vmatprep.subr.mxu0 0.0
        %1897 = vmatpush1.msra.mxu0 0.0
        %1898 = vmatprep.subr.mxu0 0.0
        %1899 = vmatpush1.msra.mxu0 0.0
        %1900 = vmatprep.subr.mxu0 0.0
        %1901 = vmatpush1.msra.mxu0 0.0
        %1902 = vmatprep.subr.mxu0 0.0
        %1903 = vmatpush1.msra.mxu0 0.0
        %1904 = vmatprep.subr.mxu0 0.0
        %1905 = vmatpush1.msra.mxu0 0.0
        %1906 = vmatprep.subr.mxu0 0.0
        %1907 = vmatpush1.msra.mxu0 0.0
        %1908 = vmatprep.subr.mxu0 0.0
        %1909 = vmatpush1.msra.mxu0 0.0
        %1910 = vmatprep.subr.mxu0 0.0
        %1911 = vmatpush1.msra.mxu0 0.0
        %1912 = vmatprep.subr.mxu0 0.0
        %1913 = vmatpush1.msra.mxu0 0.0
        %1914 = vmatprep.subr.mxu0 0.0
        %1915 = vmatpush1.msra.mxu0 0.0
        %1916 = vmatprep.subr.mxu0 0.0
        %1917 = vmatpush1.msra.mxu0 0.0
        %1918 = vmatprep.subr.mxu0 0.0
        %1919 = vmatpush1.msra.mxu0 0.0
        %1920 = vmatprep.subr.mxu0 0.0
        %1921 = vmatpush1.msra.mxu0 0.0
        %1922 = vmatprep.subr.mxu0 0.0
        %1923 = vmatpush1.msra.mxu0 0.0
        %1924 = vmatprep.subr.mxu0 0.0
        %1925 = vmatpush1.msra.mxu0 0.0
        %1926 = vmatprep.subr.mxu0 0.0
        %1927 = vmatpush1.msra.mxu0 0.0
        %1928 = vmatprep.subr.mxu0 0.0
        %1929 = vmatpush1.msra.mxu0 0.0
        %1930 = vmatprep.subr.mxu0 0.0
        %1931 = vmatpush1.msra.mxu0 0.0
        %1932 = vmatprep.subr.mxu0 0.0
        %1933 = vmatpush1.msra.mxu0 0.0
        %1934 = vmatprep.subr.mxu0 0.0
        %1935 = vmatpush1.msra.mxu0 0.0
        %1936 = vmatprep.subr.mxu0 0.0
        %1937 = vmatpush1.msra.mxu0 0.0
        %1938 = vmatprep.subr.mxu0 0.0
        %1939 = vmatpush1.msra.mxu0 0.0
        %1940 = vmatprep.subr.mxu0 0.0
        %1941 = vmatpush1.msra.mxu0 0.0
        %1942 = vmatprep.subr.mxu0 0.0
        %1943 = vmatpush1.msra.mxu0 0.0
        %1944 = vmatprep.subr.mxu0 0.0
        %1945 = vmatpush1.msra.mxu0 0.0
        %1946 = vmatprep.subr.mxu0 0.0
        %1947 = vmatpush1.msra.mxu0 0.0
        %1948 = vmatprep.subr.mxu0 0.0
        %1949 = vmatpush1.msra.mxu0 0.0
        %1950 = vmatprep.mubr.f32.mxu0 0.0
        %1951 = vmatmul.mubr.f32.gmra.mrb[0].mxu0 %v1884
        %v1952 = vpop.f32.mrb[0].mxu0
        %v1953 = vadd.f32 %v1880, %v1952
        %v1954 = vpop.f32.mrb[0].mxu0
        %1955 = vdwg.mxu0
        %v1956 = vmul.f32 %v1953, 0.35355338
        %v1957 = vld [vmem:[#allocation2] sm:$0xff]
        %v1958 = vld [vmem:[#allocation2 + $0x8] sm:$0xff]
        %v1959 = vld [vmem:[#allocation3] sm:$0xff]
        %v1960 = vld [vmem:[#allocation3 + $0x8] sm:$0xff]
        %vm1961 = vcmask 64512
        %v1963 = vsel %vm1961, %v1956, 0
        %v1966 = vsel %vm1961, %v1957, 0
        %v1969 = vsel %vm1961, %v1958, 0
        %1971 = vmatprep.subr.mxu0 0.0
        %1972 = vmatpush1.xpose.msra.mxu0 %v1966
        %1973 = vmatprep.subr.mxu0 0.0
        %1974 = vmatpush1.xpose.msra.mxu0 %v1969
        %1975 = vmatprep.subr.mxu0 0.0
        %1976 = vmatpush1.xpose.msra.mxu0 0.0
        %1977 = vmatprep.subr.mxu0 0.0
        %1978 = vmatpush1.xpose.msra.mxu0 0.0
        %1979 = vmatprep.subr.mxu0 0.0
        %1980 = vmatpush1.xpose.msra.mxu0 0.0
        %1981 = vmatprep.subr.mxu0 0.0
        %1982 = vmatpush1.xpose.msra.mxu0 0.0
        %1983 = vmatprep.subr.mxu0 0.0
        %1984 = vmatpush1.xpose.msra.mxu0 0.0
        %1985 = vmatprep.subr.mxu0 0.0
        %1986 = vmatpush1.xpose.msra.mxu0 0.0
        %1987 = vmatprep.subr.mxu0 0.0
        %1988 = vmatpush1.xpose.msra.mxu0 0.0
        %1989 = vmatprep.subr.mxu0 0.0
        %1990 = vmatpush1.xpose.msra.mxu0 0.0
        %1991 = vmatprep.subr.mxu0 0.0
        %1992 = vmatpush1.xpose.msra.mxu0 0.0
        %1993 = vmatprep.subr.mxu0 0.0
        %1994 = vmatpush1.xpose.msra.mxu0 0.0
        %1995 = vmatprep.subr.mxu0 0.0
        %1996 = vmatpush1.xpose.msra.mxu0 0.0
        %1997 = vmatprep.subr.mxu0 0.0
        %1998 = vmatpush1.xpose.msra.mxu0 0.0
        %1999 = vmatprep.subr.mxu0 0.0
        %2000 = vmatpush1.xpose.msra.mxu0 0.0
        %2001 = vmatprep.subr.mxu0 0.0
        %2002 = vmatpush1.xpose.msra.mxu0 0.0
        %2003 = vmatprep.subr.mxu0 0.0
        %2004 = vmatpush1.xpose.msra.mxu0 0.0
        %2005 = vmatprep.subr.mxu0 0.0
        %2006 = vmatpush1.xpose.msra.mxu0 0.0
        %2007 = vmatprep.subr.mxu0 0.0
        %2008 = vmatpush1.xpose.msra.mxu0 0.0
        %2009 = vmatprep.subr.mxu0 0.0
        %2010 = vmatpush1.xpose.msra.mxu0 0.0
        %2011 = vmatprep.subr.mxu0 0.0
        %2012 = vmatpush1.xpose.msra.mxu0 0.0
        %2013 = vmatprep.subr.mxu0 0.0
        %2014 = vmatpush1.xpose.msra.mxu0 0.0
        %2015 = vmatprep.subr.mxu0 0.0
        %2016 = vmatpush1.xpose.msra.mxu0 0.0
        %2017 = vmatprep.subr.mxu0 0.0
        %2018 = vmatpush1.xpose.msra.mxu0 0.0
        %2019 = vmatprep.subr.mxu0 0.0
        %2020 = vmatpush1.xpose.msra.mxu0 0.0
        %2021 = vmatprep.subr.mxu0 0.0
        %2022 = vmatpush1.xpose.msra.mxu0 0.0
        %2023 = vmatprep.subr.mxu0 0.0
        %2024 = vmatpush1.xpose.msra.mxu0 0.0
        %2025 = vmatprep.subr.mxu0 0.0
        %2026 = vmatpush1.xpose.msra.mxu0 0.0
        %2027 = vmatprep.subr.mxu0 0.0
        %2028 = vmatpush1.xpose.msra.mxu0 0.0
        %2029 = vmatprep.subr.mxu0 0.0
        %2030 = vmatpush1.xpose.msra.mxu0 0.0
        %2031 = vmatprep.subr.mxu0 0.0
        %2032 = vmatpush1.xpose.msra.mxu0 0.0
        %2033 = vmatprep.subr.mxu0 0.0
        %2034 = vmatpush1.xpose.msra.mxu0 0.0
        %2035 = vmatprep.mubr.f32.mxu0 0.0
        %2036 = vmatmul.mubr.f32.gmra.mrb[0].mxu0 %v1963
        %v2037 = vpop.f32.mrb[0].mxu0
        %v2038 = vadd.f32 0.0, %v2037
        %v2039 = vpop.f32.mrb[0].mxu0
        %2040 = vdwg.mxu0
        %v2041 = vsel %vm1868, %v2038, -1e+09
        %vm2042 = vcmask 130048
        %v2043 = vsel %vm2042, %v2041, -inf
        %2044 = vmax.xlane.f32.xlu0 %v2043
        %v2045 = vpop.xlane.xlu0 %2044
        %v2046 = vsub.f32 %v2041, %v2045
        %v2047 = vmul.f32 %v2046, 1.442695
        %v2048 = vpow.pop %v2047
        %v2049 = vsel %vm2042, %v2048, 0.0
        %2050 = vadd.xlane.f32.xlu0 %v2049
        %v2051 = vpop.xlane.xlu0 %2050
        %v2052 = vrcp.pop %v2051
        %v2053 = vmul.f32 %v2048, %v2052
        %v2055 = vsel %vm2042, %v2053, 0
        %2057 = vmatprep.subr.mxu0 0.0
        %2058 = vmatpush1.msra.mxu0 %v1959
        %2059 = vmatprep.subr.mxu0 0.0
        %2060 = vmatpush1.msra.mxu0 %v1960
        %2061 = vmatprep.subr.mxu0 0.0
        %2062 = vmatpush1.msra.mxu0 0.0
        %2063 = vmatprep.subr.mxu0 0.0
        %2064 = vmatpush1.msra.mxu0 0.0
        %2065 = vmatprep.subr.mxu0 0.0
        %2066 = vmatpush1.msra.mxu0 0.0
        %2067 = vmatprep.subr.mxu0 0.0
        %2068 = vmatpush1.msra.mxu0 0.0
        %2069 = vmatprep.subr.mxu0 0.0
        %2070 = vmatpush1.msra.mxu0 0.0
        %2071 = vmatprep.subr.mxu0 0.0
        %2072 = vmatpush1.msra.mxu0 0.0
        %2073 = vmatprep.subr.mxu0 0.0
        %2074 = vmatpush1.msra.mxu0 0.0
        %2075 = vmatprep.subr.mxu0 0.0
        %2076 = vmatpush1.msra.mxu0 0.0
        %2077 = vmatprep.subr.mxu0 0.0
        %2078 = vmatpush1.msra.mxu0 0.0
        %2079 = vmatprep.subr.mxu0 0.0
        %2080 = vmatpush1.msra.mxu0 0.0
        %2081 = vmatprep.subr.mxu0 0.0
        %2082 = vmatpush1.msra.mxu0 0.0
        %2083 = vmatprep.subr.mxu0 0.0
        %2084 = vmatpush1.msra.mxu0 0.0
        %2085 = vmatprep.subr.mxu0 0.0
        %2086 = vmatpush1.msra.mxu0 0.0
        %2087 = vmatprep.subr.mxu0 0.0
        %2088 = vmatpush1.msra.mxu0 0.0
        %2089 = vmatprep.subr.mxu0 0.0
        %2090 = vmatpush1.msra.mxu0 0.0
        %2091 = vmatprep.subr.mxu0 0.0
        %2092 = vmatpush1.msra.mxu0 0.0
        %2093 = vmatprep.subr.mxu0 0.0
        %2094 = vmatpush1.msra.mxu0 0.0
        %2095 = vmatprep.subr.mxu0 0.0
        %2096 = vmatpush1.msra.mxu0 0.0
        %2097 = vmatprep.subr.mxu0 0.0
        %2098 = vmatpush1.msra.mxu0 0.0
        %2099 = vmatprep.subr.mxu0 0.0
        %2100 = vmatpush1.msra.mxu0 0.0
        %2101 = vmatprep.subr.mxu0 0.0
        %2102 = vmatpush1.msra.mxu0 0.0
        %2103 = vmatprep.subr.mxu0 0.0
        %2104 = vmatpush1.msra.mxu0 0.0
        %2105 = vmatprep.subr.mxu0 0.0
        %2106 = vmatpush1.msra.mxu0 0.0
        %2107 = vmatprep.subr.mxu0 0.0
        %2108 = vmatpush1.msra.mxu0 0.0
        %2109 = vmatprep.subr.mxu0 0.0
        %2110 = vmatpush1.msra.mxu0 0.0
        %2111 = vmatprep.subr.mxu0 0.0
        %2112 = vmatpush1.msra.mxu0 0.0
        %2113 = vmatprep.subr.mxu0 0.0
        %2114 = vmatpush1.msra.mxu0 0.0
        %2115 = vmatprep.subr.mxu0 0.0
        %2116 = vmatpush1.msra.mxu0 0.0
        %2117 = vmatprep.subr.mxu0 0.0
        %2118 = vmatpush1.msra.mxu0 0.0
        %2119 = vmatprep.subr.mxu0 0.0
        %2120 = vmatpush1.msra.mxu0 0.0
        %2121 = vmatprep.mubr.f32.mxu0 0.0
        %2122 = vmatmul.mubr.f32.gmra.mrb[0].mxu0 %v2055
        %v2123 = vpop.f32.mrb[0].mxu0
        %v2124 = vadd.f32 0.0, %v2123
        %v2125 = vpop.f32.mrb[0].mxu0
        %2126 = vdwg.mxu0
        %2127 = vrot.lane.b32.xlu0 %v1956, 120
        %v2128 = vpop.permute.xlu0 %2127
        %2129 = vrot.lane.b32.xlu0 %v1957, 120
        %v2130 = vpop.permute.xlu0 %2129
        %2131 = vrot.lane.b32.xlu0 %v1958, 120
        %v2132 = vpop.permute.xlu0 %2131
        %v2133 = vsel %vm1961, %v2128, 0
        %v2135 = vsel %vm1961, %v2130, 0
        %v2137 = vsel %vm1961, %v2132, 0
        %2139 = vmatprep.subr.mxu0 0.0
        %2140 = vmatpush1.xpose.msra.mxu0 %v2135
        %2141 = vmatprep.subr.mxu0 0.0
        %2142 = vmatpush1.xpose.msra.mxu0 %v2137
        %2143 = vmatprep.subr.mxu0 0.0
        %2144 = vmatpush1.xpose.msra.mxu0 0.0
        %2145 = vmatprep.subr.mxu0 0.0
        %2146 = vmatpush1.xpose.msra.mxu0 0.0
        %2147 = vmatprep.subr.mxu0 0.0
        %2148 = vmatpush1.xpose.msra.mxu0 0.0
        %2149 = vmatprep.subr.mxu0 0.0
        %2150 = vmatpush1.xpose.msra.mxu0 0.0
        %2151 = vmatprep.subr.mxu0 0.0
        %2152 = vmatpush1.xpose.msra.mxu0 0.0
        %2153 = vmatprep.subr.mxu0 0.0
        %2154 = vmatpush1.xpose.msra.mxu0 0.0
        %2155 = vmatprep.subr.mxu0 0.0
        %2156 = vmatpush1.xpose.msra.mxu0 0.0
        %2157 = vmatprep.subr.mxu0 0.0
        %2158 = vmatpush1.xpose.msra.mxu0 0.0
        %2159 = vmatprep.subr.mxu0 0.0
        %2160 = vmatpush1.xpose.msra.mxu0 0.0
        %2161 = vmatprep.subr.mxu0 0.0
        %2162 = vmatpush1.xpose.msra.mxu0 0.0
        %2163 = vmatprep.subr.mxu0 0.0
        %2164 = vmatpush1.xpose.msra.mxu0 0.0
        %2165 = vmatprep.subr.mxu0 0.0
        %2166 = vmatpush1.xpose.msra.mxu0 0.0
        %2167 = vmatprep.subr.mxu0 0.0
        %2168 = vmatpush1.xpose.msra.mxu0 0.0
        %2169 = vmatprep.subr.mxu0 0.0
        %2170 = vmatpush1.xpose.msra.mxu0 0.0
        %2171 = vmatprep.subr.mxu0 0.0
        %2172 = vmatpush1.xpose.msra.mxu0 0.0
        %2173 = vmatprep.subr.mxu0 0.0
        %2174 = vmatpush1.xpose.msra.mxu0 0.0
        %2175 = vmatprep.subr.mxu0 0.0
        %2176 = vmatpush1.xpose.msra.mxu0 0.0
        %2177 = vmatprep.subr.mxu0 0.0
        %2178 = vmatpush1.xpose.msra.mxu0 0.0
        %2179 = vmatprep.subr.mxu0 0.0
        %2180 = vmatpush1.xpose.msra.mxu0 0.0
        %2181 = vmatprep.subr.mxu0 0.0
        %2182 = vmatpush1.xpose.msra.mxu0 0.0
        %2183 = vmatprep.subr.mxu0 0.0
        %2184 = vmatpush1.xpose.msra.mxu0 0.0
        %2185 = vmatprep.subr.mxu0 0.0
        %2186 = vmatpush1.xpose.msra.mxu0 0.0
        %2187 = vmatprep.subr.mxu0 0.0
        %2188 = vmatpush1.xpose.msra.mxu0 0.0
        %2189 = vmatprep.subr.mxu0 0.0
        %2190 = vmatpush1.xpose.msra.mxu0 0.0
        %2191 = vmatprep.subr.mxu0 0.0
        %2192 = vmatpush1.xpose.msra.mxu0 0.0
        %2193 = vmatprep.subr.mxu0 0.0
        %2194 = vmatpush1.xpose.msra.mxu0 0.0
        %2195 = vmatprep.subr.mxu0 0.0
        %2196 = vmatpush1.xpose.msra.mxu0 0.0
        %2197 = vmatprep.subr.mxu0 0.0
        %2198 = vmatpush1.xpose.msra.mxu0 0.0
        %2199 = vmatprep.subr.mxu0 0.0
        %2200 = vmatpush1.xpose.msra.mxu0 0.0
        %2201 = vmatprep.subr.mxu0 0.0
        %2202 = vmatpush1.xpose.msra.mxu0 0.0
        %2203 = vmatprep.mubr.f32.mxu0 0.0
        %2204 = vmatmul.mubr.f32.gmra.mrb[0].mxu0 %v2133
        %v2205 = vpop.f32.mrb[0].mxu0
        %v2206 = vadd.f32 0.0, %v2205
        %v2207 = vpop.f32.mrb[0].mxu0
        %2208 = vdwg.mxu0
        %v2209 = vsel %vm1868, %v2206, -1e+09
        %v2210 = vsel %vm2042, %v2209, -inf
        %2211 = vmax.xlane.f32.xlu0 %v2210
        %v2212 = vpop.xlane.xlu0 %2211
        %v2213 = vsub.f32 %v2209, %v2212
        %v2214 = vmul.f32 %v2213, 1.442695
        %v2215 = vpow.pop %v2214
        %v2216 = vsel %vm2042, %v2215, 0.0
        %2217 = vadd.xlane.f32.xlu0 %v2216
        %v2218 = vpop.xlane.xlu0 %2217
        %v2219 = vrcp.pop %v2218
        %v2220 = vmul.f32 %v2215, %v2219
        %2223 = vrot.lane.b32.xlu0 %v1959, 120
        %v2224 = vpop.permute.xlu0 %2223
        %2225 = vrot.lane.b32.xlu0 %v1960, 120
        %v2226 = vpop.permute.xlu0 %2225
        %v2230 = vsel %vm2042, %v2220, 0
        %2232 = vmatprep.subr.mxu0 0.0
        %2233 = vmatpush1.msra.mxu0 %v2224
        %2234 = vmatprep.subr.mxu0 0.0
        %2235 = vmatpush1.msra.mxu0 %v2226
        %2236 = vmatprep.subr.mxu0 0.0
        %2237 = vmatpush1.msra.mxu0 0.0
        %2238 = vmatprep.subr.mxu0 0.0
        %2239 = vmatpush1.msra.mxu0 0.0
        %2240 = vmatprep.subr.mxu0 0.0
        %2241 = vmatpush1.msra.mxu0 0.0
        %2242 = vmatprep.subr.mxu0 0.0
        %2243 = vmatpush1.msra.mxu0 0.0
        %2244 = vmatprep.subr.mxu0 0.0
        %2245 = vmatpush1.msra.mxu0 0.0
        %2246 = vmatprep.subr.mxu0 0.0
        %2247 = vmatpush1.msra.mxu0 0.0
        %2248 = vmatprep.subr.mxu0 0.0
        %2249 = vmatpush1.msra.mxu0 0.0
        %2250 = vmatprep.subr.mxu0 0.0
        %2251 = vmatpush1.msra.mxu0 0.0
        %2252 = vmatprep.subr.mxu0 0.0
        %2253 = vmatpush1.msra.mxu0 0.0
        %2254 = vmatprep.subr.mxu0 0.0
        %2255 = vmatpush1.msra.mxu0 0.0
        %2256 = vmatprep.subr.mxu0 0.0
        %2257 = vmatpush1.msra.mxu0 0.0
        %2258 = vmatprep.subr.mxu0 0.0
        %2259 = vmatpush1.msra.mxu0 0.0
        %2260 = vmatprep.subr.mxu0 0.0
        %2261 = vmatpush1.msra.mxu0 0.0
        %2262 = vmatprep.subr.mxu0 0.0
        %2263 = vmatpush1.msra.mxu0 0.0
        %2264 = vmatprep.subr.mxu0 0.0
        %2265 = vmatpush1.msra.mxu0 0.0
        %2266 = vmatprep.subr.mxu0 0.0
        %2267 = vmatpush1.msra.mxu0 0.0
        %2268 = vmatprep.subr.mxu0 0.0
        %2269 = vmatpush1.msra.mxu0 0.0
        %2270 = vmatprep.subr.mxu0 0.0
        %2271 = vmatpush1.msra.mxu0 0.0
        %2272 = vmatprep.subr.mxu0 0.0
        %2273 = vmatpush1.msra.mxu0 0.0
        %2274 = vmatprep.subr.mxu0 0.0
        %2275 = vmatpush1.msra.mxu0 0.0
        %2276 = vmatprep.subr.mxu0 0.0
        %2277 = vmatpush1.msra.mxu0 0.0
        %2278 = vmatprep.subr.mxu0 0.0
        %2279 = vmatpush1.msra.mxu0 0.0
        %2280 = vmatprep.subr.mxu0 0.0
        %2281 = vmatpush1.msra.mxu0 0.0
        %2282 = vmatprep.subr.mxu0 0.0
        %2283 = vmatpush1.msra.mxu0 0.0
        %2284 = vmatprep.subr.mxu0 0.0
        %2285 = vmatpush1.msra.mxu0 0.0
        %2286 = vmatprep.subr.mxu0 0.0
        %2287 = vmatpush1.msra.mxu0 0.0
        %2288 = vmatprep.subr.mxu0 0.0
        %2289 = vmatpush1.msra.mxu0 0.0
        %2290 = vmatprep.subr.mxu0 0.0
        %2291 = vmatpush1.msra.mxu0 0.0
        %2292 = vmatprep.subr.mxu0 0.0
        %2293 = vmatpush1.msra.mxu0 0.0
        %2294 = vmatprep.subr.mxu0 0.0
        %2295 = vmatpush1.msra.mxu0 0.0
        %2296 = vmatprep.mubr.f32.mxu0 0.0
        %2297 = vmatmul.mubr.f32.gmra.mrb[0].mxu0 %v2230
        %v2298 = vpop.f32.mrb[0].mxu0
        %v2299 = vadd.f32 0.0, %v2298
        %v2300 = vpop.f32.mrb[0].mxu0
        %2301 = vdwg.mxu0
        %2302 = vrot.lane.b32.xlu0 %v1956, 112
        %v2303 = vpop.permute.xlu0 %2302
        %2304 = vrot.lane.b32.xlu0 %v1957, 112
        %v2305 = vpop.permute.xlu0 %2304
        %2306 = vrot.lane.b32.xlu0 %v1958, 112
        %v2307 = vpop.permute.xlu0 %2306
        %v2308 = vsel %vm1961, %v2303, 0
        %v2310 = vsel %vm1961, %v2305, 0
        %v2312 = vsel %vm1961, %v2307, 0
        %2314 = vmatprep.subr.mxu0 0.0
        %2315 = vmatpush1.xpose.msra.mxu0 %v2310
        %2316 = vmatprep.subr.mxu0 0.0
        %2317 = vmatpush1.xpose.msra.mxu0 %v2312
        %2318 = vmatprep.subr.mxu0 0.0
        %2319 = vmatpush1.xpose.msra.mxu0 0.0
        %2320 = vmatprep.subr.mxu0 0.0
        %2321 = vmatpush1.xpose.msra.mxu0 0.0
        %2322 = vmatprep.subr.mxu0 0.0
        %2323 = vmatpush1.xpose.msra.mxu0 0.0
        %2324 = vmatprep.subr.mxu0 0.0
        %2325 = vmatpush1.xpose.msra.mxu0 0.0
        %2326 = vmatprep.subr.mxu0 0.0
        %2327 = vmatpush1.xpose.msra.mxu0 0.0
        %2328 = vmatprep.subr.mxu0 0.0
        %2329 = vmatpush1.xpose.msra.mxu0 0.0
        %2330 = vmatprep.subr.mxu0 0.0
        %2331 = vmatpush1.xpose.msra.mxu0 0.0
        %2332 = vmatprep.subr.mxu0 0.0
        %2333 = vmatpush1.xpose.msra.mxu0 0.0
        %2334 = vmatprep.subr.mxu0 0.0
        %2335 = vmatpush1.xpose.msra.mxu0 0.0
        %2336 = vmatprep.subr.mxu0 0.0
        %2337 = vmatpush1.xpose.msra.mxu0 0.0
        %2338 = vmatprep.subr.mxu0 0.0
        %2339 = vmatpush1.xpose.msra.mxu0 0.0
        %2340 = vmatprep.subr.mxu0 0.0
        %2341 = vmatpush1.xpose.msra.mxu0 0.0
        %2342 = vmatprep.subr.mxu0 0.0
        %2343 = vmatpush1.xpose.msra.mxu0 0.0
        %2344 = vmatprep.subr.mxu0 0.0
        %2345 = vmatpush1.xpose.msra.mxu0 0.0
        %2346 = vmatprep.subr.mxu0 0.0
        %2347 = vmatpush1.xpose.msra.mxu0 0.0
        %2348 = vmatprep.subr.mxu0 0.0
        %2349 = vmatpush1.xpose.msra.mxu0 0.0
        %2350 = vmatprep.subr.mxu0 0.0
        %2351 = vmatpush1.xpose.msra.mxu0 0.0
        %2352 = vmatprep.subr.mxu0 0.0
        %2353 = vmatpush1.xpose.msra.mxu0 0.0
        %2354 = vmatprep.subr.mxu0 0.0
        %2355 = vmatpush1.xpose.msra.mxu0 0.0
        %2356 = vmatprep.subr.mxu0 0.0
        %2357 = vmatpush1.xpose.msra.mxu0 0.0
        %2358 = vmatprep.subr.mxu0 0.0
        %2359 = vmatpush1.xpose.msra.mxu0 0.0
        %2360 = vmatprep.subr.mxu0 0.0
        %2361 = vmatpush1.xpose.msra.mxu0 0.0
        %2362 = vmatprep.subr.mxu0 0.0
        %2363 = vmatpush1.xpose.msra.mxu0 0.0
        %2364 = vmatprep.subr.mxu0 0.0
        %2365 = vmatpush1.xpose.msra.mxu0 0.0
        %2366 = vmatprep.subr.mxu0 0.0
        %2367 = vmatpush1.xpose.msra.mxu0 0.0
        %2368 = vmatprep.subr.mxu0 0.0
        %2369 = vmatpush1.xpose.msra.mxu0 0.0
        %2370 = vmatprep.subr.mxu0 0.0
        %2371 = vmatpush1.xpose.msra.mxu0 0.0
        %2372 = vmatprep.subr.mxu0 0.0
        %2373 = vmatpush1.xpose.msra.mxu0 0.0
        %2374 = vmatprep.subr.mxu0 0.0
        %2375 = vmatpush1.xpose.msra.mxu0 0.0
        %2376 = vmatprep.subr.mxu0 0.0
        %2377 = vmatpush1.xpose.msra.mxu0 0.0
        %2378 = vmatprep.mubr.f32.mxu0 0.0
        %2379 = vmatmul.mubr.f32.gmra.mrb[0].mxu0 %v2308
        %v2380 = vpop.f32.mrb[0].mxu0
        %v2381 = vadd.f32 0.0, %v2380
        %v2382 = vpop.f32.mrb[0].mxu0
        %2383 = vdwg.mxu0
        %v2384 = vsel %vm1868, %v2381, -1e+09
        %v2385 = vsel %vm2042, %v2384, -inf
        %2386 = vmax.xlane.f32.xlu0 %v2385
        %v2387 = vpop.xlane.xlu0 %2386
        %v2388 = vsub.f32 %v2384, %v2387
        %v2389 = vmul.f32 %v2388, 1.442695
        %v2390 = vpow.pop %v2389
        %v2391 = vsel %vm2042, %v2390, 0.0
        %2392 = vadd.xlane.f32.xlu0 %v2391
        %v2393 = vpop.xlane.xlu0 %2392
        %v2394 = vrcp.pop %v2393
        %v2395 = vmul.f32 %v2390, %v2394
        %2396 = vrot.lane.b32.xlu0 %v1959, 112
        %v2397 = vpop.permute.xlu0 %2396
        %2398 = vrot.lane.b32.xlu0 %v1960, 112
        %v2399 = vpop.permute.xlu0 %2398
        %v2403 = vsel %vm2042, %v2395, 0
        %2405 = vmatprep.subr.mxu0 0.0
        %2406 = vmatpush1.msra.mxu0 %v2397
        %2407 = vmatprep.subr.mxu0 0.0
        %2408 = vmatpush1.msra.mxu0 %v2399
        %2409 = vmatprep.subr.mxu0 0.0
        %2410 = vmatpush1.msra.mxu0 0.0
        %2411 = vmatprep.subr.mxu0 0.0
        %2412 = vmatpush1.msra.mxu0 0.0
        %2413 = vmatprep.subr.mxu0 0.0
        %2414 = vmatpush1.msra.mxu0 0.0
        %2415 = vmatprep.subr.mxu0 0.0
        %2416 = vmatpush1.msra.mxu0 0.0
        %2417 = vmatprep.subr.mxu0 0.0
        %2418 = vmatpush1.msra.mxu0 0.0
        %2419 = vmatprep.subr.mxu0 0.0
        %2420 = vmatpush1.msra.mxu0 0.0
        %2421 = vmatprep.subr.mxu0 0.0
        %2422 = vmatpush1.msra.mxu0 0.0
        %2423 = vmatprep.subr.mxu0 0.0
        %2424 = vmatpush1.msra.mxu0 0.0
        %2425 = vmatprep.subr.mxu0 0.0
        %2426 = vmatpush1.msra.mxu0 0.0
        %2427 = vmatprep.subr.mxu0 0.0
        %2428 = vmatpush1.msra.mxu0 0.0
        %2429 = vmatprep.subr.mxu0 0.0
        %2430 = vmatpush1.msra.mxu0 0.0
        %2431 = vmatprep.subr.mxu0 0.0
        %2432 = vmatpush1.msra.mxu0 0.0
        %2433 = vmatprep.subr.mxu0 0.0
        %2434 = vmatpush1.msra.mxu0 0.0
        %2435 = vmatprep.subr.mxu0 0.0
        %2436 = vmatpush1.msra.mxu0 0.0
        %2437 = vmatprep.subr.mxu0 0.0
        %2438 = vmatpush1.msra.mxu0 0.0
        %2439 = vmatprep.subr.mxu0 0.0
        %2440 = vmatpush1.msra.mxu0 0.0
        %2441 = vmatprep.subr.mxu0 0.0
        %2442 = vmatpush1.msra.mxu0 0.0
        %2443 = vmatprep.subr.mxu0 0.0
        %2444 = vmatpush1.msra.mxu0 0.0
        %2445 = vmatprep.subr.mxu0 0.0
        %2446 = vmatpush1.msra.mxu0 0.0
        %2447 = vmatprep.subr.mxu0 0.0
        %2448 = vmatpush1.msra.mxu0 0.0
        %2449 = vmatprep.subr.mxu0 0.0
        %2450 = vmatpush1.msra.mxu0 0.0
        %2451 = vmatprep.subr.mxu0 0.0
        %2452 = vmatpush1.msra.mxu0 0.0
        %2453 = vmatprep.subr.mxu0 0.0
        %2454 = vmatpush1.msra.mxu0 0.0
        %2455 = vmatprep.subr.mxu0 0.0
        %2456 = vmatpush1.msra.mxu0 0.0
        %2457 = vmatprep.subr.mxu0 0.0
        %2458 = vmatpush1.msra.mxu0 0.0
        %2459 = vmatprep.subr.mxu0 0.0
        %2460 = vmatpush1.msra.mxu0 0.0
        %2461 = vmatprep.subr.mxu0 0.0
        %2462 = vmatpush1.msra.mxu0 0.0
        %2463 = vmatprep.subr.mxu0 0.0
        %2464 = vmatpush1.msra.mxu0 0.0
        %2465 = vmatprep.subr.mxu0 0.0
        %2466 = vmatpush1.msra.mxu0 0.0
        %2467 = vmatprep.subr.mxu0 0.0
        %2468 = vmatpush1.msra.mxu0 0.0
        %2469 = vmatprep.mubr.f32.mxu0 0.0
        %2470 = vmatmul.mubr.f32.gmra.mrb[0].mxu0 %v2403
        %v2471 = vpop.f32.mrb[0].mxu0
        %v2472 = vadd.f32 0.0, %v2471
        %v2473 = vpop.f32.mrb[0].mxu0
        %2474 = vdwg.mxu0
        %2475 = vrot.lane.b32.xlu0 %v1956, 104
        %v2476 = vpop.permute.xlu0 %2475
        %2477 = vrot.lane.b32.xlu0 %v1957, 104
        %v2478 = vpop.permute.xlu0 %2477
        %2479 = vrot.lane.b32.xlu0 %v1958, 104
        %v2480 = vpop.permute.xlu0 %2479
        %v2481 = vsel %vm1961, %v2476, 0
        %v2483 = vsel %vm1961, %v2478, 0
        %v2485 = vsel %vm1961, %v2480, 0
        %2487 = vmatprep.subr.mxu0 0.0
        %2488 = vmatpush1.xpose.msra.mxu0 %v2483
        %2489 = vmatprep.subr.mxu0 0.0
        %2490 = vmatpush1.xpose.msra.mxu0 %v2485
        %2491 = vmatprep.subr.mxu0 0.0
        %2492 = vmatpush1.xpose.msra.mxu0 0.0
        %2493 = vmatprep.subr.mxu0 0.0
        %2494 = vmatpush1.xpose.msra.mxu0 0.0
        %2495 = vmatprep.subr.mxu0 0.0
        %2496 = vmatpush1.xpose.msra.mxu0 0.0
        %2497 = vmatprep.subr.mxu0 0.0
        %2498 = vmatpush1.xpose.msra.mxu0 0.0
        %2499 = vmatprep.subr.mxu0 0.0
        %2500 = vmatpush1.xpose.msra.mxu0 0.0
        %2501 = vmatprep.subr.mxu0 0.0
        %2502 = vmatpush1.xpose.msra.mxu0 0.0
        %2503 = vmatprep.subr.mxu0 0.0
        %2504 = vmatpush1.xpose.msra.mxu0 0.0
        %2505 = vmatprep.subr.mxu0 0.0
        %2506 = vmatpush1.xpose.msra.mxu0 0.0
        %2507 = vmatprep.subr.mxu0 0.0
        %2508 = vmatpush1.xpose.msra.mxu0 0.0
        %2509 = vmatprep.subr.mxu0 0.0
        %2510 = vmatpush1.xpose.msra.mxu0 0.0
        %2511 = vmatprep.subr.mxu0 0.0
        %2512 = vmatpush1.xpose.msra.mxu0 0.0
        %2513 = vmatprep.subr.mxu0 0.0
        %2514 = vmatpush1.xpose.msra.mxu0 0.0
        %2515 = vmatprep.subr.mxu0 0.0
        %2516 = vmatpush1.xpose.msra.mxu0 0.0
        %2517 = vmatprep.subr.mxu0 0.0
        %2518 = vmatpush1.xpose.msra.mxu0 0.0
        %2519 = vmatprep.subr.mxu0 0.0
        %2520 = vmatpush1.xpose.msra.mxu0 0.0
        %2521 = vmatprep.subr.mxu0 0.0
        %2522 = vmatpush1.xpose.msra.mxu0 0.0
        %2523 = vmatprep.subr.mxu0 0.0
        %2524 = vmatpush1.xpose.msra.mxu0 0.0
        %2525 = vmatprep.subr.mxu0 0.0
        %2526 = vmatpush1.xpose.msra.mxu0 0.0
        %2527 = vmatprep.subr.mxu0 0.0
        %2528 = vmatpush1.xpose.msra.mxu0 0.0
        %2529 = vmatprep.subr.mxu0 0.0
        %2530 = vmatpush1.xpose.msra.mxu0 0.0
        %2531 = vmatprep.subr.mxu0 0.0
        %2532 = vmatpush1.xpose.msra.mxu0 0.0
        %2533 = vmatprep.subr.mxu0 0.0
        %2534 = vmatpush1.xpose.msra.mxu0 0.0
        %2535 = vmatprep.subr.mxu0 0.0
        %2536 = vmatpush1.xpose.msra.mxu0 0.0
        %2537 = vmatprep.subr.mxu0 0.0
        %2538 = vmatpush1.xpose.msra.mxu0 0.0
        %2539 = vmatprep.subr.mxu0 0.0
        %2540 = vmatpush1.xpose.msra.mxu0 0.0
        %2541 = vmatprep.subr.mxu0 0.0
        %2542 = vmatpush1.xpose.msra.mxu0 0.0
        %2543 = vmatprep.subr.mxu0 0.0
        %2544 = vmatpush1.xpose.msra.mxu0 0.0
        %2545 = vmatprep.subr.mxu0 0.0
        %2546 = vmatpush1.xpose.msra.mxu0 0.0
        %2547 = vmatprep.subr.mxu0 0.0
        %2548 = vmatpush1.xpose.msra.mxu0 0.0
        %2549 = vmatprep.subr.mxu0 0.0
        %2550 = vmatpush1.xpose.msra.mxu0 0.0
        %2551 = vmatprep.mubr.f32.mxu0 0.0
        %2552 = vmatmul.mubr.f32.gmra.mrb[0].mxu0 %v2481
        %v2553 = vpop.f32.mrb[0].mxu0
        %v2554 = vadd.f32 0.0, %v2553
        %v2555 = vpop.f32.mrb[0].mxu0
        %2556 = vdwg.mxu0
        %v2557 = vsel %vm1868, %v2554, -1e+09
        %v2558 = vsel %vm2042, %v2557, -inf
        %2559 = vmax.xlane.f32.xlu0 %v2558
        %v2560 = vpop.xlane.xlu0 %2559
        %v2561 = vsub.f32 %v2557, %v2560
        %v2562 = vmul.f32 %v2561, 1.442695
        %v2563 = vpow.pop %v2562
        %v2564 = vsel %vm2042, %v2563, 0.0
        %2565 = vadd.xlane.f32.xlu0 %v2564
        %v2566 = vpop.xlane.xlu0 %2565
        %v2567 = vrcp.pop %v2566
        %v2568 = vmul.f32 %v2563, %v2567
        %2569 = vrot.lane.b32.xlu0 %v1959, 104
        %v2570 = vpop.permute.xlu0 %2569
        %2571 = vrot.lane.b32.xlu0 %v1960, 104
        %v2572 = vpop.permute.xlu0 %2571
        %v2576 = vsel %vm2042, %v2568, 0
        %2578 = vmatprep.subr.mxu0 0.0
        %2579 = vmatpush1.msra.mxu0 %v2570
        %2580 = vmatprep.subr.mxu0 0.0
        %2581 = vmatpush1.msra.mxu0 %v2572
        %2582 = vmatprep.subr.mxu0 0.0
        %2583 = vmatpush1.msra.mxu0 0.0
        %2584 = vmatprep.subr.mxu0 0.0
        %2585 = vmatpush1.msra.mxu0 0.0
        %2586 = vmatprep.subr.mxu0 0.0
        %2587 = vmatpush1.msra.mxu0 0.0
        %2588 = vmatprep.subr.mxu0 0.0
        %2589 = vmatpush1.msra.mxu0 0.0
        %2590 = vmatprep.subr.mxu0 0.0
        %2591 = vmatpush1.msra.mxu0 0.0
        %2592 = vmatprep.subr.mxu0 0.0
        %2593 = vmatpush1.msra.mxu0 0.0
        %2594 = vmatprep.subr.mxu0 0.0
        %2595 = vmatpush1.msra.mxu0 0.0
        %2596 = vmatprep.subr.mxu0 0.0
        %2597 = vmatpush1.msra.mxu0 0.0
        %2598 = vmatprep.subr.mxu0 0.0
        %2599 = vmatpush1.msra.mxu0 0.0
        %2600 = vmatprep.subr.mxu0 0.0
        %2601 = vmatpush1.msra.mxu0 0.0
        %2602 = vmatprep.subr.mxu0 0.0
        %2603 = vmatpush1.msra.mxu0 0.0
        %2604 = vmatprep.subr.mxu0 0.0
        %2605 = vmatpush1.msra.mxu0 0.0
        %2606 = vmatprep.subr.mxu0 0.0
        %2607 = vmatpush1.msra.mxu0 0.0
        %2608 = vmatprep.subr.mxu0 0.0
        %2609 = vmatpush1.msra.mxu0 0.0
        %2610 = vmatprep.subr.mxu0 0.0
        %2611 = vmatpush1.msra.mxu0 0.0
        %2612 = vmatprep.subr.mxu0 0.0
        %2613 = vmatpush1.msra.mxu0 0.0
        %2614 = vmatprep.subr.mxu0 0.0
        %2615 = vmatpush1.msra.mxu0 0.0
        %2616 = vmatprep.subr.mxu0 0.0
        %2617 = vmatpush1.msra.mxu0 0.0
        %2618 = vmatprep.subr.mxu0 0.0
        %2619 = vmatpush1.msra.mxu0 0.0
        %2620 = vmatprep.subr.mxu0 0.0
        %2621 = vmatpush1.msra.mxu0 0.0
        %2622 = vmatprep.subr.mxu0 0.0
        %2623 = vmatpush1.msra.mxu0 0.0
        %2624 = vmatprep.subr.mxu0 0.0
        %2625 = vmatpush1.msra.mxu0 0.0
        %2626 = vmatprep.subr.mxu0 0.0
        %2627 = vmatpush1.msra.mxu0 0.0
        %2628 = vmatprep.subr.mxu0 0.0
        %2629 = vmatpush1.msra.mxu0 0.0
        %2630 = vmatprep.subr.mxu0 0.0
        %2631 = vmatpush1.msra.mxu0 0.0
        %2632 = vmatprep.subr.mxu0 0.0
        %2633 = vmatpush1.msra.mxu0 0.0
        %2634 = vmatprep.subr.mxu0 0.0
        %2635 = vmatpush1.msra.mxu0 0.0
        %2636 = vmatprep.subr.mxu0 0.0
        %2637 = vmatpush1.msra.mxu0 0.0
        %2638 = vmatprep.subr.mxu0 0.0
        %2639 = vmatpush1.msra.mxu0 0.0
        %2640 = vmatprep.subr.mxu0 0.0
        %2641 = vmatpush1.msra.mxu0 0.0
        %2642 = vmatprep.mubr.f32.mxu0 0.0
        %2643 = vmatmul.mubr.f32.gmra.mrb[0].mxu0 %v2576
        %v2644 = vpop.f32.mrb[0].mxu0
        %v2645 = vadd.f32 0.0, %v2644
        %v2646 = vpop.f32.mrb[0].mxu0
        %2647 = vdwg.mxu0
        %2649 = vrot.lane.b32.xlu0 %v2299, 8
        %v2650 = vpop.permute.xlu0 %2649
        %2653 = vrot.lane.b32.xlu0 %v2472, 16
        %v2654 = vpop.permute.xlu0 %2653
        %2657 = vrot.lane.b32.xlu0 %v2645, 24
        %v2658 = vpop.permute.xlu0 %2657
        %v2660 = vsel %vm1961, %v2124, %v2650
        %v2661 = vsel %vm2042, %v2660, %v2654
        %vm2662 = vcmask 195584
        %v2663 = vsel %vm2662, %v2661, %v2658
        %v2664 = vld [vmem:[#allocation24] sm:$0xff]
        %v2665 = vld [vmem:[#allocation24 + $0x8] sm:$0xff]
        %v2666 = vld [vmem:[#allocation24 + $0x10] sm:$0xff]
        %v2667 = vld [vmem:[#allocation24 + $0x18] sm:$0xff]
        %v2668 = vld [vmem:[#allocation26] sm:$0x1]
        %v2670 = vlaneseq
        %v2671 = vshrl.u32 %v2670, 7
        %v2672 = vsub.s32 0, %v2671
        %v2673 = vrot.slane %v2668, %v2672
        %v2676 = vsel %vm1882, %v2663, 0
        %2678 = vmatprep.subr.mxu0 0.0
        %2679 = vmatpush1.msra.mxu0 %v2664
        %2680 = vmatprep.subr.mxu0 0.0
        %2681 = vmatpush1.msra.mxu0 %v2665
        %2682 = vmatprep.subr.mxu0 0.0
        %2683 = vmatpush1.msra.mxu0 %v2666
        %2684 = vmatprep.subr.mxu0 0.0
        %2685 = vmatpush1.msra.mxu0 %v2667
        %2686 = vmatprep.subr.mxu0 0.0
        %2687 = vmatpush1.msra.mxu0 0.0
        %2688 = vmatprep.subr.mxu0 0.0
        %2689 = vmatpush1.msra.mxu0 0.0
        %2690 = vmatprep.subr.mxu0 0.0
        %2691 = vmatpush1.msra.mxu0 0.0
        %2692 = vmatprep.subr.mxu0 0.0
        %2693 = vmatpush1.msra.mxu0 0.0
        %2694 = vmatprep.subr.mxu0 0.0
        %2695 = vmatpush1.msra.mxu0 0.0
        %2696 = vmatprep.subr.mxu0 0.0
        %2697 = vmatpush1.msra.mxu0 0.0
        %2698 = vmatprep.subr.mxu0 0.0
        %2699 = vmatpush1.msra.mxu0 0.0
        %2700 = vmatprep.subr.mxu0 0.0
        %2701 = vmatpush1.msra.mxu0 0.0
        %2702 = vmatprep.subr.mxu0 0.0
        %2703 = vmatpush1.msra.mxu0 0.0
        %2704 = vmatprep.subr.mxu0 0.0
        %2705 = vmatpush1.msra.mxu0 0.0
        %2706 = vmatprep.subr.mxu0 0.0
        %2707 = vmatpush1.msra.mxu0 0.0
        %2708 = vmatprep.subr.mxu0 0.0
        %2709 = vmatpush1.msra.mxu0 0.0
        %2710 = vmatprep.subr.mxu0 0.0
        %2711 = vmatpush1.msra.mxu0 0.0
        %2712 = vmatprep.subr.mxu0 0.0
        %2713 = vmatpush1.msra.mxu0 0.0
        %2714 = vmatprep.subr.mxu0 0.0
        %2715 = vmatpush1.msra.mxu0 0.0
        %2716 = vmatprep.subr.mxu0 0.0
        %2717 = vmatpush1.msra.mxu0 0.0
        %2718 = vmatprep.subr.mxu0 0.0
        %2719 = vmatpush1.msra.mxu0 0.0
        %2720 = vmatprep.subr.mxu0 0.0
        %2721 = vmatpush1.msra.mxu0 0.0
        %2722 = vmatprep.subr.mxu0 0.0
        %2723 = vmatpush1.msra.mxu0 0.0
        %2724 = vmatprep.subr.mxu0 0.0
        %2725 = vmatpush1.msra.mxu0 0.0
        %2726 = vmatprep.subr.mxu0 0.0
        %2727 = vmatpush1.msra.mxu0 0.0
        %2728 = vmatprep.subr.mxu0 0.0
        %2729 = vmatpush1.msra.mxu0 0.0
        %2730 = vmatprep.subr.mxu0 0.0
        %2731 = vmatpush1.msra.mxu0 0.0
        %2732 = vmatprep.subr.mxu0 0.0
        %2733 = vmatpush1.msra.mxu0 0.0
        %2734 = vmatprep.subr.mxu0 0.0
        %2735 = vmatpush1.msra.mxu0 0.0
        %2736 = vmatprep.subr.mxu0 0.0
        %2737 = vmatpush1.msra.mxu0 0.0
        %2738 = vmatprep.subr.mxu0 0.0
        %2739 = vmatpush1.msra.mxu0 0.0
        %2740 = vmatprep.subr.mxu0 0.0
        %2741 = vmatpush1.msra.mxu0 0.0
        %2742 = vmatprep.mubr.f32.mxu0 0.0
        %2743 = vmatmul.mubr.f32.gmra.mrb[0].mxu0 %v2676
        %v2744 = vpop.f32.mrb[0].mxu0
        %v2745 = vadd.f32 %v2673, %v2744
        %v2746 = vpop.f32.mrb[0].mxu0
        %2747 = vdwg.mxu0
        %v2748 = vadd.f32 %v1866, %v2745
        %v2749 = vsel %vm1882, %v2748, 0.0
        %2750 = vadd.xlane.f32.xlu0 %v2749
        %v2751 = vpop.xlane.xlu0 %2750
        %v2752 = vrcp.pop 32.0
        %v2753 = vmul.f32 %v2751, %v2752
        %v2754 = vsub.f32 %v2748, %v2753
        %v2755 = vmul.f32 %v2754, %v2754
        %v2756 = vsel %vm1882, %v2755, 0.0
        %2757 = vadd.xlane.f32.xlu0 %v2756
        %v2758 = vpop.xlane.xlu0 %2757
        %v2759 = vmul.f32 %v2758, %v2752
        %v2760 = vadd.f32 %v2759, 1e-05
        %v2761 = vrsqrt.pop %v2760
        %v2762 = vmul.f32 %v2754, %v2761
        %v2763 = vld [vmem:[#allocation45] sm:$0x1]
        %v2765 = vlaneseq
        %v2766 = vshrl.u32 %v2765, 7
        %v2767 = vsub.s32 0, %v2766
        %v2768 = vrot.slane %v2763, %v2767
        %v2770 = vmul.f32 %v2762, %v2768
        %v2771 = vld [vmem:[#allocation47] sm:$0x1]
        %v2773 = vlaneseq
        %v2774 = vshrl.u32 %v2773, 7
        %v2775 = vsub.s32 0, %v2774
        %v2776 = vrot.slane %v2771, %v2775
        %v2778 = vadd.f32 %v2770, %v2776
        %v2779 = vld [vmem:[#allocation27] sm:$0xff]
        %v2780 = vld [vmem:[#allocation27 + $0x8] sm:$0xff]
        %v2781 = vld [vmem:[#allocation27 + $0x10] sm:$0xff]
        %v2782 = vld [vmem:[#allocation27 + $0x18] sm:$0xff]
        %v2783 = vld [vmem:[#allocation29] sm:$0x1]
        %v2785 = vlaneseq
        %v2786 = vshrl.u32 %v2785, 7
        %v2787 = vsub.s32 0, %v2786
        %v2788 = vrot.slane %v2783, %v2787
        %v2791 = vsel %vm1882, %v2778, 0
        %2793 = vmatprep.subr.mxu0 0.0
        %2794 = vmatpush1.msra.mxu0 %v2779
        %2795 = vmatprep.subr.mxu0 0.0
        %2796 = vmatpush1.msra.mxu0 %v2780
        %2797 = vmatprep.subr.mxu0 0.0
        %2798 = vmatpush1.msra.mxu0 %v2781
        %2799 = vmatprep.subr.mxu0 0.0
        %2800 = vmatpush1.msra.mxu0 %v2782
        %2801 = vmatprep.subr.mxu0 0.0
        %2802 = vmatpush1.msra.mxu0 0.0
        %2803 = vmatprep.subr.mxu0 0.0
        %2804 = vmatpush1.msra.mxu0 0.0
        %2805 = vmatprep.subr.mxu0 0.0
        %2806 = vmatpush1.msra.mxu0 0.0
        %2807 = vmatprep.subr.mxu0 0.0
        %2808 = vmatpush1.msra.mxu0 0.0
        %2809 = vmatprep.subr.mxu0 0.0
        %2810 = vmatpush1.msra.mxu0 0.0
        %2811 = vmatprep.subr.mxu0 0.0
        %2812 = vmatpush1.msra.mxu0 0.0
        %2813 = vmatprep.subr.mxu0 0.0
        %2814 = vmatpush1.msra.mxu0 0.0
        %2815 = vmatprep.subr.mxu0 0.0
        %2816 = vmatpush1.msra.mxu0 0.0
        %2817 = vmatprep.subr.mxu0 0.0
        %2818 = vmatpush1.msra.mxu0 0.0
        %2819 = vmatprep.subr.mxu0 0.0
        %2820 = vmatpush1.msra.mxu0 0.0
        %2821 = vmatprep.subr.mxu0 0.0
        %2822 = vmatpush1.msra.mxu0 0.0
        %2823 = vmatprep.subr.mxu0 0.0
        %2824 = vmatpush1.msra.mxu0 0.0
        %2825 = vmatprep.subr.mxu0 0.0
        %2826 = vmatpush1.msra.mxu0 0.0
        %2827 = vmatprep.subr.mxu0 0.0
        %2828 = vmatpush1.msra.mxu0 0.0
        %2829 = vmatprep.subr.mxu0 0.0
        %2830 = vmatpush1.msra.mxu0 0.0
        %2831 = vmatprep.subr.mxu0 0.0
        %2832 = vmatpush1.msra.mxu0 0.0
        %2833 = vmatprep.subr.mxu0 0.0
        %2834 = vmatpush1.msra.mxu0 0.0
        %2835 = vmatprep.subr.mxu0 0.0
        %2836 = vmatpush1.msra.mxu0 0.0
        %2837 = vmatprep.subr.mxu0 0.0
        %2838 = vmatpush1.msra.mxu0 0.0
        %2839 = vmatprep.subr.mxu0 0.0
        %2840 = vmatpush1.msra.mxu0 0.0
        %2841 = vmatprep.subr.mxu0 0.0
        %2842 = vmatpush1.msra.mxu0 0.0
        %2843 = vmatprep.subr.mxu0 0.0
        %2844 = vmatpush1.msra.mxu0 0.0
        %2845 = vmatprep.subr.mxu0 0.0
        %2846 = vmatpush1.msra.mxu0 0.0
        %2847 = vmatprep.subr.mxu0 0.0
        %2848 = vmatpush1.msra.mxu0 0.0
        %2849 = vmatprep.subr.mxu0 0.0
        %2850 = vmatpush1.msra.mxu0 0.0
        %2851 = vmatprep.subr.mxu0 0.0
        %2852 = vmatpush1.msra.mxu0 0.0
        %2853 = vmatprep.subr.mxu0 0.0
        %2854 = vmatpush1.msra.mxu0 0.0
        %2855 = vmatprep.subr.mxu0 0.0
        %2856 = vmatpush1.msra.mxu0 0.0
        %2857 = vmatprep.mubr.f32.mxu0 0.0
        %2858 = vmatmul.mubr.f32.gmra.mrb[0].mxu0 %v2791
        %v2859 = vpop.f32.mrb[0].mxu0
        %v2860 = vadd.f32 %v2788, %v2859
        %v2861 = vpop.f32.mrb[0].mxu0
        %2862 = vdwg.mxu0
        %v2863 = vmul.f32 %v2860, 0.35355338
        %v2864 = vld [vmem:[#allocation4] sm:$0xff]
        %v2865 = vld [vmem:[#allocation4 + $0x8] sm:$0xff]
        %v2866 = vld [vmem:[#allocation5] sm:$0xff]
        %v2867 = vld [vmem:[#allocation5 + $0x8] sm:$0xff]
        %v2869 = vsel %vm1961, %v2863, 0
        %v2872 = vsel %vm1961, %v2864, 0
        %v2875 = vsel %vm1961, %v2865, 0
        %2877 = vmatprep.subr.mxu0 0.0
        %2878 = vmatpush1.xpose.msra.mxu0 %v2872
        %2879 = vmatprep.subr.mxu0 0.0
        %2880 = vmatpush1.xpose.msra.mxu0 %v2875
        %2881 = vmatprep.subr.mxu0 0.0
        %2882 = vmatpush1.xpose.msra.mxu0 0.0
        %2883 = vmatprep.subr.mxu0 0.0
        %2884 = vmatpush1.xpose.msra.mxu0 0.0
        %2885 = vmatprep.subr.mxu0 0.0
        %2886 = vmatpush1.xpose.msra.mxu0 0.0
        %2887 = vmatprep.subr.mxu0 0.0
        %2888 = vmatpush1.xpose.msra.mxu0 0.0
        %2889 = vmatprep.subr.mxu0 0.0
        %2890 = vmatpush1.xpose.msra.mxu0 0.0
        %2891 = vmatprep.subr.mxu0 0.0
        %2892 = vmatpush1.xpose.msra.mxu0 0.0
        %2893 = vmatprep.subr.mxu0 0.0
        %2894 = vmatpush1.xpose.msra.mxu0 0.0
        %2895 = vmatprep.subr.mxu0 0.0
        %2896 = vmatpush1.xpose.msra.mxu0 0.0
        %2897 = vmatprep.subr.mxu0 0.0
        %2898 = vmatpush1.xpose.msra.mxu0 0.0
        %2899 = vmatprep.subr.mxu0 0.0
        %2900 = vmatpush1.xpose.msra.mxu0 0.0
        %2901 = vmatprep.subr.mxu0 0.0
        %2902 = vmatpush1.xpose.msra.mxu0 0.0
        %2903 = vmatprep.subr.mxu0 0.0
        %2904 = vmatpush1.xpose.msra.mxu0 0.0
        %2905 = vmatprep.subr.mxu0 0.0
        %2906 = vmatpush1.xpose.msra.mxu0 0.0
        %2907 = vmatprep.subr.mxu0 0.0
        %2908 = vmatpush1.xpose.msra.mxu0 0.0
        %2909 = vmatprep.subr.mxu0 0.0
        %2910 = vmatpush1.xpose.msra.mxu0 0.0
        %2911 = vmatprep.subr.mxu0 0.0
        %2912 = vmatpush1.xpose.msra.mxu0 0.0
        %2913 = vmatprep.subr.mxu0 0.0
        %2914 = vmatpush1.xpose.msra.mxu0 0.0
        %2915 = vmatprep.subr.mxu0 0.0
        %2916 = vmatpush1.xpose.msra.mxu0 0.0
        %2917 = vmatprep.subr.mxu0 0.0
        %2918 = vmatpush1.xpose.msra.mxu0 0.0
        %2919 = vmatprep.subr.mxu0 0.0
        %2920 = vmatpush1.xpose.msra.mxu0 0.0
        %2921 = vmatprep.subr.mxu0 0.0
        %2922 = vmatpush1.xpose.msra.mxu0 0.0
        %2923 = vmatprep.subr.mxu0 0.0
        %2924 = vmatpush1.xpose.msra.mxu0 0.0
        %2925 = vmatprep.subr.mxu0 0.0
        %2926 = vmatpush1.xpose.msra.mxu0 0.0
        %2927 = vmatprep.subr.mxu0 0.0
        %2928 = vmatpush1.xpose.msra.mxu0 0.0
        %2929 = vmatprep.subr.mxu0 0.0
        %2930 = vmatpush1.xpose.msra.mxu0 0.0
        %2931 = vmatprep.subr.mxu0 0.0
        %2932 = vmatpush1.xpose.msra.mxu0 0.0
        %2933 = vmatprep.subr.mxu0 0.0
        %2934 = vmatpush1.xpose.msra.mxu0 0.0
        %2935 = vmatprep.subr.mxu0 0.0
        %2936 = vmatpush1.xpose.msra.mxu0 0.0
        %2937 = vmatprep.subr.mxu0 0.0
        %2938 = vmatpush1.xpose.msra.mxu0 0.0
        %2939 = vmatprep.subr.mxu0 0.0
        %2940 = vmatpush1.xpose.msra.mxu0 0.0
        %2941 = vmatprep.mubr.f32.mxu0 0.0
        %2942 = vmatmul.mubr.f32.gmra.mrb[0].mxu0 %v2869
        %v2943 = vpop.f32.mrb[0].mxu0
        %v2944 = vadd.f32 0.0, %v2943
        %v2945 = vpop.f32.mrb[0].mxu0
        %2946 = vdwg.mxu0
        %v2947 = vsel %vm1870, %v2944, -1e+09
        %v2948 = vsel %vm2042, %v2947, -inf
        %2949 = vmax.xlane.f32.xlu0 %v2948
        %v2950 = vpop.xlane.xlu0 %2949
        %v2951 = vsub.f32 %v2947, %v2950
        %v2952 = vmul.f32 %v2951, 1.442695
        %v2953 = vpow.pop %v2952
        %v2954 = vsel %vm2042, %v2953, 0.0
        %2955 = vadd.xlane.f32.xlu0 %v2954
        %v2956 = vpop.xlane.xlu0 %2955
        %v2957 = vrcp.pop %v2956
        %v2958 = vmul.f32 %v2953, %v2957
        %v2960 = vsel %vm2042, %v2958, 0
        %2962 = vmatprep.subr.mxu0 0.0
        %2963 = vmatpush1.msra.mxu0 %v2866
        %2964 = vmatprep.subr.mxu0 0.0
        %2965 = vmatpush1.msra.mxu0 %v2867
        %2966 = vmatprep.subr.mxu0 0.0
        %2967 = vmatpush1.msra.mxu0 0.0
        %2968 = vmatprep.subr.mxu0 0.0
        %2969 = vmatpush1.msra.mxu0 0.0
        %2970 = vmatprep.subr.mxu0 0.0
        %2971 = vmatpush1.msra.mxu0 0.0
        %2972 = vmatprep.subr.mxu0 0.0
        %2973 = vmatpush1.msra.mxu0 0.0
        %2974 = vmatprep.subr.mxu0 0.0
        %2975 = vmatpush1.msra.mxu0 0.0
        %2976 = vmatprep.subr.mxu0 0.0
        %2977 = vmatpush1.msra.mxu0 0.0
        %2978 = vmatprep.subr.mxu0 0.0
        %2979 = vmatpush1.msra.mxu0 0.0
        %2980 = vmatprep.subr.mxu0 0.0
        %2981 = vmatpush1.msra.mxu0 0.0
        %2982 = vmatprep.subr.mxu0 0.0
        %2983 = vmatpush1.msra.mxu0 0.0
        %2984 = vmatprep.subr.mxu0 0.0
        %2985 = vmatpush1.msra.mxu0 0.0
        %2986 = vmatprep.subr.mxu0 0.0
        %2987 = vmatpush1.msra.mxu0 0.0
        %2988 = vmatprep.subr.mxu0 0.0
        %2989 = vmatpush1.msra.mxu0 0.0
        %2990 = vmatprep.subr.mxu0 0.0
        %2991 = vmatpush1.msra.mxu0 0.0
        %2992 = vmatprep.subr.mxu0 0.0
        %2993 = vmatpush1.msra.mxu0 0.0
        %2994 = vmatprep.subr.mxu0 0.0
        %2995 = vmatpush1.msra.mxu0 0.0
        %2996 = vmatprep.subr.mxu0 0.0
        %2997 = vmatpush1.msra.mxu0 0.0
        %2998 = vmatprep.subr.mxu0 0.0
        %2999 = vmatpush1.msra.mxu0 0.0
        %3000 = vmatprep.subr.mxu0 0.0
        %3001 = vmatpush1.msra.mxu0 0.0
        %3002 = vmatprep.subr.mxu0 0.0
        %3003 = vmatpush1.msra.mxu0 0.0
        %3004 = vmatprep.subr.mxu0 0.0
        %3005 = vmatpush1.msra.mxu0 0.0
        %3006 = vmatprep.subr.mxu0 0.0
        %3007 = vmatpush1.msra.mxu0 0.0
        %3008 = vmatprep.subr.mxu0 0.0
        %3009 = vmatpush1.msra.mxu0 0.0
        %3010 = vmatprep.subr.mxu0 0.0
        %3011 = vmatpush1.msra.mxu0 0.0
        %3012 = vmatprep.subr.mxu0 0.0
        %3013 = vmatpush1.msra.mxu0 0.0
        %3014 = vmatprep.subr.mxu0 0.0
        %3015 = vmatpush1.msra.mxu0 0.0
        %3016 = vmatprep.subr.mxu0 0.0
        %3017 = vmatpush1.msra.mxu0 0.0
        %3018 = vmatprep.subr.mxu0 0.0
        %3019 = vmatpush1.msra.mxu0 0.0
        %3020 = vmatprep.subr.mxu0 0.0
        %3021 = vmatpush1.msra.mxu0 0.0
        %3022 = vmatprep.subr.mxu0 0.0
        %3023 = vmatpush1.msra.mxu0 0.0
        %3024 = vmatprep.subr.mxu0 0.0
        %3025 = vmatpush1.msra.mxu0 0.0
        %3026 = vmatprep.mubr.f32.mxu0 0.0
        %3027 = vmatmul.mubr.f32.gmra.mrb[0].mxu0 %v2960
        %v3028 = vpop.f32.mrb[0].mxu0
        %v3029 = vadd.f32 0.0, %v3028
        %v3030 = vpop.f32.mrb[0].mxu0
        %3031 = vdwg.mxu0
        %3032 = vrot.lane.b32.xlu0 %v2863, 120
        %v3033 = vpop.permute.xlu0 %3032
        %3034 = vrot.lane.b32.xlu0 %v2864, 120
        %v3035 = vpop.permute.xlu0 %3034
        %3036 = vrot.lane.b32.xlu0 %v2865, 120
        %v3037 = vpop.permute.xlu0 %3036
        %v3038 = vsel %vm1961, %v3033, 0
        %v3040 = vsel %vm1961, %v3035, 0
        %v3042 = vsel %vm1961, %v3037, 0
        %3044 = vmatprep.subr.mxu0 0.0
        %3045 = vmatpush1.xpose.msra.mxu0 %v3040
        %3046 = vmatprep.subr.mxu0 0.0
        %3047 = vmatpush1.xpose.msra.mxu0 %v3042
        %3048 = vmatprep.subr.mxu0 0.0
        %3049 = vmatpush1.xpose.msra.mxu0 0.0
        %3050 = vmatprep.subr.mxu0 0.0
        %3051 = vmatpush1.xpose.msra.mxu0 0.0
        %3052 = vmatprep.subr.mxu0 0.0
        %3053 = vmatpush1.xpose.msra.mxu0 0.0
        %3054 = vmatprep.subr.mxu0 0.0
        %3055 = vmatpush1.xpose.msra.mxu0 0.0
        %3056 = vmatprep.subr.mxu0 0.0
        %3057 = vmatpush1.xpose.msra.mxu0 0.0
        %3058 = vmatprep.subr.mxu0 0.0
        %3059 = vmatpush1.xpose.msra.mxu0 0.0
        %3060 = vmatprep.subr.mxu0 0.0
        %3061 = vmatpush1.xpose.msra.mxu0 0.0
        %3062 = vmatprep.subr.mxu0 0.0
        %3063 = vmatpush1.xpose.msra.mxu0 0.0
        %3064 = vmatprep.subr.mxu0 0.0
        %3065 = vmatpush1.xpose.msra.mxu0 0.0
        %3066 = vmatprep.subr.mxu0 0.0
        %3067 = vmatpush1.xpose.msra.mxu0 0.0
        %3068 = vmatprep.subr.mxu0 0.0
        %3069 = vmatpush1.xpose.msra.mxu0 0.0
        %3070 = vmatprep.subr.mxu0 0.0
        %3071 = vmatpush1.xpose.msra.mxu0 0.0
        %3072 = vmatprep.subr.mxu0 0.0
        %3073 = vmatpush1.xpose.msra.mxu0 0.0
        %3074 = vmatprep.subr.mxu0 0.0
        %3075 = vmatpush1.xpose.msra.mxu0 0.0
        %3076 = vmatprep.subr.mxu0 0.0
        %3077 = vmatpush1.xpose.msra.mxu0 0.0
        %3078 = vmatprep.subr.mxu0 0.0
        %3079 = vmatpush1.xpose.msra.mxu0 0.0
        %3080 = vmatprep.subr.mxu0 0.0
        %3081 = vmatpush1.xpose.msra.mxu0 0.0
        %3082 = vmatprep.subr.mxu0 0.0
        %3083 = vmatpush1.xpose.msra.mxu0 0.0
        %3084 = vmatprep.subr.mxu0 0.0
        %3085 = vmatpush1.xpose.msra.mxu0 0.0
        %3086 = vmatprep.subr.mxu0 0.0
        %3087 = vmatpush1.xpose.msra.mxu0 0.0
        %3088 = vmatprep.subr.mxu0 0.0
        %3089 = vmatpush1.xpose.msra.mxu0 0.0
        %3090 = vmatprep.subr.mxu0 0.0
        %3091 = vmatpush1.xpose.msra.mxu0 0.0
        %3092 = vmatprep.subr.mxu0 0.0
        %3093 = vmatpush1.xpose.msra.mxu0 0.0
        %3094 = vmatprep.subr.mxu0 0.0
        %3095 = vmatpush1.xpose.msra.mxu0 0.0
        %3096 = vmatprep.subr.mxu0 0.0
        %3097 = vmatpush1.xpose.msra.mxu0 0.0
        %3098 = vmatprep.subr.mxu0 0.0
        %3099 = vmatpush1.xpose.msra.mxu0 0.0
        %3100 = vmatprep.subr.mxu0 0.0
        %3101 = vmatpush1.xpose.msra.mxu0 0.0
        %3102 = vmatprep.subr.mxu0 0.0
        %3103 = vmatpush1.xpose.msra.mxu0 0.0
        %3104 = vmatprep.subr.mxu0 0.0
        %3105 = vmatpush1.xpose.msra.mxu0 0.0
        %3106 = vmatprep.subr.mxu0 0.0
        %3107 = vmatpush1.xpose.msra.mxu0 0.0
        %3108 = vmatprep.mubr.f32.mxu0 0.0
        %3109 = vmatmul.mubr.f32.gmra.mrb[0].mxu0 %v3038
        %v3110 = vpop.f32.mrb[0].mxu0
        %v3111 = vadd.f32 0.0, %v3110
        %v3112 = vpop.f32.mrb[0].mxu0
        %3113 = vdwg.mxu0
        %v3114 = vsel %vm1870, %v3111, -1e+09
        %v3115 = vsel %vm2042, %v3114, -inf
        %3116 = vmax.xlane.f32.xlu0 %v3115
        %v3117 = vpop.xlane.xlu0 %3116
        %v3118 = vsub.f32 %v3114, %v3117
        %v3119 = vmul.f32 %v3118, 1.442695
        %v3120 = vpow.pop %v3119
        %v3121 = vsel %vm2042, %v3120, 0.0
        %3122 = vadd.xlane.f32.xlu0 %v3121
        %v3123 = vpop.xlane.xlu0 %3122
        %v3124 = vrcp.pop %v3123
        %v3125 = vmul.f32 %v3120, %v3124
        %3128 = vrot.lane.b32.xlu0 %v2866, 120
        %v3129 = vpop.permute.xlu0 %3128
        %3130 = vrot.lane.b32.xlu0 %v2867, 120
        %v3131 = vpop.permute.xlu0 %3130
        %v3135 = vsel %vm2042, %v3125, 0
        %3137 = vmatprep.subr.mxu0 0.0
        %3138 = vmatpush1.msra.mxu0 %v3129
        %3139 = vmatprep.subr.mxu0 0.0
        %3140 = vmatpush1.msra.mxu0 %v3131
        %3141 = vmatprep.subr.mxu0 0.0
        %3142 = vmatpush1.msra.mxu0 0.0
        %3143 = vmatprep.subr.mxu0 0.0
        %3144 = vmatpush1.msra.mxu0 0.0
        %3145 = vmatprep.subr.mxu0 0.0
        %3146 = vmatpush1.msra.mxu0 0.0
        %3147 = vmatprep.subr.mxu0 0.0
        %3148 = vmatpush1.msra.mxu0 0.0
        %3149 = vmatprep.subr.mxu0 0.0
        %3150 = vmatpush1.msra.mxu0 0.0
        %3151 = vmatprep.subr.mxu0 0.0
        %3152 = vmatpush1.msra.mxu0 0.0
        %3153 = vmatprep.subr.mxu0 0.0
        %3154 = vmatpush1.msra.mxu0 0.0
        %3155 = vmatprep.subr.mxu0 0.0
        %3156 = vmatpush1.msra.mxu0 0.0
        %3157 = vmatprep.subr.mxu0 0.0
        %3158 = vmatpush1.msra.mxu0 0.0
        %3159 = vmatprep.subr.mxu0 0.0
        %3160 = vmatpush1.msra.mxu0 0.0
        %3161 = vmatprep.subr.mxu0 0.0
        %3162 = vmatpush1.msra.mxu0 0.0
        %3163 = vmatprep.subr.mxu0 0.0
        %3164 = vmatpush1.msra.mxu0 0.0
        %3165 = vmatprep.subr.mxu0 0.0
        %3166 = vmatpush1.msra.mxu0 0.0
        %3167 = vmatprep.subr.mxu0 0.0
        %3168 = vmatpush1.msra.mxu0 0.0
        %3169 = vmatprep.subr.mxu0 0.0
        %3170 = vmatpush1.msra.mxu0 0.0
        %3171 = vmatprep.subr.mxu0 0.0
        %3172 = vmatpush1.msra.mxu0 0.0
        %3173 = vmatprep.subr.mxu0 0.0
        %3174 = vmatpush1.msra.mxu0 0.0
        %3175 = vmatprep.subr.mxu0 0.0
        %3176 = vmatpush1.msra.mxu0 0.0
        %3177 = vmatprep.subr.mxu0 0.0
        %3178 = vmatpush1.msra.mxu0 0.0
        %3179 = vmatprep.subr.mxu0 0.0
        %3180 = vmatpush1.msra.mxu0 0.0
        %3181 = vmatprep.subr.mxu0 0.0
        %3182 = vmatpush1.msra.mxu0 0.0
        %3183 = vmatprep.subr.mxu0 0.0
        %3184 = vmatpush1.msra.mxu0 0.0
        %3185 = vmatprep.subr.mxu0 0.0
        %3186 = vmatpush1.msra.mxu0 0.0
        %3187 = vmatprep.subr.mxu0 0.0
        %3188 = vmatpush1.msra.mxu0 0.0
        %3189 = vmatprep.subr.mxu0 0.0
        %3190 = vmatpush1.msra.mxu0 0.0
        %3191 = vmatprep.subr.mxu0 0.0
        %3192 = vmatpush1.msra.mxu0 0.0
        %3193 = vmatprep.subr.mxu0 0.0
        %3194 = vmatpush1.msra.mxu0 0.0
        %3195 = vmatprep.subr.mxu0 0.0
        %3196 = vmatpush1.msra.mxu0 0.0
        %3197 = vmatprep.subr.mxu0 0.0
        %3198 = vmatpush1.msra.mxu0 0.0
        %3199 = vmatprep.subr.mxu0 0.0
        %3200 = vmatpush1.msra.mxu0 0.0
        %3201 = vmatprep.mubr.f32.mxu0 0.0
        %3202 = vmatmul.mubr.f32.gmra.mrb[0].mxu0 %v3135
        %v3203 = vpop.f32.mrb[0].mxu0
        %v3204 = vadd.f32 0.0, %v3203
        %v3205 = vpop.f32.mrb[0].mxu0
        %3206 = vdwg.mxu0
        %3207 = vrot.lane.b32.xlu0 %v2863, 112
        %v3208 = vpop.permute.xlu0 %3207
        %3209 = vrot.lane.b32.xlu0 %v2864, 112
        %v3210 = vpop.permute.xlu0 %3209
        %3211 = vrot.lane.b32.xlu0 %v2865, 112
        %v3212 = vpop.permute.xlu0 %3211
        %v3213 = vsel %vm1961, %v3208, 0
        %v3215 = vsel %vm1961, %v3210, 0
        %v3217 = vsel %vm1961, %v3212, 0
        %3219 = vmatprep.subr.mxu0 0.0
        %3220 = vmatpush1.xpose.msra.mxu0 %v3215
        %3221 = vmatprep.subr.mxu0 0.0
        %3222 = vmatpush1.xpose.msra.mxu0 %v3217
        %3223 = vmatprep.subr.mxu0 0.0
        %3224 = vmatpush1.xpose.msra.mxu0 0.0
        %3225 = vmatprep.subr.mxu0 0.0
        %3226 = vmatpush1.xpose.msra.mxu0 0.0
        %3227 = vmatprep.subr.mxu0 0.0
        %3228 = vmatpush1.xpose.msra.mxu0 0.0
        %3229 = vmatprep.subr.mxu0 0.0
        %3230 = vmatpush1.xpose.msra.mxu0 0.0
        %3231 = vmatprep.subr.mxu0 0.0
        %3232 = vmatpush1.xpose.msra.mxu0 0.0
        %3233 = vmatprep.subr.mxu0 0.0
        %3234 = vmatpush1.xpose.msra.mxu0 0.0
        %3235 = vmatprep.subr.mxu0 0.0
        %3236 = vmatpush1.xpose.msra.mxu0 0.0
        %3237 = vmatprep.subr.mxu0 0.0
        %3238 = vmatpush1.xpose.msra.mxu0 0.0
        %3239 = vmatprep.subr.mxu0 0.0
        %3240 = vmatpush1.xpose.msra.mxu0 0.0
        %3241 = vmatprep.subr.mxu0 0.0
        %3242 = vmatpush1.xpose.msra.mxu0 0.0
        %3243 = vmatprep.subr.mxu0 0.0
        %3244 = vmatpush1.xpose.msra.mxu0 0.0
        %3245 = vmatprep.subr.mxu0 0.0
        %3246 = vmatpush1.xpose.msra.mxu0 0.0
        %3247 = vmatprep.subr.mxu0 0.0
        %3248 = vmatpush1.xpose.msra.mxu0 0.0
        %3249 = vmatprep.subr.mxu0 0.0
        %3250 = vmatpush1.xpose.msra.mxu0 0.0
        %3251 = vmatprep.subr.mxu0 0.0
        %3252 = vmatpush1.xpose.msra.mxu0 0.0
        %3253 = vmatprep.subr.mxu0 0.0
        %3254 = vmatpush1.xpose.msra.mxu0 0.0
        %3255 = vmatprep.subr.mxu0 0.0
        %3256 = vmatpush1.xpose.msra.mxu0 0.0
        %3257 = vmatprep.subr.mxu0 0.0
        %3258 = vmatpush1.xpose.msra.mxu0 0.0
        %3259 = vmatprep.subr.mxu0 0.0
        %3260 = vmatpush1.xpose.msra.mxu0 0.0
        %3261 = vmatprep.subr.mxu0 0.0
        %3262 = vmatpush1.xpose.msra.mxu0 0.0
        %3263 = vmatprep.subr.mxu0 0.0
        %3264 = vmatpush1.xpose.msra.mxu0 0.0
        %3265 = vmatprep.subr.mxu0 0.0
        %3266 = vmatpush1.xpose.msra.mxu0 0.0
        %3267 = vmatprep.subr.mxu0 0.0
        %3268 = vmatpush1.xpose.msra.mxu0 0.0
        %3269 = vmatprep.subr.mxu0 0.0
        %3270 = vmatpush1.xpose.msra.mxu0 0.0
        %3271 = vmatprep.subr.mxu0 0.0
        %3272 = vmatpush1.xpose.msra.mxu0 0.0
        %3273 = vmatprep.subr.mxu0 0.0
        %3274 = vmatpush1.xpose.msra.mxu0 0.0
        %3275 = vmatprep.subr.mxu0 0.0
        %3276 = vmatpush1.xpose.msra.mxu0 0.0
        %3277 = vmatprep.subr.mxu0 0.0
        %3278 = vmatpush1.xpose.msra.mxu0 0.0
        %3279 = vmatprep.subr.mxu0 0.0
        %3280 = vmatpush1.xpose.msra.mxu0 0.0
        %3281 = vmatprep.subr.mxu0 0.0
        %3282 = vmatpush1.xpose.msra.mxu0 0.0
        %3283 = vmatprep.mubr.f32.mxu0 0.0
        %3284 = vmatmul.mubr.f32.gmra.mrb[0].mxu0 %v3213
        %v3285 = vpop.f32.mrb[0].mxu0
        %v3286 = vadd.f32 0.0, %v3285
        %v3287 = vpop.f32.mrb[0].mxu0
        %3288 = vdwg.mxu0
        %v3289 = vsel %vm1870, %v3286, -1e+09
        %v3290 = vsel %vm2042, %v3289, -inf
        %3291 = vmax.xlane.f32.xlu0 %v3290
        %v3292 = vpop.xlane.xlu0 %3291
        %v3293 = vsub.f32 %v3289, %v3292
        %v3294 = vmul.f32 %v3293, 1.442695
        %v3295 = vpow.pop %v3294
        %v3296 = vsel %vm2042, %v3295, 0.0
        %3297 = vadd.xlane.f32.xlu0 %v3296
        %v3298 = vpop.xlane.xlu0 %3297
        %v3299 = vrcp.pop %v3298
        %v3300 = vmul.f32 %v3295, %v3299
        %3301 = vrot.lane.b32.xlu0 %v2866, 112
        %v3302 = vpop.permute.xlu0 %3301
        %3303 = vrot.lane.b32.xlu0 %v2867, 112
        %v3304 = vpop.permute.xlu0 %3303
        %v3308 = vsel %vm2042, %v3300, 0
        %3310 = vmatprep.subr.mxu0 0.0
        %3311 = vmatpush1.msra.mxu0 %v3302
        %3312 = vmatprep.subr.mxu0 0.0
        %3313 = vmatpush1.msra.mxu0 %v3304
        %3314 = vmatprep.subr.mxu0 0.0
        %3315 = vmatpush1.msra.mxu0 0.0
        %3316 = vmatprep.subr.mxu0 0.0
        %3317 = vmatpush1.msra.mxu0 0.0
        %3318 = vmatprep.subr.mxu0 0.0
        %3319 = vmatpush1.msra.mxu0 0.0
        %3320 = vmatprep.subr.mxu0 0.0
        %3321 = vmatpush1.msra.mxu0 0.0
        %3322 = vmatprep.subr.mxu0 0.0
        %3323 = vmatpush1.msra.mxu0 0.0
        %3324 = vmatprep.subr.mxu0 0.0
        %3325 = vmatpush1.msra.mxu0 0.0
        %3326 = vmatprep.subr.mxu0 0.0
        %3327 = vmatpush1.msra.mxu0 0.0
        %3328 = vmatprep.subr.mxu0 0.0
        %3329 = vmatpush1.msra.mxu0 0.0
        %3330 = vmatprep.subr.mxu0 0.0
        %3331 = vmatpush1.msra.mxu0 0.0
        %3332 = vmatprep.subr.mxu0 0.0
        %3333 = vmatpush1.msra.mxu0 0.0
        %3334 = vmatprep.subr.mxu0 0.0
        %3335 = vmatpush1.msra.mxu0 0.0
        %3336 = vmatprep.subr.mxu0 0.0
        %3337 = vmatpush1.msra.mxu0 0.0
        %3338 = vmatprep.subr.mxu0 0.0
        %3339 = vmatpush1.msra.mxu0 0.0
        %3340 = vmatprep.subr.mxu0 0.0
        %3341 = vmatpush1.msra.mxu0 0.0
        %3342 = vmatprep.subr.mxu0 0.0
        %3343 = vmatpush1.msra.mxu0 0.0
        %3344 = vmatprep.subr.mxu0 0.0
        %3345 = vmatpush1.msra.mxu0 0.0
        %3346 = vmatprep.subr.mxu0 0.0
        %3347 = vmatpush1.msra.mxu0 0.0
        %3348 = vmatprep.subr.mxu0 0.0
        %3349 = vmatpush1.msra.mxu0 0.0
        %3350 = vmatprep.subr.mxu0 0.0
        %3351 = vmatpush1.msra.mxu0 0.0
        %3352 = vmatprep.subr.mxu0 0.0
        %3353 = vmatpush1.msra.mxu0 0.0
        %3354 = vmatprep.subr.mxu0 0.0
        %3355 = vmatpush1.msra.mxu0 0.0
        %3356 = vmatprep.subr.mxu0 0.0
        %3357 = vmatpush1.msra.mxu0 0.0
        %3358 = vmatprep.subr.mxu0 0.0
        %3359 = vmatpush1.msra.mxu0 0.0
        %3360 = vmatprep.subr.mxu0 0.0
        %3361 = vmatpush1.msra.mxu0 0.0
        %3362 = vmatprep.subr.mxu0 0.0
        %3363 = vmatpush1.msra.mxu0 0.0
        %3364 = vmatprep.subr.mxu0 0.0
        %3365 = vmatpush1.msra.mxu0 0.0
        %3366 = vmatprep.subr.mxu0 0.0
        %3367 = vmatpush1.msra.mxu0 0.0
        %3368 = vmatprep.subr.mxu0 0.0
        %3369 = vmatpush1.msra.mxu0 0.0
        %3370 = vmatprep.subr.mxu0 0.0
        %3371 = vmatpush1.msra.mxu0 0.0
        %3372 = vmatprep.subr.mxu0 0.0
        %3373 = vmatpush1.msra.mxu0 0.0
        %3374 = vmatprep.mubr.f32.mxu0 0.0
        %3375 = vmatmul.mubr.f32.gmra.mrb[0].mxu0 %v3308
        %v3376 = vpop.f32.mrb[0].mxu0
        %v3377 = vadd.f32 0.0, %v3376
        %v3378 = vpop.f32.mrb[0].mxu0
        %3379 = vdwg.mxu0
        %3380 = vrot.lane.b32.xlu0 %v2863, 104
        %v3381 = vpop.permute.xlu0 %3380
        %3382 = vrot.lane.b32.xlu0 %v2864, 104
        %v3383 = vpop.permute.xlu0 %3382
        %3384 = vrot.lane.b32.xlu0 %v2865, 104
        %v3385 = vpop.permute.xlu0 %3384
        %v3386 = vsel %vm1961, %v3381, 0
        %v3388 = vsel %vm1961, %v3383, 0
        %v3390 = vsel %vm1961, %v3385, 0
        %3392 = vmatprep.subr.mxu0 0.0
        %3393 = vmatpush1.xpose.msra.mxu0 %v3388
        %3394 = vmatprep.subr.mxu0 0.0
        %3395 = vmatpush1.xpose.msra.mxu0 %v3390
        %3396 = vmatprep.subr.mxu0 0.0
        %3397 = vmatpush1.xpose.msra.mxu0 0.0
        %3398 = vmatprep.subr.mxu0 0.0
        %3399 = vmatpush1.xpose.msra.mxu0 0.0
        %3400 = vmatprep.subr.mxu0 0.0
        %3401 = vmatpush1.xpose.msra.mxu0 0.0
        %3402 = vmatprep.subr.mxu0 0.0
        %3403 = vmatpush1.xpose.msra.mxu0 0.0
        %3404 = vmatprep.subr.mxu0 0.0
        %3405 = vmatpush1.xpose.msra.mxu0 0.0
        %3406 = vmatprep.subr.mxu0 0.0
        %3407 = vmatpush1.xpose.msra.mxu0 0.0
        %3408 = vmatprep.subr.mxu0 0.0
        %3409 = vmatpush1.xpose.msra.mxu0 0.0
        %3410 = vmatprep.subr.mxu0 0.0
        %3411 = vmatpush1.xpose.msra.mxu0 0.0
        %3412 = vmatprep.subr.mxu0 0.0
        %3413 = vmatpush1.xpose.msra.mxu0 0.0
        %3414 = vmatprep.subr.mxu0 0.0
        %3415 = vmatpush1.xpose.msra.mxu0 0.0
        %3416 = vmatprep.subr.mxu0 0.0
        %3417 = vmatpush1.xpose.msra.mxu0 0.0
        %3418 = vmatprep.subr.mxu0 0.0
        %3419 = vmatpush1.xpose.msra.mxu0 0.0
        %3420 = vmatprep.subr.mxu0 0.0
        %3421 = vmatpush1.xpose.msra.mxu0 0.0
        %3422 = vmatprep.subr.mxu0 0.0
        %3423 = vmatpush1.xpose.msra.mxu0 0.0
        %3424 = vmatprep.subr.mxu0 0.0
        %3425 = vmatpush1.xpose.msra.mxu0 0.0
        %3426 = vmatprep.subr.mxu0 0.0
        %3427 = vmatpush1.xpose.msra.mxu0 0.0
        %3428 = vmatprep.subr.mxu0 0.0
        %3429 = vmatpush1.xpose.msra.mxu0 0.0
        %3430 = vmatprep.subr.mxu0 0.0
        %3431 = vmatpush1.xpose.msra.mxu0 0.0
        %3432 = vmatprep.subr.mxu0 0.0
        %3433 = vmatpush1.xpose.msra.mxu0 0.0
        %3434 = vmatprep.subr.mxu0 0.0
        %3435 = vmatpush1.xpose.msra.mxu0 0.0
        %3436 = vmatprep.subr.mxu0 0.0
        %3437 = vmatpush1.xpose.msra.mxu0 0.0
        %3438 = vmatprep.subr.mxu0 0.0
        %3439 = vmatpush1.xpose.msra.mxu0 0.0
        %3440 = vmatprep.subr.mxu0 0.0
        %3441 = vmatpush1.xpose.msra.mxu0 0.0
        %3442 = vmatprep.subr.mxu0 0.0
        %3443 = vmatpush1.xpose.msra.mxu0 0.0
        %3444 = vmatprep.subr.mxu0 0.0
        %3445 = vmatpush1.xpose.msra.mxu0 0.0
        %3446 = vmatprep.subr.mxu0 0.0
        %3447 = vmatpush1.xpose.msra.mxu0 0.0
        %3448 = vmatprep.subr.mxu0 0.0
        %3449 = vmatpush1.xpose.msra.mxu0 0.0
        %3450 = vmatprep.subr.mxu0 0.0
        %3451 = vmatpush1.xpose.msra.mxu0 0.0
        %3452 = vmatprep.subr.mxu0 0.0
        %3453 = vmatpush1.xpose.msra.mxu0 0.0
        %3454 = vmatprep.subr.mxu0 0.0
        %3455 = vmatpush1.xpose.msra.mxu0 0.0
        %3456 = vmatprep.mubr.f32.mxu0 0.0
        %3457 = vmatmul.mubr.f32.gmra.mrb[0].mxu0 %v3386
        %v3458 = vpop.f32.mrb[0].mxu0
        %v3459 = vadd.f32 0.0, %v3458
        %v3460 = vpop.f32.mrb[0].mxu0
        %3461 = vdwg.mxu0
        %v3462 = vsel %vm1870, %v3459, -1e+09
        %v3463 = vsel %vm2042, %v3462, -inf
        %3464 = vmax.xlane.f32.xlu0 %v3463
        %v3465 = vpop.xlane.xlu0 %3464
        %v3466 = vsub.f32 %v3462, %v3465
        %v3467 = vmul.f32 %v3466, 1.442695
        %v3468 = vpow.pop %v3467
        %v3469 = vsel %vm2042, %v3468, 0.0
        %3470 = vadd.xlane.f32.xlu0 %v3469
        %v3471 = vpop.xlane.xlu0 %3470
        %v3472 = vrcp.pop %v3471
        %v3473 = vmul.f32 %v3468, %v3472
        %3474 = vrot.lane.b32.xlu0 %v2866, 104
        %v3475 = vpop.permute.xlu0 %3474
        %3476 = vrot.lane.b32.xlu0 %v2867, 104
        %v3477 = vpop.permute.xlu0 %3476
        %v3481 = vsel %vm2042, %v3473, 0
        %3483 = vmatprep.subr.mxu0 0.0
        %3484 = vmatpush1.msra.mxu0 %v3475
        %3485 = vmatprep.subr.mxu0 0.0
        %3486 = vmatpush1.msra.mxu0 %v3477
        %3487 = vmatprep.subr.mxu0 0.0
        %3488 = vmatpush1.msra.mxu0 0.0
        %3489 = vmatprep.subr.mxu0 0.0
        %3490 = vmatpush1.msra.mxu0 0.0
        %3491 = vmatprep.subr.mxu0 0.0
        %3492 = vmatpush1.msra.mxu0 0.0
        %3493 = vmatprep.subr.mxu0 0.0
        %3494 = vmatpush1.msra.mxu0 0.0
        %3495 = vmatprep.subr.mxu0 0.0
        %3496 = vmatpush1.msra.mxu0 0.0
        %3497 = vmatprep.subr.mxu0 0.0
        %3498 = vmatpush1.msra.mxu0 0.0
        %3499 = vmatprep.subr.mxu0 0.0
        %3500 = vmatpush1.msra.mxu0 0.0
        %3501 = vmatprep.subr.mxu0 0.0
        %3502 = vmatpush1.msra.mxu0 0.0
        %3503 = vmatprep.subr.mxu0 0.0
        %3504 = vmatpush1.msra.mxu0 0.0
        %3505 = vmatprep.subr.mxu0 0.0
        %3506 = vmatpush1.msra.mxu0 0.0
        %3507 = vmatprep.subr.mxu0 0.0
        %3508 = vmatpush1.msra.mxu0 0.0
        %3509 = vmatprep.subr.mxu0 0.0
        %3510 = vmatpush1.msra.mxu0 0.0
        %3511 = vmatprep.subr.mxu0 0.0
        %3512 = vmatpush1.msra.mxu0 0.0
        %3513 = vmatprep.subr.mxu0 0.0
        %3514 = vmatpush1.msra.mxu0 0.0
        %3515 = vmatprep.subr.mxu0 0.0
        %3516 = vmatpush1.msra.mxu0 0.0
        %3517 = vmatprep.subr.mxu0 0.0
        %3518 = vmatpush1.msra.mxu0 0.0
        %3519 = vmatprep.subr.mxu0 0.0
        %3520 = vmatpush1.msra.mxu0 0.0
        %3521 = vmatprep.subr.mxu0 0.0
        %3522 = vmatpush1.msra.mxu0 0.0
        %3523 = vmatprep.subr.mxu0 0.0
        %3524 = vmatpush1.msra.mxu0 0.0
        %3525 = vmatprep.subr.mxu0 0.0
        %3526 = vmatpush1.msra.mxu0 0.0
        %3527 = vmatprep.subr.mxu0 0.0
        %3528 = vmatpush1.msra.mxu0 0.0
        %3529 = vmatprep.subr.mxu0 0.0
        %3530 = vmatpush1.msra.mxu0 0.0
        %3531 = vmatprep.subr.mxu0 0.0
        %3532 = vmatpush1.msra.mxu0 0.0
        %3533 = vmatprep.subr.mxu0 0.0
        %3534 = vmatpush1.msra.mxu0 0.0
        %3535 = vmatprep.subr.mxu0 0.0
        %3536 = vmatpush1.msra.mxu0 0.0
        %3537 = vmatprep.subr.mxu0 0.0
        %3538 = vmatpush1.msra.mxu0 0.0
        %3539 = vmatprep.subr.mxu0 0.0
        %3540 = vmatpush1.msra.mxu0 0.0
        %3541 = vmatprep.subr.mxu0 0.0
        %3542 = vmatpush1.msra.mxu0 0.0
        %3543 = vmatprep.subr.mxu0 0.0
        %3544 = vmatpush1.msra.mxu0 0.0
        %3545 = vmatprep.subr.mxu0 0.0
        %3546 = vmatpush1.msra.mxu0 0.0
        %3547 = vmatprep.mubr.f32.mxu0 0.0
        %3548 = vmatmul.mubr.f32.gmra.mrb[0].mxu0 %v3481
        %v3549 = vpop.f32.mrb[0].mxu0
        %v3550 = vadd.f32 0.0, %v3549
        %v3551 = vpop.f32.mrb[0].mxu0
        %3552 = vdwg.mxu0
        %3554 = vrot.lane.b32.xlu0 %v3204, 8
        %v3555 = vpop.permute.xlu0 %3554
        %3558 = vrot.lane.b32.xlu0 %v3377, 16
        %v3559 = vpop.permute.xlu0 %3558
        %3562 = vrot.lane.b32.xlu0 %v3550, 24
        %v3563 = vpop.permute.xlu0 %3562
        %v3565 = vsel %vm1961, %v3029, %v3555
        %v3566 = vsel %vm2042, %v3565, %v3559
        %v3567 = vsel %vm2662, %v3566, %v3563
        %v3568 = vld [vmem:[#allocation36] sm:$0xff]
        %v3569 = vld [vmem:[#allocation36 + $0x8] sm:$0xff]
        %v3570 = vld [vmem:[#allocation36 + $0x10] sm:$0xff]
        %v3571 = vld [vmem:[#allocation36 + $0x18] sm:$0xff]
        %v3572 = vld [vmem:[#allocation38] sm:$0x1]
        %v3574 = vlaneseq
        %v3575 = vshrl.u32 %v3574, 7
        %v3576 = vsub.s32 0, %v3575
        %v3577 = vrot.slane %v3572, %v3576
        %v3580 = vsel %vm1882, %v3567, 0
        %3582 = vmatprep.subr.mxu0 0.0
        %3583 = vmatpush1.msra.mxu0 %v3568
        %3584 = vmatprep.subr.mxu0 0.0
        %3585 = vmatpush1.msra.mxu0 %v3569
        %3586 = vmatprep.subr.mxu0 0.0
        %3587 = vmatpush1.msra.mxu0 %v3570
        %3588 = vmatprep.subr.mxu0 0.0
        %3589 = vmatpush1.msra.mxu0 %v3571
        %3590 = vmatprep.subr.mxu0 0.0
        %3591 = vmatpush1.msra.mxu0 0.0
        %3592 = vmatprep.subr.mxu0 0.0
        %3593 = vmatpush1.msra.mxu0 0.0
        %3594 = vmatprep.subr.mxu0 0.0
        %3595 = vmatpush1.msra.mxu0 0.0
        %3596 = vmatprep.subr.mxu0 0.0
        %3597 = vmatpush1.msra.mxu0 0.0
        %3598 = vmatprep.subr.mxu0 0.0
        %3599 = vmatpush1.msra.mxu0 0.0
        %3600 = vmatprep.subr.mxu0 0.0
        %3601 = vmatpush1.msra.mxu0 0.0
        %3602 = vmatprep.subr.mxu0 0.0
        %3603 = vmatpush1.msra.mxu0 0.0
        %3604 = vmatprep.subr.mxu0 0.0
        %3605 = vmatpush1.msra.mxu0 0.0
        %3606 = vmatprep.subr.mxu0 0.0
        %3607 = vmatpush1.msra.mxu0 0.0
        %3608 = vmatprep.subr.mxu0 0.0
        %3609 = vmatpush1.msra.mxu0 0.0
        %3610 = vmatprep.subr.mxu0 0.0
        %3611 = vmatpush1.msra.mxu0 0.0
        %3612 = vmatprep.subr.mxu0 0.0
        %3613 = vmatpush1.msra.mxu0 0.0
        %3614 = vmatprep.subr.mxu0 0.0
        %3615 = vmatpush1.msra.mxu0 0.0
        %3616 = vmatprep.subr.mxu0 0.0
        %3617 = vmatpush1.msra.mxu0 0.0
        %3618 = vmatprep.subr.mxu0 0.0
        %3619 = vmatpush1.msra.mxu0 0.0
        %3620 = vmatprep.subr.mxu0 0.0
        %3621 = vmatpush1.msra.mxu0 0.0
        %3622 = vmatprep.subr.mxu0 0.0
        %3623 = vmatpush1.msra.mxu0 0.0
        %3624 = vmatprep.subr.mxu0 0.0
        %3625 = vmatpush1.msra.mxu0 0.0
        %3626 = vmatprep.subr.mxu0 0.0
        %3627 = vmatpush1.msra.mxu0 0.0
        %3628 = vmatprep.subr.mxu0 0.0
        %3629 = vmatpush1.msra.mxu0 0.0
        %3630 = vmatprep.subr.mxu0 0.0
        %3631 = vmatpush1.msra.mxu0 0.0
        %3632 = vmatprep.subr.mxu0 0.0
        %3633 = vmatpush1.msra.mxu0 0.0
        %3634 = vmatprep.subr.mxu0 0.0
        %3635 = vmatpush1.msra.mxu0 0.0
        %3636 = vmatprep.subr.mxu0 0.0
        %3637 = vmatpush1.msra.mxu0 0.0
        %3638 = vmatprep.subr.mxu0 0.0
        %3639 = vmatpush1.msra.mxu0 0.0
        %3640 = vmatprep.subr.mxu0 0.0
        %3641 = vmatpush1.msra.mxu0 0.0
        %3642 = vmatprep.subr.mxu0 0.0
        %3643 = vmatpush1.msra.mxu0 0.0
        %3644 = vmatprep.subr.mxu0 0.0
        %3645 = vmatpush1.msra.mxu0 0.0
        %3646 = vmatprep.mubr.f32.mxu0 0.0
        %3647 = vmatmul.mubr.f32.gmra.mrb[0].mxu0 %v3580
        %v3648 = vpop.f32.mrb[0].mxu0
        %v3649 = vadd.f32 %v3577, %v3648
        %v3650 = vpop.f32.mrb[0].mxu0
        %3651 = vdwg.mxu0
        %v3652 = vadd.f32 %v2778, %v3649
        %v3653 = vsel %vm1882, %v3652, 0.0
        %3654 = vadd.xlane.f32.xlu0 %v3653
        %v3655 = vpop.xlane.xlu0 %3654
        %v3656 = vmul.f32 %v3655, %v2752
        %v3657 = vsub.f32 %v3652, %v3656
        %v3658 = vmul.f32 %v3657, %v3657
        %v3659 = vsel %vm1882, %v3658, 0.0
        %3660 = vadd.xlane.f32.xlu0 %v3659
        %v3661 = vpop.xlane.xlu0 %3660
        %v3662 = vmul.f32 %v3661, %v2752
        %v3663 = vadd.f32 %v3662, 1e-05
        %v3664 = vrsqrt.pop %v3663
        %v3665 = vmul.f32 %v3657, %v3664
        %v3666 = vld [vmem:[#allocation48] sm:$0x1]
        %v3668 = vlaneseq
        %v3669 = vshrl.u32 %v3668, 7
        %v3670 = vsub.s32 0, %v3669
        %v3671 = vrot.slane %v3666, %v3670
        %v3673 = vmul.f32 %v3665, %v3671
        %v3674 = vld [vmem:[#allocation50] sm:$0x1]
        %v3676 = vlaneseq
        %v3677 = vshrl.u32 %v3676, 7
        %v3678 = vsub.s32 0, %v3677
        %v3679 = vrot.slane %v3674, %v3678
        %v3681 = vadd.f32 %v3673, %v3679
        %v3682 = vld [vmem:[#allocation39] sm:$0xff]
        %v3683 = vld [vmem:[#allocation39 + $0x8] sm:$0xff]
        %v3684 = vld [vmem:[#allocation39 + $0x10] sm:$0xff]
        %v3685 = vld [vmem:[#allocation39 + $0x18] sm:$0xff]
        %v3686 = vld [vmem:[#allocation41] sm:$0x1]
        %v3688 = vlaneseq
        %v3689 = vshrl.u32 %v3688, 7
        %v3690 = vsub.s32 0, %v3689
        %v3691 = vrot.slane %v3686, %v3690
        %v3694 = vsel %vm1882, %v3681, 0
        %3696 = vmatprep.subr.mxu0 0.0
        %3697 = vmatpush1.msra.mxu0 %v3682
        %3698 = vmatprep.subr.mxu0 0.0
        %3699 = vmatpush1.msra.mxu0 %v3683
        %3700 = vmatprep.subr.mxu0 0.0
        %3701 = vmatpush1.msra.mxu0 %v3684
        %3702 = vmatprep.subr.mxu0 0.0
        %3703 = vmatpush1.msra.mxu0 %v3685
        %3704 = vmatprep.subr.mxu0 0.0
        %3705 = vmatpush1.msra.mxu0 0.0
        %3706 = vmatprep.subr.mxu0 0.0
        %3707 = vmatpush1.msra.mxu0 0.0
        %3708 = vmatprep.subr.mxu0 0.0
        %3709 = vmatpush1.msra.mxu0 0.0
        %3710 = vmatprep.subr.mxu0 0.0
        %3711 = vmatpush1.msra.mxu0 0.0
        %3712 = vmatprep.subr.mxu0 0.0
        %3713 = vmatpush1.msra.mxu0 0.0
        %3714 = vmatprep.subr.mxu0 0.0
        %3715 = vmatpush1.msra.mxu0 0.0
        %3716 = vmatprep.subr.mxu0 0.0
        %3717 = vmatpush1.msra.mxu0 0.0
        %3718 = vmatprep.subr.mxu0 0.0
        %3719 = vmatpush1.msra.mxu0 0.0
        %3720 = vmatprep.subr.mxu0 0.0
        %3721 = vmatpush1.msra.mxu0 0.0
        %3722 = vmatprep.subr.mxu0 0.0
        %3723 = vmatpush1.msra.mxu0 0.0
        %3724 = vmatprep.subr.mxu0 0.0
        %3725 = vmatpush1.msra.mxu0 0.0
        %3726 = vmatprep.subr.mxu0 0.0
        %3727 = vmatpush1.msra.mxu0 0.0
        %3728 = vmatprep.subr.mxu0 0.0
        %3729 = vmatpush1.msra.mxu0 0.0
        %3730 = vmatprep.subr.mxu0 0.0
        %3731 = vmatpush1.msra.mxu0 0.0
        %3732 = vmatprep.subr.mxu0 0.0
        %3733 = vmatpush1.msra.mxu0 0.0
        %3734 = vmatprep.subr.mxu0 0.0
        %3735 = vmatpush1.msra.mxu0 0.0
        %3736 = vmatprep.subr.mxu0 0.0
        %3737 = vmatpush1.msra.mxu0 0.0
        %3738 = vmatprep.subr.mxu0 0.0
        %3739 = vmatpush1.msra.mxu0 0.0
        %3740 = vmatprep.subr.mxu0 0.0
        %3741 = vmatpush1.msra.mxu0 0.0
        %3742 = vmatprep.subr.mxu0 0.0
        %3743 = vmatpush1.msra.mxu0 0.0
        %3744 = vmatprep.subr.mxu0 0.0
        %3745 = vmatpush1.msra.mxu0 0.0
        %3746 = vmatprep.subr.mxu0 0.0
        %3747 = vmatpush1.msra.mxu0 0.0
        %3748 = vmatprep.subr.mxu0 0.0
        %3749 = vmatpush1.msra.mxu0 0.0
        %3750 = vmatprep.subr.mxu0 0.0
        %3751 = vmatpush1.msra.mxu0 0.0
        %3752 = vmatprep.subr.mxu0 0.0
        %3753 = vmatpush1.msra.mxu0 0.0
        %3754 = vmatprep.subr.mxu0 0.0
        %3755 = vmatpush1.msra.mxu0 0.0
        %3756 = vmatprep.subr.mxu0 0.0
        %3757 = vmatpush1.msra.mxu0 0.0
        %3758 = vmatprep.subr.mxu0 0.0
        %3759 = vmatpush1.msra.mxu0 0.0
        %3760 = vmatprep.mubr.f32.mxu0 0.0
        %3761 = vmatmul.mubr.f32.gmra.mrb[0].mxu0 %v3694
        %v3762 = vpop.f32.mrb[0].mxu0
        %v3763 = vadd.f32 %v3691, %v3762
        %v3764 = vpop.f32.mrb[0].mxu0
        %3765 = vdwg.mxu0
        %v3766 = vmax.f32 %v3763, 0.0
        %v3767 = vld [vmem:[#allocation42] sm:$0xff]
        %v3768 = vld [vmem:[#allocation42 + $0x8] sm:$0xff]
        %v3769 = vld [vmem:[#allocation42 + $0x10] sm:$0xff]
        %v3770 = vld [vmem:[#allocation42 + $0x18] sm:$0xff]
        %v3771 = vld [vmem:[#allocation42 + $0x20] sm:$0xff]
        %v3772 = vld [vmem:[#allocation42 + $0x28] sm:$0xff]
        %v3773 = vld [vmem:[#allocation42 + $0x30] sm:$0xff]
        %v3774 = vld [vmem:[#allocation42 + $0x38] sm:$0xff]
        %v3775 = vld [vmem:[#allocation44] sm:$0x1]
        %v3777 = vlaneseq
        %v3778 = vshrl.u32 %v3777, 7
        %v3779 = vsub.s32 0, %v3778
        %v3780 = vrot.slane %v3775, %v3779
        %vm3782 = vcmask 523264
        %v3784 = vsel %vm3782, %v3766, 0
        %3786 = vmatprep.subr.mxu0 0.0
        %3787 = vmatpush1.msra.mxu0 %v3767
        %3788 = vmatprep.subr.mxu0 0.0
        %3789 = vmatpush1.msra.mxu0 %v3768
        %3790 = vmatprep.subr.mxu0 0.0
        %3791 = vmatpush1.msra.mxu0 %v3769
        %3792 = vmatprep.subr.mxu0 0.0
        %3793 = vmatpush1.msra.mxu0 %v3770
        %3794 = vmatprep.subr.mxu0 0.0
        %3795 = vmatpush1.msra.mxu0 %v3771
        %3796 = vmatprep.subr.mxu0 0.0
        %3797 = vmatpush1.msra.mxu0 %v3772
        %3798 = vmatprep.subr.mxu0 0.0
        %3799 = vmatpush1.msra.mxu0 %v3773
        %3800 = vmatprep.subr.mxu0 0.0
        %3801 = vmatpush1.msra.mxu0 %v3774
        %3802 = vmatprep.subr.mxu0 0.0
        %3803 = vmatpush1.msra.mxu0 0.0
        %3804 = vmatprep.subr.mxu0 0.0
        %3805 = vmatpush1.msra.mxu0 0.0
        %3806 = vmatprep.subr.mxu0 0.0
        %3807 = vmatpush1.msra.mxu0 0.0
        %3808 = vmatprep.subr.mxu0 0.0
        %3809 = vmatpush1.msra.mxu0 0.0
        %3810 = vmatprep.subr.mxu0 0.0
        %3811 = vmatpush1.msra.mxu0 0.0
        %3812 = vmatprep.subr.mxu0 0.0
        %3813 = vmatpush1.msra.mxu0 0.0
        %3814 = vmatprep.subr.mxu0 0.0
        %3815 = vmatpush1.msra.mxu0 0.0
        %3816 = vmatprep.subr.mxu0 0.0
        %3817 = vmatpush1.msra.mxu0 0.0
        %3818 = vmatprep.subr.mxu0 0.0
        %3819 = vmatpush1.msra.mxu0 0.0
        %3820 = vmatprep.subr.mxu0 0.0
        %3821 = vmatpush1.msra.mxu0 0.0
        %3822 = vmatprep.subr.mxu0 0.0
        %3823 = vmatpush1.msra.mxu0 0.0
        %3824 = vmatprep.subr.mxu0 0.0
        %3825 = vmatpush1.msra.mxu0 0.0
        %3826 = vmatprep.subr.mxu0 0.0
        %3827 = vmatpush1.msra.mxu0 0.0
        %3828 = vmatprep.subr.mxu0 0.0
        %3829 = vmatpush1.msra.mxu0 0.0
        %3830 = vmatprep.subr.mxu0 0.0
        %3831 = vmatpush1.msra.mxu0 0.0
        %3832 = vmatprep.subr.mxu0 0.0
        %3833 = vmatpush1.msra.mxu0 0.0
        %3834 = vmatprep.subr.mxu0 0.0
        %3835 = vmatpush1.msra.mxu0 0.0
        %3836 = vmatprep.subr.mxu0 0.0
        %3837 = vmatpush1.msra.mxu0 0.0
        %3838 = vmatprep.subr.mxu0 0.0
        %3839 = vmatpush1.msra.mxu0 0.0
        %3840 = vmatprep.subr.mxu0 0.0
        %3841 = vmatpush1.msra.mxu0 0.0
        %3842 = vmatprep.subr.mxu0 0.0
        %3843 = vmatpush1.msra.mxu0 0.0
        %3844 = vmatprep.subr.mxu0 0.0
        %3845 = vmatpush1.msra.mxu0 0.0
        %3846 = vmatprep.subr.mxu0 0.0
        %3847 = vmatpush1.msra.mxu0 0.0
        %3848 = vmatprep.subr.mxu0 0.0
        %3849 = vmatpush1.msra.mxu0 0.0
        %3850 = vmatprep.mubr.f32.mxu0 0.0
        %3851 = vmatmul.mubr.f32.gmra.mrb[0].mxu0 %v3784
        %v3852 = vpop.f32.mrb[0].mxu0
        %v3853 = vadd.f32 %v3780, %v3852
        %v3854 = vpop.f32.mrb[0].mxu0
        %3855 = vdwg.mxu0
        %v3856 = vadd.f32 %v3681, %v3853
        %v3857 = vsel %vm1882, %v3856, 0.0
        %3858 = vadd.xlane.f32.xlu0 %v3857
        %v3859 = vpop.xlane.xlu0 %3858
        %v3860 = vmul.f32 %v3859, %v2752
        %v3861 = vsub.f32 %v3856, %v3860
        %v3862 = vmul.f32 %v3861, %v3861
        %v3863 = vsel %vm1882, %v3862, 0.0
        %3864 = vadd.xlane.f32.xlu0 %v3863
        %v3865 = vpop.xlane.xlu0 %3864
        %v3866 = vmul.f32 %v3865, %v2752
        %v3867 = vadd.f32 %v3866, 1e-05
        %v3868 = vrsqrt.pop %v3867
        %v3869 = vmul.f32 %v3861, %v3868
        %v3870 = vld [vmem:[#allocation51] sm:$0x1]
        %v3872 = vlaneseq
        %v3873 = vshrl.u32 %v3872, 7
        %v3874 = vsub.s32 0, %v3873
        %v3875 = vrot.slane %v3870, %v3874
        %v3877 = vmul.f32 %v3869, %v3875
        %v3878 = vld [vmem:[#allocation53] sm:$0x1]
        %v3880 = vlaneseq
        %v3881 = vshrl.u32 %v3880, 7
        %v3882 = vsub.s32 0, %v3881
        %v3883 = vrot.slane %v3878, %v3882
        %v3885 = vadd.f32 %v3877, %v3883
        %3886 = vst.msk [vmem:[%s1492] sm:$0xff] %vm1882, %v3885
        %s3887 = sand.u32 %s803, 1
        %s3888 = scalar_lea.sflag [#allocation8], %s3887
        %s3889 = sand.u32 %s803, 1
        %s3890 = smul.addr %s3889, 8
        %s3891 = scalar_lea.vmem [#allocation54], %s3890
        // Predicated region
        $region273: #{tpu_custom_call.1} parent=143 // pred_check
          %p3892 = pneg %p813
        $region274: #{tpu_custom_call.1} parent=143 // pred_check_branch
          %3894 = sbr.rel (%p3892) target = $region276
        $region275: #{tpu_custom_call.1} parent=143 // pred_region
          %s3896 = ssub.s32 128, 128
          %3897 = vsyncadd %s3888, %s3896
          %s3898 = smul.addr %s103, 2
          %s3899 = sadd.s32 %s104, %s3898
          %s3900 = smul.addr %s3899, 128
          %s3901 = scalar_lea.hbm %s63, %s3900
          %s3903 = sshll.u32 %s3891, 4
          %s3904 = int_to_ptr.vmem [resolvable:$true] %s3903
          %3906 = dma.vmem_to_hbm [thread:$0]  %s3904, 128, %s3901, %s3888
        $region276: #{tpu_custom_call.1} parent=143 // pred_fallthru
          _
      $region144: #{tpu_custom_call.1} parent=5 // pred_fallthru
        _
      %p3907 = scmp.le.s32.totalorder 2, %s94
      // Predicated region
      $region277: #{tpu_custom_call.1} parent=5 // pred_check
        %p3908 = pneg %p3907
      $region278: #{tpu_custom_call.1} parent=5 // pred_check_branch
        %3910 = sbr.rel (%p3908) target = $region280
      $region279: #{tpu_custom_call.1} parent=5 // pred_region
        %s3911 = ssub.s32 %s94, 2
        // Predicated region
        $region281: #{tpu_custom_call.1} parent=279 // pred_check
          %p3912 = pneg %p819
        $region282: #{tpu_custom_call.1} parent=279 // pred_check_branch
          %3914 = sbr.rel (%p3912) target = $region284
        $region283: #{tpu_custom_call.1} parent=279 // pred_region
          %s3915 = sand.u32 %s804, 1
          %s3916 = scalar_lea.sflag [#allocation8], %s3915
          %s3917 = sand.u32 %s804, 1
          %s3918 = smul.addr %s3917, 8
          %s3919 = scalar_lea.vmem [#allocation54], %s3918
          %3920 = dma.done %s3916, 128
        $region284: #{tpu_custom_call.1} parent=279 // pred_fallthru
          _
      $region280: #{tpu_custom_call.1} parent=5 // pred_fallthru
        _
    $region6: #{tpu_custom_call.1} parent=1 // loop_footer
      %s98 = sadd.s32 1, %s94
    $region7: #{tpu_custom_call.1} parent=1 // loop_footer_branch
      %93 = sbr.rel target = $region3
    $region8: #{tpu_custom_call.1} parent=1 // loop_exit
      _
    %3921 = vsyncpa [#allocation7], 1
    %s3922 = scalar_lea.sflag [#allocation7], 1
    %3923 = vsyncpa %s3922, 1
    %3924 = vsyncpa [#allocation10], 1
    %s3925 = scalar_lea.sflag [#allocation10], 1
    %3926 = vsyncpa %s3925, 1
    %3927 = vsyncpa [#allocation13], 1
    %s3928 = scalar_lea.sflag [#allocation13], 1
    %3929 = vsyncpa %s3928, 1
    %3930 = vsyncpa [#allocation16], 1
    %3931 = vsyncpa [#allocation19], 1
    %3932 = vsyncpa [#allocation22], 1
    %3933 = vsyncpa [#allocation25], 1
    %3934 = vsyncpa [#allocation28], 1
    %3935 = vsyncpa [#allocation31], 1
    %3936 = vsyncpa [#allocation34], 1
    %3937 = vsyncpa [#allocation37], 1
    %3938 = vsyncpa [#allocation40], 1
    %3939 = vsyncpa [#allocation43], 1
    %3940 = vsyncpa [#allocation46], 1
    %3941 = vsyncpa [#allocation49], 1
    %3942 = vsyncpa [#allocation52], 1
    %3943 = vsyncpa [#allocation8], 1
    %s3944 = scalar_lea.sflag [#allocation8], 1
    %3945 = vsyncpa %s3944, 1

// kernel: tpu_custom_call.1
$region0: #{tpu_custom_call.1}
  #allocation0 [shape = 'u32[]', space=smem, size = 0x4, offset = 0x4, fixed_abs, tag = 'smem constant byte address 0x4 - core index']
  #allocation1 [shape = 'u32[144,128]{1,0:T(1,128)}', space=vmem, size = 0x12000, scoped, tag = 'internal scratch']
  #allocation2 [shape = 'f32[16,32]{1,0:T(8,128)}', space=vmem, size = 0x2000, scoped, tag = 'scratch operand']
  #allocation3 [shape = 'f32[16,32]{1,0:T(8,128)}', space=vmem, size = 0x2000, scoped, tag = 'scratch operand']
  #allocation4 [shape = 'f32[16,32]{1,0:T(8,128)}', space=vmem, size = 0x2000, scoped, tag = 'scratch operand']
  #allocation5 [shape = 'f32[16,32]{1,0:T(8,128)}', space=vmem, size = 0x2000, scoped, tag = 'scratch operand']
  %s0 = inlined_call_operand.smem [shape: u32[32], index: -1, kind: input, shape index: {}]
  %s1 = sld [smem:[%s0]]
  %s2 = scalar_lea.smem %s0, 1
  %s3 = sld [smem:[%s2]]
  %s4 = scalar_lea.smem %s0, 2
  %s5 = sld [smem:[%s4]]
  %s6 = scalar_lea.smem %s0, 3
  %s7 = sld [smem:[%s6]]
  %s8 = scalar_lea.smem %s0, 4
  %s9 = sld [smem:[%s8]]
  %s10 = scalar_lea.smem %s0, 5
  %s11 = sld [smem:[%s10]]
  %s12 = scalar_lea.smem %s0, 6
  %s13 = sld [smem:[%s12]]
  %s14 = scalar_lea.smem %s0, 7
  %s15 = sld [smem:[%s14]]
  %s16 = scalar_lea.smem %s0, 8
  %s17 = sld [smem:[%s16]]
  %s18 = scalar_lea.smem %s0, 9
  %s19 = sld [smem:[%s18]]
  %s20 = scalar_lea.smem %s0, 10
  %s21 = sld [smem:[%s20]]
  %s22 = scalar_lea.smem %s0, 11
  %s23 = sld [smem:[%s22]]
  %s24 = scalar_lea.smem %s0, 12
  %s25 = sld [smem:[%s24]]
  %s26 = scalar_lea.smem %s0, 13
  %s27 = sld [smem:[%s26]]
  %s28 = scalar_lea.smem %s0, 14
  %s29 = sld [smem:[%s28]]
  %s30 = scalar_lea.smem %s0, 15
  %s31 = sld [smem:[%s30]]
  %s32 = scalar_lea.smem %s0, 16
  %s33 = sld [smem:[%s32]]
  %s34 = scalar_lea.smem %s0, 17
  %s35 = sld [smem:[%s34]]
  %s36 = scalar_lea.smem %s0, 18
  %s37 = sld [smem:[%s36]]
  %s38 = scalar_lea.smem %s0, 19
  %s39 = sld [smem:[%s38]]
  %s40 = scalar_lea.smem %s0, 20
  %s41 = sld [smem:[%s40]]
  %s42 = scalar_lea.smem %s0, 21
  %s43 = sld [smem:[%s42]]
  %s44 = scalar_lea.smem %s0, 22
  %s45 = sld [smem:[%s44]]
  %s46 = scalar_lea.smem %s0, 23
  %s47 = sld [smem:[%s46]]
  %s48 = scalar_lea.smem %s0, 24
  %s49 = sld [smem:[%s48]]
  %s50 = scalar_lea.smem %s0, 25
  %s51 = sld [smem:[%s50]]
  %s52 = scalar_lea.smem %s0, 26
  %s53 = sld [smem:[%s52]]
  %s54 = scalar_lea.smem %s0, 27
  %s55 = sld [smem:[%s54]]
  %s56 = scalar_lea.smem %s0, 28
  %s57 = sld [smem:[%s56]]
  %s58 = scalar_lea.smem %s0, 29
  %s59 = sld [smem:[%s58]]
  %s60 = scalar_lea.smem %s0, 30
  %s61 = sld [smem:[%s60]]
  %s62 = scalar_lea.smem %s0, 31
  %s63 = sld [smem:[%s62]]
  %s64 = sld [smem:[#allocation0]]
  $region285: #{tpu_custom_call.1} parent=0
    _
  %s66 = ssub.s32 1, %s64
  %s67 = scalar_select 0, %s66, %s64
  $region1: #{tpu_custom_call.1} parent=0
    #allocation6 [shape = 'u8[8192]{0}', space=vmem, size = 0x2000, scoped, tag = 'input window, operand 0']
    #allocation7 [shape = 's32[2]{0}', space=sflag, size = 0x8, scoped, tag = 'scoped memory for tpu_custom_call.1']
    #allocation8 [shape = 's32[2]{0}', space=sflag, size = 0x8, scoped, tag = 'scoped memory for tpu_custom_call.1']
    #allocation9 [shape = 'u8[16384]{0}', space=vmem, size = 0x4000, scoped, tag = 'input window, operand 1']
    #allocation10 [shape = 's32[2]{0}', space=sflag, size = 0x8, scoped, tag = 'scoped memory for tpu_custom_call.1']
    #allocation11 [shape = 'u8[16384]{0}', space=vmem, size = 0x4000, scoped, tag = 'input window, operand 2']
    #allocation12 [shape = 'u8[8192]{0}', space=vmem, size = 0x2000, scoped, tag = 'input window, operand 3']
    #allocation13 [shape = 's32[2]{0}', space=sflag, size = 0x8, scoped, tag = 'scoped memory for tpu_custom_call.1']
    #allocation14 [shape = 'u8[8192]{0}', space=vmem, size = 0x2000, scoped, tag = 'input window, operand 4']
    #allocation15 [shape = 'u8[16384]{0}', space=vmem, size = 0x4000, scoped, tag = 'input window, operand 5, single buffered']
    #allocation16 [shape = 's32[1]{0}', space=sflag, size = 0x4, scoped, tag = 'scoped memory for tpu_custom_call.1']
    #allocation17 [shape = 'u8[512]{0}', space=vmem, size = 0x400, scoped, tag = 'input window, operand 6, single buffered']
    #allocation18 [shape = 'u8[16384]{0}', space=vmem, size = 0x4000, scoped, tag = 'input window, operand 7, single buffered']
    #allocation19 [shape = 's32[1]{0}', space=sflag, size = 0x4, scoped, tag = 'scoped memory for tpu_custom_call.1']
    #allocation20 [shape = 'u8[512]{0}', space=vmem, size = 0x400, scoped, tag = 'input window, operand 8, single buffered']
    #allocation21 [shape = 'u8[16384]{0}', space=vmem, size = 0x4000, scoped, tag = 'input window, operand 9, single buffered']
    #allocation22 [shape = 's32[1]{0}', space=sflag, size = 0x4, scoped, tag = 'scoped memory for tpu_custom_call.1']
    #allocation23 [shape = 'u8[512]{0}', space=vmem, size = 0x400, scoped, tag = 'input window, operand 10, single buffered']
    #allocation24 [shape = 'u8[16384]{0}', space=vmem, size = 0x4000, scoped, tag = 'input window, operand 11, single buffered']
    #allocation25 [shape = 's32[1]{0}', space=sflag, size = 0x4, scoped, tag = 'scoped memory for tpu_custom_call.1']
    #allocation26 [shape = 'u8[512]{0}', space=vmem, size = 0x400, scoped, tag = 'input window, operand 12, single buffered']
    #allocation27 [shape = 'u8[16384]{0}', space=vmem, size = 0x4000, scoped, tag = 'input window, operand 13, single buffered']
    #allocation28 [shape = 's32[1]{0}', space=sflag, size = 0x4, scoped, tag = 'scoped memory for tpu_custom_call.1']
    #allocation29 [shape = 'u8[512]{0}', space=vmem, size = 0x400, scoped, tag = 'input window, operand 14, single buffered']
    #allocation30 [shape = 'u8[16384]{0}', space=vmem, size = 0x4000, scoped, tag = 'input window, operand 15, single buffered']
    #allocation31 [shape = 's32[1]{0}', space=sflag, size = 0x4, scoped, tag = 'scoped memory for tpu_custom_call.1']
    #allocation32 [shape = 'u8[512]{0}', space=vmem, size = 0x400, scoped, tag = 'input window, operand 16, single buffered']
    #allocation33 [shape = 'u8[16384]{0}', space=vmem, size = 0x4000, scoped, tag = 'input window, operand 17, single buffered']
    #allocation34 [shape = 's32[1]{0}', space=sflag, size = 0x4, scoped, tag = 'scoped memory for tpu_custom_call.1']
    #allocation35 [shape = 'u8[512]{0}', space=vmem, size = 0x400, scoped, tag = 'input window, operand 18, single buffered']
    #allocation36 [shape = 'u8[16384]{0}', space=vmem, size = 0x4000, scoped, tag = 'input window, operand 19, single buffered']
    #allocation37 [shape = 's32[1]{0}', space=sflag, size = 0x4, scoped, tag = 'scoped memory for tpu_custom_call.1']
    #allocation38 [shape = 'u8[512]{0}', space=vmem, size = 0x400, scoped, tag = 'input window, operand 20, single buffered']
    #allocation39 [shape = 'u8[16384]{0}', space=vmem, size = 0x4000, scoped, tag = 'input window, operand 21, single buffered']
    #allocation40 [shape = 's32[1]{0}', space=sflag, size = 0x4, scoped, tag = 'scoped memory for tpu_custom_call.1']
    #allocation41 [shape = 'u8[512]{0}', space=vmem, size = 0x400, scoped, tag = 'input window, operand 22, single buffered']
    #allocation42 [shape = 'u8[32768]{0}', space=vmem, size = 0x8000, scoped, tag = 'input window, operand 23, single buffered']
    #allocation43 [shape = 's32[1]{0}', space=sflag, size = 0x4, scoped, tag = 'scoped memory for tpu_custom_call.1']
    #allocation44 [shape = 'u8[512]{0}', space=vmem, size = 0x400, scoped, tag = 'input window, operand 24, single buffered']
    #allocation45 [shape = 'u8[512]{0}', space=vmem, size = 0x400, scoped, tag = 'input window, operand 25, single buffered']
    #allocation46 [shape = 's32[1]{0}', space=sflag, size = 0x4, scoped, tag = 'scoped memory for tpu_custom_call.1']
    #allocation47 [shape = 'u8[512]{0}', space=vmem, size = 0x400, scoped, tag = 'input window, operand 26, single buffered']
    #allocation48 [shape = 'u8[512]{0}', space=vmem, size = 0x400, scoped, tag = 'input window, operand 27, single buffered']
    #allocation49 [shape = 's32[1]{0}', space=sflag, size = 0x4, scoped, tag = 'scoped memory for tpu_custom_call.1']
    #allocation50 [shape = 'u8[512]{0}', space=vmem, size = 0x400, scoped, tag = 'input window, operand 28, single buffered']
    #allocation51 [shape = 'u8[512]{0}', space=vmem, size = 0x400, scoped, tag = 'input window, operand 29, single buffered']
    #allocation52 [shape = 's32[1]{0}', space=sflag, size = 0x4, scoped, tag = 'scoped memory for tpu_custom_call.1']
    #allocation53 [shape = 'u8[512]{0}', space=vmem, size = 0x400, scoped, tag = 'input window, operand 30, single buffered']
    #allocation54 [shape = 'u8[8192]{0}', space=vmem, size = 0x2000, scoped, tag = 'output window, operand 0']
    %68 = vsyncpa [#allocation7], 0
    %s69 = scalar_lea.sflag [#allocation7], 1
    %70 = vsyncpa %s69, 0
    %71 = vsyncpa [#allocation10], 0
    %s72 = scalar_lea.sflag [#allocation10], 1
    %73 = vsyncpa %s72, 0
    %74 = vsyncpa [#allocation13], 0
    %s75 = scalar_lea.sflag [#allocation13], 1
    %76 = vsyncpa %s75, 0
    %77 = vsyncpa [#allocation16], 0
    %78 = vsyncpa [#allocation19], 0
    %79 = vsyncpa [#allocation22], 0
    %80 = vsyncpa [#allocation25], 0
    %81 = vsyncpa [#allocation28], 0
    %82 = vsyncpa [#allocation31], 0
    %83 = vsyncpa [#allocation34], 0
    %84 = vsyncpa [#allocation37], 0
    %85 = vsyncpa [#allocation40], 0
    %86 = vsyncpa [#allocation43], 0
    %87 = vsyncpa [#allocation46], 0
    %88 = vsyncpa [#allocation49], 0
    %89 = vsyncpa [#allocation52], 0
    %90 = vsyncpa [#allocation8], 0
    %s91 = scalar_lea.sflag [#allocation8], 1
    %92 = vsyncpa %s91, 0
    loop: start=0, step=1, limit=6
    $region2: #{tpu_custom_call.1} parent=1 // loop_pre_header
      _
    $region3: #{tpu_custom_call.1} parent=1 // loop_header
      %s94 = sphi 0, %s98
      %p95 = scmp.ge.s32.totalorder %s94, 6
      %s101 = sphi 0, %s113
      %s102 = sphi 0, %s109
      %s103 = sphi 0, %s101
      %s104 = sphi 0, %s102
      %s105 = sphi 0, %s103
      %s106 = sphi 0, %s104
      %s118 = sphi 0, %s120
      %s121 = sphi 0, %s118
      %s122 = sphi 0, %s121
      %s138 = sphi 0, %s122
      %s144 = sphi 0, %s146
      %s147 = sphi 0, %s144
      %s148 = sphi 0, %s147
      %s164 = sphi 0, %s148
      %s170 = sphi 0, %s172
      %s173 = sphi 0, %s170
      %s174 = sphi 0, %s173
      %s190 = sphi 0, %s174
      %s198 = sphi 0, %s200
      %s201 = sphi 0, %s198
      %s202 = sphi 0, %s201
      %s218 = sphi 0, %s202
      %s226 = sphi 0, %s228
      %s229 = sphi 0, %s226
      %s230 = sphi 0, %s229
      %s246 = sphi 0, %s230
      %s250 = sphi 0, %s250
      %s252 = sphi 0, %s250
      %s253 = sphi 0, %s252
      %s267 = sphi 0, %s253
      %s271 = sphi 0, %s271
      %s273 = sphi 0, %s271
      %s274 = sphi 0, %s273
      %s288 = sphi 0, %s274
      %s292 = sphi 0, %s292
      %s294 = sphi 0, %s292
      %s295 = sphi 0, %s294
      %s309 = sphi 0, %s295
      %s313 = sphi 0, %s313
      %s315 = sphi 0, %s313
      %s316 = sphi 0, %s315
      %s330 = sphi 0, %s316
      %s334 = sphi 0, %s334
      %s336 = sphi 0, %s334
      %s337 = sphi 0, %s336
      %s351 = sphi 0, %s337
      %s355 = sphi 0, %s355
      %s357 = sphi 0, %s355
      %s358 = sphi 0, %s357
      %s372 = sphi 0, %s358
      %s376 = sphi 0, %s376
      %s378 = sphi 0, %s376
      %s379 = sphi 0, %s378
      %s393 = sphi 0, %s379
      %s397 = sphi 0, %s397
      %s399 = sphi 0, %s397
      %s400 = sphi 0, %s399
      %s414 = sphi 0, %s400
      %s418 = sphi 0, %s418
      %s420 = sphi 0, %s418
      %s421 = sphi 0, %s420
      %s435 = sphi 0, %s421
      %s439 = sphi 0, %s439
      %s441 = sphi 0, %s439
      %s442 = sphi 0, %s441
      %s456 = sphi 0, %s442
      %s460 = sphi 0, %s460
      %s462 = sphi 0, %s460
      %s463 = sphi 0, %s462
      %s477 = sphi 0, %s463
      %s481 = sphi 0, %s481
      %s483 = sphi 0, %s481
      %s484 = sphi 0, %s483
      %s498 = sphi 0, %s484
      %s502 = sphi 0, %s502
      %s504 = sphi 0, %s502
      %s505 = sphi 0, %s504
      %s519 = sphi 0, %s505
      %s523 = sphi 0, %s523
      %s525 = sphi 0, %s523
      %s526 = sphi 0, %s525
      %s540 = sphi 0, %s526
      %s544 = sphi 0, %s544
      %s546 = sphi 0, %s544
      %s547 = sphi 0, %s546
      %s561 = sphi 0, %s547
      %s565 = sphi 0, %s565
      %s567 = sphi 0, %s565
      %s568 = sphi 0, %s567
      %s582 = sphi 0, %s568
      %s586 = sphi 0, %s586
      %s588 = sphi 0, %s586
      %s589 = sphi 0, %s588
      %s603 = sphi 0, %s589
      %s607 = sphi 0, %s607
      %s609 = sphi 0, %s607
      %s610 = sphi 0, %s609
      %s624 = sphi 0, %s610
      %s628 = sphi 0, %s628
      %s630 = sphi 0, %s628
      %s631 = sphi 0, %s630
      %s645 = sphi 0, %s631
      %s649 = sphi 0, %s649
      %s651 = sphi 0, %s649
      %s652 = sphi 0, %s651
      %s666 = sphi 0, %s652
      %s670 = sphi 0, %s670
      %s672 = sphi 0, %s670
      %s673 = sphi 0, %s672
      %s687 = sphi 0, %s673
      %s691 = sphi 0, %s691
      %s693 = sphi 0, %s691
      %s694 = sphi 0, %s693
      %s708 = sphi 0, %s694
      %s712 = sphi 0, %s712
      %s714 = sphi 0, %s712
      %s715 = sphi 0, %s714
      %s729 = sphi 0, %s715
      %s733 = sphi 0, %s733
      %s735 = sphi 0, %s733
      %s736 = sphi 0, %s735
      %s750 = sphi 0, %s736
      %s754 = sphi 0, %s754
      %s756 = sphi 0, %s754
      %s757 = sphi 0, %s756
      %s771 = sphi 0, %s757
      %s775 = sphi 0, %s775
      %s777 = sphi 0, %s775
      %s778 = sphi 0, %s777
      %s792 = sphi 0, %s778
      %s800 = sphi 0, %s802
      %s803 = sphi 0, %s800
      %s804 = sphi 0, %s803
      %s820 = sphi 0, %s804
    $region4: #{tpu_custom_call.1} parent=1 // loop_header_branch
      %97 = sbr.rel (%p95) target = $region8
    $region5: #{tpu_custom_call.1} parent=1 // loop_body
      %s99 = ssub.s32 %s94, 1
      %s100 = ssub.s32 %s94, 2
      %s107 = sadd.s32 1, %s102
      %p108 = scmp.ge.s32.totalorder %s107, 2
      %s109 = scalar_select %p108, 0, %s107
      %s110 = sadd.s32 1, %s101
      %s111 = scalar_select %p108, %s110, %s101
      %p112 = scmp.ge.s32.totalorder %s111, 2
      %s113 = scalar_select %p112, 0, %s111
      %s114 = ssub.s32 %s101, %s113
      %s115 = ssub.s32 %s102, %s109
      %s116 = sor.u32 %s114, %s115
      %p117 = scmp.eq.s32.totalorder %s116, 0
      %s119 = sadd.s32 %s118, 1
      %s120 = scalar_select %p117, %s118, %s119
      %p123 = pneg %p117
      %p124 = scmp.eq.s32.totalorder %s94, 3
      %p125 = por %p123, %p124
      %p126 = scmp.ne.s32.totalorder %s118, %s121
      %p127 = scmp.eq.s32.totalorder %s94, 0
      %p128 = por %p126, %p127
      %p129 = scmp.ne.s32.totalorder %s118, %s121
      %p130 = scmp.eq.s32.totalorder %s99, 3
      %p131 = por %p129, %p130
      %p132 = scmp.ne.s32.totalorder %s121, %s122
      %p133 = scmp.eq.s32.totalorder %s99, 0
      %p134 = por %p132, %p133
      %p135 = scmp.ne.s32.totalorder %s121, %s122
      %p136 = scmp.eq.s32.totalorder %s100, 3
      %p137 = por %p135, %p136
      %p139 = scmp.ne.s32.totalorder %s122, %s138
      %p140 = scmp.eq.s32.totalorder %s100, 0
      %p141 = por %p139, %p140
      %s142 = ssub.s32 %s101, %s113
      %p143 = scmp.eq.s32.totalorder %s142, 0
      %s145 = sadd.s32 %s144, 1
      %s146 = scalar_select %p143, %s144, %s145
      %p149 = pneg %p143
      %p150 = scmp.eq.s32.totalorder %s94, 3
      %p151 = por %p149, %p150
      %p152 = scmp.ne.s32.totalorder %s144, %s147
      %p153 = scmp.eq.s32.totalorder %s94, 0
      %p154 = por %p152, %p153
      %p155 = scmp.ne.s32.totalorder %s144, %s147
      %p156 = scmp.eq.s32.totalorder %s99, 3
      %p157 = por %p155, %p156
      %p158 = scmp.ne.s32.totalorder %s147, %s148
      %p159 = scmp.eq.s32.totalorder %s99, 0
      %p160 = por %p158, %p159
      %p161 = scmp.ne.s32.totalorder %s147, %s148
      %p162 = scmp.eq.s32.totalorder %s100, 3
      %p163 = por %p161, %p162
      %p165 = scmp.ne.s32.totalorder %s148, %s164
      %p166 = scmp.eq.s32.totalorder %s100, 0
      %p167 = por %p165, %p166
      %s168 = ssub.s32 %s101, %s113
      %p169 = scmp.eq.s32.totalorder %s168, 0
      %s171 = sadd.s32 %s170, 1
      %s172 = scalar_select %p169, %s170, %s171
      %p175 = pneg %p169
      %p176 = scmp.eq.s32.totalorder %s94, 3
      %p177 = por %p175, %p176
      %p178 = scmp.ne.s32.totalorder %s170, %s173
      %p179 = scmp.eq.s32.totalorder %s94, 0
      %p180 = por %p178, %p179
      %p181 = scmp.ne.s32.totalorder %s170, %s173
      %p182 = scmp.eq.s32.totalorder %s99, 3
      %p183 = por %p181, %p182
      %p184 = scmp.ne.s32.totalorder %s173, %s174
      %p185 = scmp.eq.s32.totalorder %s99, 0
      %p186 = por %p184, %p185
      %p187 = scmp.ne.s32.totalorder %s173, %s174
      %p188 = scmp.eq.s32.totalorder %s100, 3
      %p189 = por %p187, %p188
      %p191 = scmp.ne.s32.totalorder %s174, %s190
      %p192 = scmp.eq.s32.totalorder %s100, 0
      %p193 = por %p191, %p192
      %s194 = ssub.s32 %s101, %s113
      %s195 = ssub.s32 %s102, %s109
      %s196 = sor.u32 %s194, %s195
      %p197 = scmp.eq.s32.totalorder %s196, 0
      %s199 = sadd.s32 %s198, 1
      %s200 = scalar_select %p197, %s198, %s199
      %p203 = pneg %p197
      %p204 = scmp.eq.s32.totalorder %s94, 3
      %p205 = por %p203, %p204
      %p206 = scmp.ne.s32.totalorder %s198, %s201
      %p207 = scmp.eq.s32.totalorder %s94, 0
      %p208 = por %p206, %p207
      %p209 = scmp.ne.s32.totalorder %s198, %s201
      %p210 = scmp.eq.s32.totalorder %s99, 3
      %p211 = por %p209, %p210
      %p212 = scmp.ne.s32.totalorder %s201, %s202
      %p213 = scmp.eq.s32.totalorder %s99, 0
      %p214 = por %p212, %p213
      %p215 = scmp.ne.s32.totalorder %s201, %s202
      %p216 = scmp.eq.s32.totalorder %s100, 3
      %p217 = por %p215, %p216
      %p219 = scmp.ne.s32.totalorder %s202, %s218
      %p220 = scmp.eq.s32.totalorder %s100, 0
      %p221 = por %p219, %p220
      %s222 = ssub.s32 %s101, %s113
      %s223 = ssub.s32 %s102, %s109
      %s224 = sor.u32 %s222, %s223
      %p225 = scmp.eq.s32.totalorder %s224, 0
      %s227 = sadd.s32 %s226, 1
      %s228 = scalar_select %p225, %s226, %s227
      %p231 = pneg %p225
      %p232 = scmp.eq.s32.totalorder %s94, 3
      %p233 = por %p231, %p232
      %p234 = scmp.ne.s32.totalorder %s226, %s229
      %p235 = scmp.eq.s32.totalorder %s94, 0
      %p236 = por %p234, %p235
      %p237 = scmp.ne.s32.totalorder %s226, %s229
      %p238 = scmp.eq.s32.totalorder %s99, 3
      %p239 = por %p237, %p238
      %p240 = scmp.ne.s32.totalorder %s229, %s230
      %p241 = scmp.eq.s32.totalorder %s99, 0
      %p242 = por %p240, %p241
      %p243 = scmp.ne.s32.totalorder %s229, %s230
      %p244 = scmp.eq.s32.totalorder %s100, 3
      %p245 = por %p243, %p244
      %p247 = scmp.ne.s32.totalorder %s230, %s246
      %p248 = scmp.eq.s32.totalorder %s100, 0
      %p249 = por %p247, %p248
      %s251 = sadd.s32 %s250, 1
      %p254 = scmp.eq.s32.totalorder %s94, 3
      %p255 = scmp.ne.s32.totalorder %s250, %s252
      %p256 = scmp.eq.s32.totalorder %s94, 0
      %p257 = por %p255, %p256
      %p258 = scmp.ne.s32.totalorder %s250, %s252
      %p259 = scmp.eq.s32.totalorder %s99, 3
      %p260 = por %p258, %p259
      %p261 = scmp.ne.s32.totalorder %s252, %s253
      %p262 = scmp.eq.s32.totalorder %s99, 0
      %p263 = por %p261, %p262
      %p264 = scmp.ne.s32.totalorder %s252, %s253
      %p265 = scmp.eq.s32.totalorder %s100, 3
      %p266 = por %p264, %p265
      %p268 = scmp.ne.s32.totalorder %s253, %s267
      %p269 = scmp.eq.s32.totalorder %s100, 0
      %p270 = por %p268, %p269
      %s272 = sadd.s32 %s271, 1
      %p275 = scmp.eq.s32.totalorder %s94, 3
      %p276 = scmp.ne.s32.totalorder %s271, %s273
      %p277 = scmp.eq.s32.totalorder %s94, 0
      %p278 = por %p276, %p277
      %p279 = scmp.ne.s32.totalorder %s271, %s273
      %p280 = scmp.eq.s32.totalorder %s99, 3
      %p281 = por %p279, %p280
      %p282 = scmp.ne.s32.totalorder %s273, %s274
      %p283 = scmp.eq.s32.totalorder %s99, 0
      %p284 = por %p282, %p283
      %p285 = scmp.ne.s32.totalorder %s273, %s274
      %p286 = scmp.eq.s32.totalorder %s100, 3
      %p287 = por %p285, %p286
      %p289 = scmp.ne.s32.totalorder %s274, %s288
      %p290 = scmp.eq.s32.totalorder %s100, 0
      %p291 = por %p289, %p290
      %s293 = sadd.s32 %s292, 1
      %p296 = scmp.eq.s32.totalorder %s94, 3
      %p297 = scmp.ne.s32.totalorder %s292, %s294
      %p298 = scmp.eq.s32.totalorder %s94, 0
      %p299 = por %p297, %p298
      %p300 = scmp.ne.s32.totalorder %s292, %s294
      %p301 = scmp.eq.s32.totalorder %s99, 3
      %p302 = por %p300, %p301
      %p303 = scmp.ne.s32.totalorder %s294, %s295
      %p304 = scmp.eq.s32.totalorder %s99, 0
      %p305 = por %p303, %p304
      %p306 = scmp.ne.s32.totalorder %s294, %s295
      %p307 = scmp.eq.s32.totalorder %s100, 3
      %p308 = por %p306, %p307
      %p310 = scmp.ne.s32.totalorder %s295, %s309
      %p311 = scmp.eq.s32.totalorder %s100, 0
      %p312 = por %p310, %p311
      %s314 = sadd.s32 %s313, 1
      %p317 = scmp.eq.s32.totalorder %s94, 3
      %p318 = scmp.ne.s32.totalorder %s313, %s315
      %p319 = scmp.eq.s32.totalorder %s94, 0
      %p320 = por %p318, %p319
      %p321 = scmp.ne.s32.totalorder %s313, %s315
      %p322 = scmp.eq.s32.totalorder %s99, 3
      %p323 = por %p321, %p322
      %p324 = scmp.ne.s32.totalorder %s315, %s316
      %p325 = scmp.eq.s32.totalorder %s99, 0
      %p326 = por %p324, %p325
      %p327 = scmp.ne.s32.totalorder %s315, %s316
      %p328 = scmp.eq.s32.totalorder %s100, 3
      %p329 = por %p327, %p328
      %p331 = scmp.ne.s32.totalorder %s316, %s330
      %p332 = scmp.eq.s32.totalorder %s100, 0
      %p333 = por %p331, %p332
      %s335 = sadd.s32 %s334, 1
      %p338 = scmp.eq.s32.totalorder %s94, 3
      %p339 = scmp.ne.s32.totalorder %s334, %s336
      %p340 = scmp.eq.s32.totalorder %s94, 0
      %p341 = por %p339, %p340
      %p342 = scmp.ne.s32.totalorder %s334, %s336
      %p343 = scmp.eq.s32.totalorder %s99, 3
      %p344 = por %p342, %p343
      %p345 = scmp.ne.s32.totalorder %s336, %s337
      %p346 = scmp.eq.s32.totalorder %s99, 0
      %p347 = por %p345, %p346
      %p348 = scmp.ne.s32.totalorder %s336, %s337
      %p349 = scmp.eq.s32.totalorder %s100, 3
      %p350 = por %p348, %p349
      %p352 = scmp.ne.s32.totalorder %s337, %s351
      %p353 = scmp.eq.s32.totalorder %s100, 0
      %p354 = por %p352, %p353
      %s356 = sadd.s32 %s355, 1
      %p359 = scmp.eq.s32.totalorder %s94, 3
      %p360 = scmp.ne.s32.totalorder %s355, %s357
      %p361 = scmp.eq.s32.totalorder %s94, 0
      %p362 = por %p360, %p361
      %p363 = scmp.ne.s32.totalorder %s355, %s357
      %p364 = scmp.eq.s32.totalorder %s99, 3
      %p365 = por %p363, %p364
      %p366 = scmp.ne.s32.totalorder %s357, %s358
      %p367 = scmp.eq.s32.totalorder %s99, 0
      %p368 = por %p366, %p367
      %p369 = scmp.ne.s32.totalorder %s357, %s358
      %p370 = scmp.eq.s32.totalorder %s100, 3
      %p371 = por %p369, %p370
      %p373 = scmp.ne.s32.totalorder %s358, %s372
      %p374 = scmp.eq.s32.totalorder %s100, 0
      %p375 = por %p373, %p374
      %s377 = sadd.s32 %s376, 1
      %p380 = scmp.eq.s32.totalorder %s94, 3
      %p381 = scmp.ne.s32.totalorder %s376, %s378
      %p382 = scmp.eq.s32.totalorder %s94, 0
      %p383 = por %p381, %p382
      %p384 = scmp.ne.s32.totalorder %s376, %s378
      %p385 = scmp.eq.s32.totalorder %s99, 3
      %p386 = por %p384, %p385
      %p387 = scmp.ne.s32.totalorder %s378, %s379
      %p388 = scmp.eq.s32.totalorder %s99, 0
      %p389 = por %p387, %p388
      %p390 = scmp.ne.s32.totalorder %s378, %s379
      %p391 = scmp.eq.s32.totalorder %s100, 3
      %p392 = por %p390, %p391
      %p394 = scmp.ne.s32.totalorder %s379, %s393
      %p395 = scmp.eq.s32.totalorder %s100, 0
      %p396 = por %p394, %p395
      %s398 = sadd.s32 %s397, 1
      %p401 = scmp.eq.s32.totalorder %s94, 3
      %p402 = scmp.ne.s32.totalorder %s397, %s399
      %p403 = scmp.eq.s32.totalorder %s94, 0
      %p404 = por %p402, %p403
      %p405 = scmp.ne.s32.totalorder %s397, %s399
      %p406 = scmp.eq.s32.totalorder %s99, 3
      %p407 = por %p405, %p406
      %p408 = scmp.ne.s32.totalorder %s399, %s400
      %p409 = scmp.eq.s32.totalorder %s99, 0
      %p410 = por %p408, %p409
      %p411 = scmp.ne.s32.totalorder %s399, %s400
      %p412 = scmp.eq.s32.totalorder %s100, 3
      %p413 = por %p411, %p412
      %p415 = scmp.ne.s32.totalorder %s400, %s414
      %p416 = scmp.eq.s32.totalorder %s100, 0
      %p417 = por %p415, %p416
      %s419 = sadd.s32 %s418, 1
      %p422 = scmp.eq.s32.totalorder %s94, 3
      %p423 = scmp.ne.s32.totalorder %s418, %s420
      %p424 = scmp.eq.s32.totalorder %s94, 0
      %p425 = por %p423, %p424
      %p426 = scmp.ne.s32.totalorder %s418, %s420
      %p427 = scmp.eq.s32.totalorder %s99, 3
      %p428 = por %p426, %p427
      %p429 = scmp.ne.s32.totalorder %s420, %s421
      %p430 = scmp.eq.s32.totalorder %s99, 0
      %p431 = por %p429, %p430
      %p432 = scmp.ne.s32.totalorder %s420, %s421
      %p433 = scmp.eq.s32.totalorder %s100, 3
      %p434 = por %p432, %p433
      %p436 = scmp.ne.s32.totalorder %s421, %s435
      %p437 = scmp.eq.s32.totalorder %s100, 0
      %p438 = por %p436, %p437
      %s440 = sadd.s32 %s439, 1
      %p443 = scmp.eq.s32.totalorder %s94, 3
      %p444 = scmp.ne.s32.totalorder %s439, %s441
      %p445 = scmp.eq.s32.totalorder %s94, 0
      %p446 = por %p444, %p445
      %p447 = scmp.ne.s32.totalorder %s439, %s441
      %p448 = scmp.eq.s32.totalorder %s99, 3
      %p449 = por %p447, %p448
      %p450 = scmp.ne.s32.totalorder %s441, %s442
      %p451 = scmp.eq.s32.totalorder %s99, 0
      %p452 = por %p450, %p451
      %p453 = scmp.ne.s32.totalorder %s441, %s442
      %p454 = scmp.eq.s32.totalorder %s100, 3
      %p455 = por %p453, %p454
      %p457 = scmp.ne.s32.totalorder %s442, %s456
      %p458 = scmp.eq.s32.totalorder %s100, 0
      %p459 = por %p457, %p458
      %s461 = sadd.s32 %s460, 1
      %p464 = scmp.eq.s32.totalorder %s94, 3
      %p465 = scmp.ne.s32.totalorder %s460, %s462
      %p466 = scmp.eq.s32.totalorder %s94, 0
      %p467 = por %p465, %p466
      %p468 = scmp.ne.s32.totalorder %s460, %s462
      %p469 = scmp.eq.s32.totalorder %s99, 3
      %p470 = por %p468, %p469
      %p471 = scmp.ne.s32.totalorder %s462, %s463
      %p472 = scmp.eq.s32.totalorder %s99, 0
      %p473 = por %p471, %p472
      %p474 = scmp.ne.s32.totalorder %s462, %s463
      %p475 = scmp.eq.s32.totalorder %s100, 3
      %p476 = por %p474, %p475
      %p478 = scmp.ne.s32.totalorder %s463, %s477
      %p479 = scmp.eq.s32.totalorder %s100, 0
      %p480 = por %p478, %p479
      %s482 = sadd.s32 %s481, 1
      %p485 = scmp.eq.s32.totalorder %s94, 3
      %p486 = scmp.ne.s32.totalorder %s481, %s483
      %p487 = scmp.eq.s32.totalorder %s94, 0
      %p488 = por %p486, %p487
      %p489 = scmp.ne.s32.totalorder %s481, %s483
      %p490 = scmp.eq.s32.totalorder %s99, 3
      %p491 = por %p489, %p490
      %p492 = scmp.ne.s32.totalorder %s483, %s484
      %p493 = scmp.eq.s32.totalorder %s99, 0
      %p494 = por %p492, %p493
      %p495 = scmp.ne.s32.totalorder %s483, %s484
      %p496 = scmp.eq.s32.totalorder %s100, 3
      %p497 = por %p495, %p496
      %p499 = scmp.ne.s32.totalorder %s484, %s498
      %p500 = scmp.eq.s32.totalorder %s100, 0
      %p501 = por %p499, %p500
      %s503 = sadd.s32 %s502, 1
      %p506 = scmp.eq.s32.totalorder %s94, 3
      %p507 = scmp.ne.s32.totalorder %s502, %s504
      %p508 = scmp.eq.s32.totalorder %s94, 0
      %p509 = por %p507, %p508
      %p510 = scmp.ne.s32.totalorder %s502, %s504
      %p511 = scmp.eq.s32.totalorder %s99, 3
      %p512 = por %p510, %p511
      %p513 = scmp.ne.s32.totalorder %s504, %s505
      %p514 = scmp.eq.s32.totalorder %s99, 0
      %p515 = por %p513, %p514
      %p516 = scmp.ne.s32.totalorder %s504, %s505
      %p517 = scmp.eq.s32.totalorder %s100, 3
      %p518 = por %p516, %p517
      %p520 = scmp.ne.s32.totalorder %s505, %s519
      %p521 = scmp.eq.s32.totalorder %s100, 0
      %p522 = por %p520, %p521
      %s524 = sadd.s32 %s523, 1
      %p527 = scmp.eq.s32.totalorder %s94, 3
      %p528 = scmp.ne.s32.totalorder %s523, %s525
      %p529 = scmp.eq.s32.totalorder %s94, 0
      %p530 = por %p528, %p529
      %p531 = scmp.ne.s32.totalorder %s523, %s525
      %p532 = scmp.eq.s32.totalorder %s99, 3
      %p533 = por %p531, %p532
      %p534 = scmp.ne.s32.totalorder %s525, %s526
      %p535 = scmp.eq.s32.totalorder %s99, 0
      %p536 = por %p534, %p535
      %p537 = scmp.ne.s32.totalorder %s525, %s526
      %p538 = scmp.eq.s32.totalorder %s100, 3
      %p539 = por %p537, %p538
      %p541 = scmp.ne.s32.totalorder %s526, %s540
      %p542 = scmp.eq.s32.totalorder %s100, 0
      %p543 = por %p541, %p542
      %s545 = sadd.s32 %s544, 1
      %p548 = scmp.eq.s32.totalorder %s94, 3
      %p549 = scmp.ne.s32.totalorder %s544, %s546
      %p550 = scmp.eq.s32.totalorder %s94, 0
      %p551 = por %p549, %p550
      %p552 = scmp.ne.s32.totalorder %s544, %s546
      %p553 = scmp.eq.s32.totalorder %s99, 3
      %p554 = por %p552, %p553
      %p555 = scmp.ne.s32.totalorder %s546, %s547
      %p556 = scmp.eq.s32.totalorder %s99, 0
      %p557 = por %p555, %p556
      %p558 = scmp.ne.s32.totalorder %s546, %s547
      %p559 = scmp.eq.s32.totalorder %s100, 3
      %p560 = por %p558, %p559
      %p562 = scmp.ne.s32.totalorder %s547, %s561
      %p563 = scmp.eq.s32.totalorder %s100, 0
      %p564 = por %p562, %p563
      %s566 = sadd.s32 %s565, 1
      %p569 = scmp.eq.s32.totalorder %s94, 3
      %p570 = scmp.ne.s32.totalorder %s565, %s567
      %p571 = scmp.eq.s32.totalorder %s94, 0
      %p572 = por %p570, %p571
      %p573 = scmp.ne.s32.totalorder %s565, %s567
      %p574 = scmp.eq.s32.totalorder %s99, 3
      %p575 = por %p573, %p574
      %p576 = scmp.ne.s32.totalorder %s567, %s568
      %p577 = scmp.eq.s32.totalorder %s99, 0
      %p578 = por %p576, %p577
      %p579 = scmp.ne.s32.totalorder %s567, %s568
      %p580 = scmp.eq.s32.totalorder %s100, 3
      %p581 = por %p579, %p580
      %p583 = scmp.ne.s32.totalorder %s568, %s582
      %p584 = scmp.eq.s32.totalorder %s100, 0
      %p585 = por %p583, %p584
      %s587 = sadd.s32 %s586, 1
      %p590 = scmp.eq.s32.totalorder %s94, 3
      %p591 = scmp.ne.s32.totalorder %s586, %s588
      %p592 = scmp.eq.s32.totalorder %s94, 0
      %p593 = por %p591, %p592
      %p594 = scmp.ne.s32.totalorder %s586, %s588
      %p595 = scmp.eq.s32.totalorder %s99, 3
      %p596 = por %p594, %p595
      %p597 = scmp.ne.s32.totalorder %s588, %s589
      %p598 = scmp.eq.s32.totalorder %s99, 0
      %p599 = por %p597, %p598
      %p600 = scmp.ne.s32.totalorder %s588, %s589
      %p601 = scmp.eq.s32.totalorder %s100, 3
      %p602 = por %p600, %p601
      %p604 = scmp.ne.s32.totalorder %s589, %s603
      %p605 = scmp.eq.s32.totalorder %s100, 0
      %p606 = por %p604, %p605
      %s608 = sadd.s32 %s607, 1
      %p611 = scmp.eq.s32.totalorder %s94, 3
      %p612 = scmp.ne.s32.totalorder %s607, %s609
      %p613 = scmp.eq.s32.totalorder %s94, 0
      %p614 = por %p612, %p613
      %p615 = scmp.ne.s32.totalorder %s607, %s609
      %p616 = scmp.eq.s32.totalorder %s99, 3
      %p617 = por %p615, %p616
      %p618 = scmp.ne.s32.totalorder %s609, %s610
      %p619 = scmp.eq.s32.totalorder %s99, 0
      %p620 = por %p618, %p619
      %p621 = scmp.ne.s32.totalorder %s609, %s610
      %p622 = scmp.eq.s32.totalorder %s100, 3
      %p623 = por %p621, %p622
      %p625 = scmp.ne.s32.totalorder %s610, %s624
      %p626 = scmp.eq.s32.totalorder %s100, 0
      %p627 = por %p625, %p626
      %s629 = sadd.s32 %s628, 1
      %p632 = scmp.eq.s32.totalorder %s94, 3
      %p633 = scmp.ne.s32.totalorder %s628, %s630
      %p634 = scmp.eq.s32.totalorder %s94, 0
      %p635 = por %p633, %p634
      %p636 = scmp.ne.s32.totalorder %s628, %s630
      %p637 = scmp.eq.s32.totalorder %s99, 3
      %p638 = por %p636, %p637
      %p639 = scmp.ne.s32.totalorder %s630, %s631
      %p640 = scmp.eq.s32.totalorder %s99, 0
      %p641 = por %p639, %p640
      %p642 = scmp.ne.s32.totalorder %s630, %s631
      %p643 = scmp.eq.s32.totalorder %s100, 3
      %p644 = por %p642, %p643
      %p646 = scmp.ne.s32.totalorder %s631, %s645
      %p647 = scmp.eq.s32.totalorder %s100, 0
      %p648 = por %p646, %p647
      %s650 = sadd.s32 %s649, 1
      %p653 = scmp.eq.s32.totalorder %s94, 3
      %p654 = scmp.ne.s32.totalorder %s649, %s651
      %p655 = scmp.eq.s32.totalorder %s94, 0
      %p656 = por %p654, %p655
      %p657 = scmp.ne.s32.totalorder %s649, %s651
      %p658 = scmp.eq.s32.totalorder %s99, 3
      %p659 = por %p657, %p658
      %p660 = scmp.ne.s32.totalorder %s651, %s652
      %p661 = scmp.eq.s32.totalorder %s99, 0
      %p662 = por %p660, %p661
      %p663 = scmp.ne.s32.totalorder %s651, %s652
      %p664 = scmp.eq.s32.totalorder %s100, 3
      %p665 = por %p663, %p664
      %p667 = scmp.ne.s32.totalorder %s652, %s666
      %p668 = scmp.eq.s32.totalorder %s100, 0
      %p669 = por %p667, %p668
      %s671 = sadd.s32 %s670, 1
      %p674 = scmp.eq.s32.totalorder %s94, 3
      %p675 = scmp.ne.s32.totalorder %s670, %s672
      %p676 = scmp.eq.s32.totalorder %s94, 0
      %p677 = por %p675, %p676
      %p678 = scmp.ne.s32.totalorder %s670, %s672
      %p679 = scmp.eq.s32.totalorder %s99, 3
      %p680 = por %p678, %p679
      %p681 = scmp.ne.s32.totalorder %s672, %s673
      %p682 = scmp.eq.s32.totalorder %s99, 0
      %p683 = por %p681, %p682
      %p684 = scmp.ne.s32.totalorder %s672, %s673
      %p685 = scmp.eq.s32.totalorder %s100, 3
      %p686 = por %p684, %p685
      %p688 = scmp.ne.s32.totalorder %s673, %s687
      %p689 = scmp.eq.s32.totalorder %s100, 0
      %p690 = por %p688, %p689
      %s692 = sadd.s32 %s691, 1
      %p695 = scmp.eq.s32.totalorder %s94, 3
      %p696 = scmp.ne.s32.totalorder %s691, %s693
      %p697 = scmp.eq.s32.totalorder %s94, 0
      %p698 = por %p696, %p697
      %p699 = scmp.ne.s32.totalorder %s691, %s693
      %p700 = scmp.eq.s32.totalorder %s99, 3
      %p701 = por %p699, %p700
      %p702 = scmp.ne.s32.totalorder %s693, %s694
      %p703 = scmp.eq.s32.totalorder %s99, 0
      %p704 = por %p702, %p703
      %p705 = scmp.ne.s32.totalorder %s693, %s694
      %p706 = scmp.eq.s32.totalorder %s100, 3
      %p707 = por %p705, %p706
      %p709 = scmp.ne.s32.totalorder %s694, %s708
      %p710 = scmp.eq.s32.totalorder %s100, 0
      %p711 = por %p709, %p710
      %s713 = sadd.s32 %s712, 1
      %p716 = scmp.eq.s32.totalorder %s94, 3
      %p717 = scmp.ne.s32.totalorder %s712, %s714
      %p718 = scmp.eq.s32.totalorder %s94, 0
      %p719 = por %p717, %p718
      %p720 = scmp.ne.s32.totalorder %s712, %s714
      %p721 = scmp.eq.s32.totalorder %s99, 3
      %p722 = por %p720, %p721
      %p723 = scmp.ne.s32.totalorder %s714, %s715
      %p724 = scmp.eq.s32.totalorder %s99, 0
      %p725 = por %p723, %p724
      %p726 = scmp.ne.s32.totalorder %s714, %s715
      %p727 = scmp.eq.s32.totalorder %s100, 3
      %p728 = por %p726, %p727
      %p730 = scmp.ne.s32.totalorder %s715, %s729
      %p731 = scmp.eq.s32.totalorder %s100, 0
      %p732 = por %p730, %p731
      %s734 = sadd.s32 %s733, 1
      %p737 = scmp.eq.s32.totalorder %s94, 3
      %p738 = scmp.ne.s32.totalorder %s733, %s735
      %p739 = scmp.eq.s32.totalorder %s94, 0
      %p740 = por %p738, %p739
      %p741 = scmp.ne.s32.totalorder %s733, %s735
      %p742 = scmp.eq.s32.totalorder %s99, 3
      %p743 = por %p741, %p742
      %p744 = scmp.ne.s32.totalorder %s735, %s736
      %p745 = scmp.eq.s32.totalorder %s99, 0
      %p746 = por %p744, %p745
      %p747 = scmp.ne.s32.totalorder %s735, %s736
      %p748 = scmp.eq.s32.totalorder %s100, 3
      %p749 = por %p747, %p748
      %p751 = scmp.ne.s32.totalorder %s736, %s750
      %p752 = scmp.eq.s32.totalorder %s100, 0
      %p753 = por %p751, %p752
      %s755 = sadd.s32 %s754, 1
      %p758 = scmp.eq.s32.totalorder %s94, 3
      %p759 = scmp.ne.s32.totalorder %s754, %s756
      %p760 = scmp.eq.s32.totalorder %s94, 0
      %p761 = por %p759, %p760
      %p762 = scmp.ne.s32.totalorder %s754, %s756
      %p763 = scmp.eq.s32.totalorder %s99, 3
      %p764 = por %p762, %p763
      %p765 = scmp.ne.s32.totalorder %s756, %s757
      %p766 = scmp.eq.s32.totalorder %s99, 0
      %p767 = por %p765, %p766
      %p768 = scmp.ne.s32.totalorder %s756, %s757
      %p769 = scmp.eq.s32.totalorder %s100, 3
      %p770 = por %p768, %p769
      %p772 = scmp.ne.s32.totalorder %s757, %s771
      %p773 = scmp.eq.s32.totalorder %s100, 0
      %p774 = por %p772, %p773
      %s776 = sadd.s32 %s775, 1
      %p779 = scmp.eq.s32.totalorder %s94, 3
      %p780 = scmp.ne.s32.totalorder %s775, %s777
      %p781 = scmp.eq.s32.totalorder %s94, 0
      %p782 = por %p780, %p781
      %p783 = scmp.ne.s32.totalorder %s775, %s777
      %p784 = scmp.eq.s32.totalorder %s99, 3
      %p785 = por %p783, %p784
      %p786 = scmp.ne.s32.totalorder %s777, %s778
      %p787 = scmp.eq.s32.totalorder %s99, 0
      %p788 = por %p786, %p787
      %p789 = scmp.ne.s32.totalorder %s777, %s778
      %p790 = scmp.eq.s32.totalorder %s100, 3
      %p791 = por %p789, %p790
      %p793 = scmp.ne.s32.totalorder %s778, %s792
      %p794 = scmp.eq.s32.totalorder %s100, 0
      %p795 = por %p793, %p794
      %s796 = ssub.s32 %s101, %s113
      %s797 = ssub.s32 %s102, %s109
      %s798 = sor.u32 %s796, %s797
      %p799 = scmp.eq.s32.totalorder %s798, 0
      %s801 = sadd.s32 %s800, 1
      %s802 = scalar_select %p799, %s800, %s801
      %p805 = pneg %p799
      %p806 = scmp.eq.s32.totalorder %s94, 3
      %p807 = por %p805, %p806
      %p808 = scmp.ne.s32.totalorder %s800, %s803
      %p809 = scmp.eq.s32.totalorder %s94, 0
      %p810 = por %p808, %p809
      %p811 = scmp.ne.s32.totalorder %s800, %s803
      %p812 = scmp.eq.s32.totalorder %s99, 3
      %p813 = por %p811, %p812
      %p814 = scmp.ne.s32.totalorder %s803, %s804
      %p815 = scmp.eq.s32.totalorder %s99, 0
      %p816 = por %p814, %p815
      %p817 = scmp.ne.s32.totalorder %s803, %s804
      %p818 = scmp.eq.s32.totalorder %s100, 3
      %p819 = por %p817, %p818
      %p821 = scmp.ne.s32.totalorder %s804, %s820
      %p822 = scmp.eq.s32.totalorder %s100, 0
      %p823 = por %p821, %p822
      %p824 = scmp.le.s32.totalorder 1, %s94
      %p825 = scmp.lt.s32.totalorder %s94, 5
      %p826 = pnand %p824, %p825
      %p827 = pneg %p826
      // Predicated region
      $region9: #{tpu_custom_call.1} parent=5 // pred_check
        _
      $region10: #{tpu_custom_call.1} parent=5 // pred_check_branch
        %829 = sbr.rel (%p826) target = $region12
      $region11: #{tpu_custom_call.1} parent=5 // pred_region
        %s830 = ssub.s32 %s94, 1
        // Predicated region
        $region13: #{tpu_custom_call.1} parent=11 // pred_check
          %p831 = pneg %p263
        $region14: #{tpu_custom_call.1} parent=11 // pred_check_branch
          %833 = sbr.rel (%p831) target = $region16
        $region15: #{tpu_custom_call.1} parent=11 // pred_region
          %s835 = ssub.s32 512, 512
          %836 = vsyncadd [#allocation16], %s835
          %s837 = sshll.u32 [#allocation15], 4
          %s838 = int_to_ptr.vmem [resolvable:$true] %s837
          %843 = dma.hbm_to_vmem [thread:$0]  %s11, 512, %s838, [#allocation16], 128, 128, 8
        $region16: #{tpu_custom_call.1} parent=11 // pred_fallthru
          _
        // Predicated region
        $region17: #{tpu_custom_call.1} parent=11 // pred_check
          %p844 = pneg %p284
        $region18: #{tpu_custom_call.1} parent=11 // pred_check_branch
          %846 = sbr.rel (%p844) target = $region20
        $region19: #{tpu_custom_call.1} parent=11 // pred_region
          %s848 = ssub.s32 16, 16
          %849 = vsyncadd [#allocation16], %s848
          %s851 = sshll.u32 [#allocation17], 4
          %s852 = int_to_ptr.vmem [resolvable:$true] %s851
          %854 = dma.hbm_to_vmem [thread:$0]  %s13, 16, %s852, [#allocation16]
        $region20: #{tpu_custom_call.1} parent=11 // pred_fallthru
          _
        // Predicated region
        $region21: #{tpu_custom_call.1} parent=11 // pred_check
          %p855 = pneg %p305
        $region22: #{tpu_custom_call.1} parent=11 // pred_check_branch
          %857 = sbr.rel (%p855) target = $region24
        $region23: #{tpu_custom_call.1} parent=11 // pred_region
          %s859 = ssub.s32 512, 512
          %860 = vsyncadd [#allocation19], %s859
          %s861 = sshll.u32 [#allocation18], 4
          %s862 = int_to_ptr.vmem [resolvable:$true] %s861
          %867 = dma.hbm_to_vmem [thread:$0]  %s15, 512, %s862, [#allocation19], 128, 128, 8
        $region24: #{tpu_custom_call.1} parent=11 // pred_fallthru
          _
        // Predicated region
        $region25: #{tpu_custom_call.1} parent=11 // pred_check
          %p868 = pneg %p326
        $region26: #{tpu_custom_call.1} parent=11 // pred_check_branch
          %870 = sbr.rel (%p868) target = $region28
        $region27: #{tpu_custom_call.1} parent=11 // pred_region
          %s872 = ssub.s32 16, 16
          %873 = vsyncadd [#allocation19], %s872
          %s875 = sshll.u32 [#allocation20], 4
          %s876 = int_to_ptr.vmem [resolvable:$true] %s875
          %878 = dma.hbm_to_vmem [thread:$0]  %s17, 16, %s876, [#allocation19]
        $region28: #{tpu_custom_call.1} parent=11 // pred_fallthru
          _
        // Predicated region
        $region29: #{tpu_custom_call.1} parent=11 // pred_check
          %p879 = pneg %p347
        $region30: #{tpu_custom_call.1} parent=11 // pred_check_branch
          %881 = sbr.rel (%p879) target = $region32
        $region31: #{tpu_custom_call.1} parent=11 // pred_region
          %s883 = ssub.s32 512, 512
          %884 = vsyncadd [#allocation22], %s883
          %s885 = sshll.u32 [#allocation21], 4
          %s886 = int_to_ptr.vmem [resolvable:$true] %s885
          %891 = dma.hbm_to_vmem [thread:$0]  %s19, 512, %s886, [#allocation22], 128, 128, 8
        $region32: #{tpu_custom_call.1} parent=11 // pred_fallthru
          _
        // Predicated region
        $region33: #{tpu_custom_call.1} parent=11 // pred_check
          %p892 = pneg %p368
        $region34: #{tpu_custom_call.1} parent=11 // pred_check_branch
          %894 = sbr.rel (%p892) target = $region36
        $region35: #{tpu_custom_call.1} parent=11 // pred_region
          %s896 = ssub.s32 16, 16
          %897 = vsyncadd [#allocation22], %s896
          %s899 = sshll.u32 [#allocation23], 4
          %s900 = int_to_ptr.vmem [resolvable:$true] %s899
          %902 = dma.hbm_to_vmem [thread:$0]  %s21, 16, %s900, [#allocation22]
        $region36: #{tpu_custom_call.1} parent=11 // pred_fallthru
          _
        // Predicated region
        $region37: #{tpu_custom_call.1} parent=11 // pred_check
          %p903 = pneg %p389
        $region38: #{tpu_custom_call.1} parent=11 // pred_check_branch
          %905 = sbr.rel (%p903) target = $region40
        $region39: #{tpu_custom_call.1} parent=11 // pred_region
          %s907 = ssub.s32 512, 512
          %908 = vsyncadd [#allocation25], %s907
          %s909 = sshll.u32 [#allocation24], 4
          %s910 = int_to_ptr.vmem [resolvable:$true] %s909
          %915 = dma.hbm_to_vmem [thread:$0]  %s23, 512, %s910, [#allocation25], 128, 128, 8
        $region40: #{tpu_custom_call.1} parent=11 // pred_fallthru
          _
        // Predicated region
        $region41: #{tpu_custom_call.1} parent=11 // pred_check
          %p916 = pneg %p410
        $region42: #{tpu_custom_call.1} parent=11 // pred_check_branch
          %918 = sbr.rel (%p916) target = $region44
        $region43: #{tpu_custom_call.1} parent=11 // pred_region
          %s920 = ssub.s32 16, 16
          %921 = vsyncadd [#allocation25], %s920
          %s923 = sshll.u32 [#allocation26], 4
          %s924 = int_to_ptr.vmem [resolvable:$true] %s923
          %926 = dma.hbm_to_vmem [thread:$0]  %s25, 16, %s924, [#allocation25]
        $region44: #{tpu_custom_call.1} parent=11 // pred_fallthru
          _
        // Predicated region
        $region45: #{tpu_custom_call.1} parent=11 // pred_check
          %p927 = pneg %p431
        $region46: #{tpu_custom_call.1} parent=11 // pred_check_branch
          %929 = sbr.rel (%p927) target = $region48
        $region47: #{tpu_custom_call.1} parent=11 // pred_region
          %s931 = ssub.s32 512, 512
          %932 = vsyncadd [#allocation28], %s931
          %s933 = sshll.u32 [#allocation27], 4
          %s934 = int_to_ptr.vmem [resolvable:$true] %s933
          %939 = dma.hbm_to_vmem [thread:$0]  %s27, 512, %s934, [#allocation28], 128, 128, 8
        $region48: #{tpu_custom_call.1} parent=11 // pred_fallthru
          _
        // Predicated region
        $region49: #{tpu_custom_call.1} parent=11 // pred_check
          %p940 = pneg %p452
        $region50: #{tpu_custom_call.1} parent=11 // pred_check_branch
          %942 = sbr.rel (%p940) target = $region52
        $region51: #{tpu_custom_call.1} parent=11 // pred_region
          %s944 = ssub.s32 16, 16
          %945 = vsyncadd [#allocation28], %s944
          %s947 = sshll.u32 [#allocation29], 4
          %s948 = int_to_ptr.vmem [resolvable:$true] %s947
          %950 = dma.hbm_to_vmem [thread:$0]  %s29, 16, %s948, [#allocation28]
        $region52: #{tpu_custom_call.1} parent=11 // pred_fallthru
          _
        // Predicated region
        $region53: #{tpu_custom_call.1} parent=11 // pred_check
          %p951 = pneg %p473
        $region54: #{tpu_custom_call.1} parent=11 // pred_check_branch
          %953 = sbr.rel (%p951) target = $region56
        $region55: #{tpu_custom_call.1} parent=11 // pred_region
          %s955 = ssub.s32 512, 512
          %956 = vsyncadd [#allocation31], %s955
          %s957 = sshll.u32 [#allocation30], 4
          %s958 = int_to_ptr.vmem [resolvable:$true] %s957
          %963 = dma.hbm_to_vmem [thread:$0]  %s31, 512, %s958, [#allocation31], 128, 128, 8
        $region56: #{tpu_custom_call.1} parent=11 // pred_fallthru
          _
        // Predicated region
        $region57: #{tpu_custom_call.1} parent=11 // pred_check
          %p964 = pneg %p494
        $region58: #{tpu_custom_call.1} parent=11 // pred_check_branch
          %966 = sbr.rel (%p964) target = $region60
        $region59: #{tpu_custom_call.1} parent=11 // pred_region
          %s968 = ssub.s32 16, 16
          %969 = vsyncadd [#allocation31], %s968
          %s971 = sshll.u32 [#allocation32], 4
          %s972 = int_to_ptr.vmem [resolvable:$true] %s971
          %974 = dma.hbm_to_vmem [thread:$0]  %s33, 16, %s972, [#allocation31]
        $region60: #{tpu_custom_call.1} parent=11 // pred_fallthru
          _
        // Predicated region
        $region61: #{tpu_custom_call.1} parent=11 // pred_check
          %p975 = pneg %p515
        $region62: #{tpu_custom_call.1} parent=11 // pred_check_branch
          %977 = sbr.rel (%p975) target = $region64
        $region63: #{tpu_custom_call.1} parent=11 // pred_region
          %s979 = ssub.s32 512, 512
          %980 = vsyncadd [#allocation34], %s979
          %s981 = sshll.u32 [#allocation33], 4
          %s982 = int_to_ptr.vmem [resolvable:$true] %s981
          %987 = dma.hbm_to_vmem [thread:$0]  %s35, 512, %s982, [#allocation34], 128, 128, 8
        $region64: #{tpu_custom_call.1} parent=11 // pred_fallthru
          _
        // Predicated region
        $region65: #{tpu_custom_call.1} parent=11 // pred_check
          %p988 = pneg %p536
        $region66: #{tpu_custom_call.1} parent=11 // pred_check_branch
          %990 = sbr.rel (%p988) target = $region68
        $region67: #{tpu_custom_call.1} parent=11 // pred_region
          %s992 = ssub.s32 16, 16
          %993 = vsyncadd [#allocation34], %s992
          %s995 = sshll.u32 [#allocation35], 4
          %s996 = int_to_ptr.vmem [resolvable:$true] %s995
          %998 = dma.hbm_to_vmem [thread:$0]  %s37, 16, %s996, [#allocation34]
        $region68: #{tpu_custom_call.1} parent=11 // pred_fallthru
          _
        // Predicated region
        $region69: #{tpu_custom_call.1} parent=11 // pred_check
          %p999 = pneg %p557
        $region70: #{tpu_custom_call.1} parent=11 // pred_check_branch
          %1001 = sbr.rel (%p999) target = $region72
        $region71: #{tpu_custom_call.1} parent=11 // pred_region
          %s1003 = ssub.s32 512, 512
          %1004 = vsyncadd [#allocation37], %s1003
          %s1005 = sshll.u32 [#allocation36], 4
          %s1006 = int_to_ptr.vmem [resolvable:$true] %s1005
          %1011 = dma.hbm_to_vmem [thread:$0]  %s39, 512, %s1006, [#allocation37], 128, 128, 8
        $region72: #{tpu_custom_call.1} parent=11 // pred_fallthru
          _
        // Predicated region
        $region73: #{tpu_custom_call.1} parent=11 // pred_check
          %p1012 = pneg %p578
        $region74: #{tpu_custom_call.1} parent=11 // pred_check_branch
          %1014 = sbr.rel (%p1012) target = $region76
        $region75: #{tpu_custom_call.1} parent=11 // pred_region
          %s1016 = ssub.s32 16, 16
          %1017 = vsyncadd [#allocation37], %s1016
          %s1019 = sshll.u32 [#allocation38], 4
          %s1020 = int_to_ptr.vmem [resolvable:$true] %s1019
          %1022 = dma.hbm_to_vmem [thread:$0]  %s41, 16, %s1020, [#allocation37]
        $region76: #{tpu_custom_call.1} parent=11 // pred_fallthru
          _
        // Predicated region
        $region77: #{tpu_custom_call.1} parent=11 // pred_check
          %p1023 = pneg %p599
        $region78: #{tpu_custom_call.1} parent=11 // pred_check_branch
          %1025 = sbr.rel (%p1023) target = $region80
        $region79: #{tpu_custom_call.1} parent=11 // pred_region
          %s1027 = ssub.s32 512, 512
          %1028 = vsyncadd [#allocation40], %s1027
          %s1029 = sshll.u32 [#allocation39], 4
          %s1030 = int_to_ptr.vmem [resolvable:$true] %s1029
          %1035 = dma.hbm_to_vmem [thread:$0]  %s43, 512, %s1030, [#allocation40], 128, 128, 8
        $region80: #{tpu_custom_call.1} parent=11 // pred_fallthru
          _
        // Predicated region
        $region81: #{tpu_custom_call.1} parent=11 // pred_check
          %p1036 = pneg %p620
        $region82: #{tpu_custom_call.1} parent=11 // pred_check_branch
          %1038 = sbr.rel (%p1036) target = $region84
        $region83: #{tpu_custom_call.1} parent=11 // pred_region
          %s1040 = ssub.s32 16, 16
          %1041 = vsyncadd [#allocation40], %s1040
          %s1043 = sshll.u32 [#allocation41], 4
          %s1044 = int_to_ptr.vmem [resolvable:$true] %s1043
          %1046 = dma.hbm_to_vmem [thread:$0]  %s45, 16, %s1044, [#allocation40]
        $region84: #{tpu_custom_call.1} parent=11 // pred_fallthru
          _
        // Predicated region
        $region85: #{tpu_custom_call.1} parent=11 // pred_check
          %p1047 = pneg %p641
        $region86: #{tpu_custom_call.1} parent=11 // pred_check_branch
          %1049 = sbr.rel (%p1047) target = $region88
        $region87: #{tpu_custom_call.1} parent=11 // pred_region
          %s1051 = ssub.s32 1024, 1024
          %1052 = vsyncadd [#allocation43], %s1051
          %s1053 = sshll.u32 [#allocation42], 4
          %s1054 = int_to_ptr.vmem [resolvable:$true] %s1053
          %1059 = dma.hbm_to_vmem [thread:$0]  %s47, 1024, %s1054, [#allocation43], 128, 128, 8
        $region88: #{tpu_custom_call.1} parent=11 // pred_fallthru
          _
        // Predicated region
        $region89: #{tpu_custom_call.1} parent=11 // pred_check
          %p1060 = pneg %p662
        $region90: #{tpu_custom_call.1} parent=11 // pred_check_branch
          %1062 = sbr.rel (%p1060) target = $region92
        $region91: #{tpu_custom_call.1} parent=11 // pred_region
          %s1064 = ssub.s32 16, 16
          %1065 = vsyncadd [#allocation43], %s1064
          %s1067 = sshll.u32 [#allocation44], 4
          %s1068 = int_to_ptr.vmem [resolvable:$true] %s1067
          %1070 = dma.hbm_to_vmem [thread:$0]  %s49, 16, %s1068, [#allocation43]
        $region92: #{tpu_custom_call.1} parent=11 // pred_fallthru
          _
        // Predicated region
        $region93: #{tpu_custom_call.1} parent=11 // pred_check
          %p1071 = pneg %p683
        $region94: #{tpu_custom_call.1} parent=11 // pred_check_branch
          %1073 = sbr.rel (%p1071) target = $region96
        $region95: #{tpu_custom_call.1} parent=11 // pred_region
          %s1075 = ssub.s32 16, 16
          %1076 = vsyncadd [#allocation46], %s1075
          %s1078 = sshll.u32 [#allocation45], 4
          %s1079 = int_to_ptr.vmem [resolvable:$true] %s1078
          %1081 = dma.hbm_to_vmem [thread:$0]  %s51, 16, %s1079, [#allocation46]
        $region96: #{tpu_custom_call.1} parent=11 // pred_fallthru
          _
        // Predicated region
        $region97: #{tpu_custom_call.1} parent=11 // pred_check
          %p1082 = pneg %p704
        $region98: #{tpu_custom_call.1} parent=11 // pred_check_branch
          %1084 = sbr.rel (%p1082) target = $region100
        $region99: #{tpu_custom_call.1} parent=11 // pred_region
          %s1086 = ssub.s32 16, 16
          %1087 = vsyncadd [#allocation46], %s1086
          %s1089 = sshll.u32 [#allocation47], 4
          %s1090 = int_to_ptr.vmem [resolvable:$true] %s1089
          %1092 = dma.hbm_to_vmem [thread:$0]  %s53, 16, %s1090, [#allocation46]
        $region100: #{tpu_custom_call.1} parent=11 // pred_fallthru
          _
        // Predicated region
        $region101: #{tpu_custom_call.1} parent=11 // pred_check
          %p1093 = pneg %p725
        $region102: #{tpu_custom_call.1} parent=11 // pred_check_branch
          %1095 = sbr.rel (%p1093) target = $region104
        $region103: #{tpu_custom_call.1} parent=11 // pred_region
          %s1097 = ssub.s32 16, 16
          %1098 = vsyncadd [#allocation49], %s1097
          %s1100 = sshll.u32 [#allocation48], 4
          %s1101 = int_to_ptr.vmem [resolvable:$true] %s1100
          %1103 = dma.hbm_to_vmem [thread:$0]  %s55, 16, %s1101, [#allocation49]
        $region104: #{tpu_custom_call.1} parent=11 // pred_fallthru
          _
        // Predicated region
        $region105: #{tpu_custom_call.1} parent=11 // pred_check
          %p1104 = pneg %p746
        $region106: #{tpu_custom_call.1} parent=11 // pred_check_branch
          %1106 = sbr.rel (%p1104) target = $region108
        $region107: #{tpu_custom_call.1} parent=11 // pred_region
          %s1108 = ssub.s32 16, 16
          %1109 = vsyncadd [#allocation49], %s1108
          %s1111 = sshll.u32 [#allocation50], 4
          %s1112 = int_to_ptr.vmem [resolvable:$true] %s1111
          %1114 = dma.hbm_to_vmem [thread:$0]  %s57, 16, %s1112, [#allocation49]
        $region108: #{tpu_custom_call.1} parent=11 // pred_fallthru
          _
        // Predicated region
        $region109: #{tpu_custom_call.1} parent=11 // pred_check
          %p1115 = pneg %p767
        $region110: #{tpu_custom_call.1} parent=11 // pred_check_branch
          %1117 = sbr.rel (%p1115) target = $region112
        $region111: #{tpu_custom_call.1} parent=11 // pred_region
          %s1119 = ssub.s32 16, 16
          %1120 = vsyncadd [#allocation52], %s1119
          %s1122 = sshll.u32 [#allocation51], 4
          %s1123 = int_to_ptr.vmem [resolvable:$true] %s1122
          %1125 = dma.hbm_to_vmem [thread:$0]  %s59, 16, %s1123, [#allocation52]
        $region112: #{tpu_custom_call.1} parent=11 // pred_fallthru
          _
        // Predicated region
        $region113: #{tpu_custom_call.1} parent=11 // pred_check
          %p1126 = pneg %p788
        $region114: #{tpu_custom_call.1} parent=11 // pred_check_branch
          %1128 = sbr.rel (%p1126) target = $region116
        $region115: #{tpu_custom_call.1} parent=11 // pred_region
          %s1130 = ssub.s32 16, 16
          %1131 = vsyncadd [#allocation52], %s1130
          %s1133 = sshll.u32 [#allocation53], 4
          %s1134 = int_to_ptr.vmem [resolvable:$true] %s1133
          %1136 = dma.hbm_to_vmem [thread:$0]  %s61, 16, %s1134, [#allocation52]
        $region116: #{tpu_custom_call.1} parent=11 // pred_fallthru
          _
      $region12: #{tpu_custom_call.1} parent=5 // pred_fallthru
        _
      %p1137 = scmp.lt.s32.totalorder %s94, 4
      // Predicated region
      $region117: #{tpu_custom_call.1} parent=5 // pred_check
        %p1138 = pneg %p1137
      $region118: #{tpu_custom_call.1} parent=5 // pred_check_branch
        %1140 = sbr.rel (%p1138) target = $region120
      $region119: #{tpu_custom_call.1} parent=5 // pred_region
        // Predicated region
        $region121: #{tpu_custom_call.1} parent=119 // pred_check
          %p1141 = pneg %p128
        $region122: #{tpu_custom_call.1} parent=119 // pred_check_branch
          %1143 = sbr.rel (%p1141) target = $region124
        $region123: #{tpu_custom_call.1} parent=119 // pred_region
          %s1144 = sand.u32 %s118, 1
          %s1145 = scalar_lea.sflag [#allocation7], %s1144
          %s1146 = sand.u32 %s118, 1
          %s1147 = smul.addr %s1146, 8
          %s1148 = scalar_lea.vmem [#allocation6], %s1147
          %s1150 = ssub.s32 128, 128
          %1151 = vsyncadd %s1145, %s1150
          %s1152 = smul.addr %s101, 2
          %s1153 = sadd.s32 %s102, %s1152
          %s1154 = smul.addr %s1153, 128
          %s1155 = scalar_lea.hbm %s1, %s1154
          %s1157 = sshll.u32 %s1148, 4
          %s1158 = int_to_ptr.vmem [resolvable:$true] %s1157
          %1160 = dma.hbm_to_vmem [thread:$0]  %s1155, 128, %s1158, %s1145
        $region124: #{tpu_custom_call.1} parent=119 // pred_fallthru
          _
        // Predicated region
        $region125: #{tpu_custom_call.1} parent=119 // pred_check
          %p1161 = pneg %p154
        $region126: #{tpu_custom_call.1} parent=119 // pred_check_branch
          %1163 = sbr.rel (%p1161) target = $region128
        $region127: #{tpu_custom_call.1} parent=119 // pred_region
          %s1164 = sand.u32 %s94, 1
          %s1165 = scalar_lea.sflag [#allocation10], %s1164
          %s1166 = sand.u32 %s144, 1
          %s1167 = smul.addr %s1166, 16
          %s1168 = scalar_lea.vmem [#allocation9], %s1167
          %s1170 = ssub.s32 256, 256
          %1171 = vsyncadd %s1165, %s1170
          %s1172 = smul.addr %s101, 2
          %s1173 = smul.addr %s1172, 128
          %s1174 = scalar_lea.hbm %s3, %s1173
          %s1175 = sshll.u32 %s1168, 4
          %s1176 = int_to_ptr.vmem [resolvable:$true] %s1175
          %1181 = dma.hbm_to_vmem [thread:$0]  %s1174, 256, %s1176, %s1165, 128, 128, 8
        $region128: #{tpu_custom_call.1} parent=119 // pred_fallthru
          _
        // Predicated region
        $region129: #{tpu_custom_call.1} parent=119 // pred_check
          %p1182 = pneg %p180
        $region130: #{tpu_custom_call.1} parent=119 // pred_check_branch
          %1184 = sbr.rel (%p1182) target = $region132
        $region131: #{tpu_custom_call.1} parent=119 // pred_region
          %s1185 = sand.u32 %s94, 1
          %s1186 = scalar_lea.sflag [#allocation10], %s1185
          %s1187 = sand.u32 %s170, 1
          %s1188 = smul.addr %s1187, 16
          %s1189 = scalar_lea.vmem [#allocation11], %s1188
          %s1191 = ssub.s32 256, 256
          %1192 = vsyncadd %s1186, %s1191
          %s1193 = smul.addr %s101, 2
          %s1194 = smul.addr %s1193, 128
          %s1195 = scalar_lea.hbm %s5, %s1194
          %s1196 = sshll.u32 %s1189, 4
          %s1197 = int_to_ptr.vmem [resolvable:$true] %s1196
          %1202 = dma.hbm_to_vmem [thread:$0]  %s1195, 256, %s1197, %s1186, 128, 128, 8
        $region132: #{tpu_custom_call.1} parent=119 // pred_fallthru
          _
        // Predicated region
        $region133: #{tpu_custom_call.1} parent=119 // pred_check
          %p1203 = pneg %p208
        $region134: #{tpu_custom_call.1} parent=119 // pred_check_branch
          %1205 = sbr.rel (%p1203) target = $region136
        $region135: #{tpu_custom_call.1} parent=119 // pred_region
          %s1206 = sand.u32 %s94, 1
          %s1207 = scalar_lea.sflag [#allocation13], %s1206
          %s1208 = sand.u32 %s198, 1
          %s1209 = smul.addr %s1208, 8
          %s1210 = scalar_lea.vmem [#allocation12], %s1209
          %s1212 = ssub.s32 128, 128
          %1213 = vsyncadd %s1207, %s1212
          %s1214 = smul.addr %s101, 2
          %s1215 = sadd.s32 %s102, %s1214
          %s1216 = smul.addr %s1215, 128
          %s1217 = scalar_lea.hbm %s7, %s1216
          %s1219 = sshll.u32 %s1210, 4
          %s1220 = int_to_ptr.vmem [resolvable:$true] %s1219
          %1222 = dma.hbm_to_vmem [thread:$0]  %s1217, 128, %s1220, %s1207
        $region136: #{tpu_custom_call.1} parent=119 // pred_fallthru
          _
        // Predicated region
        $region137: #{tpu_custom_call.1} parent=119 // pred_check
          %p1223 = pneg %p236
        $region138: #{tpu_custom_call.1} parent=119 // pred_check_branch
          %1225 = sbr.rel (%p1223) target = $region140
        $region139: #{tpu_custom_call.1} parent=119 // pred_region
          %s1226 = sand.u32 %s94, 1
          %s1227 = scalar_lea.sflag [#allocation13], %s1226
          %s1228 = sand.u32 %s226, 1
          %s1229 = smul.addr %s1228, 8
          %s1230 = scalar_lea.vmem [#allocation14], %s1229
          %s1232 = ssub.s32 128, 128
          %1233 = vsyncadd %s1227, %s1232
          %s1234 = smul.addr %s101, 2
          %s1235 = sadd.s32 %s102, %s1234
          %s1236 = smul.addr %s1235, 128
          %s1237 = scalar_lea.hbm %s9, %s1236
          %s1239 = sshll.u32 %s1230, 4
          %s1240 = int_to_ptr.vmem [resolvable:$true] %s1239
          %1242 = dma.hbm_to_vmem [thread:$0]  %s1237, 128, %s1240, %s1227
        $region140: #{tpu_custom_call.1} parent=119 // pred_fallthru
          _
      $region120: #{tpu_custom_call.1} parent=5 // pred_fallthru
        _
      %p1243 = scmp.le.s32.totalorder 1, %s94
      %p1244 = scmp.lt.s32.totalorder %s94, 5
      %p1245 = pnand %p1243, %p1244
      %p1246 = pneg %p1245
      // Predicated region
      $region141: #{tpu_custom_call.1} parent=5 // pred_check
        _
      $region142: #{tpu_custom_call.1} parent=5 // pred_check_branch
        %1248 = sbr.rel (%p1245) target = $region144
      $region143: #{tpu_custom_call.1} parent=5 // pred_region
        %s1249 = ssub.s32 %s94, 1
        %s1250 = sand.u32 %s121, 1
        %s1251 = scalar_lea.sflag [#allocation7], %s1250
        %s1252 = sand.u32 %s121, 1
        %s1253 = smul.addr %s1252, 8
        %s1254 = scalar_lea.vmem [#allocation6], %s1253
        // Predicated region
        $region145: #{tpu_custom_call.1} parent=143 // pred_check
          %p1255 = pneg %p134
        $region146: #{tpu_custom_call.1} parent=143 // pred_check_branch
          %1257 = sbr.rel (%p1255) target = $region148
        $region147: #{tpu_custom_call.1} parent=143 // pred_region
          %1258 = dma.done %s1251, 128
        $region148: #{tpu_custom_call.1} parent=143 // pred_fallthru
          _
        %s1259 = sand.u32 %s99, 1
        %s1260 = scalar_lea.sflag [#allocation10], %s1259
        %s1261 = sand.u32 %s147, 1
        %s1262 = smul.addr %s1261, 16
        %s1263 = scalar_lea.vmem [#allocation9], %s1262
        // Predicated region
        $region149: #{tpu_custom_call.1} parent=143 // pred_check
          %p1264 = pneg %p160
        $region150: #{tpu_custom_call.1} parent=143 // pred_check_branch
          %1266 = sbr.rel (%p1264) target = $region152
        $region151: #{tpu_custom_call.1} parent=143 // pred_region
          %1267 = dma.done %s1260, 256
        $region152: #{tpu_custom_call.1} parent=143 // pred_fallthru
          _
        %s1268 = sand.u32 %s99, 1
        %s1269 = scalar_lea.sflag [#allocation10], %s1268
        %s1270 = sand.u32 %s173, 1
        %s1271 = smul.addr %s1270, 16
        %s1272 = scalar_lea.vmem [#allocation11], %s1271
        // Predicated region
        $region153: #{tpu_custom_call.1} parent=143 // pred_check
          %p1273 = pneg %p186
        $region154: #{tpu_custom_call.1} parent=143 // pred_check_branch
          %1275 = sbr.rel (%p1273) target = $region156
        $region155: #{tpu_custom_call.1} parent=143 // pred_region
          %1276 = dma.done %s1269, 256
        $region156: #{tpu_custom_call.1} parent=143 // pred_fallthru
          _
        %s1277 = sand.u32 %s99, 1
        %s1278 = scalar_lea.sflag [#allocation13], %s1277
        %s1279 = sand.u32 %s201, 1
        %s1280 = smul.addr %s1279, 8
        %s1281 = scalar_lea.vmem [#allocation12], %s1280
        // Predicated region
        $region157: #{tpu_custom_call.1} parent=143 // pred_check
          %p1282 = pneg %p214
        $region158: #{tpu_custom_call.1} parent=143 // pred_check_branch
          %1284 = sbr.rel (%p1282) target = $region160
        $region159: #{tpu_custom_call.1} parent=143 // pred_region
          %1285 = dma.done %s1278, 128
        $region160: #{tpu_custom_call.1} parent=143 // pred_fallthru
          _
        %s1286 = sand.u32 %s99, 1
        %s1287 = scalar_lea.sflag [#allocation13], %s1286
        %s1288 = sand.u32 %s229, 1
        %s1289 = smul.addr %s1288, 8
        %s1290 = scalar_lea.vmem [#allocation14], %s1289
        // Predicated region
        $region161: #{tpu_custom_call.1} parent=143 // pred_check
          %p1291 = pneg %p242
        $region162: #{tpu_custom_call.1} parent=143 // pred_check_branch
          %1293 = sbr.rel (%p1291) target = $region164
        $region163: #{tpu_custom_call.1} parent=143 // pred_region
          %1294 = dma.done %s1287, 128
        $region164: #{tpu_custom_call.1} parent=143 // pred_fallthru
          _
        // Predicated region
        $region165: #{tpu_custom_call.1} parent=143 // pred_check
          %p1295 = pneg %p263
        $region166: #{tpu_custom_call.1} parent=143 // pred_check_branch
          %1297 = sbr.rel (%p1295) target = $region168
        $region167: #{tpu_custom_call.1} parent=143 // pred_region
          %1298 = dma.done [#allocation16], 512
        $region168: #{tpu_custom_call.1} parent=143 // pred_fallthru
          _
        // Predicated region
        $region169: #{tpu_custom_call.1} parent=143 // pred_check
          %p1299 = pneg %p284
        $region170: #{tpu_custom_call.1} parent=143 // pred_check_branch
          %1301 = sbr.rel (%p1299) target = $region172
        $region171: #{tpu_custom_call.1} parent=143 // pred_region
          %1302 = dma.done [#allocation16], 16
        $region172: #{tpu_custom_call.1} parent=143 // pred_fallthru
          _
        // Predicated region
        $region173: #{tpu_custom_call.1} parent=143 // pred_check
          %p1303 = pneg %p305
        $region174: #{tpu_custom_call.1} parent=143 // pred_check_branch
          %1305 = sbr.rel (%p1303) target = $region176
        $region175: #{tpu_custom_call.1} parent=143 // pred_region
          %1306 = dma.done [#allocation19], 512
        $region176: #{tpu_custom_call.1} parent=143 // pred_fallthru
          _
        // Predicated region
        $region177: #{tpu_custom_call.1} parent=143 // pred_check
          %p1307 = pneg %p326
        $region178: #{tpu_custom_call.1} parent=143 // pred_check_branch
          %1309 = sbr.rel (%p1307) target = $region180
        $region179: #{tpu_custom_call.1} parent=143 // pred_region
          %1310 = dma.done [#allocation19], 16
        $region180: #{tpu_custom_call.1} parent=143 // pred_fallthru
          _
        // Predicated region
        $region181: #{tpu_custom_call.1} parent=143 // pred_check
          %p1311 = pneg %p347
        $region182: #{tpu_custom_call.1} parent=143 // pred_check_branch
          %1313 = sbr.rel (%p1311) target = $region184
        $region183: #{tpu_custom_call.1} parent=143 // pred_region
          %1314 = dma.done [#allocation22], 512
        $region184: #{tpu_custom_call.1} parent=143 // pred_fallthru
          _
        // Predicated region
        $region185: #{tpu_custom_call.1} parent=143 // pred_check
          %p1315 = pneg %p368
        $region186: #{tpu_custom_call.1} parent=143 // pred_check_branch
          %1317 = sbr.rel (%p1315) target = $region188
        $region187: #{tpu_custom_call.1} parent=143 // pred_region
          %1318 = dma.done [#allocation22], 16
        $region188: #{tpu_custom_call.1} parent=143 // pred_fallthru
          _
        // Predicated region
        $region189: #{tpu_custom_call.1} parent=143 // pred_check
          %p1319 = pneg %p389
        $region190: #{tpu_custom_call.1} parent=143 // pred_check_branch
          %1321 = sbr.rel (%p1319) target = $region192
        $region191: #{tpu_custom_call.1} parent=143 // pred_region
          %1322 = dma.done [#allocation25], 512
        $region192: #{tpu_custom_call.1} parent=143 // pred_fallthru
          _
        // Predicated region
        $region193: #{tpu_custom_call.1} parent=143 // pred_check
          %p1323 = pneg %p410
        $region194: #{tpu_custom_call.1} parent=143 // pred_check_branch
          %1325 = sbr.rel (%p1323) target = $region196
        $region195: #{tpu_custom_call.1} parent=143 // pred_region
          %1326 = dma.done [#allocation25], 16
        $region196: #{tpu_custom_call.1} parent=143 // pred_fallthru
          _
        // Predicated region
        $region197: #{tpu_custom_call.1} parent=143 // pred_check
          %p1327 = pneg %p431
        $region198: #{tpu_custom_call.1} parent=143 // pred_check_branch
          %1329 = sbr.rel (%p1327) target = $region200
        $region199: #{tpu_custom_call.1} parent=143 // pred_region
          %1330 = dma.done [#allocation28], 512
        $region200: #{tpu_custom_call.1} parent=143 // pred_fallthru
          _
        // Predicated region
        $region201: #{tpu_custom_call.1} parent=143 // pred_check
          %p1331 = pneg %p452
        $region202: #{tpu_custom_call.1} parent=143 // pred_check_branch
          %1333 = sbr.rel (%p1331) target = $region204
        $region203: #{tpu_custom_call.1} parent=143 // pred_region
          %1334 = dma.done [#allocation28], 16
        $region204: #{tpu_custom_call.1} parent=143 // pred_fallthru
          _
        // Predicated region
        $region205: #{tpu_custom_call.1} parent=143 // pred_check
          %p1335 = pneg %p473
        $region206: #{tpu_custom_call.1} parent=143 // pred_check_branch
          %1337 = sbr.rel (%p1335) target = $region208
        $region207: #{tpu_custom_call.1} parent=143 // pred_region
          %1338 = dma.done [#allocation31], 512
        $region208: #{tpu_custom_call.1} parent=143 // pred_fallthru
          _
        // Predicated region
        $region209: #{tpu_custom_call.1} parent=143 // pred_check
          %p1339 = pneg %p494
        $region210: #{tpu_custom_call.1} parent=143 // pred_check_branch
          %1341 = sbr.rel (%p1339) target = $region212
        $region211: #{tpu_custom_call.1} parent=143 // pred_region
          %1342 = dma.done [#allocation31], 16
        $region212: #{tpu_custom_call.1} parent=143 // pred_fallthru
          _
        // Predicated region
        $region213: #{tpu_custom_call.1} parent=143 // pred_check
          %p1343 = pneg %p515
        $region214: #{tpu_custom_call.1} parent=143 // pred_check_branch
          %1345 = sbr.rel (%p1343) target = $region216
        $region215: #{tpu_custom_call.1} parent=143 // pred_region
          %1346 = dma.done [#allocation34], 512
        $region216: #{tpu_custom_call.1} parent=143 // pred_fallthru
          _
        // Predicated region
        $region217: #{tpu_custom_call.1} parent=143 // pred_check
          %p1347 = pneg %p536
        $region218: #{tpu_custom_call.1} parent=143 // pred_check_branch
          %1349 = sbr.rel (%p1347) target = $region220
        $region219: #{tpu_custom_call.1} parent=143 // pred_region
          %1350 = dma.done [#allocation34], 16
        $region220: #{tpu_custom_call.1} parent=143 // pred_fallthru
          _
        // Predicated region
        $region221: #{tpu_custom_call.1} parent=143 // pred_check
          %p1351 = pneg %p557
        $region222: #{tpu_custom_call.1} parent=143 // pred_check_branch
          %1353 = sbr.rel (%p1351) target = $region224
        $region223: #{tpu_custom_call.1} parent=143 // pred_region
          %1354 = dma.done [#allocation37], 512
        $region224: #{tpu_custom_call.1} parent=143 // pred_fallthru
          _
        // Predicated region
        $region225: #{tpu_custom_call.1} parent=143 // pred_check
          %p1355 = pneg %p578
        $region226: #{tpu_custom_call.1} parent=143 // pred_check_branch
          %1357 = sbr.rel (%p1355) target = $region228
        $region227: #{tpu_custom_call.1} parent=143 // pred_region
          %1358 = dma.done [#allocation37], 16
        $region228: #{tpu_custom_call.1} parent=143 // pred_fallthru
          _
        // Predicated region
        $region229: #{tpu_custom_call.1} parent=143 // pred_check
          %p1359 = pneg %p599
        $region230: #{tpu_custom_call.1} parent=143 // pred_check_branch
          %1361 = sbr.rel (%p1359) target = $region232
        $region231: #{tpu_custom_call.1} parent=143 // pred_region
          %1362 = dma.done [#allocation40], 512
        $region232: #{tpu_custom_call.1} parent=143 // pred_fallthru
          _
        // Predicated region
        $region233: #{tpu_custom_call.1} parent=143 // pred_check
          %p1363 = pneg %p620
        $region234: #{tpu_custom_call.1} parent=143 // pred_check_branch
          %1365 = sbr.rel (%p1363) target = $region236
        $region235: #{tpu_custom_call.1} parent=143 // pred_region
          %1366 = dma.done [#allocation40], 16
        $region236: #{tpu_custom_call.1} parent=143 // pred_fallthru
          _
        // Predicated region
        $region237: #{tpu_custom_call.1} parent=143 // pred_check
          %p1367 = pneg %p641
        $region238: #{tpu_custom_call.1} parent=143 // pred_check_branch
          %1369 = sbr.rel (%p1367) target = $region240
        $region239: #{tpu_custom_call.1} parent=143 // pred_region
          %1370 = dma.done [#allocation43], 1024
        $region240: #{tpu_custom_call.1} parent=143 // pred_fallthru
          _
        // Predicated region
        $region241: #{tpu_custom_call.1} parent=143 // pred_check
          %p1371 = pneg %p662
        $region242: #{tpu_custom_call.1} parent=143 // pred_check_branch
          %1373 = sbr.rel (%p1371) target = $region244
        $region243: #{tpu_custom_call.1} parent=143 // pred_region
          %1374 = dma.done [#allocation43], 16
        $region244: #{tpu_custom_call.1} parent=143 // pred_fallthru
          _
        // Predicated region
        $region245: #{tpu_custom_call.1} parent=143 // pred_check
          %p1375 = pneg %p683
        $region246: #{tpu_custom_call.1} parent=143 // pred_check_branch
          %1377 = sbr.rel (%p1375) target = $region248
        $region247: #{tpu_custom_call.1} parent=143 // pred_region
          %1378 = dma.done [#allocation46], 16
        $region248: #{tpu_custom_call.1} parent=143 // pred_fallthru
          _
        // Predicated region
        $region249: #{tpu_custom_call.1} parent=143 // pred_check
          %p1379 = pneg %p704
        $region250: #{tpu_custom_call.1} parent=143 // pred_check_branch
          %1381 = sbr.rel (%p1379) target = $region252
        $region251: #{tpu_custom_call.1} parent=143 // pred_region
          %1382 = dma.done [#allocation46], 16
        $region252: #{tpu_custom_call.1} parent=143 // pred_fallthru
          _
        // Predicated region
        $region253: #{tpu_custom_call.1} parent=143 // pred_check
          %p1383 = pneg %p725
        $region254: #{tpu_custom_call.1} parent=143 // pred_check_branch
          %1385 = sbr.rel (%p1383) target = $region256
        $region255: #{tpu_custom_call.1} parent=143 // pred_region
          %1386 = dma.done [#allocation49], 16
        $region256: #{tpu_custom_call.1} parent=143 // pred_fallthru
          _
        // Predicated region
        $region257: #{tpu_custom_call.1} parent=143 // pred_check
          %p1387 = pneg %p746
        $region258: #{tpu_custom_call.1} parent=143 // pred_check_branch
          %1389 = sbr.rel (%p1387) target = $region260
        $region259: #{tpu_custom_call.1} parent=143 // pred_region
          %1390 = dma.done [#allocation49], 16
        $region260: #{tpu_custom_call.1} parent=143 // pred_fallthru
          _
        // Predicated region
        $region261: #{tpu_custom_call.1} parent=143 // pred_check
          %p1391 = pneg %p767
        $region262: #{tpu_custom_call.1} parent=143 // pred_check_branch
          %1393 = sbr.rel (%p1391) target = $region264
        $region263: #{tpu_custom_call.1} parent=143 // pred_region
          %1394 = dma.done [#allocation52], 16
        $region264: #{tpu_custom_call.1} parent=143 // pred_fallthru
          _
        // Predicated region
        $region265: #{tpu_custom_call.1} parent=143 // pred_check
          %p1395 = pneg %p788
        $region266: #{tpu_custom_call.1} parent=143 // pred_check_branch
          %1397 = sbr.rel (%p1395) target = $region268
        $region267: #{tpu_custom_call.1} parent=143 // pred_region
          %1398 = dma.done [#allocation52], 16
        $region268: #{tpu_custom_call.1} parent=143 // pred_fallthru
          _
        %s1399 = sand.u32 %s121, 1
        %s1400 = scalar_lea.sflag [#allocation7], %s1399
        %s1401 = sand.u32 %s121, 1
        %s1402 = smul.addr %s1401, 8
        %s1403 = scalar_lea.vmem [#allocation6], %s1402
        %p1404 = pneg %p134
        %p1405 = pneg %p131
        %s1406 = sand.u32 %s99, 1
        %s1407 = scalar_lea.sflag [#allocation10], %s1406
        %s1408 = sand.u32 %s147, 1
        %s1409 = smul.addr %s1408, 16
        %s1410 = scalar_lea.vmem [#allocation9], %s1409
        %p1411 = pneg %p160
        %p1412 = pneg %p157
        %s1413 = sand.u32 %s99, 1
        %s1414 = scalar_lea.sflag [#allocation10], %s1413
        %s1415 = sand.u32 %s173, 1
        %s1416 = smul.addr %s1415, 16
        %s1417 = scalar_lea.vmem [#allocation11], %s1416
        %p1418 = pneg %p186
        %p1419 = pneg %p183
        %s1420 = sand.u32 %s99, 1
        %s1421 = scalar_lea.sflag [#allocation13], %s1420
        %s1422 = sand.u32 %s201, 1
        %s1423 = smul.addr %s1422, 8
        %s1424 = scalar_lea.vmem [#allocation12], %s1423
        %p1425 = pneg %p214
        %p1426 = pneg %p211
        %s1427 = sand.u32 %s99, 1
        %s1428 = scalar_lea.sflag [#allocation13], %s1427
        %s1429 = sand.u32 %s229, 1
        %s1430 = smul.addr %s1429, 8
        %s1431 = scalar_lea.vmem [#allocation14], %s1430
        %p1432 = pneg %p242
        %p1433 = pneg %p239
        %p1434 = pneg %p263
        %p1435 = pneg %p260
        %p1436 = pneg %p284
        %p1437 = pneg %p281
        %p1438 = pneg %p305
        %p1439 = pneg %p302
        %p1440 = pneg %p326
        %p1441 = pneg %p323
        %p1442 = pneg %p347
        %p1443 = pneg %p344
        %p1444 = pneg %p368
        %p1445 = pneg %p365
        %p1446 = pneg %p389
        %p1447 = pneg %p386
        %p1448 = pneg %p410
        %p1449 = pneg %p407
        %p1450 = pneg %p431
        %p1451 = pneg %p428
        %p1452 = pneg %p452
        %p1453 = pneg %p449
        %p1454 = pneg %p473
        %p1455 = pneg %p470
        %p1456 = pneg %p494
        %p1457 = pneg %p491
        %p1458 = pneg %p515
        %p1459 = pneg %p512
        %p1460 = pneg %p536
        %p1461 = pneg %p533
        %p1462 = pneg %p557
        %p1463 = pneg %p554
        %p1464 = pneg %p578
        %p1465 = pneg %p575
        %p1466 = pneg %p599
        %p1467 = pneg %p596
        %p1468 = pneg %p620
        %p1469 = pneg %p617
        %p1470 = pneg %p641
        %p1471 = pneg %p638
        %p1472 = pneg %p662
        %p1473 = pneg %p659
        %p1474 = pneg %p683
        %p1475 = pneg %p680
        %p1476 = pneg %p704
        %p1477 = pneg %p701
        %p1478 = pneg %p725
        %p1479 = pneg %p722
        %p1480 = pneg %p746
        %p1481 = pneg %p743
        %p1482 = pneg %p767
        %p1483 = pneg %p764
        %p1484 = pneg %p788
        %p1485 = pneg %p785
        %p1486 = pneg %p816
        %p1487 = pneg %p813
        %s1488 = sand.u32 %s803, 1
        %s1489 = scalar_lea.sflag [#allocation8], %s1488
        %s1490 = sand.u32 %s803, 1
        %s1491 = smul.addr %s1490, 8
        %s1492 = scalar_lea.vmem [#allocation54], %s1491
        %p1493 = scmp.eq.s32.totalorder %s104, 0
        // Predicated region
        $region269: #{tpu_custom_call.1} parent=143 // pred_check
          %p1494 = pneg %p1493
        $region270: #{tpu_custom_call.1} parent=143 // pred_check_branch
          %1496 = sbr.rel (%p1494) target = $region272
        $region271: #{tpu_custom_call.1} parent=143 // pred_region
          %v1497 = vld [vmem:[%s1263] sm:$0xff]
          %v1498 = vld [vmem:[%s1263 + $0x8] sm:$0xff]
          %v1499 = vld [vmem:[%s1272] sm:$0xff]
          %v1500 = vld [vmem:[%s1272 + $0x8] sm:$0xff]
          %v1501 = vld [vmem:[#allocation18] sm:$0xff]
          %v1502 = vld [vmem:[#allocation18 + $0x8] sm:$0xff]
          %v1503 = vld [vmem:[#allocation18 + $0x10] sm:$0xff]
          %v1504 = vld [vmem:[#allocation18 + $0x18] sm:$0xff]
          %v1505 = vld [vmem:[#allocation20] sm:$0x1]
          %v1507 = vlaneseq
          %v1508 = vshrl.u32 %v1507, 7
          %v1509 = vsub.s32 0, %v1508
          %v1510 = vrot.slane %v1505, %v1509
          %vm1512 = vcmask 261120
          %v1514 = vsel %vm1512, %v1497, 0
          %v1517 = vsel %vm1512, %v1498, 0
          %1519 = vmatprep.subr.mxu0 0.0
          %1520 = vmatpush1.msra.mxu0 %v1501
          %1521 = vmatprep.subr.mxu0 0.0
          %1522 = vmatpush1.msra.mxu0 %v1502
          %1523 = vmatprep.subr.mxu0 0.0
          %1524 = vmatpush1.msra.mxu0 %v1503
          %1525 = vmatprep.subr.mxu0 0.0
          %1526 = vmatpush1.msra.mxu0 %v1504
          %1527 = vmatprep.subr.mxu0 0.0
          %1528 = vmatpush1.msra.mxu0 0.0
          %1529 = vmatprep.subr.mxu0 0.0
          %1530 = vmatpush1.msra.mxu0 0.0
          %1531 = vmatprep.subr.mxu0 0.0
          %1532 = vmatpush1.msra.mxu0 0.0
          %1533 = vmatprep.subr.mxu0 0.0
          %1534 = vmatpush1.msra.mxu0 0.0
          %1535 = vmatprep.subr.mxu0 0.0
          %1536 = vmatpush1.msra.mxu0 0.0
          %1537 = vmatprep.subr.mxu0 0.0
          %1538 = vmatpush1.msra.mxu0 0.0
          %1539 = vmatprep.subr.mxu0 0.0
          %1540 = vmatpush1.msra.mxu0 0.0
          %1541 = vmatprep.subr.mxu0 0.0
          %1542 = vmatpush1.msra.mxu0 0.0
          %1543 = vmatprep.subr.mxu0 0.0
          %1544 = vmatpush1.msra.mxu0 0.0
          %1545 = vmatprep.subr.mxu0 0.0
          %1546 = vmatpush1.msra.mxu0 0.0
          %1547 = vmatprep.subr.mxu0 0.0
          %1548 = vmatpush1.msra.mxu0 0.0
          %1549 = vmatprep.subr.mxu0 0.0
          %1550 = vmatpush1.msra.mxu0 0.0
          %1551 = vmatprep.subr.mxu0 0.0
          %1552 = vmatpush1.msra.mxu0 0.0
          %1553 = vmatprep.subr.mxu0 0.0
          %1554 = vmatpush1.msra.mxu0 0.0
          %1555 = vmatprep.subr.mxu0 0.0
          %1556 = vmatpush1.msra.mxu0 0.0
          %1557 = vmatprep.subr.mxu0 0.0
          %1558 = vmatpush1.msra.mxu0 0.0
          %1559 = vmatprep.subr.mxu0 0.0
          %1560 = vmatpush1.msra.mxu0 0.0
          %1561 = vmatprep.subr.mxu0 0.0
          %1562 = vmatpush1.msra.mxu0 0.0
          %1563 = vmatprep.subr.mxu0 0.0
          %1564 = vmatpush1.msra.mxu0 0.0
          %1565 = vmatprep.subr.mxu0 0.0
          %1566 = vmatpush1.msra.mxu0 0.0
          %1567 = vmatprep.subr.mxu0 0.0
          %1568 = vmatpush1.msra.mxu0 0.0
          %1569 = vmatprep.subr.mxu0 0.0
          %1570 = vmatpush1.msra.mxu0 0.0
          %1571 = vmatprep.subr.mxu0 0.0
          %1572 = vmatpush1.msra.mxu0 0.0
          %1573 = vmatprep.subr.mxu0 0.0
          %1574 = vmatpush1.msra.mxu0 0.0
          %1575 = vmatprep.subr.mxu0 0.0
          %1576 = vmatpush1.msra.mxu0 0.0
          %1577 = vmatprep.subr.mxu0 0.0
          %1578 = vmatpush1.msra.mxu0 0.0
          %1579 = vmatprep.subr.mxu0 0.0
          %1580 = vmatpush1.msra.mxu0 0.0
          %1581 = vmatprep.subr.mxu0 0.0
          %1582 = vmatpush1.msra.mxu0 0.0
          %1583 = vmatprep.mubr.f32.mxu0 0.0
          %1584 = vmatmul.mubr.f32.gmra.mrb[0].mxu0 %v1514
          %v1585 = vpop.f32.mrb[0].mxu0
          %v1586 = vadd.f32 %v1510, %v1585
          %v1587 = vpop.f32.mrb[0].mxu0
          %1588 = vmatprep.mubr.f32.mxu0 0.0
          %1589 = vmatmul.mubr.f32.gmra.mrb[0].mxu0 %v1517
          %v1590 = vpop.f32.mrb[0].mxu0
          %v1591 = vadd.f32 %v1510, %v1590
          %v1592 = vpop.f32.mrb[0].mxu0
          %1593 = vdwg.mxu0
          %1594 = vst.msk [vmem:[#allocation2] sm:$0xff] %vm1512, %v1586
          %1595 = vst.msk [vmem:[#allocation2 + $0x8] sm:$0xff] %vm1512, %v1591
          %v1596 = vld [vmem:[#allocation21] sm:$0xff]
          %v1597 = vld [vmem:[#allocation21 + $0x8] sm:$0xff]
          %v1598 = vld [vmem:[#allocation21 + $0x10] sm:$0xff]
          %v1599 = vld [vmem:[#allocation21 + $0x18] sm:$0xff]
          %v1600 = vld [vmem:[#allocation23] sm:$0x1]
          %v1602 = vlaneseq
          %v1603 = vshrl.u32 %v1602, 7
          %v1604 = vsub.s32 0, %v1603
          %v1605 = vrot.slane %v1600, %v1604
          %1607 = vmatprep.subr.mxu0 0.0
          %1608 = vmatpush1.msra.mxu0 %v1596
          %1609 = vmatprep.subr.mxu0 0.0
          %1610 = vmatpush1.msra.mxu0 %v1597
          %1611 = vmatprep.subr.mxu0 0.0
          %1612 = vmatpush1.msra.mxu0 %v1598
          %1613 = vmatprep.subr.mxu0 0.0
          %1614 = vmatpush1.msra.mxu0 %v1599
          %1615 = vmatprep.subr.mxu0 0.0
          %1616 = vmatpush1.msra.mxu0 0.0
          %1617 = vmatprep.subr.mxu0 0.0
          %1618 = vmatpush1.msra.mxu0 0.0
          %1619 = vmatprep.subr.mxu0 0.0
          %1620 = vmatpush1.msra.mxu0 0.0
          %1621 = vmatprep.subr.mxu0 0.0
          %1622 = vmatpush1.msra.mxu0 0.0
          %1623 = vmatprep.subr.mxu0 0.0
          %1624 = vmatpush1.msra.mxu0 0.0
          %1625 = vmatprep.subr.mxu0 0.0
          %1626 = vmatpush1.msra.mxu0 0.0
          %1627 = vmatprep.subr.mxu0 0.0
          %1628 = vmatpush1.msra.mxu0 0.0
          %1629 = vmatprep.subr.mxu0 0.0
          %1630 = vmatpush1.msra.mxu0 0.0
          %1631 = vmatprep.subr.mxu0 0.0
          %1632 = vmatpush1.msra.mxu0 0.0
          %1633 = vmatprep.subr.mxu0 0.0
          %1634 = vmatpush1.msra.mxu0 0.0
          %1635 = vmatprep.subr.mxu0 0.0
          %1636 = vmatpush1.msra.mxu0 0.0
          %1637 = vmatprep.subr.mxu0 0.0
          %1638 = vmatpush1.msra.mxu0 0.0
          %1639 = vmatprep.subr.mxu0 0.0
          %1640 = vmatpush1.msra.mxu0 0.0
          %1641 = vmatprep.subr.mxu0 0.0
          %1642 = vmatpush1.msra.mxu0 0.0
          %1643 = vmatprep.subr.mxu0 0.0
          %1644 = vmatpush1.msra.mxu0 0.0
          %1645 = vmatprep.subr.mxu0 0.0
          %1646 = vmatpush1.msra.mxu0 0.0
          %1647 = vmatprep.subr.mxu0 0.0
          %1648 = vmatpush1.msra.mxu0 0.0
          %1649 = vmatprep.subr.mxu0 0.0
          %1650 = vmatpush1.msra.mxu0 0.0
          %1651 = vmatprep.subr.mxu0 0.0
          %1652 = vmatpush1.msra.mxu0 0.0
          %1653 = vmatprep.subr.mxu0 0.0
          %1654 = vmatpush1.msra.mxu0 0.0
          %1655 = vmatprep.subr.mxu0 0.0
          %1656 = vmatpush1.msra.mxu0 0.0
          %1657 = vmatprep.subr.mxu0 0.0
          %1658 = vmatpush1.msra.mxu0 0.0
          %1659 = vmatprep.subr.mxu0 0.0
          %1660 = vmatpush1.msra.mxu0 0.0
          %1661 = vmatprep.subr.mxu0 0.0
          %1662 = vmatpush1.msra.mxu0 0.0
          %1663 = vmatprep.subr.mxu0 0.0
          %1664 = vmatpush1.msra.mxu0 0.0
          %1665 = vmatprep.subr.mxu0 0.0
          %1666 = vmatpush1.msra.mxu0 0.0
          %1667 = vmatprep.subr.mxu0 0.0
          %1668 = vmatpush1.msra.mxu0 0.0
          %1669 = vmatprep.subr.mxu0 0.0
          %1670 = vmatpush1.msra.mxu0 0.0
          %1671 = vmatprep.mubr.f32.mxu0 0.0
          %1672 = vmatmul.mubr.f32.gmra.mrb[0].mxu0 %v1514
          %v1673 = vpop.f32.mrb[0].mxu0
          %v1674 = vadd.f32 %v1605, %v1673
          %v1675 = vpop.f32.mrb[0].mxu0
          %1676 = vmatprep.mubr.f32.mxu0 0.0
          %1677 = vmatmul.mubr.f32.gmra.mrb[0].mxu0 %v1517
          %v1678 = vpop.f32.mrb[0].mxu0
          %v1679 = vadd.f32 %v1605, %v1678
          %v1680 = vpop.f32.mrb[0].mxu0
          %1681 = vdwg.mxu0
          %1682 = vst.msk [vmem:[#allocation3] sm:$0xff] %vm1512, %v1674
          %1683 = vst.msk [vmem:[#allocation3 + $0x8] sm:$0xff] %vm1512, %v1679
          %v1684 = vld [vmem:[#allocation30] sm:$0xff]
          %v1685 = vld [vmem:[#allocation30 + $0x8] sm:$0xff]
          %v1686 = vld [vmem:[#allocation30 + $0x10] sm:$0xff]
          %v1687 = vld [vmem:[#allocation30 + $0x18] sm:$0xff]
          %v1688 = vld [vmem:[#allocation32] sm:$0x1]
          %v1690 = vlaneseq
          %v1691 = vshrl.u32 %v1690, 7
          %v1692 = vsub.s32 0, %v1691
          %v1693 = vrot.slane %v1688, %v1692
          %v1696 = vsel %vm1512, %v1499, 0
          %v1699 = vsel %vm1512, %v1500, 0
          %1701 = vmatprep.subr.mxu0 0.0
          %1702 = vmatpush1.msra.mxu0 %v1684
          %1703 = vmatprep.subr.mxu0 0.0
          %1704 = vmatpush1.msra.mxu0 %v1685
          %1705 = vmatprep.subr.mxu0 0.0
          %1706 = vmatpush1.msra.mxu0 %v1686
          %1707 = vmatprep.subr.mxu0 0.0
          %1708 = vmatpush1.msra.mxu0 %v1687
          %1709 = vmatprep.subr.mxu0 0.0
          %1710 = vmatpush1.msra.mxu0 0.0
          %1711 = vmatprep.subr.mxu0 0.0
          %1712 = vmatpush1.msra.mxu0 0.0
          %1713 = vmatprep.subr.mxu0 0.0
          %1714 = vmatpush1.msra.mxu0 0.0
          %1715 = vmatprep.subr.mxu0 0.0
          %1716 = vmatpush1.msra.mxu0 0.0
          %1717 = vmatprep.subr.mxu0 0.0
          %1718 = vmatpush1.msra.mxu0 0.0
          %1719 = vmatprep.subr.mxu0 0.0
          %1720 = vmatpush1.msra.mxu0 0.0
          %1721 = vmatprep.subr.mxu0 0.0
          %1722 = vmatpush1.msra.mxu0 0.0
          %1723 = vmatprep.subr.mxu0 0.0
          %1724 = vmatpush1.msra.mxu0 0.0
          %1725 = vmatprep.subr.mxu0 0.0
          %1726 = vmatpush1.msra.mxu0 0.0
          %1727 = vmatprep.subr.mxu0 0.0
          %1728 = vmatpush1.msra.mxu0 0.0
          %1729 = vmatprep.subr.mxu0 0.0
          %1730 = vmatpush1.msra.mxu0 0.0
          %1731 = vmatprep.subr.mxu0 0.0
          %1732 = vmatpush1.msra.mxu0 0.0
          %1733 = vmatprep.subr.mxu0 0.0
          %1734 = vmatpush1.msra.mxu0 0.0
          %1735 = vmatprep.subr.mxu0 0.0
          %1736 = vmatpush1.msra.mxu0 0.0
          %1737 = vmatprep.subr.mxu0 0.0
          %1738 = vmatpush1.msra.mxu0 0.0
          %1739 = vmatprep.subr.mxu0 0.0
          %1740 = vmatpush1.msra.mxu0 0.0
          %1741 = vmatprep.subr.mxu0 0.0
          %1742 = vmatpush1.msra.mxu0 0.0
          %1743 = vmatprep.subr.mxu0 0.0
          %1744 = vmatpush1.msra.mxu0 0.0
          %1745 = vmatprep.subr.mxu0 0.0
          %1746 = vmatpush1.msra.mxu0 0.0
          %1747 = vmatprep.subr.mxu0 0.0
          %1748 = vmatpush1.msra.mxu0 0.0
          %1749 = vmatprep.subr.mxu0 0.0
          %1750 = vmatpush1.msra.mxu0 0.0
          %1751 = vmatprep.subr.mxu0 0.0
          %1752 = vmatpush1.msra.mxu0 0.0
          %1753 = vmatprep.subr.mxu0 0.0
          %1754 = vmatpush1.msra.mxu0 0.0
          %1755 = vmatprep.subr.mxu0 0.0
          %1756 = vmatpush1.msra.mxu0 0.0
          %1757 = vmatprep.subr.mxu0 0.0
          %1758 = vmatpush1.msra.mxu0 0.0
          %1759 = vmatprep.subr.mxu0 0.0
          %1760 = vmatpush1.msra.mxu0 0.0
          %1761 = vmatprep.subr.mxu0 0.0
          %1762 = vmatpush1.msra.mxu0 0.0
          %1763 = vmatprep.subr.mxu0 0.0
          %1764 = vmatpush1.msra.mxu0 0.0
          %1765 = vmatprep.mubr.f32.mxu0 0.0
          %1766 = vmatmul.mubr.f32.gmra.mrb[0].mxu0 %v1696
          %v1767 = vpop.f32.mrb[0].mxu0
          %v1768 = vadd.f32 %v1693, %v1767
          %v1769 = vpop.f32.mrb[0].mxu0
          %1770 = vmatprep.mubr.f32.mxu0 0.0
          %1771 = vmatmul.mubr.f32.gmra.mrb[0].mxu0 %v1699
          %v1772 = vpop.f32.mrb[0].mxu0
          %v1773 = vadd.f32 %v1693, %v1772
          %v1774 = vpop.f32.mrb[0].mxu0
          %1775 = vdwg.mxu0
          %1776 = vst.msk [vmem:[#allocation4] sm:$0xff] %vm1512, %v1768
          %1777 = vst.msk [vmem:[#allocation4 + $0x8] sm:$0xff] %vm1512, %v1773
          %v1778 = vld [vmem:[#allocation33] sm:$0xff]
          %v1779 = vld [vmem:[#allocation33 + $0x8] sm:$0xff]
          %v1780 = vld [vmem:[#allocation33 + $0x10] sm:$0xff]
          %v1781 = vld [vmem:[#allocation33 + $0x18] sm:$0xff]
          %v1782 = vld [vmem:[#allocation35] sm:$0x1]
          %v1784 = vlaneseq
          %v1785 = vshrl.u32 %v1784, 7
          %v1786 = vsub.s32 0, %v1785
          %v1787 = vrot.slane %v1782, %v1786
          %1789 = vmatprep.subr.mxu0 0.0
          %1790 = vmatpush1.msra.mxu0 %v1778
          %1791 = vmatprep.subr.mxu0 0.0
          %1792 = vmatpush1.msra.mxu0 %v1779
          %1793 = vmatprep.subr.mxu0 0.0
          %1794 = vmatpush1.msra.mxu0 %v1780
          %1795 = vmatprep.subr.mxu0 0.0
          %1796 = vmatpush1.msra.mxu0 %v1781
          %1797 = vmatprep.subr.mxu0 0.0
          %1798 = vmatpush1.msra.mxu0 0.0
          %1799 = vmatprep.subr.mxu0 0.0
          %1800 = vmatpush1.msra.mxu0 0.0
          %1801 = vmatprep.subr.mxu0 0.0
          %1802 = vmatpush1.msra.mxu0 0.0
          %1803 = vmatprep.subr.mxu0 0.0
          %1804 = vmatpush1.msra.mxu0 0.0
          %1805 = vmatprep.subr.mxu0 0.0
          %1806 = vmatpush1.msra.mxu0 0.0
          %1807 = vmatprep.subr.mxu0 0.0
          %1808 = vmatpush1.msra.mxu0 0.0
          %1809 = vmatprep.subr.mxu0 0.0
          %1810 = vmatpush1.msra.mxu0 0.0
          %1811 = vmatprep.subr.mxu0 0.0
          %1812 = vmatpush1.msra.mxu0 0.0
          %1813 = vmatprep.subr.mxu0 0.0
          %1814 = vmatpush1.msra.mxu0 0.0
          %1815 = vmatprep.subr.mxu0 0.0
          %1816 = vmatpush1.msra.mxu0 0.0
          %1817 = vmatprep.subr.mxu0 0.0
          %1818 = vmatpush1.msra.mxu0 0.0
          %1819 = vmatprep.subr.mxu0 0.0
          %1820 = vmatpush1.msra.mxu0 0.0
          %1821 = vmatprep.subr.mxu0 0.0
          %1822 = vmatpush1.msra.mxu0 0.0
          %1823 = vmatprep.subr.mxu0 0.0
          %1824 = vmatpush1.msra.mxu0 0.0
          %1825 = vmatprep.subr.mxu0 0.0
          %1826 = vmatpush1.msra.mxu0 0.0
          %1827 = vmatprep.subr.mxu0 0.0
          %1828 = vmatpush1.msra.mxu0 0.0
          %1829 = vmatprep.subr.mxu0 0.0
          %1830 = vmatpush1.msra.mxu0 0.0
          %1831 = vmatprep.subr.mxu0 0.0
          %1832 = vmatpush1.msra.mxu0 0.0
          %1833 = vmatprep.subr.mxu0 0.0
          %1834 = vmatpush1.msra.mxu0 0.0
          %1835 = vmatprep.subr.mxu0 0.0
          %1836 = vmatpush1.msra.mxu0 0.0
          %1837 = vmatprep.subr.mxu0 0.0
          %1838 = vmatpush1.msra.mxu0 0.0
          %1839 = vmatprep.subr.mxu0 0.0
          %1840 = vmatpush1.msra.mxu0 0.0
          %1841 = vmatprep.subr.mxu0 0.0
          %1842 = vmatpush1.msra.mxu0 0.0
          %1843 = vmatprep.subr.mxu0 0.0
          %1844 = vmatpush1.msra.mxu0 0.0
          %1845 = vmatprep.subr.mxu0 0.0
          %1846 = vmatpush1.msra.mxu0 0.0
          %1847 = vmatprep.subr.mxu0 0.0
          %1848 = vmatpush1.msra.mxu0 0.0
          %1849 = vmatprep.subr.mxu0 0.0
          %1850 = vmatpush1.msra.mxu0 0.0
          %1851 = vmatprep.subr.mxu0 0.0
          %1852 = vmatpush1.msra.mxu0 0.0
          %1853 = vmatprep.mubr.f32.mxu0 0.0
          %1854 = vmatmul.mubr.f32.gmra.mrb[0].mxu0 %v1696
          %v1855 = vpop.f32.mrb[0].mxu0
          %v1856 = vadd.f32 %v1787, %v1855
          %v1857 = vpop.f32.mrb[0].mxu0
          %1858 = vmatprep.mubr.f32.mxu0 0.0
          %1859 = vmatmul.mubr.f32.gmra.mrb[0].mxu0 %v1699
          %v1860 = vpop.f32.mrb[0].mxu0
          %v1861 = vadd.f32 %v1787, %v1860
          %v1862 = vpop.f32.mrb[0].mxu0
          %1863 = vdwg.mxu0
          %1864 = vst.msk [vmem:[#allocation5] sm:$0xff] %vm1512, %v1856
          %1865 = vst.msk [vmem:[#allocation5 + $0x8] sm:$0xff] %vm1512, %v1861
        $region272: #{tpu_custom_call.1} parent=143 // pred_fallthru
          _
        %v1866 = vld [vmem:[%s1254] sm:$0xff]
        %v1867 = vld [vmem:[%s1281] sm:$0xff]
        %vm1868 = vcmp.ne.s32.totalorder %v1867, 0
        %v1869 = vld [vmem:[%s1290] sm:$0xff]
        %vm1870 = vcmp.ne.s32.totalorder %v1869, 0
        %v1871 = vld [vmem:[#allocation15] sm:$0xff]
        %v1872 = vld [vmem:[#allocation15 + $0x8] sm:$0xff]
        %v1873 = vld [vmem:[#allocation15 + $0x10] sm:$0xff]
        %v1874 = vld [vmem:[#allocation15 + $0x18] sm:$0xff]
        %v1875 = vld [vmem:[#allocation17] sm:$0x1]
        %v1877 = vlaneseq
        %v1878 = vshrl.u32 %v1877, 7
        %v1879 = vsub.s32 0, %v1878
        %v1880 = vrot.slane %v1875, %v1879
        %vm1882 = vcmask 261120
        %v1884 = vsel %vm1882, %v1866, 0
        %1886 = vmatprep.subr.mxu0 0.0
        %1887 = vmatpush1.msra.mxu0 %v1871
        %1888 = vmatprep.subr.mxu0 0.0
        %1889 = vmatpush1.msra.mxu0 %v1872
        %1890 = vmatprep.subr.mxu0 0.0
        %1891 = vmatpush1.msra.mxu0 %v1873
        %1892 = vmatprep.subr.mxu0 0.0
        %1893 = vmatpush1.msra.mxu0 %v1874
        %1894 = vmatprep.subr.mxu0 0.0
        %1895 = vmatpush1.msra.mxu0 0.0
        %1896 = vmatprep.subr.mxu0 0.0
        %1897 = vmatpush1.msra.mxu0 0.0
        %1898 = vmatprep.subr.mxu0 0.0
        %1899 = vmatpush1.msra.mxu0 0.0
        %1900 = vmatprep.subr.mxu0 0.0
        %1901 = vmatpush1.msra.mxu0 0.0
        %1902 = vmatprep.subr.mxu0 0.0
        %1903 = vmatpush1.msra.mxu0 0.0
        %1904 = vmatprep.subr.mxu0 0.0
        %1905 = vmatpush1.msra.mxu0 0.0
        %1906 = vmatprep.subr.mxu0 0.0
        %1907 = vmatpush1.msra.mxu0 0.0
        %1908 = vmatprep.subr.mxu0 0.0
        %1909 = vmatpush1.msra.mxu0 0.0
        %1910 = vmatprep.subr.mxu0 0.0
        %1911 = vmatpush1.msra.mxu0 0.0
        %1912 = vmatprep.subr.mxu0 0.0
        %1913 = vmatpush1.msra.mxu0 0.0
        %1914 = vmatprep.subr.mxu0 0.0
        %1915 = vmatpush1.msra.mxu0 0.0
        %1916 = vmatprep.subr.mxu0 0.0
        %1917 = vmatpush1.msra.mxu0 0.0
        %1918 = vmatprep.subr.mxu0 0.0
        %1919 = vmatpush1.msra.mxu0 0.0
        %1920 = vmatprep.subr.mxu0 0.0
        %1921 = vmatpush1.msra.mxu0 0.0
        %1922 = vmatprep.subr.mxu0 0.0
        %1923 = vmatpush1.msra.mxu0 0.0
        %1924 = vmatprep.subr.mxu0 0.0
        %1925 = vmatpush1.msra.mxu0 0.0
        %1926 = vmatprep.subr.mxu0 0.0
        %1927 = vmatpush1.msra.mxu0 0.0
        %1928 = vmatprep.subr.mxu0 0.0
        %1929 = vmatpush1.msra.mxu0 0.0
        %1930 = vmatprep.subr.mxu0 0.0
        %1931 = vmatpush1.msra.mxu0 0.0
        %1932 = vmatprep.subr.mxu0 0.0
        %1933 = vmatpush1.msra.mxu0 0.0
        %1934 = vmatprep.subr.mxu0 0.0
        %1935 = vmatpush1.msra.mxu0 0.0
        %1936 = vmatprep.subr.mxu0 0.0
        %1937 = vmatpush1.msra.mxu0 0.0
        %1938 = vmatprep.subr.mxu0 0.0
        %1939 = vmatpush1.msra.mxu0 0.0
        %1940 = vmatprep.subr.mxu0 0.0
        %1941 = vmatpush1.msra.mxu0 0.0
        %1942 = vmatprep.subr.mxu0 0.0
        %1943 = vmatpush1.msra.mxu0 0.0
        %1944 = vmatprep.subr.mxu0 0.0
        %1945 = vmatpush1.msra.mxu0 0.0
        %1946 = vmatprep.subr.mxu0 0.0
        %1947 = vmatpush1.msra.mxu0 0.0
        %1948 = vmatprep.subr.mxu0 0.0
        %1949 = vmatpush1.msra.mxu0 0.0
        %1950 = vmatprep.mubr.f32.mxu0 0.0
        %1951 = vmatmul.mubr.f32.gmra.mrb[0].mxu0 %v1884
        %v1952 = vpop.f32.mrb[0].mxu0
        %v1953 = vadd.f32 %v1880, %v1952
        %v1954 = vpop.f32.mrb[0].mxu0
        %1955 = vdwg.mxu0
        %v1956 = vmul.f32 %v1953, 0.35355338
        %v1957 = vld [vmem:[#allocation2] sm:$0xff]
        %v1958 = vld [vmem:[#allocation2 + $0x8] sm:$0xff]
        %v1959 = vld [vmem:[#allocation3] sm:$0xff]
        %v1960 = vld [vmem:[#allocation3 + $0x8] sm:$0xff]
        %vm1961 = vcmask 64512
        %v1963 = vsel %vm1961, %v1956, 0
        %v1966 = vsel %vm1961, %v1957, 0
        %v1969 = vsel %vm1961, %v1958, 0
        %1971 = vmatprep.subr.mxu0 0.0
        %1972 = vmatpush1.xpose.msra.mxu0 %v1966
        %1973 = vmatprep.subr.mxu0 0.0
        %1974 = vmatpush1.xpose.msra.mxu0 %v1969
        %1975 = vmatprep.subr.mxu0 0.0
        %1976 = vmatpush1.xpose.msra.mxu0 0.0
        %1977 = vmatprep.subr.mxu0 0.0
        %1978 = vmatpush1.xpose.msra.mxu0 0.0
        %1979 = vmatprep.subr.mxu0 0.0
        %1980 = vmatpush1.xpose.msra.mxu0 0.0
        %1981 = vmatprep.subr.mxu0 0.0
        %1982 = vmatpush1.xpose.msra.mxu0 0.0
        %1983 = vmatprep.subr.mxu0 0.0
        %1984 = vmatpush1.xpose.msra.mxu0 0.0
        %1985 = vmatprep.subr.mxu0 0.0
        %1986 = vmatpush1.xpose.msra.mxu0 0.0
        %1987 = vmatprep.subr.mxu0 0.0
        %1988 = vmatpush1.xpose.msra.mxu0 0.0
        %1989 = vmatprep.subr.mxu0 0.0
        %1990 = vmatpush1.xpose.msra.mxu0 0.0
        %1991 = vmatprep.subr.mxu0 0.0
        %1992 = vmatpush1.xpose.msra.mxu0 0.0
        %1993 = vmatprep.subr.mxu0 0.0
        %1994 = vmatpush1.xpose.msra.mxu0 0.0
        %1995 = vmatprep.subr.mxu0 0.0
        %1996 = vmatpush1.xpose.msra.mxu0 0.0
        %1997 = vmatprep.subr.mxu0 0.0
        %1998 = vmatpush1.xpose.msra.mxu0 0.0
        %1999 = vmatprep.subr.mxu0 0.0
        %2000 = vmatpush1.xpose.msra.mxu0 0.0
        %2001 = vmatprep.subr.mxu0 0.0
        %2002 = vmatpush1.xpose.msra.mxu0 0.0
        %2003 = vmatprep.subr.mxu0 0.0
        %2004 = vmatpush1.xpose.msra.mxu0 0.0
        %2005 = vmatprep.subr.mxu0 0.0
        %2006 = vmatpush1.xpose.msra.mxu0 0.0
        %2007 = vmatprep.subr.mxu0 0.0
        %2008 = vmatpush1.xpose.msra.mxu0 0.0
        %2009 = vmatprep.subr.mxu0 0.0
        %2010 = vmatpush1.xpose.msra.mxu0 0.0
        %2011 = vmatprep.subr.mxu0 0.0
        %2012 = vmatpush1.xpose.msra.mxu0 0.0
        %2013 = vmatprep.subr.mxu0 0.0
        %2014 = vmatpush1.xpose.msra.mxu0 0.0
        %2015 = vmatprep.subr.mxu0 0.0
        %2016 = vmatpush1.xpose.msra.mxu0 0.0
        %2017 = vmatprep.subr.mxu0 0.0
        %2018 = vmatpush1.xpose.msra.mxu0 0.0
        %2019 = vmatprep.subr.mxu0 0.0
        %2020 = vmatpush1.xpose.msra.mxu0 0.0
        %2021 = vmatprep.subr.mxu0 0.0
        %2022 = vmatpush1.xpose.msra.mxu0 0.0
        %2023 = vmatprep.subr.mxu0 0.0
        %2024 = vmatpush1.xpose.msra.mxu0 0.0
        %2025 = vmatprep.subr.mxu0 0.0
        %2026 = vmatpush1.xpose.msra.mxu0 0.0
        %2027 = vmatprep.subr.mxu0 0.0
        %2028 = vmatpush1.xpose.msra.mxu0 0.0
        %2029 = vmatprep.subr.mxu0 0.0
        %2030 = vmatpush1.xpose.msra.mxu0 0.0
        %2031 = vmatprep.subr.mxu0 0.0
        %2032 = vmatpush1.xpose.msra.mxu0 0.0
        %2033 = vmatprep.subr.mxu0 0.0
        %2034 = vmatpush1.xpose.msra.mxu0 0.0
        %2035 = vmatprep.mubr.f32.mxu0 0.0
        %2036 = vmatmul.mubr.f32.gmra.mrb[0].mxu0 %v1963
        %v2037 = vpop.f32.mrb[0].mxu0
        %v2038 = vadd.f32 0.0, %v2037
        %v2039 = vpop.f32.mrb[0].mxu0
        %2040 = vdwg.mxu0
        %v2041 = vsel %vm1868, %v2038, -1e+09
        %vm2042 = vcmask 130048
        %v2043 = vsel %vm2042, %v2041, -inf
        %2044 = vmax.xlane.f32.xlu0 %v2043
        %v2045 = vpop.xlane.xlu0 %2044
        %v2046 = vsub.f32 %v2041, %v2045
        %v2047 = vmul.f32 %v2046, 1.442695
        %v2048 = vpow.pop %v2047
        %v2049 = vsel %vm2042, %v2048, 0.0
        %2050 = vadd.xlane.f32.xlu0 %v2049
        %v2051 = vpop.xlane.xlu0 %2050
        %v2052 = vrcp.pop %v2051
        %v2053 = vmul.f32 %v2048, %v2052
        %v2055 = vsel %vm2042, %v2053, 0
        %2057 = vmatprep.subr.mxu0 0.0
        %2058 = vmatpush1.msra.mxu0 %v1959
        %2059 = vmatprep.subr.mxu0 0.0
        %2060 = vmatpush1.msra.mxu0 %v1960
        %2061 = vmatprep.subr.mxu0 0.0
        %2062 = vmatpush1.msra.mxu0 0.0
        %2063 = vmatprep.subr.mxu0 0.0
        %2064 = vmatpush1.msra.mxu0 0.0
        %2065 = vmatprep.subr.mxu0 0.0
        %2066 = vmatpush1.msra.mxu0 0.0
        %2067 = vmatprep.subr.mxu0 0.0
        %2068 = vmatpush1.msra.mxu0 0.0
        %2069 = vmatprep.subr.mxu0 0.0
        %2070 = vmatpush1.msra.mxu0 0.0
        %2071 = vmatprep.subr.mxu0 0.0
        %2072 = vmatpush1.msra.mxu0 0.0
        %2073 = vmatprep.subr.mxu0 0.0
        %2074 = vmatpush1.msra.mxu0 0.0
        %2075 = vmatprep.subr.mxu0 0.0
        %2076 = vmatpush1.msra.mxu0 0.0
        %2077 = vmatprep.subr.mxu0 0.0
        %2078 = vmatpush1.msra.mxu0 0.0
        %2079 = vmatprep.subr.mxu0 0.0
        %2080 = vmatpush1.msra.mxu0 0.0
        %2081 = vmatprep.subr.mxu0 0.0
        %2082 = vmatpush1.msra.mxu0 0.0
        %2083 = vmatprep.subr.mxu0 0.0
        %2084 = vmatpush1.msra.mxu0 0.0
        %2085 = vmatprep.subr.mxu0 0.0
        %2086 = vmatpush1.msra.mxu0 0.0
        %2087 = vmatprep.subr.mxu0 0.0
        %2088 = vmatpush1.msra.mxu0 0.0
        %2089 = vmatprep.subr.mxu0 0.0
        %2090 = vmatpush1.msra.mxu0 0.0
        %2091 = vmatprep.subr.mxu0 0.0
        %2092 = vmatpush1.msra.mxu0 0.0
        %2093 = vmatprep.subr.mxu0 0.0
        %2094 = vmatpush1.msra.mxu0 0.0
        %2095 = vmatprep.subr.mxu0 0.0
        %2096 = vmatpush1.msra.mxu0 0.0
        %2097 = vmatprep.subr.mxu0 0.0
        %2098 = vmatpush1.msra.mxu0 0.0
        %2099 = vmatprep.subr.mxu0 0.0
        %2100 = vmatpush1.msra.mxu0 0.0
        %2101 = vmatprep.subr.mxu0 0.0
        %2102 = vmatpush1.msra.mxu0 0.0
        %2103 = vmatprep.subr.mxu0 0.0
        %2104 = vmatpush1.msra.mxu0 0.0
        %2105 = vmatprep.subr.mxu0 0.0
        %2106 = vmatpush1.msra.mxu0 0.0
        %2107 = vmatprep.subr.mxu0 0.0
        %2108 = vmatpush1.msra.mxu0 0.0
        %2109 = vmatprep.subr.mxu0 0.0
        %2110 = vmatpush1.msra.mxu0 0.0
        %2111 = vmatprep.subr.mxu0 0.0
        %2112 = vmatpush1.msra.mxu0 0.0
        %2113 = vmatprep.subr.mxu0 0.0
        %2114 = vmatpush1.msra.mxu0 0.0
        %2115 = vmatprep.subr.mxu0 0.0
        %2116 = vmatpush1.msra.mxu0 0.0
        %2117 = vmatprep.subr.mxu0 0.0
        %2118 = vmatpush1.msra.mxu0 0.0
        %2119 = vmatprep.subr.mxu0 0.0
        %2120 = vmatpush1.msra.mxu0 0.0
        %2121 = vmatprep.mubr.f32.mxu0 0.0
        %2122 = vmatmul.mubr.f32.gmra.mrb[0].mxu0 %v2055
        %v2123 = vpop.f32.mrb[0].mxu0
        %v2124 = vadd.f32 0.0, %v2123
        %v2125 = vpop.f32.mrb[0].mxu0
        %2126 = vdwg.mxu0
        %2127 = vrot.lane.b32.xlu0 %v1956, 120
        %v2128 = vpop.permute.xlu0 %2127
        %2129 = vrot.lane.b32.xlu0 %v1957, 120
        %v2130 = vpop.permute.xlu0 %2129
        %2131 = vrot.lane.b32.xlu0 %v1958, 120
        %v2132 = vpop.permute.xlu0 %2131
        %v2133 = vsel %vm1961, %v2128, 0
        %v2135 = vsel %vm1961, %v2130, 0
        %v2137 = vsel %vm1961, %v2132, 0
        %2139 = vmatprep.subr.mxu0 0.0
        %2140 = vmatpush1.xpose.msra.mxu0 %v2135
        %2141 = vmatprep.subr.mxu0 0.0
        %2142 = vmatpush1.xpose.msra.mxu0 %v2137
        %2143 = vmatprep.subr.mxu0 0.0
        %2144 = vmatpush1.xpose.msra.mxu0 0.0
        %2145 = vmatprep.subr.mxu0 0.0
        %2146 = vmatpush1.xpose.msra.mxu0 0.0
        %2147 = vmatprep.subr.mxu0 0.0
        %2148 = vmatpush1.xpose.msra.mxu0 0.0
        %2149 = vmatprep.subr.mxu0 0.0
        %2150 = vmatpush1.xpose.msra.mxu0 0.0
        %2151 = vmatprep.subr.mxu0 0.0
        %2152 = vmatpush1.xpose.msra.mxu0 0.0
        %2153 = vmatprep.subr.mxu0 0.0
        %2154 = vmatpush1.xpose.msra.mxu0 0.0
        %2155 = vmatprep.subr.mxu0 0.0
        %2156 = vmatpush1.xpose.msra.mxu0 0.0
        %2157 = vmatprep.subr.mxu0 0.0
        %2158 = vmatpush1.xpose.msra.mxu0 0.0
        %2159 = vmatprep.subr.mxu0 0.0
        %2160 = vmatpush1.xpose.msra.mxu0 0.0
        %2161 = vmatprep.subr.mxu0 0.0
        %2162 = vmatpush1.xpose.msra.mxu0 0.0
        %2163 = vmatprep.subr.mxu0 0.0
        %2164 = vmatpush1.xpose.msra.mxu0 0.0
        %2165 = vmatprep.subr.mxu0 0.0
        %2166 = vmatpush1.xpose.msra.mxu0 0.0
        %2167 = vmatprep.subr.mxu0 0.0
        %2168 = vmatpush1.xpose.msra.mxu0 0.0
        %2169 = vmatprep.subr.mxu0 0.0
        %2170 = vmatpush1.xpose.msra.mxu0 0.0
        %2171 = vmatprep.subr.mxu0 0.0
        %2172 = vmatpush1.xpose.msra.mxu0 0.0
        %2173 = vmatprep.subr.mxu0 0.0
        %2174 = vmatpush1.xpose.msra.mxu0 0.0
        %2175 = vmatprep.subr.mxu0 0.0
        %2176 = vmatpush1.xpose.msra.mxu0 0.0
        %2177 = vmatprep.subr.mxu0 0.0
        %2178 = vmatpush1.xpose.msra.mxu0 0.0
        %2179 = vmatprep.subr.mxu0 0.0
        %2180 = vmatpush1.xpose.msra.mxu0 0.0
        %2181 = vmatprep.subr.mxu0 0.0
        %2182 = vmatpush1.xpose.msra.mxu0 0.0
        %2183 = vmatprep.subr.mxu0 0.0
        %2184 = vmatpush1.xpose.msra.mxu0 0.0
        %2185 = vmatprep.subr.mxu0 0.0
        %2186 = vmatpush1.xpose.msra.mxu0 0.0
        %2187 = vmatprep.subr.mxu0 0.0
        %2188 = vmatpush1.xpose.msra.mxu0 0.0
        %2189 = vmatprep.subr.mxu0 0.0
        %2190 = vmatpush1.xpose.msra.mxu0 0.0
        %2191 = vmatprep.subr.mxu0 0.0
        %2192 = vmatpush1.xpose.msra.mxu0 0.0
        %2193 = vmatprep.subr.mxu0 0.0
        %2194 = vmatpush1.xpose.msra.mxu0 0.0
        %2195 = vmatprep.subr.mxu0 0.0
        %2196 = vmatpush1.xpose.msra.mxu0 0.0
        %2197 = vmatprep.subr.mxu0 0.0
        %2198 = vmatpush1.xpose.msra.mxu0 0.0
        %2199 = vmatprep.subr.mxu0 0.0
        %2200 = vmatpush1.xpose.msra.mxu0 0.0
        %2201 = vmatprep.subr.mxu0 0.0
        %2202 = vmatpush1.xpose.msra.mxu0 0.0
        %2203 = vmatprep.mubr.f32.mxu0 0.0
        %2204 = vmatmul.mubr.f32.gmra.mrb[0].mxu0 %v2133
        %v2205 = vpop.f32.mrb[0].mxu0
        %v2206 = vadd.f32 0.0, %v2205
        %v2207 = vpop.f32.mrb[0].mxu0
        %2208 = vdwg.mxu0
        %v2209 = vsel %vm1868, %v2206, -1e+09
        %v2210 = vsel %vm2042, %v2209, -inf
        %2211 = vmax.xlane.f32.xlu0 %v2210
        %v2212 = vpop.xlane.xlu0 %2211
        %v2213 = vsub.f32 %v2209, %v2212
        %v2214 = vmul.f32 %v2213, 1.442695
        %v2215 = vpow.pop %v2214
        %v2216 = vsel %vm2042, %v2215, 0.0
        %2217 = vadd.xlane.f32.xlu0 %v2216
        %v2218 = vpop.xlane.xlu0 %2217
        %v2219 = vrcp.pop %v2218
        %v2220 = vmul.f32 %v2215, %v2219
        %2223 = vrot.lane.b32.xlu0 %v1959, 120
        %v2224 = vpop.permute.xlu0 %2223
        %2225 = vrot.lane.b32.xlu0 %v1960, 120
        %v2226 = vpop.permute.xlu0 %2225
        %v2230 = vsel %vm2042, %v2220, 0
        %2232 = vmatprep.subr.mxu0 0.0
        %2233 = vmatpush1.msra.mxu0 %v2224
        %2234 = vmatprep.subr.mxu0 0.0
        %2235 = vmatpush1.msra.mxu0 %v2226
        %2236 = vmatprep.subr.mxu0 0.0
        %2237 = vmatpush1.msra.mxu0 0.0
        %2238 = vmatprep.subr.mxu0 0.0
        %2239 = vmatpush1.msra.mxu0 0.0
        %2240 = vmatprep.subr.mxu0 0.0
        %2241 = vmatpush1.msra.mxu0 0.0
        %2242 = vmatprep.subr.mxu0 0.0
        %2243 = vmatpush1.msra.mxu0 0.0
        %2244 = vmatprep.subr.mxu0 0.0
        %2245 = vmatpush1.msra.mxu0 0.0
        %2246 = vmatprep.subr.mxu0 0.0
        %2247 = vmatpush1.msra.mxu0 0.0
        %2248 = vmatprep.subr.mxu0 0.0
        %2249 = vmatpush1.msra.mxu0 0.0
        %2250 = vmatprep.subr.mxu0 0.0
        %2251 = vmatpush1.msra.mxu0 0.0
        %2252 = vmatprep.subr.mxu0 0.0
        %2253 = vmatpush1.msra.mxu0 0.0
        %2254 = vmatprep.subr.mxu0 0.0
        %2255 = vmatpush1.msra.mxu0 0.0
        %2256 = vmatprep.subr.mxu0 0.0
        %2257 = vmatpush1.msra.mxu0 0.0
        %2258 = vmatprep.subr.mxu0 0.0
        %2259 = vmatpush1.msra.mxu0 0.0
        %2260 = vmatprep.subr.mxu0 0.0
        %2261 = vmatpush1.msra.mxu0 0.0
        %2262 = vmatprep.subr.mxu0 0.0
        %2263 = vmatpush1.msra.mxu0 0.0
        %2264 = vmatprep.subr.mxu0 0.0
        %2265 = vmatpush1.msra.mxu0 0.0
        %2266 = vmatprep.subr.mxu0 0.0
        %2267 = vmatpush1.msra.mxu0 0.0
        %2268 = vmatprep.subr.mxu0 0.0
        %2269 = vmatpush1.msra.mxu0 0.0
        %2270 = vmatprep.subr.mxu0 0.0
        %2271 = vmatpush1.msra.mxu0 0.0
        %2272 = vmatprep.subr.mxu0 0.0
        %2273 = vmatpush1.msra.mxu0 0.0
        %2274 = vmatprep.subr.mxu0 0.0
        %2275 = vmatpush1.msra.mxu0 0.0
        %2276 = vmatprep.subr.mxu0 0.0
        %2277 = vmatpush1.msra.mxu0 0.0
        %2278 = vmatprep.subr.mxu0 0.0
        %2279 = vmatpush1.msra.mxu0 0.0
        %2280 = vmatprep.subr.mxu0 0.0
        %2281 = vmatpush1.msra.mxu0 0.0
        %2282 = vmatprep.subr.mxu0 0.0
        %2283 = vmatpush1.msra.mxu0 0.0
        %2284 = vmatprep.subr.mxu0 0.0
        %2285 = vmatpush1.msra.mxu0 0.0
        %2286 = vmatprep.subr.mxu0 0.0
        %2287 = vmatpush1.msra.mxu0 0.0
        %2288 = vmatprep.subr.mxu0 0.0
        %2289 = vmatpush1.msra.mxu0 0.0
        %2290 = vmatprep.subr.mxu0 0.0
        %2291 = vmatpush1.msra.mxu0 0.0
        %2292 = vmatprep.subr.mxu0 0.0
        %2293 = vmatpush1.msra.mxu0 0.0
        %2294 = vmatprep.subr.mxu0 0.0
        %2295 = vmatpush1.msra.mxu0 0.0
        %2296 = vmatprep.mubr.f32.mxu0 0.0
        %2297 = vmatmul.mubr.f32.gmra.mrb[0].mxu0 %v2230
        %v2298 = vpop.f32.mrb[0].mxu0
        %v2299 = vadd.f32 0.0, %v2298
        %v2300 = vpop.f32.mrb[0].mxu0
        %2301 = vdwg.mxu0
        %2302 = vrot.lane.b32.xlu0 %v1956, 112
        %v2303 = vpop.permute.xlu0 %2302
        %2304 = vrot.lane.b32.xlu0 %v1957, 112
        %v2305 = vpop.permute.xlu0 %2304
        %2306 = vrot.lane.b32.xlu0 %v1958, 112
        %v2307 = vpop.permute.xlu0 %2306
        %v2308 = vsel %vm1961, %v2303, 0
        %v2310 = vsel %vm1961, %v2305, 0
        %v2312 = vsel %vm1961, %v2307, 0
        %2314 = vmatprep.subr.mxu0 0.0
        %2315 = vmatpush1.xpose.msra.mxu0 %v2310
        %2316 = vmatprep.subr.mxu0 0.0
        %2317 = vmatpush1.xpose.msra.mxu0 %v2312
        %2318 = vmatprep.subr.mxu0 0.0
        %2319 = vmatpush1.xpose.msra.mxu0 0.0
        %2320 = vmatprep.subr.mxu0 0.0
        %2321 = vmatpush1.xpose.msra.mxu0 0.0
        %2322 = vmatprep.subr.mxu0 0.0
        %2323 = vmatpush1.xpose.msra.mxu0 0.0
        %2324 = vmatprep.subr.mxu0 0.0
        %2325 = vmatpush1.xpose.msra.mxu0 0.0
        %2326 = vmatprep.subr.mxu0 0.0
        %2327 = vmatpush1.xpose.msra.mxu0 0.0
        %2328 = vmatprep.subr.mxu0 0.0
        %2329 = vmatpush1.xpose.msra.mxu0 0.0
        %2330 = vmatprep.subr.mxu0 0.0
        %2331 = vmatpush1.xpose.msra.mxu0 0.0
        %2332 = vmatprep.subr.mxu0 0.0
        %2333 = vmatpush1.xpose.msra.mxu0 0.0
        %2334 = vmatprep.subr.mxu0 0.0
        %2335 = vmatpush1.xpose.msra.mxu0 0.0
        %2336 = vmatprep.subr.mxu0 0.0
        %2337 = vmatpush1.xpose.msra.mxu0 0.0
        %2338 = vmatprep.subr.mxu0 0.0
        %2339 = vmatpush1.xpose.msra.mxu0 0.0
        %2340 = vmatprep.subr.mxu0 0.0
        %2341 = vmatpush1.xpose.msra.mxu0 0.0
        %2342 = vmatprep.subr.mxu0 0.0
        %2343 = vmatpush1.xpose.msra.mxu0 0.0
        %2344 = vmatprep.subr.mxu0 0.0
        %2345 = vmatpush1.xpose.msra.mxu0 0.0
        %2346 = vmatprep.subr.mxu0 0.0
        %2347 = vmatpush1.xpose.msra.mxu0 0.0
        %2348 = vmatprep.subr.mxu0 0.0
        %2349 = vmatpush1.xpose.msra.mxu0 0.0
        %2350 = vmatprep.subr.mxu0 0.0
        %2351 = vmatpush1.xpose.msra.mxu0 0.0
        %2352 = vmatprep.subr.mxu0 0.0
        %2353 = vmatpush1.xpose.msra.mxu0 0.0
        %2354 = vmatprep.subr.mxu0 0.0
        %2355 = vmatpush1.xpose.msra.mxu0 0.0
        %2356 = vmatprep.subr.mxu0 0.0
        %2357 = vmatpush1.xpose.msra.mxu0 0.0
        %2358 = vmatprep.subr.mxu0 0.0
        %2359 = vmatpush1.xpose.msra.mxu0 0.0
        %2360 = vmatprep.subr.mxu0 0.0
        %2361 = vmatpush1.xpose.msra.mxu0 0.0
        %2362 = vmatprep.subr.mxu0 0.0
        %2363 = vmatpush1.xpose.msra.mxu0 0.0
        %2364 = vmatprep.subr.mxu0 0.0
        %2365 = vmatpush1.xpose.msra.mxu0 0.0
        %2366 = vmatprep.subr.mxu0 0.0
        %2367 = vmatpush1.xpose.msra.mxu0 0.0
        %2368 = vmatprep.subr.mxu0 0.0
        %2369 = vmatpush1.xpose.msra.mxu0 0.0
        %2370 = vmatprep.subr.mxu0 0.0
        %2371 = vmatpush1.xpose.msra.mxu0 0.0
        %2372 = vmatprep.subr.mxu0 0.0
        %2373 = vmatpush1.xpose.msra.mxu0 0.0
        %2374 = vmatprep.subr.mxu0 0.0
        %2375 = vmatpush1.xpose.msra.mxu0 0.0
        %2376 = vmatprep.subr.mxu0 0.0
        %2377 = vmatpush1.xpose.msra.mxu0 0.0
        %2378 = vmatprep.mubr.f32.mxu0 0.0
        %2379 = vmatmul.mubr.f32.gmra.mrb[0].mxu0 %v2308
        %v2380 = vpop.f32.mrb[0].mxu0
        %v2381 = vadd.f32 0.0, %v2380
        %v2382 = vpop.f32.mrb[0].mxu0
        %2383 = vdwg.mxu0
        %v2384 = vsel %vm1868, %v2381, -1e+09
        %v2385 = vsel %vm2042, %v2384, -inf
        %2386 = vmax.xlane.f32.xlu0 %v2385
        %v2387 = vpop.xlane.xlu0 %2386
        %v2388 = vsub.f32 %v2384, %v2387
        %v2389 = vmul.f32 %v2388, 1.442695
        %v2390 = vpow.pop %v2389
        %v2391 = vsel %vm2042, %v2390, 0.0
        %2392 = vadd.xlane.f32.xlu0 %v2391
        %v2393 = vpop.xlane.xlu0 %2392
        %v2394 = vrcp.pop %v2393
        %v2395 = vmul.f32 %v2390, %v2394
        %2396 = vrot.lane.b32.xlu0 %v1959, 112
        %v2397 = vpop.permute.xlu0 %2396
        %2398 = vrot.lane.b32.xlu0 %v1960, 112
        %v2399 = vpop.permute.xlu0 %2398
        %v2403 = vsel %vm2042, %v2395, 0
        %2405 = vmatprep.subr.mxu0 0.0
        %2406 = vmatpush1.msra.mxu0 %v2397
        %2407 = vmatprep.subr.mxu0 0.0
        %2408 = vmatpush1.msra.mxu0 %v2399
        %2409 = vmatprep.subr.mxu0 0.0
        %2410 = vmatpush1.msra.mxu0 0.0
        %2411 = vmatprep.subr.mxu0 0.0
        %2412 = vmatpush1.msra.mxu0 0.0
        %2413 = vmatprep.subr.mxu0 0.0
        %2414 = vmatpush1.msra.mxu0 0.0
        %2415 = vmatprep.subr.mxu0 0.0
        %2416 = vmatpush1.msra.mxu0 0.0
        %2417 = vmatprep.subr.mxu0 0.0
        %2418 = vmatpush1.msra.mxu0 0.0
        %2419 = vmatprep.subr.mxu0 0.0
        %2420 = vmatpush1.msra.mxu0 0.0
        %2421 = vmatprep.subr.mxu0 0.0
        %2422 = vmatpush1.msra.mxu0 0.0
        %2423 = vmatprep.subr.mxu0 0.0
        %2424 = vmatpush1.msra.mxu0 0.0
        %2425 = vmatprep.subr.mxu0 0.0
        %2426 = vmatpush1.msra.mxu0 0.0
        %2427 = vmatprep.subr.mxu0 0.0
        %2428 = vmatpush1.msra.mxu0 0.0
        %2429 = vmatprep.subr.mxu0 0.0
        %2430 = vmatpush1.msra.mxu0 0.0
        %2431 = vmatprep.subr.mxu0 0.0
        %2432 = vmatpush1.msra.mxu0 0.0
        %2433 = vmatprep.subr.mxu0 0.0
        %2434 = vmatpush1.msra.mxu0 0.0
        %2435 = vmatprep.subr.mxu0 0.0
        %2436 = vmatpush1.msra.mxu0 0.0
        %2437 = vmatprep.subr.mxu0 0.0
        %2438 = vmatpush1.msra.mxu0 0.0
        %2439 = vmatprep.subr.mxu0 0.0
        %2440 = vmatpush1.msra.mxu0 0.0
        %2441 = vmatprep.subr.mxu0 0.0
        %2442 = vmatpush1.msra.mxu0 0.0
        %2443 = vmatprep.subr.mxu0 0.0
        %2444 = vmatpush1.msra.mxu0 0.0
        %2445 = vmatprep.subr.mxu0 0.0
        %2446 = vmatpush1.msra.mxu0 0.0
        %2447 = vmatprep.subr.mxu0 0.0
        %2448 = vmatpush1.msra.mxu0 0.0
        %2449 = vmatprep.subr.mxu0 0.0
        %2450 = vmatpush1.msra.mxu0 0.0
        %2451 = vmatprep.subr.mxu0 0.0
        %2452 = vmatpush1.msra.mxu0 0.0
        %2453 = vmatprep.subr.mxu0 0.0
        %2454 = vmatpush1.msra.mxu0 0.0
        %2455 = vmatprep.subr.mxu0 0.0
        %2456 = vmatpush1.msra.mxu0 0.0
        %2457 = vmatprep.subr.mxu0 0.0
        %2458 = vmatpush1.msra.mxu0 0.0
        %2459 = vmatprep.subr.mxu0 0.0
        %2460 = vmatpush1.msra.mxu0 0.0
        %2461 = vmatprep.subr.mxu0 0.0
        %2462 = vmatpush1.msra.mxu0 0.0
        %2463 = vmatprep.subr.mxu0 0.0
        %2464 = vmatpush1.msra.mxu0 0.0
        %2465 = vmatprep.subr.mxu0 0.0
        %2466 = vmatpush1.msra.mxu0 0.0
        %2467 = vmatprep.subr.mxu0 0.0
        %2468 = vmatpush1.msra.mxu0 0.0
        %2469 = vmatprep.mubr.f32.mxu0 0.0
        %2470 = vmatmul.mubr.f32.gmra.mrb[0].mxu0 %v2403
        %v2471 = vpop.f32.mrb[0].mxu0
        %v2472 = vadd.f32 0.0, %v2471
        %v2473 = vpop.f32.mrb[0].mxu0
        %2474 = vdwg.mxu0
        %2475 = vrot.lane.b32.xlu0 %v1956, 104
        %v2476 = vpop.permute.xlu0 %2475
        %2477 = vrot.lane.b32.xlu0 %v1957, 104
        %v2478 = vpop.permute.xlu0 %2477
        %2479 = vrot.lane.b32.xlu0 %v1958, 104
        %v2480 = vpop.permute.xlu0 %2479
        %v2481 = vsel %vm1961, %v2476, 0
        %v2483 = vsel %vm1961, %v2478, 0
        %v2485 = vsel %vm1961, %v2480, 0
        %2487 = vmatprep.subr.mxu0 0.0
        %2488 = vmatpush1.xpose.msra.mxu0 %v2483
        %2489 = vmatprep.subr.mxu0 0.0
        %2490 = vmatpush1.xpose.msra.mxu0 %v2485
        %2491 = vmatprep.subr.mxu0 0.0
        %2492 = vmatpush1.xpose.msra.mxu0 0.0
        %2493 = vmatprep.subr.mxu0 0.0
        %2494 = vmatpush1.xpose.msra.mxu0 0.0
        %2495 = vmatprep.subr.mxu0 0.0
        %2496 = vmatpush1.xpose.msra.mxu0 0.0
        %2497 = vmatprep.subr.mxu0 0.0
        %2498 = vmatpush1.xpose.msra.mxu0 0.0
        %2499 = vmatprep.subr.mxu0 0.0
        %2500 = vmatpush1.xpose.msra.mxu0 0.0
        %2501 = vmatprep.subr.mxu0 0.0
        %2502 = vmatpush1.xpose.msra.mxu0 0.0
        %2503 = vmatprep.subr.mxu0 0.0
        %2504 = vmatpush1.xpose.msra.mxu0 0.0
        %2505 = vmatprep.subr.mxu0 0.0
        %2506 = vmatpush1.xpose.msra.mxu0 0.0
        %2507 = vmatprep.subr.mxu0 0.0
        %2508 = vmatpush1.xpose.msra.mxu0 0.0
        %2509 = vmatprep.subr.mxu0 0.0
        %2510 = vmatpush1.xpose.msra.mxu0 0.0
        %2511 = vmatprep.subr.mxu0 0.0
        %2512 = vmatpush1.xpose.msra.mxu0 0.0
        %2513 = vmatprep.subr.mxu0 0.0
        %2514 = vmatpush1.xpose.msra.mxu0 0.0
        %2515 = vmatprep.subr.mxu0 0.0
        %2516 = vmatpush1.xpose.msra.mxu0 0.0
        %2517 = vmatprep.subr.mxu0 0.0
        %2518 = vmatpush1.xpose.msra.mxu0 0.0
        %2519 = vmatprep.subr.mxu0 0.0
        %2520 = vmatpush1.xpose.msra.mxu0 0.0
        %2521 = vmatprep.subr.mxu0 0.0
        %2522 = vmatpush1.xpose.msra.mxu0 0.0
        %2523 = vmatprep.subr.mxu0 0.0
        %2524 = vmatpush1.xpose.msra.mxu0 0.0
        %2525 = vmatprep.subr.mxu0 0.0
        %2526 = vmatpush1.xpose.msra.mxu0 0.0
        %2527 = vmatprep.subr.mxu0 0.0
        %2528 = vmatpush1.xpose.msra.mxu0 0.0
        %2529 = vmatprep.subr.mxu0 0.0
        %2530 = vmatpush1.xpose.msra.mxu0 0.0
        %2531 = vmatprep.subr.mxu0 0.0
        %2532 = vmatpush1.xpose.msra.mxu0 0.0
        %2533 = vmatprep.subr.mxu0 0.0
        %2534 = vmatpush1.xpose.msra.mxu0 0.0
        %2535 = vmatprep.subr.mxu0 0.0
        %2536 = vmatpush1.xpose.msra.mxu0 0.0
        %2537 = vmatprep.subr.mxu0 0.0
        %2538 = vmatpush1.xpose.msra.mxu0 0.0
        %2539 = vmatprep.subr.mxu0 0.0
        %2540 = vmatpush1.xpose.msra.mxu0 0.0
        %2541 = vmatprep.subr.mxu0 0.0
        %2542 = vmatpush1.xpose.msra.mxu0 0.0
        %2543 = vmatprep.subr.mxu0 0.0
        %2544 = vmatpush1.xpose.msra.mxu0 0.0
        %2545 = vmatprep.subr.mxu0 0.0
        %2546 = vmatpush1.xpose.msra.mxu0 0.0
        %2547 = vmatprep.subr.mxu0 0.0
        %2548 = vmatpush1.xpose.msra.mxu0 0.0
        %2549 = vmatprep.subr.mxu0 0.0
        %2550 = vmatpush1.xpose.msra.mxu0 0.0
        %2551 = vmatprep.mubr.f32.mxu0 0.0
        %2552 = vmatmul.mubr.f32.gmra.mrb[0].mxu0 %v2481
        %v2553 = vpop.f32.mrb[0].mxu0
        %v2554 = vadd.f32 0.0, %v2553
        %v2555 = vpop.f32.mrb[0].mxu0
        %2556 = vdwg.mxu0
        %v2557 = vsel %vm1868, %v2554, -1e+09
        %v2558 = vsel %vm2042, %v2557, -inf
        %2559 = vmax.xlane.f32.xlu0 %v2558
        %v2560 = vpop.xlane.xlu0 %2559
        %v2561 = vsub.f32 %v2557, %v2560
        %v2562 = vmul.f32 %v2561, 1.442695
        %v2563 = vpow.pop %v2562
        %v2564 = vsel %vm2042, %v2563, 0.0
        %2565 = vadd.xlane.f32.xlu0 %v2564
        %v2566 = vpop.xlane.xlu0 %2565
        %v2567 = vrcp.pop %v2566
        %v2568 = vmul.f32 %v2563, %v2567
        %2569 = vrot.lane.b32.xlu0 %v1959, 104
        %v2570 = vpop.permute.xlu0 %2569
        %2571 = vrot.lane.b32.xlu0 %v1960, 104
        %v2572 = vpop.permute.xlu0 %2571
        %v2576 = vsel %vm2042, %v2568, 0
        %2578 = vmatprep.subr.mxu0 0.0
        %2579 = vmatpush1.msra.mxu0 %v2570
        %2580 = vmatprep.subr.mxu0 0.0
        %2581 = vmatpush1.msra.mxu0 %v2572
        %2582 = vmatprep.subr.mxu0 0.0
        %2583 = vmatpush1.msra.mxu0 0.0
        %2584 = vmatprep.subr.mxu0 0.0
        %2585 = vmatpush1.msra.mxu0 0.0
        %2586 = vmatprep.subr.mxu0 0.0
        %2587 = vmatpush1.msra.mxu0 0.0
        %2588 = vmatprep.subr.mxu0 0.0
        %2589 = vmatpush1.msra.mxu0 0.0
        %2590 = vmatprep.subr.mxu0 0.0
        %2591 = vmatpush1.msra.mxu0 0.0
        %2592 = vmatprep.subr.mxu0 0.0
        %2593 = vmatpush1.msra.mxu0 0.0
        %2594 = vmatprep.subr.mxu0 0.0
        %2595 = vmatpush1.msra.mxu0 0.0
        %2596 = vmatprep.subr.mxu0 0.0
        %2597 = vmatpush1.msra.mxu0 0.0
        %2598 = vmatprep.subr.mxu0 0.0
        %2599 = vmatpush1.msra.mxu0 0.0
        %2600 = vmatprep.subr.mxu0 0.0
        %2601 = vmatpush1.msra.mxu0 0.0
        %2602 = vmatprep.subr.mxu0 0.0
        %2603 = vmatpush1.msra.mxu0 0.0
        %2604 = vmatprep.subr.mxu0 0.0
        %2605 = vmatpush1.msra.mxu0 0.0
        %2606 = vmatprep.subr.mxu0 0.0
        %2607 = vmatpush1.msra.mxu0 0.0
        %2608 = vmatprep.subr.mxu0 0.0
        %2609 = vmatpush1.msra.mxu0 0.0
        %2610 = vmatprep.subr.mxu0 0.0
        %2611 = vmatpush1.msra.mxu0 0.0
        %2612 = vmatprep.subr.mxu0 0.0
        %2613 = vmatpush1.msra.mxu0 0.0
        %2614 = vmatprep.subr.mxu0 0.0
        %2615 = vmatpush1.msra.mxu0 0.0
        %2616 = vmatprep.subr.mxu0 0.0
        %2617 = vmatpush1.msra.mxu0 0.0
        %2618 = vmatprep.subr.mxu0 0.0
        %2619 = vmatpush1.msra.mxu0 0.0
        %2620 = vmatprep.subr.mxu0 0.0
        %2621 = vmatpush1.msra.mxu0 0.0
        %2622 = vmatprep.subr.mxu0 0.0
        %2623 = vmatpush1.msra.mxu0 0.0
        %2624 = vmatprep.subr.mxu0 0.0
        %2625 = vmatpush1.msra.mxu0 0.0
        %2626 = vmatprep.subr.mxu0 0.0
        %2627 = vmatpush1.msra.mxu0 0.0
        %2628 = vmatprep.subr.mxu0 0.0
        %2629 = vmatpush1.msra.mxu0 0.0
        %2630 = vmatprep.subr.mxu0 0.0
        %2631 = vmatpush1.msra.mxu0 0.0
        %2632 = vmatprep.subr.mxu0 0.0
        %2633 = vmatpush1.msra.mxu0 0.0
        %2634 = vmatprep.subr.mxu0 0.0
        %2635 = vmatpush1.msra.mxu0 0.0
        %2636 = vmatprep.subr.mxu0 0.0
        %2637 = vmatpush1.msra.mxu0 0.0
        %2638 = vmatprep.subr.mxu0 0.0
        %2639 = vmatpush1.msra.mxu0 0.0
        %2640 = vmatprep.subr.mxu0 0.0
        %2641 = vmatpush1.msra.mxu0 0.0
        %2642 = vmatprep.mubr.f32.mxu0 0.0
        %2643 = vmatmul.mubr.f32.gmra.mrb[0].mxu0 %v2576
        %v2644 = vpop.f32.mrb[0].mxu0
        %v2645 = vadd.f32 0.0, %v2644
        %v2646 = vpop.f32.mrb[0].mxu0
        %2647 = vdwg.mxu0
        %2649 = vrot.lane.b32.xlu0 %v2299, 8
        %v2650 = vpop.permute.xlu0 %2649
        %2653 = vrot.lane.b32.xlu0 %v2472, 16
        %v2654 = vpop.permute.xlu0 %2653
        %2657 = vrot.lane.b32.xlu0 %v2645, 24
        %v2658 = vpop.permute.xlu0 %2657
        %v2660 = vsel %vm1961, %v2124, %v2650
        %v2661 = vsel %vm2042, %v2660, %v2654
        %vm2662 = vcmask 195584
        %v2663 = vsel %vm2662, %v2661, %v2658
        %v2664 = vld [vmem:[#allocation24] sm:$0xff]
        %v2665 = vld [vmem:[#allocation24 + $0x8] sm:$0xff]
        %v2666 = vld [vmem:[#allocation24 + $0x10] sm:$0xff]
        %v2667 = vld [vmem:[#allocation24 + $0x18] sm:$0xff]
        %v2668 = vld [vmem:[#allocation26] sm:$0x1]
        %v2670 = vlaneseq
        %v2671 = vshrl.u32 %v2670, 7
        %v2672 = vsub.s32 0, %v2671
        %v2673 = vrot.slane %v2668, %v2672
        %v2676 = vsel %vm1882, %v2663, 0
        %2678 = vmatprep.subr.mxu0 0.0
        %2679 = vmatpush1.msra.mxu0 %v2664
        %2680 = vmatprep.subr.mxu0 0.0
        %2681 = vmatpush1.msra.mxu0 %v2665
        %2682 = vmatprep.subr.mxu0 0.0
        %2683 = vmatpush1.msra.mxu0 %v2666
        %2684 = vmatprep.subr.mxu0 0.0
        %2685 = vmatpush1.msra.mxu0 %v2667
        %2686 = vmatprep.subr.mxu0 0.0
        %2687 = vmatpush1.msra.mxu0 0.0
        %2688 = vmatprep.subr.mxu0 0.0
        %2689 = vmatpush1.msra.mxu0 0.0
        %2690 = vmatprep.subr.mxu0 0.0
        %2691 = vmatpush1.msra.mxu0 0.0
        %2692 = vmatprep.subr.mxu0 0.0
        %2693 = vmatpush1.msra.mxu0 0.0
        %2694 = vmatprep.subr.mxu0 0.0
        %2695 = vmatpush1.msra.mxu0 0.0
        %2696 = vmatprep.subr.mxu0 0.0
        %2697 = vmatpush1.msra.mxu0 0.0
        %2698 = vmatprep.subr.mxu0 0.0
        %2699 = vmatpush1.msra.mxu0 0.0
        %2700 = vmatprep.subr.mxu0 0.0
        %2701 = vmatpush1.msra.mxu0 0.0
        %2702 = vmatprep.subr.mxu0 0.0
        %2703 = vmatpush1.msra.mxu0 0.0
        %2704 = vmatprep.subr.mxu0 0.0
        %2705 = vmatpush1.msra.mxu0 0.0
        %2706 = vmatprep.subr.mxu0 0.0
        %2707 = vmatpush1.msra.mxu0 0.0
        %2708 = vmatprep.subr.mxu0 0.0
        %2709 = vmatpush1.msra.mxu0 0.0
        %2710 = vmatprep.subr.mxu0 0.0
        %2711 = vmatpush1.msra.mxu0 0.0
        %2712 = vmatprep.subr.mxu0 0.0
        %2713 = vmatpush1.msra.mxu0 0.0
        %2714 = vmatprep.subr.mxu0 0.0
        %2715 = vmatpush1.msra.mxu0 0.0
        %2716 = vmatprep.subr.mxu0 0.0
        %2717 = vmatpush1.msra.mxu0 0.0
        %2718 = vmatprep.subr.mxu0 0.0
        %2719 = vmatpush1.msra.mxu0 0.0
        %2720 = vmatprep.subr.mxu0 0.0
        %2721 = vmatpush1.msra.mxu0 0.0
        %2722 = vmatprep.subr.mxu0 0.0
        %2723 = vmatpush1.msra.mxu0 0.0
        %2724 = vmatprep.subr.mxu0 0.0
        %2725 = vmatpush1.msra.mxu0 0.0
        %2726 = vmatprep.subr.mxu0 0.0
        %2727 = vmatpush1.msra.mxu0 0.0
        %2728 = vmatprep.subr.mxu0 0.0
        %2729 = vmatpush1.msra.mxu0 0.0
        %2730 = vmatprep.subr.mxu0 0.0
        %2731 = vmatpush1.msra.mxu0 0.0
        %2732 = vmatprep.subr.mxu0 0.0
        %2733 = vmatpush1.msra.mxu0 0.0
        %2734 = vmatprep.subr.mxu0 0.0
        %2735 = vmatpush1.msra.mxu0 0.0
        %2736 = vmatprep.subr.mxu0 0.0
        %2737 = vmatpush1.msra.mxu0 0.0
        %2738 = vmatprep.subr.mxu0 0.0
        %2739 = vmatpush1.msra.mxu0 0.0
        %2740 = vmatprep.subr.mxu0 0.0
        %2741 = vmatpush1.msra.mxu0 0.0
        %2742 = vmatprep.mubr.f32.mxu0 0.0
        %2743 = vmatmul.mubr.f32.gmra.mrb[0].mxu0 %v2676
        %v2744 = vpop.f32.mrb[0].mxu0
        %v2745 = vadd.f32 %v2673, %v2744
        %v2746 = vpop.f32.mrb[0].mxu0
        %2747 = vdwg.mxu0
        %v2748 = vadd.f32 %v1866, %v2745
        %v2749 = vsel %vm1882, %v2748, 0.0
        %2750 = vadd.xlane.f32.xlu0 %v2749
        %v2751 = vpop.xlane.xlu0 %2750
        %v2752 = vrcp.pop 32.0
        %v2753 = vmul.f32 %v2751, %v2752
        %v2754 = vsub.f32 %v2748, %v2753
        %v2755 = vmul.f32 %v2754, %v2754
        %v2756 = vsel %vm1882, %v2755, 0.0
        %2757 = vadd.xlane.f32.xlu0 %v2756
        %v2758 = vpop.xlane.xlu0 %2757
        %v2759 = vmul.f32 %v2758, %v2752
        %v2760 = vadd.f32 %v2759, 1e-05
        %v2761 = vrsqrt.pop %v2760
        %v2762 = vmul.f32 %v2754, %v2761
        %v2763 = vld [vmem:[#allocation45] sm:$0x1]
        %v2765 = vlaneseq
        %v2766 = vshrl.u32 %v2765, 7
        %v2767 = vsub.s32 0, %v2766
        %v2768 = vrot.slane %v2763, %v2767
        %v2770 = vmul.f32 %v2762, %v2768
        %v2771 = vld [vmem:[#allocation47] sm:$0x1]
        %v2773 = vlaneseq
        %v2774 = vshrl.u32 %v2773, 7
        %v2775 = vsub.s32 0, %v2774
        %v2776 = vrot.slane %v2771, %v2775
        %v2778 = vadd.f32 %v2770, %v2776
        %v2779 = vld [vmem:[#allocation27] sm:$0xff]
        %v2780 = vld [vmem:[#allocation27 + $0x8] sm:$0xff]
        %v2781 = vld [vmem:[#allocation27 + $0x10] sm:$0xff]
        %v2782 = vld [vmem:[#allocation27 + $0x18] sm:$0xff]
        %v2783 = vld [vmem:[#allocation29] sm:$0x1]
        %v2785 = vlaneseq
        %v2786 = vshrl.u32 %v2785, 7
        %v2787 = vsub.s32 0, %v2786
        %v2788 = vrot.slane %v2783, %v2787
        %v2791 = vsel %vm1882, %v2778, 0
        %2793 = vmatprep.subr.mxu0 0.0
        %2794 = vmatpush1.msra.mxu0 %v2779
        %2795 = vmatprep.subr.mxu0 0.0
        %2796 = vmatpush1.msra.mxu0 %v2780
        %2797 = vmatprep.subr.mxu0 0.0
        %2798 = vmatpush1.msra.mxu0 %v2781
        %2799 = vmatprep.subr.mxu0 0.0
        %2800 = vmatpush1.msra.mxu0 %v2782
        %2801 = vmatprep.subr.mxu0 0.0
        %2802 = vmatpush1.msra.mxu0 0.0
        %2803 = vmatprep.subr.mxu0 0.0
        %2804 = vmatpush1.msra.mxu0 0.0
        %2805 = vmatprep.subr.mxu0 0.0
        %2806 = vmatpush1.msra.mxu0 0.0
        %2807 = vmatprep.subr.mxu0 0.0
        %2808 = vmatpush1.msra.mxu0 0.0
        %2809 = vmatprep.subr.mxu0 0.0
        %2810 = vmatpush1.msra.mxu0 0.0
        %2811 = vmatprep.subr.mxu0 0.0
        %2812 = vmatpush1.msra.mxu0 0.0
        %2813 = vmatprep.subr.mxu0 0.0
        %2814 = vmatpush1.msra.mxu0 0.0
        %2815 = vmatprep.subr.mxu0 0.0
        %2816 = vmatpush1.msra.mxu0 0.0
        %2817 = vmatprep.subr.mxu0 0.0
        %2818 = vmatpush1.msra.mxu0 0.0
        %2819 = vmatprep.subr.mxu0 0.0
        %2820 = vmatpush1.msra.mxu0 0.0
        %2821 = vmatprep.subr.mxu0 0.0
        %2822 = vmatpush1.msra.mxu0 0.0
        %2823 = vmatprep.subr.mxu0 0.0
        %2824 = vmatpush1.msra.mxu0 0.0
        %2825 = vmatprep.subr.mxu0 0.0
        %2826 = vmatpush1.msra.mxu0 0.0
        %2827 = vmatprep.subr.mxu0 0.0
        %2828 = vmatpush1.msra.mxu0 0.0
        %2829 = vmatprep.subr.mxu0 0.0
        %2830 = vmatpush1.msra.mxu0 0.0
        %2831 = vmatprep.subr.mxu0 0.0
        %2832 = vmatpush1.msra.mxu0 0.0
        %2833 = vmatprep.subr.mxu0 0.0
        %2834 = vmatpush1.msra.mxu0 0.0
        %2835 = vmatprep.subr.mxu0 0.0
        %2836 = vmatpush1.msra.mxu0 0.0
        %2837 = vmatprep.subr.mxu0 0.0
        %2838 = vmatpush1.msra.mxu0 0.0
        %2839 = vmatprep.subr.mxu0 0.0
        %2840 = vmatpush1.msra.mxu0 0.0
        %2841 = vmatprep.subr.mxu0 0.0
        %2842 = vmatpush1.msra.mxu0 0.0
        %2843 = vmatprep.subr.mxu0 0.0
        %2844 = vmatpush1.msra.mxu0 0.0
        %2845 = vmatprep.subr.mxu0 0.0
        %2846 = vmatpush1.msra.mxu0 0.0
        %2847 = vmatprep.subr.mxu0 0.0
        %2848 = vmatpush1.msra.mxu0 0.0
        %2849 = vmatprep.subr.mxu0 0.0
        %2850 = vmatpush1.msra.mxu0 0.0
        %2851 = vmatprep.subr.mxu0 0.0
        %2852 = vmatpush1.msra.mxu0 0.0
        %2853 = vmatprep.subr.mxu0 0.0
        %2854 = vmatpush1.msra.mxu0 0.0
        %2855 = vmatprep.subr.mxu0 0.0
        %2856 = vmatpush1.msra.mxu0 0.0
        %2857 = vmatprep.mubr.f32.mxu0 0.0
        %2858 = vmatmul.mubr.f32.gmra.mrb[0].mxu0 %v2791
        %v2859 = vpop.f32.mrb[0].mxu0
        %v2860 = vadd.f32 %v2788, %v2859
        %v2861 = vpop.f32.mrb[0].mxu0
        %2862 = vdwg.mxu0
        %v2863 = vmul.f32 %v2860, 0.35355338
        %v2864 = vld [vmem:[#allocation4] sm:$0xff]
        %v2865 = vld [vmem:[#allocation4 + $0x8] sm:$0xff]
        %v2866 = vld [vmem:[#allocation5] sm:$0xff]
        %v2867 = vld [vmem:[#allocation5 + $0x8] sm:$0xff]
        %v2869 = vsel %vm1961, %v2863, 0
        %v2872 = vsel %vm1961, %v2864, 0
        %v2875 = vsel %vm1961, %v2865, 0
        %2877 = vmatprep.subr.mxu0 0.0
        %2878 = vmatpush1.xpose.msra.mxu0 %v2872
        %2879 = vmatprep.subr.mxu0 0.0
        %2880 = vmatpush1.xpose.msra.mxu0 %v2875
        %2881 = vmatprep.subr.mxu0 0.0
        %2882 = vmatpush1.xpose.msra.mxu0 0.0
        %2883 = vmatprep.subr.mxu0 0.0
        %2884 = vmatpush1.xpose.msra.mxu0 0.0
        %2885 = vmatprep.subr.mxu0 0.0
        %2886 = vmatpush1.xpose.msra.mxu0 0.0
        %2887 = vmatprep.subr.mxu0 0.0
        %2888 = vmatpush1.xpose.msra.mxu0 0.0
        %2889 = vmatprep.subr.mxu0 0.0
        %2890 = vmatpush1.xpose.msra.mxu0 0.0
        %2891 = vmatprep.subr.mxu0 0.0
        %2892 = vmatpush1.xpose.msra.mxu0 0.0
        %2893 = vmatprep.subr.mxu0 0.0
        %2894 = vmatpush1.xpose.msra.mxu0 0.0
        %2895 = vmatprep.subr.mxu0 0.0
        %2896 = vmatpush1.xpose.msra.mxu0 0.0
        %2897 = vmatprep.subr.mxu0 0.0
        %2898 = vmatpush1.xpose.msra.mxu0 0.0
        %2899 = vmatprep.subr.mxu0 0.0
        %2900 = vmatpush1.xpose.msra.mxu0 0.0
        %2901 = vmatprep.subr.mxu0 0.0
        %2902 = vmatpush1.xpose.msra.mxu0 0.0
        %2903 = vmatprep.subr.mxu0 0.0
        %2904 = vmatpush1.xpose.msra.mxu0 0.0
        %2905 = vmatprep.subr.mxu0 0.0
        %2906 = vmatpush1.xpose.msra.mxu0 0.0
        %2907 = vmatprep.subr.mxu0 0.0
        %2908 = vmatpush1.xpose.msra.mxu0 0.0
        %2909 = vmatprep.subr.mxu0 0.0
        %2910 = vmatpush1.xpose.msra.mxu0 0.0
        %2911 = vmatprep.subr.mxu0 0.0
        %2912 = vmatpush1.xpose.msra.mxu0 0.0
        %2913 = vmatprep.subr.mxu0 0.0
        %2914 = vmatpush1.xpose.msra.mxu0 0.0
        %2915 = vmatprep.subr.mxu0 0.0
        %2916 = vmatpush1.xpose.msra.mxu0 0.0
        %2917 = vmatprep.subr.mxu0 0.0
        %2918 = vmatpush1.xpose.msra.mxu0 0.0
        %2919 = vmatprep.subr.mxu0 0.0
        %2920 = vmatpush1.xpose.msra.mxu0 0.0
        %2921 = vmatprep.subr.mxu0 0.0
        %2922 = vmatpush1.xpose.msra.mxu0 0.0
        %2923 = vmatprep.subr.mxu0 0.0
        %2924 = vmatpush1.xpose.msra.mxu0 0.0
        %2925 = vmatprep.subr.mxu0 0.0
        %2926 = vmatpush1.xpose.msra.mxu0 0.0
        %2927 = vmatprep.subr.mxu0 0.0
        %2928 = vmatpush1.xpose.msra.mxu0 0.0
        %2929 = vmatprep.subr.mxu0 0.0
        %2930 = vmatpush1.xpose.msra.mxu0 0.0
        %2931 = vmatprep.subr.mxu0 0.0
        %2932 = vmatpush1.xpose.msra.mxu0 0.0
        %2933 = vmatprep.subr.mxu0 0.0
        %2934 = vmatpush1.xpose.msra.mxu0 0.0
        %2935 = vmatprep.subr.mxu0 0.0
        %2936 = vmatpush1.xpose.msra.mxu0 0.0
        %2937 = vmatprep.subr.mxu0 0.0
        %2938 = vmatpush1.xpose.msra.mxu0 0.0
        %2939 = vmatprep.subr.mxu0 0.0
        %2940 = vmatpush1.xpose.msra.mxu0 0.0
        %2941 = vmatprep.mubr.f32.mxu0 0.0
        %2942 = vmatmul.mubr.f32.gmra.mrb[0].mxu0 %v2869
        %v2943 = vpop.f32.mrb[0].mxu0
        %v2944 = vadd.f32 0.0, %v2943
        %v2945 = vpop.f32.mrb[0].mxu0
        %2946 = vdwg.mxu0
        %v2947 = vsel %vm1870, %v2944, -1e+09
        %v2948 = vsel %vm2042, %v2947, -inf
        %2949 = vmax.xlane.f32.xlu0 %v2948
        %v2950 = vpop.xlane.xlu0 %2949
        %v2951 = vsub.f32 %v2947, %v2950
        %v2952 = vmul.f32 %v2951, 1.442695
        %v2953 = vpow.pop %v2952
        %v2954 = vsel %vm2042, %v2953, 0.0
        %2955 = vadd.xlane.f32.xlu0 %v2954
        %v2956 = vpop.xlane.xlu0 %2955
        %v2957 = vrcp.pop %v2956
        %v2958 = vmul.f32 %v2953, %v2957
        %v2960 = vsel %vm2042, %v2958, 0
        %2962 = vmatprep.subr.mxu0 0.0
        %2963 = vmatpush1.msra.mxu0 %v2866
        %2964 = vmatprep.subr.mxu0 0.0
        %2965 = vmatpush1.msra.mxu0 %v2867
        %2966 = vmatprep.subr.mxu0 0.0
        %2967 = vmatpush1.msra.mxu0 0.0
        %2968 = vmatprep.subr.mxu0 0.0
        %2969 = vmatpush1.msra.mxu0 0.0
        %2970 = vmatprep.subr.mxu0 0.0
        %2971 = vmatpush1.msra.mxu0 0.0
        %2972 = vmatprep.subr.mxu0 0.0
        %2973 = vmatpush1.msra.mxu0 0.0
        %2974 = vmatprep.subr.mxu0 0.0
        %2975 = vmatpush1.msra.mxu0 0.0
        %2976 = vmatprep.subr.mxu0 0.0
        %2977 = vmatpush1.msra.mxu0 0.0
        %2978 = vmatprep.subr.mxu0 0.0
        %2979 = vmatpush1.msra.mxu0 0.0
        %2980 = vmatprep.subr.mxu0 0.0
        %2981 = vmatpush1.msra.mxu0 0.0
        %2982 = vmatprep.subr.mxu0 0.0
        %2983 = vmatpush1.msra.mxu0 0.0
        %2984 = vmatprep.subr.mxu0 0.0
        %2985 = vmatpush1.msra.mxu0 0.0
        %2986 = vmatprep.subr.mxu0 0.0
        %2987 = vmatpush1.msra.mxu0 0.0
        %2988 = vmatprep.subr.mxu0 0.0
        %2989 = vmatpush1.msra.mxu0 0.0
        %2990 = vmatprep.subr.mxu0 0.0
        %2991 = vmatpush1.msra.mxu0 0.0
        %2992 = vmatprep.subr.mxu0 0.0
        %2993 = vmatpush1.msra.mxu0 0.0
        %2994 = vmatprep.subr.mxu0 0.0
        %2995 = vmatpush1.msra.mxu0 0.0
        %2996 = vmatprep.subr.mxu0 0.0
        %2997 = vmatpush1.msra.mxu0 0.0
        %2998 = vmatprep.subr.mxu0 0.0
        %2999 = vmatpush1.msra.mxu0 0.0
        %3000 = vmatprep.subr.mxu0 0.0
        %3001 = vmatpush1.msra.mxu0 0.0
        %3002 = vmatprep.subr.mxu0 0.0
        %3003 = vmatpush1.msra.mxu0 0.0
        %3004 = vmatprep.subr.mxu0 0.0
        %3005 = vmatpush1.msra.mxu0 0.0
        %3006 = vmatprep.subr.mxu0 0.0
        %3007 = vmatpush1.msra.mxu0 0.0
        %3008 = vmatprep.subr.mxu0 0.0
        %3009 = vmatpush1.msra.mxu0 0.0
        %3010 = vmatprep.subr.mxu0 0.0
        %3011 = vmatpush1.msra.mxu0 0.0
        %3012 = vmatprep.subr.mxu0 0.0
        %3013 = vmatpush1.msra.mxu0 0.0
        %3014 = vmatprep.subr.mxu0 0.0
        %3015 = vmatpush1.msra.mxu0 0.0
        %3016 = vmatprep.subr.mxu0 0.0
        %3017 = vmatpush1.msra.mxu0 0.0
        %3018 = vmatprep.subr.mxu0 0.0
        %3019 = vmatpush1.msra.mxu0 0.0
        %3020 = vmatprep.subr.mxu0 0.0
        %3021 = vmatpush1.msra.mxu0 0.0
        %3022 = vmatprep.subr.mxu0 0.0
        %3023 = vmatpush1.msra.mxu0 0.0
        %3024 = vmatprep.subr.mxu0 0.0
        %3025 = vmatpush1.msra.mxu0 0.0
        %3026 = vmatprep.mubr.f32.mxu0 0.0
        %3027 = vmatmul.mubr.f32.gmra.mrb[0].mxu0 %v2960
        %v3028 = vpop.f32.mrb[0].mxu0
        %v3029 = vadd.f32 0.0, %v3028
        %v3030 = vpop.f32.mrb[0].mxu0
        %3031 = vdwg.mxu0
        %3032 = vrot.lane.b32.xlu0 %v2863, 120
        %v3033 = vpop.permute.xlu0 %3032
        %3034 = vrot.lane.b32.xlu0 %v2864, 120
        %v3035 = vpop.permute.xlu0 %3034
        %3036 = vrot.lane.b32.xlu0 %v2865, 120
        %v3037 = vpop.permute.xlu0 %3036
        %v3038 = vsel %vm1961, %v3033, 0
        %v3040 = vsel %vm1961, %v3035, 0
        %v3042 = vsel %vm1961, %v3037, 0
        %3044 = vmatprep.subr.mxu0 0.0
        %3045 = vmatpush1.xpose.msra.mxu0 %v3040
        %3046 = vmatprep.subr.mxu0 0.0
        %3047 = vmatpush1.xpose.msra.mxu0 %v3042
        %3048 = vmatprep.subr.mxu0 0.0
        %3049 = vmatpush1.xpose.msra.mxu0 0.0
        %3050 = vmatprep.subr.mxu0 0.0
        %3051 = vmatpush1.xpose.msra.mxu0 0.0
        %3052 = vmatprep.subr.mxu0 0.0
        %3053 = vmatpush1.xpose.msra.mxu0 0.0
        %3054 = vmatprep.subr.mxu0 0.0
        %3055 = vmatpush1.xpose.msra.mxu0 0.0
        %3056 = vmatprep.subr.mxu0 0.0
        %3057 = vmatpush1.xpose.msra.mxu0 0.0
        %3058 = vmatprep.subr.mxu0 0.0
        %3059 = vmatpush1.xpose.msra.mxu0 0.0
        %3060 = vmatprep.subr.mxu0 0.0
        %3061 = vmatpush1.xpose.msra.mxu0 0.0
        %3062 = vmatprep.subr.mxu0 0.0
        %3063 = vmatpush1.xpose.msra.mxu0 0.0
        %3064 = vmatprep.subr.mxu0 0.0
        %3065 = vmatpush1.xpose.msra.mxu0 0.0
        %3066 = vmatprep.subr.mxu0 0.0
        %3067 = vmatpush1.xpose.msra.mxu0 0.0
        %3068 = vmatprep.subr.mxu0 0.0
        %3069 = vmatpush1.xpose.msra.mxu0 0.0
        %3070 = vmatprep.subr.mxu0 0.0
        %3071 = vmatpush1.xpose.msra.mxu0 0.0
        %3072 = vmatprep.subr.mxu0 0.0
        %3073 = vmatpush1.xpose.msra.mxu0 0.0
        %3074 = vmatprep.subr.mxu0 0.0
        %3075 = vmatpush1.xpose.msra.mxu0 0.0
        %3076 = vmatprep.subr.mxu0 0.0
        %3077 = vmatpush1.xpose.msra.mxu0 0.0
        %3078 = vmatprep.subr.mxu0 0.0
        %3079 = vmatpush1.xpose.msra.mxu0 0.0
        %3080 = vmatprep.subr.mxu0 0.0
        %3081 = vmatpush1.xpose.msra.mxu0 0.0
        %3082 = vmatprep.subr.mxu0 0.0
        %3083 = vmatpush1.xpose.msra.mxu0 0.0
        %3084 = vmatprep.subr.mxu0 0.0
        %3085 = vmatpush1.xpose.msra.mxu0 0.0
        %3086 = vmatprep.subr.mxu0 0.0
        %3087 = vmatpush1.xpose.msra.mxu0 0.0
        %3088 = vmatprep.subr.mxu0 0.0
        %3089 = vmatpush1.xpose.msra.mxu0 0.0
        %3090 = vmatprep.subr.mxu0 0.0
        %3091 = vmatpush1.xpose.msra.mxu0 0.0
        %3092 = vmatprep.subr.mxu0 0.0
        %3093 = vmatpush1.xpose.msra.mxu0 0.0
        %3094 = vmatprep.subr.mxu0 0.0
        %3095 = vmatpush1.xpose.msra.mxu0 0.0
        %3096 = vmatprep.subr.mxu0 0.0
        %3097 = vmatpush1.xpose.msra.mxu0 0.0
        %3098 = vmatprep.subr.mxu0 0.0
        %3099 = vmatpush1.xpose.msra.mxu0 0.0
        %3100 = vmatprep.subr.mxu0 0.0
        %3101 = vmatpush1.xpose.msra.mxu0 0.0
        %3102 = vmatprep.subr.mxu0 0.0
        %3103 = vmatpush1.xpose.msra.mxu0 0.0
        %3104 = vmatprep.subr.mxu0 0.0
        %3105 = vmatpush1.xpose.msra.mxu0 0.0
        %3106 = vmatprep.subr.mxu0 0.0
        %3107 = vmatpush1.xpose.msra.mxu0 0.0
        %3108 = vmatprep.mubr.f32.mxu0 0.0
        %3109 = vmatmul.mubr.f32.gmra.mrb[0].mxu0 %v3038
        %v3110 = vpop.f32.mrb[0].mxu0
        %v3111 = vadd.f32 0.0, %v3110
        %v3112 = vpop.f32.mrb[0].mxu0
        %3113 = vdwg.mxu0
        %v3114 = vsel %vm1870, %v3111, -1e+09
        %v3115 = vsel %vm2042, %v3114, -inf
        %3116 = vmax.xlane.f32.xlu0 %v3115
        %v3117 = vpop.xlane.xlu0 %3116
        %v3118 = vsub.f32 %v3114, %v3117
        %v3119 = vmul.f32 %v3118, 1.442695
        %v3120 = vpow.pop %v3119
        %v3121 = vsel %vm2042, %v3120, 0.0
        %3122 = vadd.xlane.f32.xlu0 %v3121
        %v3123 = vpop.xlane.xlu0 %3122
        %v3124 = vrcp.pop %v3123
        %v3125 = vmul.f32 %v3120, %v3124
        %3128 = vrot.lane.b32.xlu0 %v2866, 120
        %v3129 = vpop.permute.xlu0 %3128
        %3130 = vrot.lane.b32.xlu0 %v2867, 120
        %v3131 = vpop.permute.xlu0 %3130
        %v3135 = vsel %vm2042, %v3125, 0
        %3137 = vmatprep.subr.mxu0 0.0
        %3138 = vmatpush1.msra.mxu0 %v3129
        %3139 = vmatprep.subr.mxu0 0.0
        %3140 = vmatpush1.msra.mxu0 %v3131
        %3141 = vmatprep.subr.mxu0 0.0
        %3142 = vmatpush1.msra.mxu0 0.0
        %3143 = vmatprep.subr.mxu0 0.0
        %3144 = vmatpush1.msra.mxu0 0.0
        %3145 = vmatprep.subr.mxu0 0.0
        %3146 = vmatpush1.msra.mxu0 0.0
        %3147 = vmatprep.subr.mxu0 0.0
        %3148 = vmatpush1.msra.mxu0 0.0
        %3149 = vmatprep.subr.mxu0 0.0
        %3150 = vmatpush1.msra.mxu0 0.0
        %3151 = vmatprep.subr.mxu0 0.0
        %3152 = vmatpush1.msra.mxu0 0.0
        %3153 = vmatprep.subr.mxu0 0.0
        %3154 = vmatpush1.msra.mxu0 0.0
        %3155 = vmatprep.subr.mxu0 0.0
        %3156 = vmatpush1.msra.mxu0 0.0
        %3157 = vmatprep.subr.mxu0 0.0
        %3158 = vmatpush1.msra.mxu0 0.0
        %3159 = vmatprep.subr.mxu0 0.0
        %3160 = vmatpush1.msra.mxu0 0.0
        %3161 = vmatprep.subr.mxu0 0.0
        %3162 = vmatpush1.msra.mxu0 0.0
        %3163 = vmatprep.subr.mxu0 0.0
        %3164 = vmatpush1.msra.mxu0 0.0
        %3165 = vmatprep.subr.mxu0 0.0
        %3166 = vmatpush1.msra.mxu0 0.0
        %3167 = vmatprep.subr.mxu0 0.0
        %3168 = vmatpush1.msra.mxu0 0.0
        %3169 = vmatprep.subr.mxu0 0.0
        %3170 = vmatpush1.msra.mxu0 0.0
        %3171 = vmatprep.subr.mxu0 0.0
        %3172 = vmatpush1.msra.mxu0 0.0
        %3173 = vmatprep.subr.mxu0 0.0
        %3174 = vmatpush1.msra.mxu0 0.0
        %3175 = vmatprep.subr.mxu0 0.0
        %3176 = vmatpush1.msra.mxu0 0.0
        %3177 = vmatprep.subr.mxu0 0.0
        %3178 = vmatpush1.msra.mxu0 0.0
        %3179 = vmatprep.subr.mxu0 0.0
        %3180 = vmatpush1.msra.mxu0 0.0
        %3181 = vmatprep.subr.mxu0 0.0
        %3182 = vmatpush1.msra.mxu0 0.0
        %3183 = vmatprep.subr.mxu0 0.0
        %3184 = vmatpush1.msra.mxu0 0.0
        %3185 = vmatprep.subr.mxu0 0.0
        %3186 = vmatpush1.msra.mxu0 0.0
        %3187 = vmatprep.subr.mxu0 0.0
        %3188 = vmatpush1.msra.mxu0 0.0
        %3189 = vmatprep.subr.mxu0 0.0
        %3190 = vmatpush1.msra.mxu0 0.0
        %3191 = vmatprep.subr.mxu0 0.0
        %3192 = vmatpush1.msra.mxu0 0.0
        %3193 = vmatprep.subr.mxu0 0.0
        %3194 = vmatpush1.msra.mxu0 0.0
        %3195 = vmatprep.subr.mxu0 0.0
        %3196 = vmatpush1.msra.mxu0 0.0
        %3197 = vmatprep.subr.mxu0 0.0
        %3198 = vmatpush1.msra.mxu0 0.0
        %3199 = vmatprep.subr.mxu0 0.0
        %3200 = vmatpush1.msra.mxu0 0.0
        %3201 = vmatprep.mubr.f32.mxu0 0.0
        %3202 = vmatmul.mubr.f32.gmra.mrb[0].mxu0 %v3135
        %v3203 = vpop.f32.mrb[0].mxu0
        %v3204 = vadd.f32 0.0, %v3203
        %v3205 = vpop.f32.mrb[0].mxu0
        %3206 = vdwg.mxu0
        %3207 = vrot.lane.b32.xlu0 %v2863, 112
        %v3208 = vpop.permute.xlu0 %3207
        %3209 = vrot.lane.b32.xlu0 %v2864, 112
        %v3210 = vpop.permute.xlu0 %3209
        %3211 = vrot.lane.b32.xlu0 %v2865, 112
        %v3212 = vpop.permute.xlu0 %3211
        %v3213 = vsel %vm1961, %v3208, 0
        %v3215 = vsel %vm1961, %v3210, 0
        %v3217 = vsel %vm1961, %v3212, 0
        %3219 = vmatprep.subr.mxu0 0.0
        %3220 = vmatpush1.xpose.msra.mxu0 %v3215
        %3221 = vmatprep.subr.mxu0 0.0
        %3222 = vmatpush1.xpose.msra.mxu0 %v3217
        %3223 = vmatprep.subr.mxu0 0.0
        %3224 = vmatpush1.xpose.msra.mxu0 0.0
        %3225 = vmatprep.subr.mxu0 0.0
        %3226 = vmatpush1.xpose.msra.mxu0 0.0
        %3227 = vmatprep.subr.mxu0 0.0
        %3228 = vmatpush1.xpose.msra.mxu0 0.0
        %3229 = vmatprep.subr.mxu0 0.0
        %3230 = vmatpush1.xpose.msra.mxu0 0.0
        %3231 = vmatprep.subr.mxu0 0.0
        %3232 = vmatpush1.xpose.msra.mxu0 0.0
        %3233 = vmatprep.subr.mxu0 0.0
        %3234 = vmatpush1.xpose.msra.mxu0 0.0
        %3235 = vmatprep.subr.mxu0 0.0
        %3236 = vmatpush1.xpose.msra.mxu0 0.0
        %3237 = vmatprep.subr.mxu0 0.0
        %3238 = vmatpush1.xpose.msra.mxu0 0.0
        %3239 = vmatprep.subr.mxu0 0.0
        %3240 = vmatpush1.xpose.msra.mxu0 0.0
        %3241 = vmatprep.subr.mxu0 0.0
        %3242 = vmatpush1.xpose.msra.mxu0 0.0
        %3243 = vmatprep.subr.mxu0 0.0
        %3244 = vmatpush1.xpose.msra.mxu0 0.0
        %3245 = vmatprep.subr.mxu0 0.0
        %3246 = vmatpush1.xpose.msra.mxu0 0.0
        %3247 = vmatprep.subr.mxu0 0.0
        %3248 = vmatpush1.xpose.msra.mxu0 0.0
        %3249 = vmatprep.subr.mxu0 0.0
        %3250 = vmatpush1.xpose.msra.mxu0 0.0
        %3251 = vmatprep.subr.mxu0 0.0
        %3252 = vmatpush1.xpose.msra.mxu0 0.0
        %3253 = vmatprep.subr.mxu0 0.0
        %3254 = vmatpush1.xpose.msra.mxu0 0.0
        %3255 = vmatprep.subr.mxu0 0.0
        %3256 = vmatpush1.xpose.msra.mxu0 0.0
        %3257 = vmatprep.subr.mxu0 0.0
        %3258 = vmatpush1.xpose.msra.mxu0 0.0
        %3259 = vmatprep.subr.mxu0 0.0
        %3260 = vmatpush1.xpose.msra.mxu0 0.0
        %3261 = vmatprep.subr.mxu0 0.0
        %3262 = vmatpush1.xpose.msra.mxu0 0.0
        %3263 = vmatprep.subr.mxu0 0.0
        %3264 = vmatpush1.xpose.msra.mxu0 0.0
        %3265 = vmatprep.subr.mxu0 0.0
        %3266 = vmatpush1.xpose.msra.mxu0 0.0
        %3267 = vmatprep.subr.mxu0 0.0
        %3268 = vmatpush1.xpose.msra.mxu0 0.0
        %3269 = vmatprep.subr.mxu0 0.0
        %3270 = vmatpush1.xpose.msra.mxu0 0.0
        %3271 = vmatprep.subr.mxu0 0.0
        %3272 = vmatpush1.xpose.msra.mxu0 0.0
        %3273 = vmatprep.subr.mxu0 0.0
        %3274 = vmatpush1.xpose.msra.mxu0 0.0
        %3275 = vmatprep.subr.mxu0 0.0
        %3276 = vmatpush1.xpose.msra.mxu0 0.0
        %3277 = vmatprep.subr.mxu0 0.0
        %3278 = vmatpush1.xpose.msra.mxu0 0.0
        %3279 = vmatprep.subr.mxu0 0.0
        %3280 = vmatpush1.xpose.msra.mxu0 0.0
        %3281 = vmatprep.subr.mxu0 0.0
        %3282 = vmatpush1.xpose.msra.mxu0 0.0
        %3283 = vmatprep.mubr.f32.mxu0 0.0
        %3284 = vmatmul.mubr.f32.gmra.mrb[0].mxu0 %v3213
        %v3285 = vpop.f32.mrb[0].mxu0
        %v3286 = vadd.f32 0.0, %v3285
        %v3287 = vpop.f32.mrb[0].mxu0
        %3288 = vdwg.mxu0
        %v3289 = vsel %vm1870, %v3286, -1e+09
        %v3290 = vsel %vm2042, %v3289, -inf
        %3291 = vmax.xlane.f32.xlu0 %v3290
        %v3292 = vpop.xlane.xlu0 %3291
        %v3293 = vsub.f32 %v3289, %v3292
        %v3294 = vmul.f32 %v3293, 1.442695
        %v3295 = vpow.pop %v3294
        %v3296 = vsel %vm2042, %v3295, 0.0
        %3297 = vadd.xlane.f32.xlu0 %v3296
        %v3298 = vpop.xlane.xlu0 %3297
        %v3299 = vrcp.pop %v3298
        %v3300 = vmul.f32 %v3295, %v3299
        %3301 = vrot.lane.b32.xlu0 %v2866, 112
        %v3302 = vpop.permute.xlu0 %3301
        %3303 = vrot.lane.b32.xlu0 %v2867, 112
        %v3304 = vpop.permute.xlu0 %3303
        %v3308 = vsel %vm2042, %v3300, 0
        %3310 = vmatprep.subr.mxu0 0.0
        %3311 = vmatpush1.msra.mxu0 %v3302
        %3312 = vmatprep.subr.mxu0 0.0
        %3313 = vmatpush1.msra.mxu0 %v3304
        %3314 = vmatprep.subr.mxu0 0.0
        %3315 = vmatpush1.msra.mxu0 0.0
        %3316 = vmatprep.subr.mxu0 0.0
        %3317 = vmatpush1.msra.mxu0 0.0
        %3318 = vmatprep.subr.mxu0 0.0
        %3319 = vmatpush1.msra.mxu0 0.0
        %3320 = vmatprep.subr.mxu0 0.0
        %3321 = vmatpush1.msra.mxu0 0.0
        %3322 = vmatprep.subr.mxu0 0.0
        %3323 = vmatpush1.msra.mxu0 0.0
        %3324 = vmatprep.subr.mxu0 0.0
        %3325 = vmatpush1.msra.mxu0 0.0
        %3326 = vmatprep.subr.mxu0 0.0
        %3327 = vmatpush1.msra.mxu0 0.0
        %3328 = vmatprep.subr.mxu0 0.0
        %3329 = vmatpush1.msra.mxu0 0.0
        %3330 = vmatprep.subr.mxu0 0.0
        %3331 = vmatpush1.msra.mxu0 0.0
        %3332 = vmatprep.subr.mxu0 0.0
        %3333 = vmatpush1.msra.mxu0 0.0
        %3334 = vmatprep.subr.mxu0 0.0
        %3335 = vmatpush1.msra.mxu0 0.0
        %3336 = vmatprep.subr.mxu0 0.0
        %3337 = vmatpush1.msra.mxu0 0.0
        %3338 = vmatprep.subr.mxu0 0.0
        %3339 = vmatpush1.msra.mxu0 0.0
        %3340 = vmatprep.subr.mxu0 0.0
        %3341 = vmatpush1.msra.mxu0 0.0
        %3342 = vmatprep.subr.mxu0 0.0
        %3343 = vmatpush1.msra.mxu0 0.0
        %3344 = vmatprep.subr.mxu0 0.0
        %3345 = vmatpush1.msra.mxu0 0.0
        %3346 = vmatprep.subr.mxu0 0.0
        %3347 = vmatpush1.msra.mxu0 0.0
        %3348 = vmatprep.subr.mxu0 0.0
        %3349 = vmatpush1.msra.mxu0 0.0
        %3350 = vmatprep.subr.mxu0 0.0
        %3351 = vmatpush1.msra.mxu0 0.0
        %3352 = vmatprep.subr.mxu0 0.0
        %3353 = vmatpush1.msra.mxu0 0.0
        %3354 = vmatprep.subr.mxu0 0.0
        %3355 = vmatpush1.msra.mxu0 0.0
        %3356 = vmatprep.subr.mxu0 0.0
        %3357 = vmatpush1.msra.mxu0 0.0
        %3358 = vmatprep.subr.mxu0 0.0
        %3359 = vmatpush1.msra.mxu0 0.0
        %3360 = vmatprep.subr.mxu0 0.0
        %3361 = vmatpush1.msra.mxu0 0.0
        %3362 = vmatprep.subr.mxu0 0.0
        %3363 = vmatpush1.msra.mxu0 0.0
        %3364 = vmatprep.subr.mxu0 0.0
        %3365 = vmatpush1.msra.mxu0 0.0
        %3366 = vmatprep.subr.mxu0 0.0
        %3367 = vmatpush1.msra.mxu0 0.0
        %3368 = vmatprep.subr.mxu0 0.0
        %3369 = vmatpush1.msra.mxu0 0.0
        %3370 = vmatprep.subr.mxu0 0.0
        %3371 = vmatpush1.msra.mxu0 0.0
        %3372 = vmatprep.subr.mxu0 0.0
        %3373 = vmatpush1.msra.mxu0 0.0
        %3374 = vmatprep.mubr.f32.mxu0 0.0
        %3375 = vmatmul.mubr.f32.gmra.mrb[0].mxu0 %v3308
        %v3376 = vpop.f32.mrb[0].mxu0
        %v3377 = vadd.f32 0.0, %v3376
        %v3378 = vpop.f32.mrb[0].mxu0
        %3379 = vdwg.mxu0
        %3380 = vrot.lane.b32.xlu0 %v2863, 104
        %v3381 = vpop.permute.xlu0 %3380
        %3382 = vrot.lane.b32.xlu0 %v2864, 104
        %v3383 = vpop.permute.xlu0 %3382
        %3384 = vrot.lane.b32.xlu0 %v2865, 104
        %v3385 = vpop.permute.xlu0 %3384
        %v3386 = vsel %vm1961, %v3381, 0
        %v3388 = vsel %vm1961, %v3383, 0
        %v3390 = vsel %vm1961, %v3385, 0
        %3392 = vmatprep.subr.mxu0 0.0
        %3393 = vmatpush1.xpose.msra.mxu0 %v3388
        %3394 = vmatprep.subr.mxu0 0.0
        %3395 = vmatpush1.xpose.msra.mxu0 %v3390
        %3396 = vmatprep.subr.mxu0 0.0
        %3397 = vmatpush1.xpose.msra.mxu0 0.0
        %3398 = vmatprep.subr.mxu0 0.0
        %3399 = vmatpush1.xpose.msra.mxu0 0.0
        %3400 = vmatprep.subr.mxu0 0.0
        %3401 = vmatpush1.xpose.msra.mxu0 0.0
        %3402 = vmatprep.subr.mxu0 0.0
        %3403 = vmatpush1.xpose.msra.mxu0 0.0
        %3404 = vmatprep.subr.mxu0 0.0
        %3405 = vmatpush1.xpose.msra.mxu0 0.0
        %3406 = vmatprep.subr.mxu0 0.0
        %3407 = vmatpush1.xpose.msra.mxu0 0.0
        %3408 = vmatprep.subr.mxu0 0.0
        %3409 = vmatpush1.xpose.msra.mxu0 0.0
        %3410 = vmatprep.subr.mxu0 0.0
        %3411 = vmatpush1.xpose.msra.mxu0 0.0
        %3412 = vmatprep.subr.mxu0 0.0
        %3413 = vmatpush1.xpose.msra.mxu0 0.0
        %3414 = vmatprep.subr.mxu0 0.0
        %3415 = vmatpush1.xpose.msra.mxu0 0.0
        %3416 = vmatprep.subr.mxu0 0.0
        %3417 = vmatpush1.xpose.msra.mxu0 0.0
        %3418 = vmatprep.subr.mxu0 0.0
        %3419 = vmatpush1.xpose.msra.mxu0 0.0
        %3420 = vmatprep.subr.mxu0 0.0
        %3421 = vmatpush1.xpose.msra.mxu0 0.0
        %3422 = vmatprep.subr.mxu0 0.0
        %3423 = vmatpush1.xpose.msra.mxu0 0.0
        %3424 = vmatprep.subr.mxu0 0.0
        %3425 = vmatpush1.xpose.msra.mxu0 0.0
        %3426 = vmatprep.subr.mxu0 0.0
        %3427 = vmatpush1.xpose.msra.mxu0 0.0
        %3428 = vmatprep.subr.mxu0 0.0
        %3429 = vmatpush1.xpose.msra.mxu0 0.0
        %3430 = vmatprep.subr.mxu0 0.0
        %3431 = vmatpush1.xpose.msra.mxu0 0.0
        %3432 = vmatprep.subr.mxu0 0.0
        %3433 = vmatpush1.xpose.msra.mxu0 0.0
        %3434 = vmatprep.subr.mxu0 0.0
        %3435 = vmatpush1.xpose.msra.mxu0 0.0
        %3436 = vmatprep.subr.mxu0 0.0
        %3437 = vmatpush1.xpose.msra.mxu0 0.0
        %3438 = vmatprep.subr.mxu0 0.0
        %3439 = vmatpush1.xpose.msra.mxu0 0.0
        %3440 = vmatprep.subr.mxu0 0.0
        %3441 = vmatpush1.xpose.msra.mxu0 0.0
        %3442 = vmatprep.subr.mxu0 0.0
        %3443 = vmatpush1.xpose.msra.mxu0 0.0
        %3444 = vmatprep.subr.mxu0 0.0
        %3445 = vmatpush1.xpose.msra.mxu0 0.0
        %3446 = vmatprep.subr.mxu0 0.0
        %3447 = vmatpush1.xpose.msra.mxu0 0.0
        %3448 = vmatprep.subr.mxu0 0.0
        %3449 = vmatpush1.xpose.msra.mxu0 0.0
        %3450 = vmatprep.subr.mxu0 0.0
        %3451 = vmatpush1.xpose.msra.mxu0 0.0
        %3452 = vmatprep.subr.mxu0 0.0
        %3453 = vmatpush1.xpose.msra.mxu0 0.0
        %3454 = vmatprep.subr.mxu0 0.0
        %3455 = vmatpush1.xpose.msra.mxu0 0.0
        %3456 = vmatprep.mubr.f32.mxu0 0.0
        %3457 = vmatmul.mubr.f32.gmra.mrb[0].mxu0 %v3386
        %v3458 = vpop.f32.mrb[0].mxu0
        %v3459 = vadd.f32 0.0, %v3458
        %v3460 = vpop.f32.mrb[0].mxu0
        %3461 = vdwg.mxu0
        %v3462 = vsel %vm1870, %v3459, -1e+09
        %v3463 = vsel %vm2042, %v3462, -inf
        %3464 = vmax.xlane.f32.xlu0 %v3463
        %v3465 = vpop.xlane.xlu0 %3464
        %v3466 = vsub.f32 %v3462, %v3465
        %v3467 = vmul.f32 %v3466, 1.442695
        %v3468 = vpow.pop %v3467
        %v3469 = vsel %vm2042, %v3468, 0.0
        %3470 = vadd.xlane.f32.xlu0 %v3469
        %v3471 = vpop.xlane.xlu0 %3470
        %v3472 = vrcp.pop %v3471
        %v3473 = vmul.f32 %v3468, %v3472
        %3474 = vrot.lane.b32.xlu0 %v2866, 104
        %v3475 = vpop.permute.xlu0 %3474
        %3476 = vrot.lane.b32.xlu0 %v2867, 104
        %v3477 = vpop.permute.xlu0 %3476
        %v3481 = vsel %vm2042, %v3473, 0
        %3483 = vmatprep.subr.mxu0 0.0
        %3484 = vmatpush1.msra.mxu0 %v3475
        %3485 = vmatprep.subr.mxu0 0.0
        %3486 = vmatpush1.msra.mxu0 %v3477
        %3487 = vmatprep.subr.mxu0 0.0
        %3488 = vmatpush1.msra.mxu0 0.0
        %3489 = vmatprep.subr.mxu0 0.0
        %3490 = vmatpush1.msra.mxu0 0.0
        %3491 = vmatprep.subr.mxu0 0.0
        %3492 = vmatpush1.msra.mxu0 0.0
        %3493 = vmatprep.subr.mxu0 0.0
        %3494 = vmatpush1.msra.mxu0 0.0
        %3495 = vmatprep.subr.mxu0 0.0
        %3496 = vmatpush1.msra.mxu0 0.0
        %3497 = vmatprep.subr.mxu0 0.0
        %3498 = vmatpush1.msra.mxu0 0.0
        %3499 = vmatprep.subr.mxu0 0.0
        %3500 = vmatpush1.msra.mxu0 0.0
        %3501 = vmatprep.subr.mxu0 0.0
        %3502 = vmatpush1.msra.mxu0 0.0
        %3503 = vmatprep.subr.mxu0 0.0
        %3504 = vmatpush1.msra.mxu0 0.0
        %3505 = vmatprep.subr.mxu0 0.0
        %3506 = vmatpush1.msra.mxu0 0.0
        %3507 = vmatprep.subr.mxu0 0.0
        %3508 = vmatpush1.msra.mxu0 0.0
        %3509 = vmatprep.subr.mxu0 0.0
        %3510 = vmatpush1.msra.mxu0 0.0
        %3511 = vmatprep.subr.mxu0 0.0
        %3512 = vmatpush1.msra.mxu0 0.0
        %3513 = vmatprep.subr.mxu0 0.0
        %3514 = vmatpush1.msra.mxu0 0.0
        %3515 = vmatprep.subr.mxu0 0.0
        %3516 = vmatpush1.msra.mxu0 0.0
        %3517 = vmatprep.subr.mxu0 0.0
        %3518 = vmatpush1.msra.mxu0 0.0
        %3519 = vmatprep.subr.mxu0 0.0
        %3520 = vmatpush1.msra.mxu0 0.0
        %3521 = vmatprep.subr.mxu0 0.0
        %3522 = vmatpush1.msra.mxu0 0.0
        %3523 = vmatprep.subr.mxu0 0.0
        %3524 = vmatpush1.msra.mxu0 0.0
        %3525 = vmatprep.subr.mxu0 0.0
        %3526 = vmatpush1.msra.mxu0 0.0
        %3527 = vmatprep.subr.mxu0 0.0
        %3528 = vmatpush1.msra.mxu0 0.0
        %3529 = vmatprep.subr.mxu0 0.0
        %3530 = vmatpush1.msra.mxu0 0.0
        %3531 = vmatprep.subr.mxu0 0.0
        %3532 = vmatpush1.msra.mxu0 0.0
        %3533 = vmatprep.subr.mxu0 0.0
        %3534 = vmatpush1.msra.mxu0 0.0
        %3535 = vmatprep.subr.mxu0 0.0
        %3536 = vmatpush1.msra.mxu0 0.0
        %3537 = vmatprep.subr.mxu0 0.0
        %3538 = vmatpush1.msra.mxu0 0.0
        %3539 = vmatprep.subr.mxu0 0.0
        %3540 = vmatpush1.msra.mxu0 0.0
        %3541 = vmatprep.subr.mxu0 0.0
        %3542 = vmatpush1.msra.mxu0 0.0
        %3543 = vmatprep.subr.mxu0 0.0
        %3544 = vmatpush1.msra.mxu0 0.0
        %3545 = vmatprep.subr.mxu0 0.0
        %3546 = vmatpush1.msra.mxu0 0.0
        %3547 = vmatprep.mubr.f32.mxu0 0.0
        %3548 = vmatmul.mubr.f32.gmra.mrb[0].mxu0 %v3481
        %v3549 = vpop.f32.mrb[0].mxu0
        %v3550 = vadd.f32 0.0, %v3549
        %v3551 = vpop.f32.mrb[0].mxu0
        %3552 = vdwg.mxu0
        %3554 = vrot.lane.b32.xlu0 %v3204, 8
        %v3555 = vpop.permute.xlu0 %3554
        %3558 = vrot.lane.b32.xlu0 %v3377, 16
        %v3559 = vpop.permute.xlu0 %3558
        %3562 = vrot.lane.b32.xlu0 %v3550, 24
        %v3563 = vpop.permute.xlu0 %3562
        %v3565 = vsel %vm1961, %v3029, %v3555
        %v3566 = vsel %vm2042, %v3565, %v3559
        %v3567 = vsel %vm2662, %v3566, %v3563
        %v3568 = vld [vmem:[#allocation36] sm:$0xff]
        %v3569 = vld [vmem:[#allocation36 + $0x8] sm:$0xff]
        %v3570 = vld [vmem:[#allocation36 + $0x10] sm:$0xff]
        %v3571 = vld [vmem:[#allocation36 + $0x18] sm:$0xff]
        %v3572 = vld [vmem:[#allocation38] sm:$0x1]
        %v3574 = vlaneseq
        %v3575 = vshrl.u32 %v3574, 7
        %v3576 = vsub.s32 0, %v3575
        %v3577 = vrot.slane %v3572, %v3576
        %v3580 = vsel %vm1882, %v3567, 0
        %3582 = vmatprep.subr.mxu0 0.0
        %3583 = vmatpush1.msra.mxu0 %v3568
        %3584 = vmatprep.subr.mxu0 0.0
        %3585 = vmatpush1.msra.mxu0 %v3569
        %3586 = vmatprep.subr.mxu0 0.0
        %3587 = vmatpush1.msra.mxu0 %v3570
        %3588 = vmatprep.subr.mxu0 0.0
        %3589 = vmatpush1.msra.mxu0 %v3571
        %3590 = vmatprep.subr.mxu0 0.0
        %3591 = vmatpush1.msra.mxu0 0.0
        %3592 = vmatprep.subr.mxu0 0.0
        %3593 = vmatpush1.msra.mxu0 0.0
        %3594 = vmatprep.subr.mxu0 0.0
        %3595 = vmatpush1.msra.mxu0 0.0
        %3596 = vmatprep.subr.mxu0 0.0
        %3597 = vmatpush1.msra.mxu0 0.0
        %3598 = vmatprep.subr.mxu0 0.0
        %3599 = vmatpush1.msra.mxu0 0.0
        %3600 = vmatprep.subr.mxu0 0.0
        %3601 = vmatpush1.msra.mxu0 0.0
        %3602 = vmatprep.subr.mxu0 0.0
        %3603 = vmatpush1.msra.mxu0 0.0
        %3604 = vmatprep.subr.mxu0 0.0
        %3605 = vmatpush1.msra.mxu0 0.0
        %3606 = vmatprep.subr.mxu0 0.0
        %3607 = vmatpush1.msra.mxu0 0.0
        %3608 = vmatprep.subr.mxu0 0.0
        %3609 = vmatpush1.msra.mxu0 0.0
        %3610 = vmatprep.subr.mxu0 0.0
        %3611 = vmatpush1.msra.mxu0 0.0
        %3612 = vmatprep.subr.mxu0 0.0
        %3613 = vmatpush1.msra.mxu0 0.0
        %3614 = vmatprep.subr.mxu0 0.0
        %3615 = vmatpush1.msra.mxu0 0.0
        %3616 = vmatprep.subr.mxu0 0.0
        %3617 = vmatpush1.msra.mxu0 0.0
        %3618 = vmatprep.subr.mxu0 0.0
        %3619 = vmatpush1.msra.mxu0 0.0
        %3620 = vmatprep.subr.mxu0 0.0
        %3621 = vmatpush1.msra.mxu0 0.0
        %3622 = vmatprep.subr.mxu0 0.0
        %3623 = vmatpush1.msra.mxu0 0.0
        %3624 = vmatprep.subr.mxu0 0.0
        %3625 = vmatpush1.msra.mxu0 0.0
        %3626 = vmatprep.subr.mxu0 0.0
        %3627 = vmatpush1.msra.mxu0 0.0
        %3628 = vmatprep.subr.mxu0 0.0
        %3629 = vmatpush1.msra.mxu0 0.0
        %3630 = vmatprep.subr.mxu0 0.0
        %3631 = vmatpush1.msra.mxu0 0.0
        %3632 = vmatprep.subr.mxu0 0.0
        %3633 = vmatpush1.msra.mxu0 0.0
        %3634 = vmatprep.subr.mxu0 0.0
        %3635 = vmatpush1.msra.mxu0 0.0
        %3636 = vmatprep.subr.mxu0 0.0
        %3637 = vmatpush1.msra.mxu0 0.0
        %3638 = vmatprep.subr.mxu0 0.0
        %3639 = vmatpush1.msra.mxu0 0.0
        %3640 = vmatprep.subr.mxu0 0.0
        %3641 = vmatpush1.msra.mxu0 0.0
        %3642 = vmatprep.subr.mxu0 0.0
        %3643 = vmatpush1.msra.mxu0 0.0
        %3644 = vmatprep.subr.mxu0 0.0
        %3645 = vmatpush1.msra.mxu0 0.0
        %3646 = vmatprep.mubr.f32.mxu0 0.0
        %3647 = vmatmul.mubr.f32.gmra.mrb[0].mxu0 %v3580
        %v3648 = vpop.f32.mrb[0].mxu0
        %v3649 = vadd.f32 %v3577, %v3648
        %v3650 = vpop.f32.mrb[0].mxu0
        %3651 = vdwg.mxu0
        %v3652 = vadd.f32 %v2778, %v3649
        %v3653 = vsel %vm1882, %v3652, 0.0
        %3654 = vadd.xlane.f32.xlu0 %v3653
        %v3655 = vpop.xlane.xlu0 %3654
        %v3656 = vmul.f32 %v3655, %v2752
        %v3657 = vsub.f32 %v3652, %v3656
        %v3658 = vmul.f32 %v3657, %v3657
        %v3659 = vsel %vm1882, %v3658, 0.0
        %3660 = vadd.xlane.f32.xlu0 %v3659
        %v3661 = vpop.xlane.xlu0 %3660
        %v3662 = vmul.f32 %v3661, %v2752
        %v3663 = vadd.f32 %v3662, 1e-05
        %v3664 = vrsqrt.pop %v3663
        %v3665 = vmul.f32 %v3657, %v3664
        %v3666 = vld [vmem:[#allocation48] sm:$0x1]
        %v3668 = vlaneseq
        %v3669 = vshrl.u32 %v3668, 7
        %v3670 = vsub.s32 0, %v3669
        %v3671 = vrot.slane %v3666, %v3670
        %v3673 = vmul.f32 %v3665, %v3671
        %v3674 = vld [vmem:[#allocation50] sm:$0x1]
        %v3676 = vlaneseq
        %v3677 = vshrl.u32 %v3676, 7
        %v3678 = vsub.s32 0, %v3677
        %v3679 = vrot.slane %v3674, %v3678
        %v3681 = vadd.f32 %v3673, %v3679
        %v3682 = vld [vmem:[#allocation39] sm:$0xff]
        %v3683 = vld [vmem:[#allocation39 + $0x8] sm:$0xff]
        %v3684 = vld [vmem:[#allocation39 + $0x10] sm:$0xff]
        %v3685 = vld [vmem:[#allocation39 + $0x18] sm:$0xff]
        %v3686 = vld [vmem:[#allocation41] sm:$0x1]
        %v3688 = vlaneseq
        %v3689 = vshrl.u32 %v3688, 7
        %v3690 = vsub.s32 0, %v3689
        %v3691 = vrot.slane %v3686, %v3690
        %v3694 = vsel %vm1882, %v3681, 0
        %3696 = vmatprep.subr.mxu0 0.0
        %3697 = vmatpush1.msra.mxu0 %v3682
        %3698 = vmatprep.subr.mxu0 0.0
        %3699 = vmatpush1.msra.mxu0 %v3683
        %3700 = vmatprep.subr.mxu0 0.0
        %3701 = vmatpush1.msra.mxu0 %v3684
        %3702 = vmatprep.subr.mxu0 0.0
        %3703 = vmatpush1.msra.mxu0 %v3685
        %3704 = vmatprep.subr.mxu0 0.0
        %3705 = vmatpush1.msra.mxu0 0.0
        %3706 = vmatprep.subr.mxu0 0.0
        %3707 = vmatpush1.msra.mxu0 0.0
        %3708 = vmatprep.subr.mxu0 0.0
        %3709 = vmatpush1.msra.mxu0 0.0
        %3710 = vmatprep.subr.mxu0 0.0
        %3711 = vmatpush1.msra.mxu0 0.0
        %3712 = vmatprep.subr.mxu0 0.0
        %3713 = vmatpush1.msra.mxu0 0.0
        %3714 = vmatprep.subr.mxu0 0.0
        %3715 = vmatpush1.msra.mxu0 0.0
        %3716 = vmatprep.subr.mxu0 0.0
        %3717 = vmatpush1.msra.mxu0 0.0
        %3718 = vmatprep.subr.mxu0 0.0
        %3719 = vmatpush1.msra.mxu0 0.0
        %3720 = vmatprep.subr.mxu0 0.0
        %3721 = vmatpush1.msra.mxu0 0.0
        %3722 = vmatprep.subr.mxu0 0.0
        %3723 = vmatpush1.msra.mxu0 0.0
        %3724 = vmatprep.subr.mxu0 0.0
        %3725 = vmatpush1.msra.mxu0 0.0
        %3726 = vmatprep.subr.mxu0 0.0
        %3727 = vmatpush1.msra.mxu0 0.0
        %3728 = vmatprep.subr.mxu0 0.0
        %3729 = vmatpush1.msra.mxu0 0.0
        %3730 = vmatprep.subr.mxu0 0.0
        %3731 = vmatpush1.msra.mxu0 0.0
        %3732 = vmatprep.subr.mxu0 0.0
        %3733 = vmatpush1.msra.mxu0 0.0
        %3734 = vmatprep.subr.mxu0 0.0
        %3735 = vmatpush1.msra.mxu0 0.0
        %3736 = vmatprep.subr.mxu0 0.0
        %3737 = vmatpush1.msra.mxu0 0.0
        %3738 = vmatprep.subr.mxu0 0.0
        %3739 = vmatpush1.msra.mxu0 0.0
        %3740 = vmatprep.subr.mxu0 0.0
        %3741 = vmatpush1.msra.mxu0 0.0
        %3742 = vmatprep.subr.mxu0 0.0
        %3743 = vmatpush1.msra.mxu0 0.0
        %3744 = vmatprep.subr.mxu0 0.0
        %3745 = vmatpush1.msra.mxu0 0.0
        %3746 = vmatprep.subr.mxu0 0.0
        %3747 = vmatpush1.msra.mxu0 0.0
        %3748 = vmatprep.subr.mxu0 0.0
        %3749 = vmatpush1.msra.mxu0 0.0
        %3750 = vmatprep.subr.mxu0 0.0
        %3751 = vmatpush1.msra.mxu0 0.0
        %3752 = vmatprep.subr.mxu0 0.0
        %3753 = vmatpush1.msra.mxu0 0.0
        %3754 = vmatprep.subr.mxu0 0.0
        %3755 = vmatpush1.msra.mxu0 0.0
        %3756 = vmatprep.subr.mxu0 0.0
        %3757 = vmatpush1.msra.mxu0 0.0
        %3758 = vmatprep.subr.mxu0 0.0
        %3759 = vmatpush1.msra.mxu0 0.0
        %3760 = vmatprep.mubr.f32.mxu0 0.0
        %3761 = vmatmul.mubr.f32.gmra.mrb[0].mxu0 %v3694
        %v3762 = vpop.f32.mrb[0].mxu0
        %v3763 = vadd.f32 %v3691, %v3762
        %v3764 = vpop.f32.mrb[0].mxu0
        %3765 = vdwg.mxu0
        %v3766 = vmax.f32 %v3763, 0.0
        %v3767 = vld [vmem:[#allocation42] sm:$0xff]
        %v3768 = vld [vmem:[#allocation42 + $0x8] sm:$0xff]
        %v3769 = vld [vmem:[#allocation42 + $0x10] sm:$0xff]
        %v3770 = vld [vmem:[#allocation42 + $0x18] sm:$0xff]
        %v3771 = vld [vmem:[#allocation42 + $0x20] sm:$0xff]
        %v3772 = vld [vmem:[#allocation42 + $0x28] sm:$0xff]
        %v3773 = vld [vmem:[#allocation42 + $0x30] sm:$0xff]
        %v3774 = vld [vmem:[#allocation42 + $0x38] sm:$0xff]
        %v3775 = vld [vmem:[#allocation44] sm:$0x1]
        %v3777 = vlaneseq
        %v3778 = vshrl.u32 %v3777, 7
        %v3779 = vsub.s32 0, %v3778
        %v3780 = vrot.slane %v3775, %v3779
        %vm3782 = vcmask 523264
        %v3784 = vsel %vm3782, %v3766, 0
        %3786 = vmatprep.subr.mxu0 0.0
        %3787 = vmatpush1.msra.mxu0 %v3767
        %3788 = vmatprep.subr.mxu0 0.0
        %3789 = vmatpush1.msra.mxu0 %v3768
        %3790 = vmatprep.subr.mxu0 0.0
        %3791 = vmatpush1.msra.mxu0 %v3769
        %3792 = vmatprep.subr.mxu0 0.0
        %3793 = vmatpush1.msra.mxu0 %v3770
        %3794 = vmatprep.subr.mxu0 0.0
        %3795 = vmatpush1.msra.mxu0 %v3771
        %3796 = vmatprep.subr.mxu0 0.0
        %3797 = vmatpush1.msra.mxu0 %v3772
        %3798 = vmatprep.subr.mxu0 0.0
        %3799 = vmatpush1.msra.mxu0 %v3773
        %3800 = vmatprep.subr.mxu0 0.0
        %3801 = vmatpush1.msra.mxu0 %v3774
        %3802 = vmatprep.subr.mxu0 0.0
        %3803 = vmatpush1.msra.mxu0 0.0
        %3804 = vmatprep.subr.mxu0 0.0
        %3805 = vmatpush1.msra.mxu0 0.0
        %3806 = vmatprep.subr.mxu0 0.0
        %3807 = vmatpush1.msra.mxu0 0.0
        %3808 = vmatprep.subr.mxu0 0.0
        %3809 = vmatpush1.msra.mxu0 0.0
        %3810 = vmatprep.subr.mxu0 0.0
        %3811 = vmatpush1.msra.mxu0 0.0
        %3812 = vmatprep.subr.mxu0 0.0
        %3813 = vmatpush1.msra.mxu0 0.0
        %3814 = vmatprep.subr.mxu0 0.0
        %3815 = vmatpush1.msra.mxu0 0.0
        %3816 = vmatprep.subr.mxu0 0.0
        %3817 = vmatpush1.msra.mxu0 0.0
        %3818 = vmatprep.subr.mxu0 0.0
        %3819 = vmatpush1.msra.mxu0 0.0
        %3820 = vmatprep.subr.mxu0 0.0
        %3821 = vmatpush1.msra.mxu0 0.0
        %3822 = vmatprep.subr.mxu0 0.0
        %3823 = vmatpush1.msra.mxu0 0.0
        %3824 = vmatprep.subr.mxu0 0.0
        %3825 = vmatpush1.msra.mxu0 0.0
        %3826 = vmatprep.subr.mxu0 0.0
        %3827 = vmatpush1.msra.mxu0 0.0
        %3828 = vmatprep.subr.mxu0 0.0
        %3829 = vmatpush1.msra.mxu0 0.0
        %3830 = vmatprep.subr.mxu0 0.0
        %3831 = vmatpush1.msra.mxu0 0.0
        %3832 = vmatprep.subr.mxu0 0.0
        %3833 = vmatpush1.msra.mxu0 0.0
        %3834 = vmatprep.subr.mxu0 0.0
        %3835 = vmatpush1.msra.mxu0 0.0
        %3836 = vmatprep.subr.mxu0 0.0
        %3837 = vmatpush1.msra.mxu0 0.0
        %3838 = vmatprep.subr.mxu0 0.0
        %3839 = vmatpush1.msra.mxu0 0.0
        %3840 = vmatprep.subr.mxu0 0.0
        %3841 = vmatpush1.msra.mxu0 0.0
        %3842 = vmatprep.subr.mxu0 0.0
        %3843 = vmatpush1.msra.mxu0 0.0
        %3844 = vmatprep.subr.mxu0 0.0
        %3845 = vmatpush1.msra.mxu0 0.0
        %3846 = vmatprep.subr.mxu0 0.0
        %3847 = vmatpush1.msra.mxu0 0.0
        %3848 = vmatprep.subr.mxu0 0.0
        %3849 = vmatpush1.msra.mxu0 0.0
        %3850 = vmatprep.mubr.f32.mxu0 0.0
        %3851 = vmatmul.mubr.f32.gmra.mrb[0].mxu0 %v3784
        %v3852 = vpop.f32.mrb[0].mxu0
        %v3853 = vadd.f32 %v3780, %v3852
        %v3854 = vpop.f32.mrb[0].mxu0
        %3855 = vdwg.mxu0
        %v3856 = vadd.f32 %v3681, %v3853
        %v3857 = vsel %vm1882, %v3856, 0.0
        %3858 = vadd.xlane.f32.xlu0 %v3857
        %v3859 = vpop.xlane.xlu0 %3858
        %v3860 = vmul.f32 %v3859, %v2752
        %v3861 = vsub.f32 %v3856, %v3860
        %v3862 = vmul.f32 %v3861, %v3861
        %v3863 = vsel %vm1882, %v3862, 0.0
        %3864 = vadd.xlane.f32.xlu0 %v3863
        %v3865 = vpop.xlane.xlu0 %3864
        %v3866 = vmul.f32 %v3865, %v2752
        %v3867 = vadd.f32 %v3866, 1e-05
        %v3868 = vrsqrt.pop %v3867
        %v3869 = vmul.f32 %v3861, %v3868
        %v3870 = vld [vmem:[#allocation51] sm:$0x1]
        %v3872 = vlaneseq
        %v3873 = vshrl.u32 %v3872, 7
        %v3874 = vsub.s32 0, %v3873
        %v3875 = vrot.slane %v3870, %v3874
        %v3877 = vmul.f32 %v3869, %v3875
        %v3878 = vld [vmem:[#allocation53] sm:$0x1]
        %v3880 = vlaneseq
        %v3881 = vshrl.u32 %v3880, 7
        %v3882 = vsub.s32 0, %v3881
        %v3883 = vrot.slane %v3878, %v3882
        %v3885 = vadd.f32 %v3877, %v3883
        %3886 = vst.msk [vmem:[%s1492] sm:$0xff] %vm1882, %v3885
        %s3887 = sand.u32 %s803, 1
        %s3888 = scalar_lea.sflag [#allocation8], %s3887
        %s3889 = sand.u32 %s803, 1
        %s3890 = smul.addr %s3889, 8
        %s3891 = scalar_lea.vmem [#allocation54], %s3890
        // Predicated region
        $region273: #{tpu_custom_call.1} parent=143 // pred_check
          %p3892 = pneg %p813
        $region274: #{tpu_custom_call.1} parent=143 // pred_check_branch
          %3894 = sbr.rel (%p3892) target = $region276
        $region275: #{tpu_custom_call.1} parent=143 // pred_region
          %s3896 = ssub.s32 128, 128
          %3897 = vsyncadd %s3888, %s3896
          %s3898 = smul.addr %s103, 2
          %s3899 = sadd.s32 %s104, %s3898
          %s3900 = smul.addr %s3899, 128
          %s3901 = scalar_lea.hbm %s63, %s3900
          %s3903 = sshll.u32 %s3891, 4
          %s3904 = int_to_ptr.vmem [resolvable:$true] %s3903
          %3906 = dma.vmem_to_hbm [thread:$0]  %s3904, 128, %s3901, %s3888
        $region276: #{tpu_custom_call.1} parent=143 // pred_fallthru
          _
      $region144: #{tpu_custom_call.1} parent=5 // pred_fallthru
        _
      %p3907 = scmp.le.s32.totalorder 2, %s94
      // Predicated region
      $region277: #{tpu_custom_call.1} parent=5 // pred_check
        %p3908 = pneg %p3907
      $region278: #{tpu_custom_call.1} parent=5 // pred_check_branch
        %3910 = sbr.rel (%p3908) target = $region280
      $region279: #{tpu_custom_call.1} parent=5 // pred_region
        %s3911 = ssub.s32 %s94, 2
        // Predicated region
        $region281: #{tpu_custom_call.1} parent=279 // pred_check
          %p3912 = pneg %p819
        $region282: #{tpu_custom_call.1} parent=279 // pred_check_branch
          %3914 = sbr.rel (%p3912) target = $region284
        $region283: #{tpu_custom_call.1} parent=279 // pred_region
          %s3915 = sand.u32 %s804, 1
          %s3916 = scalar_lea.sflag [#allocation8], %s3915
          %s3917 = sand.u32 %s804, 1
          %s3918 = smul.addr %s3917, 8
          %s3919 = scalar_lea.vmem [#allocation54], %s3918
          %3920 = dma.done %s3916, 128
        $region284: #{tpu_custom_call.1} parent=279 // pred_fallthru
          _
      $region280: #{tpu_custom_call.1} parent=5 // pred_fallthru
        _
    $region6: #{tpu_custom_call.1} parent=1 // loop_footer
      %s98 = sadd.s32 1, %s94
    $region7: #{tpu_custom_call.1} parent=1 // loop_footer_branch
      %93 = sbr.rel target = $region3
    $region8: #{tpu_custom_call.1} parent=1 // loop_exit
      _
    %3921 = vsyncpa [#allocation7], 1
    %s3922 = scalar_lea.sflag [#allocation7], 1
    %3923 = vsyncpa %s3922, 1
    %3924 = vsyncpa [#allocation10], 1
    %s3925 = scalar_lea.sflag [#allocation10], 1
    %3926 = vsyncpa %s3925, 1
    %3927 = vsyncpa [#allocation13], 1
    %s3928 = scalar_lea.sflag [#allocation13], 1
    %3929 = vsyncpa %s3928, 1
    %3930 = vsyncpa [#allocation16], 1
    %3931 = vsyncpa [#allocation19], 1
    %3932 = vsyncpa [#allocation22], 1
    %3933 = vsyncpa [#allocation25], 1
    %3934 = vsyncpa [#allocation28], 1
    %3935 = vsyncpa [#allocation31], 1
    %3936 = vsyncpa [#allocation34], 1
    %3937 = vsyncpa [#allocation37], 1
    %3938 = vsyncpa [#allocation40], 1
    %3939 = vsyncpa [#allocation43], 1
    %3940 = vsyncpa [#allocation46], 1
    %3941 = vsyncpa [#allocation49], 1
    %3942 = vsyncpa [#allocation52], 1
    %3943 = vsyncpa [#allocation8], 1
    %s3944 = scalar_lea.sflag [#allocation8], 1
    %3945 = vsyncpa %s3944, 1

</llo_original>
